<compile_context>
chip_gen: v7x
topology: tpu7x:2x2x1
jax: 0.10.0
libtpu: 0.0.40
codegen_flags: <defaults>
</compile_context>

<pallas_src>
import functools

import numpy as np
import jax
import jax.numpy as jnp
from jax.experimental import pallas as pl
from jax.experimental.pallas import tpu as pltpu

NUM_LAYERS = 9   # conv1, conv3, conv5, ..., conv17
C = 256          # channels fixed by the module


def _round_up(v, m):
    return (v + m - 1) // m * m


def _pick_layers_per_step():
    """3 fused conv layers per grid step on v7x (per-step overhead dominates
    there); 1 layer/step on v5e/v6e (weight-DMA bound; finer steps keep the
    pipeline fill short)."""
    try:
        kind = jax.devices()[0].device_kind.lower().replace(" ", "")
    except Exception:
        return 1
    if "v7" in kind or "tpu7" in kind:
        return 3
    return 1


def _make_resblock_kernel(WP, M, MARGIN, lps):
    """Fused Res_Block kernel; one grid step == `lps` conv layers."""
    last = NUM_LAYERS - 1
    # Flat row offset of each 3x3 tap in the padded image: d = (dy-1)*WP+(dx-1).
    taps = [(t, (t // 3 - 1) * WP + (t % 3 - 1)) for t in range(9)]

    def kernel(alpha_ref,            # SMEM (9,) f32        : PReLU slopes (last = 1.0)
               x_ref,                # VMEM (M, C) f32      : flat padded input (resident)
               w_ref,                # VMEM (lps, 9C, C) bf16: this step's weights
               mask_ref,             # VMEM (M, C) f32      : 1.0 at interior rows
               out_ref,              # VMEM (M, C) f32      : final output
               act_ref,              # scratch (M+2*MARGIN, C) bf16 : activation (+slack)
               skip_ref,             # scratch (M, C) bf16  : res1/res2/res3/res4 skip
               patch_ref):           # scratch (M, 9C) bf16 : im2col patch
        step = pl.program_id(0)

        for l in range(lps):
            lg = lps * step + l                      # global layer index

            @pl.when(lg == 0)
            def _init():
                act_ref[...] = jnp.zeros_like(act_ref)
                x_bf = x_ref[...].astype(jnp.bfloat16)
                act_ref[MARGIN:MARGIN + M, :] = x_bf
                skip_ref[...] = x_bf                 # res1, used at layer 1

            @pl.when((lg == 2) | (lg == 4) | (lg == 6))
            def _capture():                          # capture res2 / res3 / res4
                skip_ref[...] = act_ref[MARGIN:MARGIN + M, :]

            # im2col: 9 statically shifted copies of the activation,
            # concatenated along K into the bf16 (M, 9*C) patch buffer.
            for t, d in taps:
                patch_ref[:, t * C:(t + 1) * C] = \
                    act_ref[MARGIN + d:MARGIN + d + M, :]

            # The whole 3x3 conv as ONE (M, 9C) x (9C, C) MXU matmul; f32
            # accumulation stays in the MXU result path.
            acc = jnp.dot(patch_ref[...], w_ref[l],
                          preferred_element_type=jnp.float32)

            # PReLU; the last layer (conv17) uses slope 1.0 -> identity.
            a = alpha_ref[lg]
            y = jnp.where(acc >= 0.0, acc, acc * a)

            @pl.when(lg % 2 == 1)                    # layers 1,3,5,7: + block skip
            def _odd():
                ym = (y + skip_ref[...].astype(jnp.float32)) * mask_ref[...]
                act_ref[MARGIN:MARGIN + M, :] = ym.astype(jnp.bfloat16)

            @pl.when((lg % 2 == 0) & (lg != last))   # layers 0,2,4,6: plain store
            def _even():
                act_ref[MARGIN:MARGIN + M, :] = \
                    (y * mask_ref[...]).astype(jnp.bfloat16)

            @pl.when(lg == last)                     # layer 8: conv17 + res1 (= x)
            def _final():
                out_ref[...] = y + x_ref[...]

    return kernel


@functools.partial(jax.jit, static_argnames=("lps",))
def res_block_forward(x, w_stack, alphas, *, lps=1):
    """Pallas Res_Block forward.

    x:       (N, H, W, C) f32, NHWC
    w_stack: (9, 3, 3, C, C) float (HWIO per layer); cast to bf16 internally
    alphas:  (8,) f32 PReLU slopes (shared-parameter PReLU)
    lps:     conv layers fused per grid step (1 on v5e/v6e, 3 on v7x)
    """
    N, H, W, Cin = x.shape
    assert Cin == C, "Res_Block is fixed at 256 channels"
    assert NUM_LAYERS % lps == 0
    n_steps = NUM_LAYERS // lps

    HP, WP = H + 2, W + 2
    n_rows = HP * WP                        # flat padded rows per batch element
    S = _round_up(n_rows, 16)               # per-batch row stride (bf16 tile)
    M = N * S                               # matmul M dimension (batch folded)
    MARGIN = max(16, _round_up(WP + 1, 16)) # slack rows >= max tap reach (WP+1)

    # --- VMEM scaling guard (v7x: 64 MiB physical / 32 MiB default scoped). ---
    est_vmem = (
        3 * 2 * M * C * 4                          # x, mask, out (f32, ~2 bufs)
        + 2 * lps * 9 * C * C * 2                  # streamed weights, double-buffered
        + (M + 2 * MARGIN) * C * 2                 # act scratch (bf16)
        + M * C * 2 + M * 9 * C * 2)               # skip + im2col patch (bf16)
    if est_vmem > 24 * 1024 * 1024:
        # TODO(synk): for large N*H*W tile the M axis with halo rows and stream
        # activations instead of keeping them fully resident in VMEM.
        raise ValueError(
            f"Res_Block resident working set ~{est_vmem >> 20} MiB exceeds the "
            "safe VMEM budget; tile the M axis / stream activations.")

    # Flat zero-padded input layout: (M, C); zeros at halo and filler rows.
    x_pad = jnp.pad(x, ((0, 0), (1, 1), (1, 1), (0, 0)))
    x_flat = x_pad.reshape(N, n_rows, C)
    x_flat = jnp.pad(x_flat, ((0, 0), (0, S - n_rows), (0, 0))).reshape(M, C)

    # Interior-row mask, expanded to (M, C) so per-layer re-zeroing is a plain
    # elementwise f32 multiply (no lane broadcast, no per-layer convert).
    rr = np.arange(S)
    yy, xx = rr // WP, rr % WP
    valid = ((rr < n_rows) & (yy >= 1) & (yy <= H) & (xx >= 1) & (xx <= W))
    mask_rows = np.tile(valid.astype(np.float32), N).reshape(M, 1)
    mask = jnp.asarray(np.ascontiguousarray(np.broadcast_to(mask_rows, (M, C))))

    # PReLU slopes; append 1.0 for the final conv (identity activation).
    alphas9 = jnp.concatenate(
        [jnp.asarray(alphas, jnp.float32).reshape(-1),
         jnp.ones((1,), jnp.float32)])

    # Weights: per layer one (9*C, C) bf16 im2col block; `lps` layers per grid
    # step, streamed (double-buffered) from HBM.
    w_blk = w_stack.reshape(NUM_LAYERS, 9 * C, C).astype(jnp.bfloat16)
    w_blk = w_blk.reshape(n_steps, lps, 9 * C, C)

    kernel = _make_resblock_kernel(WP, M, MARGIN, lps)

    out_flat = pl.pallas_call(
        kernel,
        out_shape=jax.ShapeDtypeStruct((M, C), jnp.float32),
        grid_spec=pltpu.PrefetchScalarGridSpec(
            num_scalar_prefetch=1,                                  # alphas -> SMEM
            grid=(n_steps,),
            in_specs=[
                pl.BlockSpec((M, C), lambda s, a: (0, 0)),          # x (resident)
                pl.BlockSpec((None, lps, 9 * C, C),
                             lambda s, a: (s, 0, 0, 0)),            # weights (streamed)
                pl.BlockSpec((M, C), lambda s, a: (0, 0)),          # mask (resident)
            ],
            out_specs=pl.BlockSpec((M, C), lambda s, a: (0, 0)),    # resident, written once
            scratch_shapes=[
                pltpu.VMEM((M + 2 * MARGIN, C), jnp.bfloat16),      # activation (+slack)
                pltpu.VMEM((M, C), jnp.bfloat16),                   # skip (res1..res4)
                pltpu.VMEM((M, 9 * C), jnp.bfloat16),               # im2col patch
            ],
        ),
        compiler_params=pltpu.CompilerParams(
            dimension_semantics=("arbitrary",)),
    )(alphas9, x_flat, w_blk, mask)

    out = out_flat.reshape(N, S, C)[:, :n_rows, :].reshape(N, HP, WP, C)
    return out[:, 1:H + 1, 1:W + 1, :]


def res_block_reference(x, w_stack, alphas):
    """Pure-JAX reference (lax conv).  Uses the same bf16-rounded weights."""
    ws = [w_stack[i].astype(jnp.bfloat16).astype(jnp.float32)
          for i in range(NUM_LAYERS)]

    def conv(h, w):
        return jax.lax.conv_general_dilated(
            h, w, window_strides=(1, 1), padding="SAME",
            dimension_numbers=("NHWC", "HWIO", "NHWC"))

    def prelu(h, a):
        return jnp.where(h >= 0.0, h, a * h)

    res1 = x
    out = prelu(conv(prelu(conv(x, ws[0]), alphas[0]), ws[1]), alphas[1]) + res1
    res2 = out
    out = prelu(conv(prelu(conv(out, ws[2]), alphas[2]), ws[3]), alphas[3]) + res2
    res3 = out
    out = prelu(conv(prelu(conv(out, ws[4]), alphas[4]), ws[5]), alphas[5]) + res3
    res4 = out
    out = prelu(conv(prelu(conv(out, ws[6]), alphas[6]), ws[7]), alphas[7]) + res4
    out = conv(out, ws[8]) + res1
    return out


if __name__ == "__main__":
    # Channels fixed at 256 by the module; keep batch / spatial small.
    N, H, W = 2, 8, 8

    key = jax.random.PRNGKey(0)
    kx, kw = jax.random.split(key)

    x = jax.random.normal(kx, (N, H, W, C), dtype=jnp.float32)
    # 9 conv weights in HWIO, deterministic small init; PReLU slopes at the
    # PyTorch default 0.25.
    w_stack = 0.02 * jax.random.normal(kw, (NUM_LAYERS, 3, 3, C, C),
                                       dtype=jnp.float32)
    alphas = jnp.full((8,), 0.25, jnp.float32)

    lps = _pick_layers_per_step()
    out = jax.block_until_ready(res_block_forward(x, w_stack, alphas, lps=lps))
    ref = jax.block_until_ready(res_block_reference(x, w_stack, alphas))

    max_err = float(jnp.max(jnp.abs(out - ref)))
    scale = float(jnp.max(jnp.abs(ref))) + 1e-6
    assert out.shape == (N, H, W, C)
    assert max_err / scale < 2e-2, f"mismatch: rel err {max_err / scale}"

    print("KERNEL_OK")
</pallas_src>

<mosaic_0001>
module attributes {stable_mosaic.version = 11 : i64} {
  func.func @kernel(%arg0: i32, %arg1: memref<9xf32, #tpu.memory_space<smem>>, %arg2: memref<224x256xf32, #tpu.memory_space<vmem>>, %arg3: memref<1x1x2304x256xbf16, #tpu.memory_space<vmem>>, %arg4: memref<224x256xf32, #tpu.memory_space<vmem>>, %arg5: memref<224x256xf32, #tpu.memory_space<vmem>>, %arg6: memref<256x256xbf16, #tpu.memory_space<vmem>>, %arg7: memref<224x256xbf16, #tpu.memory_space<vmem>>, %arg8: memref<224x2304xbf16, #tpu.memory_space<vmem>>) attributes {dimension_semantics = [#tpu.dimension_semantics<arbitrary>], iteration_bounds = array<i64: 9>, scalar_prefetch = 1 : i64, scratch_operands = 3 : i64, tpu.core_type = #tpu.core_type<tc>, window_params = [{pipeline_mode = #tpu.pipeline_mode<synchronous>, transform_indices = @transform_0, window_bounds = array<i64: 224, 256>}, {transform_indices = @transform_1, window_bounds = array<i64: 1, 1, 2304, 256>}, {pipeline_mode = #tpu.pipeline_mode<synchronous>, transform_indices = @transform_2, window_bounds = array<i64: 224, 256>}, {pipeline_mode = #tpu.pipeline_mode<synchronous>, transform_indices = @transform_3, window_bounds = array<i64: 224, 256>}]} {
    %c1_i32 = arith.constant 1 : i32
    %0 = arith.muli %c1_i32, %arg0 : i32
    %c0_i32 = arith.constant 0 : i32
    %1 = arith.addi %0, %c0_i32 : i32
    %c0_i32_0 = arith.constant 0 : i32
    %2 = arith.cmpi eq, %1, %c0_i32_0 : i32
    %3 = arith.extui %2 : i1 to i32
    %c0_i32_1 = arith.constant 0 : i32
    %4 = arith.cmpi ne, %3, %c0_i32_1 : i32
    scf.if %4 {
      %cst_46 = arith.constant 0.000000e+00 : bf16
      %72 = vector.broadcast %cst_46 : bf16 to vector<256x256xbf16>
      %c0_47 = arith.constant 0 : index
      %c0_48 = arith.constant 0 : index
      %73 = vector.load %arg6[%c0_47, %c0_48] : memref<256x256xbf16, #tpu.memory_space<vmem>>, vector<256x256xbf16>
      tpu.vector_store %arg6[%c0_47, %c0_48], %72 {strides = array<i32>} : memref<256x256xbf16, #tpu.memory_space<vmem>>, vector<256x256xbf16>,
      %c0_49 = arith.constant 0 : index
      %c0_50 = arith.constant 0 : index
      %74 = vector.load %arg2[%c0_49, %c0_50] : memref<224x256xf32, #tpu.memory_space<vmem>>, vector<224x256xf32>
      %75 = arith.truncf %74 : vector<224x256xf32> to vector<224x256xbf16>
      %c16_51 = arith.constant 16 : index
      %c0_52 = arith.constant 0 : index
      %76 = vector.load %arg6[%c16_51, %c0_52] : memref<256x256xbf16, #tpu.memory_space<vmem>>, vector<224x256xbf16>
      tpu.vector_store %arg6[%c16_51, %c0_52], %75 {strides = array<i32>} : memref<256x256xbf16, #tpu.memory_space<vmem>>, vector<224x256xbf16>,
      %c0_53 = arith.constant 0 : index
      %c0_54 = arith.constant 0 : index
      %77 = vector.load %arg7[%c0_53, %c0_54] : memref<224x256xbf16, #tpu.memory_space<vmem>>, vector<224x256xbf16>
      tpu.vector_store %arg7[%c0_53, %c0_54], %75 {strides = array<i32>} : memref<224x256xbf16, #tpu.memory_space<vmem>>, vector<224x256xbf16>,
    } else {
    }
    %c2_i32 = arith.constant 2 : i32
    %5 = arith.cmpi eq, %1, %c2_i32 : i32
    %c4_i32 = arith.constant 4 : i32
    %6 = arith.cmpi eq, %1, %c4_i32 : i32
    %7 = arith.ori %5, %6 : i1
    %c6_i32 = arith.constant 6 : i32
    %8 = arith.cmpi eq, %1, %c6_i32 : i32
    %9 = arith.ori %7, %8 : i1
    %10 = arith.extui %9 : i1 to i32
    %c0_i32_2 = arith.constant 0 : i32
    %11 = arith.cmpi ne, %10, %c0_i32_2 : i32
    scf.if %11 {
      %c16_46 = arith.constant 16 : index
      %c0_47 = arith.constant 0 : index
      %72 = vector.load %arg6[%c16_46, %c0_47] : memref<256x256xbf16, #tpu.memory_space<vmem>>, vector<224x256xbf16>
      %c0_48 = arith.constant 0 : index
      %c0_49 = arith.constant 0 : index
      %73 = vector.load %arg7[%c0_48, %c0_49] : memref<224x256xbf16, #tpu.memory_space<vmem>>, vector<224x256xbf16>
      tpu.vector_store %arg7[%c0_48, %c0_49], %72 {strides = array<i32>} : memref<224x256xbf16, #tpu.memory_space<vmem>>, vector<224x256xbf16>,
    } else {
    }
    %c5 = arith.constant 5 : index
    %c0 = arith.constant 0 : index
    %12 = vector.load %arg6[%c5, %c0] : memref<256x256xbf16, #tpu.memory_space<vmem>>, vector<224x256xbf16>
    %c0_3 = arith.constant 0 : index
    %c0_4 = arith.constant 0 : index
    %13 = vector.load %arg8[%c0_3, %c0_4] : memref<224x2304xbf16, #tpu.memory_space<vmem>>, vector<224x256xbf16>
    tpu.vector_store %arg8[%c0_3, %c0_4], %12 {strides = array<i32>} : memref<224x2304xbf16, #tpu.memory_space<vmem>>, vector<224x256xbf16>,
    %c6 = arith.constant 6 : index
    %c0_5 = arith.constant 0 : index
    %14 = vector.load %arg6[%c6, %c0_5] : memref<256x256xbf16, #tpu.memory_space<vmem>>, vector<224x256xbf16>
    %c0_6 = arith.constant 0 : index
    %c256 = arith.constant 256 : index
    %15 = vector.load %arg8[%c0_6, %c256] : memref<224x2304xbf16, #tpu.memory_space<vmem>>, vector<224x256xbf16>
    tpu.vector_store %arg8[%c0_6, %c256], %14 {strides = array<i32>} : memref<224x2304xbf16, #tpu.memory_space<vmem>>, vector<224x256xbf16>,
    %c7 = arith.constant 7 : index
    %c0_7 = arith.constant 0 : index
    %16 = vector.load %arg6[%c7, %c0_7] : memref<256x256xbf16, #tpu.memory_space<vmem>>, vector<224x256xbf16>
    %c0_8 = arith.constant 0 : index
    %c512 = arith.constant 512 : index
    %17 = vector.load %arg8[%c0_8, %c512] : memref<224x2304xbf16, #tpu.memory_space<vmem>>, vector<224x256xbf16>
    tpu.vector_store %arg8[%c0_8, %c512], %16 {strides = array<i32>} : memref<224x2304xbf16, #tpu.memory_space<vmem>>, vector<224x256xbf16>,
    %c15 = arith.constant 15 : index
    %c0_9 = arith.constant 0 : index
    %18 = vector.load %arg6[%c15, %c0_9] : memref<256x256xbf16, #tpu.memory_space<vmem>>, vector<224x256xbf16>
    %c0_10 = arith.constant 0 : index
    %c768 = arith.constant 768 : index
    %19 = vector.load %arg8[%c0_10, %c768] : memref<224x2304xbf16, #tpu.memory_space<vmem>>, vector<224x256xbf16>
    tpu.vector_store %arg8[%c0_10, %c768], %18 {strides = array<i32>} : memref<224x2304xbf16, #tpu.memory_space<vmem>>, vector<224x256xbf16>,
    %c16 = arith.constant 16 : index
    %c0_11 = arith.constant 0 : index
    %20 = vector.load %arg6[%c16, %c0_11] : memref<256x256xbf16, #tpu.memory_space<vmem>>, vector<224x256xbf16>
    %c0_12 = arith.constant 0 : index
    %c1024 = arith.constant 1024 : index
    %21 = vector.load %arg8[%c0_12, %c1024] : memref<224x2304xbf16, #tpu.memory_space<vmem>>, vector<224x256xbf16>
    tpu.vector_store %arg8[%c0_12, %c1024], %20 {strides = array<i32>} : memref<224x2304xbf16, #tpu.memory_space<vmem>>, vector<224x256xbf16>,
    %c17 = arith.constant 17 : index
    %c0_13 = arith.constant 0 : index
    %22 = vector.load %arg6[%c17, %c0_13] : memref<256x256xbf16, #tpu.memory_space<vmem>>, vector<224x256xbf16>
    %c0_14 = arith.constant 0 : index
    %c1280 = arith.constant 1280 : index
    %23 = vector.load %arg8[%c0_14, %c1280] : memref<224x2304xbf16, #tpu.memory_space<vmem>>, vector<224x256xbf16>
    tpu.vector_store %arg8[%c0_14, %c1280], %22 {strides = array<i32>} : memref<224x2304xbf16, #tpu.memory_space<vmem>>, vector<224x256xbf16>,
    %c25 = arith.constant 25 : index
    %c0_15 = arith.constant 0 : index
    %24 = vector.load %arg6[%c25, %c0_15] : memref<256x256xbf16, #tpu.memory_space<vmem>>, vector<224x256xbf16>
    %c0_16 = arith.constant 0 : index
    %c1536 = arith.constant 1536 : index
    %25 = vector.load %arg8[%c0_16, %c1536] : memref<224x2304xbf16, #tpu.memory_space<vmem>>, vector<224x256xbf16>
    tpu.vector_store %arg8[%c0_16, %c1536], %24 {strides = array<i32>} : memref<224x2304xbf16, #tpu.memory_space<vmem>>, vector<224x256xbf16>,
    %c26 = arith.constant 26 : index
    %c0_17 = arith.constant 0 : index
    %26 = vector.load %arg6[%c26, %c0_17] : memref<256x256xbf16, #tpu.memory_space<vmem>>, vector<224x256xbf16>
    %c0_18 = arith.constant 0 : index
    %c1792 = arith.constant 1792 : index
    %27 = vector.load %arg8[%c0_18, %c1792] : memref<224x2304xbf16, #tpu.memory_space<vmem>>, vector<224x256xbf16>
    tpu.vector_store %arg8[%c0_18, %c1792], %26 {strides = array<i32>} : memref<224x2304xbf16, #tpu.memory_space<vmem>>, vector<224x256xbf16>,
    %c27 = arith.constant 27 : index
    %c0_19 = arith.constant 0 : index
    %28 = vector.load %arg6[%c27, %c0_19] : memref<256x256xbf16, #tpu.memory_space<vmem>>, vector<224x256xbf16>
    %c0_20 = arith.constant 0 : index
    %c2048 = arith.constant 2048 : index
    %29 = vector.load %arg8[%c0_20, %c2048] : memref<224x2304xbf16, #tpu.memory_space<vmem>>, vector<224x256xbf16>
    tpu.vector_store %arg8[%c0_20, %c2048], %28 {strides = array<i32>} : memref<224x2304xbf16, #tpu.memory_space<vmem>>, vector<224x256xbf16>,
    %c0_21 = arith.constant 0 : index
    %c0_22 = arith.constant 0 : index
    %30 = vector.load %arg8[%c0_21, %c0_22] : memref<224x2304xbf16, #tpu.memory_space<vmem>>, vector<224x2304xbf16>
    %c0_23 = arith.constant 0 : index
    %c0_24 = arith.constant 0 : index
    %c0_25 = arith.constant 0 : index
    %c0_26 = arith.constant 0 : index
    %31 = vector.load %arg3[%c0_23, %c0_24, %c0_25, %c0_26] : memref<1x1x2304x256xbf16, #tpu.memory_space<vmem>>, vector<1x1x2304x256xbf16>
    %32 = vector.shape_cast %31 : vector<1x1x2304x256xbf16> to vector<2304x256xbf16>
    %cst = arith.constant dense<0.000000e+00> : vector<224x256xf32>
    %33 = tpu.matmul %30, %32, %cst {dimension_numbers = #tpu.dot_dimension_numbers<[1], [0], [0], [1], [0, 0, 1, 1], [], []>} : vector<224x2304xbf16>, vector<2304x256xbf16>, vector<224x256xf32> -> vector<224x256xf32>
    %34 = arith.index_cast %1 : i32 to index
    %35 = memref.load %arg1[%34] : memref<9xf32, #tpu.memory_space<smem>>
    %cst_27 = arith.constant 0.000000e+00 : f32
    %36 = vector.broadcast %cst_27 : f32 to vector<224x256xf32>
    %37 = arith.cmpf oge, %33, %36 : vector<224x256xf32>
    %38 = vector.broadcast %35 : f32 to vector<224x256xf32>
    %39 = arith.mulf %33, %38 : vector<224x256xf32>
    %40 = arith.select %37, %33, %39 : vector<224x256xi1>, vector<224x256xf32>
    %c2_i32_28 = arith.constant 2 : i32
    %c0_i32_29 = arith.constant 0 : i32
    %41 = arith.cmpi eq, %c2_i32_28, %c0_i32_29 : i32
    %c1_i32_30 = arith.constant 1 : i32
    %42 = arith.select %41, %c1_i32_30, %c2_i32_28 : i32
    %43 = arith.remsi %1, %42 : i32
    %c0_i32_31 = arith.constant 0 : i32
    %44 = arith.cmpi ne, %43, %c0_i32_31 : i32
    %c0_i32_32 = arith.constant 0 : i32
    %45 = arith.cmpi slt, %43, %c0_i32_32 : i32
    %c0_i32_33 = arith.constant 0 : i32
    %46 = arith.cmpi slt, %42, %c0_i32_33 : i32
    %47 = arith.xori %45, %46 : i1
    %48 = arith.andi %47, %44 : i1
    %49 = arith.addi %43, %42 : i32
    %50 = arith.select %48, %49, %43 : i32
    %c1_i32_34 = arith.constant 1 : i32
    %51 = arith.cmpi eq, %50, %c1_i32_34 : i32
    %52 = arith.extui %51 : i1 to i32
    %c0_i32_35 = arith.constant 0 : i32
    %53 = arith.cmpi ne, %52, %c0_i32_35 : i32
    scf.if %53 {
      %c0_46 = arith.constant 0 : index
      %c0_47 = arith.constant 0 : index
      %72 = vector.load %arg7[%c0_46, %c0_47] : memref<224x256xbf16, #tpu.memory_space<vmem>>, vector<224x256xbf16>
      %73 = arith.extf %72 : vector<224x256xbf16> to vector<224x256xf32>
      %74 = arith.addf %40, %73 : vector<224x256xf32>
      %c0_48 = arith.constant 0 : index
      %c0_49 = arith.constant 0 : index
      %75 = vector.load %arg4[%c0_48, %c0_49] : memref<224x256xf32, #tpu.memory_space<vmem>>, vector<224x256xf32>
      %76 = arith.mulf %74, %75 : vector<224x256xf32>
      %77 = arith.truncf %76 : vector<224x256xf32> to vector<224x256xbf16>
      %c16_50 = arith.constant 16 : index
      %c0_51 = arith.constant 0 : index
      %78 = vector.load %arg6[%c16_50, %c0_51] : memref<256x256xbf16, #tpu.memory_space<vmem>>, vector<224x256xbf16>
      tpu.vector_store %arg6[%c16_50, %c0_51], %77 {strides = array<i32>} : memref<256x256xbf16, #tpu.memory_space<vmem>>, vector<224x256xbf16>,
    } else {
    }
    %c2_i32_36 = arith.constant 2 : i32
    %c0_i32_37 = arith.constant 0 : i32
    %54 = arith.cmpi eq, %c2_i32_36, %c0_i32_37 : i32
    %c1_i32_38 = arith.constant 1 : i32
    %55 = arith.select %54, %c1_i32_38, %c2_i32_36 : i32
    %56 = arith.remsi %1, %55 : i32
    %c0_i32_39 = arith.constant 0 : i32
    %57 = arith.cmpi ne, %56, %c0_i32_39 : i32
    %c0_i32_40 = arith.constant 0 : i32
    %58 = arith.cmpi slt, %56, %c0_i32_40 : i32
    %c0_i32_41 = arith.constant 0 : i32
    %59 = arith.cmpi slt, %55, %c0_i32_41 : i32
    %60 = arith.xori %58, %59 : i1
    %61 = arith.andi %60, %57 : i1
    %62 = arith.addi %56, %55 : i32
    %63 = arith.select %61, %62, %56 : i32
    %c0_i32_42 = arith.constant 0 : i32
    %64 = arith.cmpi eq, %63, %c0_i32_42 : i32
    %c8_i32 = arith.constant 8 : i32
    %65 = arith.cmpi ne, %1, %c8_i32 : i32
    %66 = arith.andi %64, %65 : i1
    %67 = arith.extui %66 : i1 to i32
    %c0_i32_43 = arith.constant 0 : i32
    %68 = arith.cmpi ne, %67, %c0_i32_43 : i32
    scf.if %68 {
      %c0_46 = arith.constant 0 : index
      %c0_47 = arith.constant 0 : index
      %72 = vector.load %arg4[%c0_46, %c0_47] : memref<224x256xf32, #tpu.memory_space<vmem>>, vector<224x256xf32>
      %73 = arith.mulf %40, %72 : vector<224x256xf32>
      %74 = arith.truncf %73 : vector<224x256xf32> to vector<224x256xbf16>
      %c16_48 = arith.constant 16 : index
      %c0_49 = arith.constant 0 : index
      %75 = vector.load %arg6[%c16_48, %c0_49] : memref<256x256xbf16, #tpu.memory_space<vmem>>, vector<224x256xbf16>
      tpu.vector_store %arg6[%c16_48, %c0_49], %74 {strides = array<i32>} : memref<256x256xbf16, #tpu.memory_space<vmem>>, vector<224x256xbf16>,
    } else {
    }
    %c8_i32_44 = arith.constant 8 : i32
    %69 = arith.cmpi eq, %1, %c8_i32_44 : i32
    %70 = arith.extui %69 : i1 to i32
    %c0_i32_45 = arith.constant 0 : i32
    %71 = arith.cmpi ne, %70, %c0_i32_45 : i32
    scf.if %71 {
      %c0_46 = arith.constant 0 : index
      %c0_47 = arith.constant 0 : index
      %72 = vector.load %arg2[%c0_46, %c0_47] : memref<224x256xf32, #tpu.memory_space<vmem>>, vector<224x256xf32>
      %73 = arith.addf %40, %72 : vector<224x256xf32>
      %c0_48 = arith.constant 0 : index
      %c0_49 = arith.constant 0 : index
      %74 = vector.load %arg5[%c0_48, %c0_49] : memref<224x256xf32, #tpu.memory_space<vmem>>, vector<224x256xf32>
      tpu.vector_store %arg5[%c0_48, %c0_49], %73 {strides = array<i32>} : memref<224x256xf32, #tpu.memory_space<vmem>>, vector<224x256xf32>,
    } else {
    }
    return
  }
  func.func @transform_0(%arg0: i32, %arg1: memref<9xf32, #tpu.memory_space<smem>>) -> (i32, i32) {
    %c0_i32 = arith.constant 0 : i32
    %c0_i32_0 = arith.constant 0 : i32
    %c0_i32_1 = arith.constant 0 : i32
    return %c0_i32, %c0_i32_0 : i32, i32
  }
  func.func @transform_1(%arg0: i32, %arg1: memref<9xf32, #tpu.memory_space<smem>>) -> (i32, i32, i32, i32) {
    %c0_i32 = arith.constant 0 : i32
    %c0_i32_0 = arith.constant 0 : i32
    %c0_i32_1 = arith.constant 0 : i32
    %c0_i32_2 = arith.constant 0 : i32
    return %arg0, %c0_i32, %c0_i32_0, %c0_i32_1 : i32, i32, i32, i32
  }
  func.func @transform_2(%arg0: i32, %arg1: memref<9xf32, #tpu.memory_space<smem>>) -> (i32, i32) {
    %c0_i32 = arith.constant 0 : i32
    %c0_i32_0 = arith.constant 0 : i32
    %c0_i32_1 = arith.constant 0 : i32
    return %c0_i32, %c0_i32_0 : i32, i32
  }
  func.func @transform_3(%arg0: i32, %arg1: memref<9xf32, #tpu.memory_space<smem>>) -> (i32, i32) {
    %c0_i32 = arith.constant 0 : i32
    %c0_i32_0 = arith.constant 0 : i32
    %c0_i32_1 = arith.constant 0 : i32
    return %c0_i32, %c0_i32_0 : i32, i32
  }
}

</mosaic_0001>

<llo_original>
// kernel: res_block_forward.1
$region0: #{res_block_forward.1}
  #allocation0 [shape = 'u32[]', space=smem, size = 0x4, offset = 0x4, fixed_abs, tag = 'smem constant byte address 0x4 - core index']
  #allocation1 [shape = 'u32[144,128]{1,0:T(1,128)}', space=vmem, size = 0x12000, scoped, tag = 'internal scratch']
  #allocation2 [shape = 'bf16[256,256]{1,0:T(16,128)(2,1)}', space=vmem, size = 0x20000, scoped, tag = 'scratch operand']
  #allocation3 [shape = 'bf16[224,256]{1,0:T(16,128)(2,1)}', space=vmem, size = 0x1c000, scoped, tag = 'scratch operand']
  #allocation4 [shape = 'bf16[224,2304]{1,0:T(16,128)(2,1)}', space=vmem, size = 0xfc000, scoped, tag = 'scratch operand']
  #allocation5 [shape = 's32[1]{0}', space=sflag, size = 0x4, scoped, tag = 'scoped memory for res_block_forward.1']
  #allocation6 [shape = 'u8[512]{0}', space=smem, size = 0x200, scoped, tag = 'prefetched SMEM operand 0']
  %s0 = inlined_call_operand.vmem [shape: f32[9], index: 0, kind: input, shape index: {}]
  %s1 = inlined_call_operand.vmem [shape: f32[224,256], index: 1, kind: input, shape index: {}]
  %s2 = inlined_call_operand.vmem [shape: bf16[9,1,2304,256], index: 2, kind: input, shape index: {}]
  %s3 = inlined_call_operand.vmem [shape: f32[224,256], index: 3, kind: input, shape index: {}]
  %s4 = inlined_call_operand.vmem [shape: f32[224,256], index: 4, kind: output, shape index: {}]
  %s5 = sld [smem:[#allocation0]]
  $region65: #{res_block_forward.1} parent=0
    _
  %s7 = ssub.s32 1, %s5
  %s8 = scalar_select 0, %s7, %s5
  %s9 = sshll.u32 %s0, 4
  %s10 = int_to_ptr.vmem [resolvable:$true] %s9
  %12 = dma.vmem_to_smem %s10, 16, [#allocation6], [#allocation5]
  %13 = dma.done [#allocation5], 16
  %14 = sfence
  loop: start=0, step=1, limit=11
  $region2: #{res_block_forward.1} parent=0 // loop_pre_header
    _
  $region3: #{res_block_forward.1} parent=0 // loop_header
    %s16 = sphi 0, %s20
    %p17 = scmp.ge.s32.totalorder %s16, 11
    %s24 = sphi 0, %s24
    %s26 = sphi 0, %s24
    %s27 = sphi 0, %s26
    %s41 = sphi 0, %s27
    %s47 = sphi 0, %s49
    %s50 = sphi 0, %s47
    %s51 = sphi 0, %s50
    %s67 = sphi 0, %s51
    %s71 = sphi 0, %s71
    %s73 = sphi 0, %s71
    %s74 = sphi 0, %s73
    %s88 = sphi 0, %s74
    %s92 = sphi 0, %s92
    %s94 = sphi 0, %s92
    %s95 = sphi 0, %s94
    %s109 = sphi 0, %s95
  $region4: #{res_block_forward.1} parent=0 // loop_header_branch
    %19 = sbr.rel (%p17) target = $region8
  $region5: #{res_block_forward.1} parent=0 // loop_body
    %s21 = ssub.s32 %s16, 1
    %s22 = ssub.s32 %s16, 2
    %s23 = sadd.s32 %s16, 1
    %s25 = sadd.s32 %s24, 1
    %p28 = scmp.eq.s32.totalorder %s16, 8
    %p29 = scmp.ne.s32.totalorder %s24, %s26
    %p30 = scmp.eq.s32.totalorder %s16, 0
    %p31 = por %p29, %p30
    %p32 = scmp.ne.s32.totalorder %s24, %s26
    %p33 = scmp.eq.s32.totalorder %s21, 8
    %p34 = por %p32, %p33
    %p35 = scmp.ne.s32.totalorder %s26, %s27
    %p36 = scmp.eq.s32.totalorder %s21, 0
    %p37 = por %p35, %p36
    %p38 = scmp.ne.s32.totalorder %s26, %s27
    %p39 = scmp.eq.s32.totalorder %s22, 8
    %p40 = por %p38, %p39
    %p42 = scmp.ne.s32.totalorder %s27, %s41
    %p43 = scmp.eq.s32.totalorder %s22, 0
    %p44 = por %p42, %p43
    %s45 = ssub.s32 %s16, %s23
    %p46 = scmp.eq.s32.totalorder %s45, 0
    %s48 = sadd.s32 %s47, 1
    %s49 = scalar_select %p46, %s47, %s48
    %p52 = pneg %p46
    %p53 = scmp.eq.s32.totalorder %s16, 8
    %p54 = por %p52, %p53
    %p55 = scmp.ne.s32.totalorder %s47, %s50
    %p56 = scmp.eq.s32.totalorder %s16, 0
    %p57 = por %p55, %p56
    %p58 = scmp.ne.s32.totalorder %s47, %s50
    %p59 = scmp.eq.s32.totalorder %s21, 8
    %p60 = por %p58, %p59
    %p61 = scmp.ne.s32.totalorder %s50, %s51
    %p62 = scmp.eq.s32.totalorder %s21, 0
    %p63 = por %p61, %p62
    %p64 = scmp.ne.s32.totalorder %s50, %s51
    %p65 = scmp.eq.s32.totalorder %s22, 8
    %p66 = por %p64, %p65
    %p68 = scmp.ne.s32.totalorder %s51, %s67
    %p69 = scmp.eq.s32.totalorder %s22, 0
    %p70 = por %p68, %p69
    %s72 = sadd.s32 %s71, 1
    %p75 = scmp.eq.s32.totalorder %s16, 8
    %p76 = scmp.ne.s32.totalorder %s71, %s73
    %p77 = scmp.eq.s32.totalorder %s16, 0
    %p78 = por %p76, %p77
    %p79 = scmp.ne.s32.totalorder %s71, %s73
    %p80 = scmp.eq.s32.totalorder %s21, 8
    %p81 = por %p79, %p80
    %p82 = scmp.ne.s32.totalorder %s73, %s74
    %p83 = scmp.eq.s32.totalorder %s21, 0
    %p84 = por %p82, %p83
    %p85 = scmp.ne.s32.totalorder %s73, %s74
    %p86 = scmp.eq.s32.totalorder %s22, 8
    %p87 = por %p85, %p86
    %p89 = scmp.ne.s32.totalorder %s74, %s88
    %p90 = scmp.eq.s32.totalorder %s22, 0
    %p91 = por %p89, %p90
    %s93 = sadd.s32 %s92, 1
    %p96 = scmp.eq.s32.totalorder %s16, 8
    %p97 = scmp.ne.s32.totalorder %s92, %s94
    %p98 = scmp.eq.s32.totalorder %s16, 0
    %p99 = por %p97, %p98
    %p100 = scmp.ne.s32.totalorder %s92, %s94
    %p101 = scmp.eq.s32.totalorder %s21, 8
    %p102 = por %p100, %p101
    %p103 = scmp.ne.s32.totalorder %s94, %s95
    %p104 = scmp.eq.s32.totalorder %s21, 0
    %p105 = por %p103, %p104
    %p106 = scmp.ne.s32.totalorder %s94, %s95
    %p107 = scmp.eq.s32.totalorder %s22, 8
    %p108 = por %p106, %p107
    %p110 = scmp.ne.s32.totalorder %s95, %s109
    %p111 = scmp.eq.s32.totalorder %s22, 0
    %p112 = por %p110, %p111
    %p113 = scmp.le.s32.totalorder 1, %s16
    %p114 = scmp.lt.s32.totalorder %s16, 10
    %p115 = pnand %p113, %p114
    %p116 = pneg %p115
    // Predicated region
    $region9: #{res_block_forward.1} parent=5 // pred_check
      _
    $region10: #{res_block_forward.1} parent=5 // pred_check_branch
      %118 = sbr.rel (%p115) target = $region12
    $region11: #{res_block_forward.1} parent=5 // pred_region
      %s119 = ssub.s32 %s16, 1
      // Predicated region
      $region13: #{res_block_forward.1} parent=11 // pred_check
        %p120 = pneg %p37
      $region14: #{res_block_forward.1} parent=11 // pred_check_branch
        %122 = sbr.rel (%p120) target = $region16
      $region15: #{res_block_forward.1} parent=11 // pred_region
        _
      $region16: #{res_block_forward.1} parent=11 // pred_fallthru
        _
      // Predicated region
      $region17: #{res_block_forward.1} parent=11 // pred_check
        %p123 = pneg %p84
      $region18: #{res_block_forward.1} parent=11 // pred_check_branch
        %125 = sbr.rel (%p123) target = $region20
      $region19: #{res_block_forward.1} parent=11 // pred_region
        _
      $region20: #{res_block_forward.1} parent=11 // pred_fallthru
        _
    $region12: #{res_block_forward.1} parent=5 // pred_fallthru
      _
    %p126 = scmp.lt.s32.totalorder %s16, 9
    // Predicated region
    $region21: #{res_block_forward.1} parent=5 // pred_check
      %p127 = pneg %p126
    $region22: #{res_block_forward.1} parent=5 // pred_check_branch
      %129 = sbr.rel (%p127) target = $region24
    $region23: #{res_block_forward.1} parent=5 // pred_region
      // Predicated region
      $region25: #{res_block_forward.1} parent=23 // pred_check
        %p130 = pneg %p57
      $region26: #{res_block_forward.1} parent=23 // pred_check_branch
        %132 = sbr.rel (%p130) target = $region28
      $region27: #{res_block_forward.1} parent=23 // pred_region
        %p133 = scmp.lt.s32.totalorder %s16, 8
        %s134 = scalar_select %p133, %s16, 8
        %s135 = smul.addr %s134, 576
        %s136 = smul.addr %s135, 4
        %s137 = scalar_lea.vmem %s2, %s136
      $region28: #{res_block_forward.1} parent=23 // pred_fallthru
        _
    $region24: #{res_block_forward.1} parent=5 // pred_fallthru
      _
    %p138 = scmp.le.s32.totalorder 1, %s16
    %p139 = scmp.lt.s32.totalorder %s16, 10
    %p140 = pnand %p138, %p139
    %p141 = pneg %p140
    // Predicated region
    $region29: #{res_block_forward.1} parent=5 // pred_check
      _
    $region30: #{res_block_forward.1} parent=5 // pred_check_branch
      %143 = sbr.rel (%p140) target = $region32
    $region31: #{res_block_forward.1} parent=5 // pred_region
      %s144 = ssub.s32 %s16, 1
      %p145 = pneg %p37
      %p146 = pneg %p34
      %p147 = scmp.lt.s32.totalorder %s21, 8
      %s148 = scalar_select %p147, %s21, 8
      %s149 = smul.addr %s148, 576
      %s150 = smul.addr %s149, 4
      %s151 = scalar_lea.vmem %s2, %s150
      %p152 = pneg %p63
      %p153 = pneg %p60
      %p154 = pneg %p84
      %p155 = pneg %p81
      %p156 = pneg %p105
      %p157 = pneg %p102
      %p158 = scmp.lt.s32.totalorder %s21, 8
      %s159 = scalar_select %p158, %s21, 8
      %s160 = smul.addr %s159, 576
      %s161 = smul.addr %s160, 4
      %s162 = scalar_lea.vmem %s2, %s161
      %p164 = scmp.eq.s32.totalorder %s21, 0
      // Predicated region
      $region33: #{res_block_forward.1} parent=31 // pred_check
        %p165 = pneg %p164
      $region34: #{res_block_forward.1} parent=31 // pred_check_branch
        %167 = sbr.rel (%p165) target = $region36
      $region35: #{res_block_forward.1} parent=31 // pred_region
        %168 = vst [vmem:[#allocation2] sm:$0xff] 0
        %169 = vst [vmem:[#allocation2 + $0x8] sm:$0xff] 0
        %170 = vst [vmem:[#allocation2 + $0x10] sm:$0xff] 0
        %171 = vst [vmem:[#allocation2 + $0x18] sm:$0xff] 0
        %172 = vst [vmem:[#allocation2 + $0x20] sm:$0xff] 0
        %173 = vst [vmem:[#allocation2 + $0x28] sm:$0xff] 0
        %174 = vst [vmem:[#allocation2 + $0x30] sm:$0xff] 0
        %175 = vst [vmem:[#allocation2 + $0x38] sm:$0xff] 0
        %176 = vst [vmem:[#allocation2 + $0x40] sm:$0xff] 0
        %177 = vst [vmem:[#allocation2 + $0x48] sm:$0xff] 0
        %178 = vst [vmem:[#allocation2 + $0x50] sm:$0xff] 0
        %179 = vst [vmem:[#allocation2 + $0x58] sm:$0xff] 0
        %180 = vst [vmem:[#allocation2 + $0x60] sm:$0xff] 0
        %181 = vst [vmem:[#allocation2 + $0x68] sm:$0xff] 0
        %182 = vst [vmem:[#allocation2 + $0x70] sm:$0xff] 0
        %183 = vst [vmem:[#allocation2 + $0x78] sm:$0xff] 0
        %184 = vst [vmem:[#allocation2 + $0x80] sm:$0xff] 0
        %185 = vst [vmem:[#allocation2 + $0x88] sm:$0xff] 0
        %186 = vst [vmem:[#allocation2 + $0x90] sm:$0xff] 0
        %187 = vst [vmem:[#allocation2 + $0x98] sm:$0xff] 0
        %188 = vst [vmem:[#allocation2 + $0xa0] sm:$0xff] 0
        %189 = vst [vmem:[#allocation2 + $0xa8] sm:$0xff] 0
        %190 = vst [vmem:[#allocation2 + $0xb0] sm:$0xff] 0
        %191 = vst [vmem:[#allocation2 + $0xb8] sm:$0xff] 0
        %192 = vst [vmem:[#allocation2 + $0xc0] sm:$0xff] 0
        %193 = vst [vmem:[#allocation2 + $0xc8] sm:$0xff] 0
        %194 = vst [vmem:[#allocation2 + $0xd0] sm:$0xff] 0
        %195 = vst [vmem:[#allocation2 + $0xd8] sm:$0xff] 0
        %196 = vst [vmem:[#allocation2 + $0xe0] sm:$0xff] 0
        %197 = vst [vmem:[#allocation2 + $0xe8] sm:$0xff] 0
        %198 = vst [vmem:[#allocation2 + $0xf0] sm:$0xff] 0
        %199 = vst [vmem:[#allocation2 + $0xf8] sm:$0xff] 0
        %v200 = vld [vmem:[%s1] sm:$0xff]
        %v201 = vld [vmem:[%s1 + $0x8] sm:$0xff]
        %v202 = vld [vmem:[%s1 + $0x10] sm:$0xff]
        %v203 = vld [vmem:[%s1 + $0x18] sm:$0xff]
        %v204 = vld [vmem:[%s1 + $0x20] sm:$0xff]
        %v205 = vld [vmem:[%s1 + $0x28] sm:$0xff]
        %v206 = vld [vmem:[%s1 + $0x30] sm:$0xff]
        %v207 = vld [vmem:[%s1 + $0x38] sm:$0xff]
        %v208 = vld [vmem:[%s1 + $0x40] sm:$0xff]
        %v209 = vld [vmem:[%s1 + $0x48] sm:$0xff]
        %v210 = vld [vmem:[%s1 + $0x50] sm:$0xff]
        %v211 = vld [vmem:[%s1 + $0x58] sm:$0xff]
        %v212 = vld [vmem:[%s1 + $0x60] sm:$0xff]
        %v213 = vld [vmem:[%s1 + $0x68] sm:$0xff]
        %v214 = vld [vmem:[%s1 + $0x70] sm:$0xff]
        %v215 = vld [vmem:[%s1 + $0x78] sm:$0xff]
        %v216 = vld [vmem:[%s1 + $0x80] sm:$0xff]
        %v217 = vld [vmem:[%s1 + $0x88] sm:$0xff]
        %v218 = vld [vmem:[%s1 + $0x90] sm:$0xff]
        %v219 = vld [vmem:[%s1 + $0x98] sm:$0xff]
        %v220 = vld [vmem:[%s1 + $0xa0] sm:$0xff]
        %v221 = vld [vmem:[%s1 + $0xa8] sm:$0xff]
        %v222 = vld [vmem:[%s1 + $0xb0] sm:$0xff]
        %v223 = vld [vmem:[%s1 + $0xb8] sm:$0xff]
        %v224 = vld [vmem:[%s1 + $0xc0] sm:$0xff]
        %v225 = vld [vmem:[%s1 + $0xc8] sm:$0xff]
        %v226 = vld [vmem:[%s1 + $0xd0] sm:$0xff]
        %v227 = vld [vmem:[%s1 + $0xd8] sm:$0xff]
        %v228 = vld [vmem:[%s1 + $0xe0] sm:$0xff]
        %v229 = vld [vmem:[%s1 + $0xe8] sm:$0xff]
        %v230 = vld [vmem:[%s1 + $0xf0] sm:$0xff]
        %v231 = vld [vmem:[%s1 + $0xf8] sm:$0xff]
        %v232 = vld [vmem:[%s1 + $0x100] sm:$0xff]
        %v233 = vld [vmem:[%s1 + $0x108] sm:$0xff]
        %v234 = vld [vmem:[%s1 + $0x110] sm:$0xff]
        %v235 = vld [vmem:[%s1 + $0x118] sm:$0xff]
        %v236 = vld [vmem:[%s1 + $0x120] sm:$0xff]
        %v237 = vld [vmem:[%s1 + $0x128] sm:$0xff]
        %v238 = vld [vmem:[%s1 + $0x130] sm:$0xff]
        %v239 = vld [vmem:[%s1 + $0x138] sm:$0xff]
        %v240 = vld [vmem:[%s1 + $0x140] sm:$0xff]
        %v241 = vld [vmem:[%s1 + $0x148] sm:$0xff]
        %v242 = vld [vmem:[%s1 + $0x150] sm:$0xff]
        %v243 = vld [vmem:[%s1 + $0x158] sm:$0xff]
        %v244 = vld [vmem:[%s1 + $0x160] sm:$0xff]
        %v245 = vld [vmem:[%s1 + $0x168] sm:$0xff]
        %v246 = vld [vmem:[%s1 + $0x170] sm:$0xff]
        %v247 = vld [vmem:[%s1 + $0x178] sm:$0xff]
        %v248 = vld [vmem:[%s1 + $0x180] sm:$0xff]
        %v249 = vld [vmem:[%s1 + $0x188] sm:$0xff]
        %v250 = vld [vmem:[%s1 + $0x190] sm:$0xff]
        %v251 = vld [vmem:[%s1 + $0x198] sm:$0xff]
        %v252 = vld [vmem:[%s1 + $0x1a0] sm:$0xff]
        %v253 = vld [vmem:[%s1 + $0x1a8] sm:$0xff]
        %v254 = vld [vmem:[%s1 + $0x1b0] sm:$0xff]
        %v255 = vld [vmem:[%s1 + $0x1b8] sm:$0xff]
        %v256 = vpack.c.bf16 %v202, %v200
        %v257 = vpack.c.bf16 %v203, %v201
        %v258 = vpack.c.bf16 %v206, %v204
        %v259 = vpack.c.bf16 %v207, %v205
        %v260 = vpack.c.bf16 %v210, %v208
        %v261 = vpack.c.bf16 %v211, %v209
        %v262 = vpack.c.bf16 %v214, %v212
        %v263 = vpack.c.bf16 %v215, %v213
        %v264 = vpack.c.bf16 %v218, %v216
        %v265 = vpack.c.bf16 %v219, %v217
        %v266 = vpack.c.bf16 %v222, %v220
        %v267 = vpack.c.bf16 %v223, %v221
        %v268 = vpack.c.bf16 %v226, %v224
        %v269 = vpack.c.bf16 %v227, %v225
        %v270 = vpack.c.bf16 %v230, %v228
        %v271 = vpack.c.bf16 %v231, %v229
        %v272 = vpack.c.bf16 %v234, %v232
        %v273 = vpack.c.bf16 %v235, %v233
        %v274 = vpack.c.bf16 %v238, %v236
        %v275 = vpack.c.bf16 %v239, %v237
        %v276 = vpack.c.bf16 %v242, %v240
        %v277 = vpack.c.bf16 %v243, %v241
        %v278 = vpack.c.bf16 %v246, %v244
        %v279 = vpack.c.bf16 %v247, %v245
        %v280 = vpack.c.bf16 %v250, %v248
        %v281 = vpack.c.bf16 %v251, %v249
        %v282 = vpack.c.bf16 %v254, %v252
        %v283 = vpack.c.bf16 %v255, %v253
        %284 = vst [vmem:[#allocation2 + $0x10] sm:$0xff] %v256
        %285 = vst [vmem:[#allocation2 + $0x18] sm:$0xff] %v257
        %286 = vst [vmem:[#allocation2 + $0x20] sm:$0xff] %v258
        %287 = vst [vmem:[#allocation2 + $0x28] sm:$0xff] %v259
        %288 = vst [vmem:[#allocation2 + $0x30] sm:$0xff] %v260
        %289 = vst [vmem:[#allocation2 + $0x38] sm:$0xff] %v261
        %290 = vst [vmem:[#allocation2 + $0x40] sm:$0xff] %v262
        %291 = vst [vmem:[#allocation2 + $0x48] sm:$0xff] %v263
        %292 = vst [vmem:[#allocation2 + $0x50] sm:$0xff] %v264
        %293 = vst [vmem:[#allocation2 + $0x58] sm:$0xff] %v265
        %294 = vst [vmem:[#allocation2 + $0x60] sm:$0xff] %v266
        %295 = vst [vmem:[#allocation2 + $0x68] sm:$0xff] %v267
        %296 = vst [vmem:[#allocation2 + $0x70] sm:$0xff] %v268
        %297 = vst [vmem:[#allocation2 + $0x78] sm:$0xff] %v269
        %298 = vst [vmem:[#allocation2 + $0x80] sm:$0xff] %v270
        %299 = vst [vmem:[#allocation2 + $0x88] sm:$0xff] %v271
        %300 = vst [vmem:[#allocation2 + $0x90] sm:$0xff] %v272
        %301 = vst [vmem:[#allocation2 + $0x98] sm:$0xff] %v273
        %302 = vst [vmem:[#allocation2 + $0xa0] sm:$0xff] %v274
        %303 = vst [vmem:[#allocation2 + $0xa8] sm:$0xff] %v275
        %304 = vst [vmem:[#allocation2 + $0xb0] sm:$0xff] %v276
        %305 = vst [vmem:[#allocation2 + $0xb8] sm:$0xff] %v277
        %306 = vst [vmem:[#allocation2 + $0xc0] sm:$0xff] %v278
        %307 = vst [vmem:[#allocation2 + $0xc8] sm:$0xff] %v279
        %308 = vst [vmem:[#allocation2 + $0xd0] sm:$0xff] %v280
        %309 = vst [vmem:[#allocation2 + $0xd8] sm:$0xff] %v281
        %310 = vst [vmem:[#allocation2 + $0xe0] sm:$0xff] %v282
        %311 = vst [vmem:[#allocation2 + $0xe8] sm:$0xff] %v283
        %312 = vst [vmem:[#allocation3] sm:$0xff] %v256
        %313 = vst [vmem:[#allocation3 + $0x8] sm:$0xff] %v257
        %314 = vst [vmem:[#allocation3 + $0x10] sm:$0xff] %v258
        %315 = vst [vmem:[#allocation3 + $0x18] sm:$0xff] %v259
        %316 = vst [vmem:[#allocation3 + $0x20] sm:$0xff] %v260
        %317 = vst [vmem:[#allocation3 + $0x28] sm:$0xff] %v261
        %318 = vst [vmem:[#allocation3 + $0x30] sm:$0xff] %v262
        %319 = vst [vmem:[#allocation3 + $0x38] sm:$0xff] %v263
        %320 = vst [vmem:[#allocation3 + $0x40] sm:$0xff] %v264
        %321 = vst [vmem:[#allocation3 + $0x48] sm:$0xff] %v265
        %322 = vst [vmem:[#allocation3 + $0x50] sm:$0xff] %v266
        %323 = vst [vmem:[#allocation3 + $0x58] sm:$0xff] %v267
        %324 = vst [vmem:[#allocation3 + $0x60] sm:$0xff] %v268
        %325 = vst [vmem:[#allocation3 + $0x68] sm:$0xff] %v269
        %326 = vst [vmem:[#allocation3 + $0x70] sm:$0xff] %v270
        %327 = vst [vmem:[#allocation3 + $0x78] sm:$0xff] %v271
        %328 = vst [vmem:[#allocation3 + $0x80] sm:$0xff] %v272
        %329 = vst [vmem:[#allocation3 + $0x88] sm:$0xff] %v273
        %330 = vst [vmem:[#allocation3 + $0x90] sm:$0xff] %v274
        %331 = vst [vmem:[#allocation3 + $0x98] sm:$0xff] %v275
        %332 = vst [vmem:[#allocation3 + $0xa0] sm:$0xff] %v276
        %333 = vst [vmem:[#allocation3 + $0xa8] sm:$0xff] %v277
        %334 = vst [vmem:[#allocation3 + $0xb0] sm:$0xff] %v278
        %335 = vst [vmem:[#allocation3 + $0xb8] sm:$0xff] %v279
        %336 = vst [vmem:[#allocation3 + $0xc0] sm:$0xff] %v280
        %337 = vst [vmem:[#allocation3 + $0xc8] sm:$0xff] %v281
        %338 = vst [vmem:[#allocation3 + $0xd0] sm:$0xff] %v282
        %339 = vst [vmem:[#allocation3 + $0xd8] sm:$0xff] %v283
      $region36: #{res_block_forward.1} parent=31 // pred_fallthru
        _
      %p340 = scmp.eq.s32.totalorder %s21, 2
      %p341 = scmp.eq.s32.totalorder %s21, 4
      %p342 = por %p340, %p341
      %p343 = scmp.eq.s32.totalorder %s21, 6
      %p344 = por %p342, %p343
      // Predicated region
      $region37: #{res_block_forward.1} parent=31 // pred_check
        %p345 = pneg %p344
      $region38: #{res_block_forward.1} parent=31 // pred_check_branch
        %347 = sbr.rel (%p345) target = $region40
      $region39: #{res_block_forward.1} parent=31 // pred_region
        %v348 = vld [vmem:[#allocation2 + $0x10] sm:$0xff]
        %v349 = vld [vmem:[#allocation2 + $0x18] sm:$0xff]
        %v350 = vld [vmem:[#allocation2 + $0x20] sm:$0xff]
        %v351 = vld [vmem:[#allocation2 + $0x28] sm:$0xff]
        %v352 = vld [vmem:[#allocation2 + $0x30] sm:$0xff]
        %v353 = vld [vmem:[#allocation2 + $0x38] sm:$0xff]
        %v354 = vld [vmem:[#allocation2 + $0x40] sm:$0xff]
        %v355 = vld [vmem:[#allocation2 + $0x48] sm:$0xff]
        %v356 = vld [vmem:[#allocation2 + $0x50] sm:$0xff]
        %v357 = vld [vmem:[#allocation2 + $0x58] sm:$0xff]
        %v358 = vld [vmem:[#allocation2 + $0x60] sm:$0xff]
        %v359 = vld [vmem:[#allocation2 + $0x68] sm:$0xff]
        %v360 = vld [vmem:[#allocation2 + $0x70] sm:$0xff]
        %v361 = vld [vmem:[#allocation2 + $0x78] sm:$0xff]
        %v362 = vld [vmem:[#allocation2 + $0x80] sm:$0xff]
        %v363 = vld [vmem:[#allocation2 + $0x88] sm:$0xff]
        %v364 = vld [vmem:[#allocation2 + $0x90] sm:$0xff]
        %v365 = vld [vmem:[#allocation2 + $0x98] sm:$0xff]
        %v366 = vld [vmem:[#allocation2 + $0xa0] sm:$0xff]
        %v367 = vld [vmem:[#allocation2 + $0xa8] sm:$0xff]
        %v368 = vld [vmem:[#allocation2 + $0xb0] sm:$0xff]
        %v369 = vld [vmem:[#allocation2 + $0xb8] sm:$0xff]
        %v370 = vld [vmem:[#allocation2 + $0xc0] sm:$0xff]
        %v371 = vld [vmem:[#allocation2 + $0xc8] sm:$0xff]
        %v372 = vld [vmem:[#allocation2 + $0xd0] sm:$0xff]
        %v373 = vld [vmem:[#allocation2 + $0xd8] sm:$0xff]
        %v374 = vld [vmem:[#allocation2 + $0xe0] sm:$0xff]
        %v375 = vld [vmem:[#allocation2 + $0xe8] sm:$0xff]
        %376 = vst [vmem:[#allocation3] sm:$0xff] %v348
        %377 = vst [vmem:[#allocation3 + $0x8] sm:$0xff] %v349
        %378 = vst [vmem:[#allocation3 + $0x10] sm:$0xff] %v350
        %379 = vst [vmem:[#allocation3 + $0x18] sm:$0xff] %v351
        %380 = vst [vmem:[#allocation3 + $0x20] sm:$0xff] %v352
        %381 = vst [vmem:[#allocation3 + $0x28] sm:$0xff] %v353
        %382 = vst [vmem:[#allocation3 + $0x30] sm:$0xff] %v354
        %383 = vst [vmem:[#allocation3 + $0x38] sm:$0xff] %v355
        %384 = vst [vmem:[#allocation3 + $0x40] sm:$0xff] %v356
        %385 = vst [vmem:[#allocation3 + $0x48] sm:$0xff] %v357
        %386 = vst [vmem:[#allocation3 + $0x50] sm:$0xff] %v358
        %387 = vst [vmem:[#allocation3 + $0x58] sm:$0xff] %v359
        %388 = vst [vmem:[#allocation3 + $0x60] sm:$0xff] %v360
        %389 = vst [vmem:[#allocation3 + $0x68] sm:$0xff] %v361
        %390 = vst [vmem:[#allocation3 + $0x70] sm:$0xff] %v362
        %391 = vst [vmem:[#allocation3 + $0x78] sm:$0xff] %v363
        %392 = vst [vmem:[#allocation3 + $0x80] sm:$0xff] %v364
        %393 = vst [vmem:[#allocation3 + $0x88] sm:$0xff] %v365
        %394 = vst [vmem:[#allocation3 + $0x90] sm:$0xff] %v366
        %395 = vst [vmem:[#allocation3 + $0x98] sm:$0xff] %v367
        %396 = vst [vmem:[#allocation3 + $0xa0] sm:$0xff] %v368
        %397 = vst [vmem:[#allocation3 + $0xa8] sm:$0xff] %v369
        %398 = vst [vmem:[#allocation3 + $0xb0] sm:$0xff] %v370
        %399 = vst [vmem:[#allocation3 + $0xb8] sm:$0xff] %v371
        %400 = vst [vmem:[#allocation3 + $0xc0] sm:$0xff] %v372
        %401 = vst [vmem:[#allocation3 + $0xc8] sm:$0xff] %v373
        %402 = vst [vmem:[#allocation3 + $0xd0] sm:$0xff] %v374
        %403 = vst [vmem:[#allocation3 + $0xd8] sm:$0xff] %v375
      $region40: #{res_block_forward.1} parent=31 // pred_fallthru
        _
      %v404 = vld [vmem:[#allocation2] sm:$0xfc]
      %v405 = vld [vmem:[#allocation2 + $0x8] sm:$0xfc]
      %v406 = vld [vmem:[#allocation2 + $0x10] sm:$0xff]
      %v407 = vld [vmem:[#allocation2 + $0x18] sm:$0xff]
      %v408 = vld [vmem:[#allocation2 + $0x20] sm:$0xff]
      %v409 = vld [vmem:[#allocation2 + $0x28] sm:$0xff]
      %v410 = vld [vmem:[#allocation2 + $0x30] sm:$0xff]
      %v411 = vld [vmem:[#allocation2 + $0x38] sm:$0xff]
      %v412 = vld [vmem:[#allocation2 + $0x40] sm:$0xff]
      %v413 = vld [vmem:[#allocation2 + $0x48] sm:$0xff]
      %v414 = vld [vmem:[#allocation2 + $0x50] sm:$0xff]
      %v415 = vld [vmem:[#allocation2 + $0x58] sm:$0xff]
      %v416 = vld [vmem:[#allocation2 + $0x60] sm:$0xff]
      %v417 = vld [vmem:[#allocation2 + $0x68] sm:$0xff]
      %v418 = vld [vmem:[#allocation2 + $0x70] sm:$0xff]
      %v419 = vld [vmem:[#allocation2 + $0x78] sm:$0xff]
      %v420 = vld [vmem:[#allocation2 + $0x80] sm:$0xff]
      %v421 = vld [vmem:[#allocation2 + $0x88] sm:$0xff]
      %v422 = vld [vmem:[#allocation2 + $0x90] sm:$0xff]
      %v423 = vld [vmem:[#allocation2 + $0x98] sm:$0xff]
      %v424 = vld [vmem:[#allocation2 + $0xa0] sm:$0xff]
      %v425 = vld [vmem:[#allocation2 + $0xa8] sm:$0xff]
      %v426 = vld [vmem:[#allocation2 + $0xb0] sm:$0xff]
      %v427 = vld [vmem:[#allocation2 + $0xb8] sm:$0xff]
      %v428 = vld [vmem:[#allocation2 + $0xc0] sm:$0xff]
      %v429 = vld [vmem:[#allocation2 + $0xc8] sm:$0xff]
      %v430 = vld [vmem:[#allocation2 + $0xd0] sm:$0xff]
      %v431 = vld [vmem:[#allocation2 + $0xd8] sm:$0xff]
      %v432 = vld [vmem:[#allocation2 + $0xe0] sm:$0x7]
      %v433 = vld [vmem:[#allocation2 + $0xe8] sm:$0x7]
      %vm434 = vsmask.f32 5376
      %v436 = vshrl.u32 %v404, 16
      %v438 = vrot.slane %v436, 2
      %v439 = vshll.u32 %v404, 16
      %v441 = vrot.slane %v439, 3
      %v442 = vor.u32 %v438, %v441
      %v444 = vshrl.u32 %v406, 16
      %v446 = vrot.slane %v444, 2
      %v447 = vshll.u32 %v406, 16
      %v449 = vrot.slane %v447, 3
      %v450 = vor.u32 %v446, %v449
      %v451 = vsel %vm434, %v442, %v450
      %v453 = vshrl.u32 %v405, 16
      %v455 = vrot.slane %v453, 2
      %v456 = vshll.u32 %v405, 16
      %v458 = vrot.slane %v456, 3
      %v459 = vor.u32 %v455, %v458
      %v461 = vshrl.u32 %v407, 16
      %v463 = vrot.slane %v461, 2
      %v464 = vshll.u32 %v407, 16
      %v466 = vrot.slane %v464, 3
      %v467 = vor.u32 %v463, %v466
      %v468 = vsel %vm434, %v459, %v467
      %v470 = vshrl.u32 %v408, 16
      %v472 = vrot.slane %v470, 2
      %v473 = vshll.u32 %v408, 16
      %v475 = vrot.slane %v473, 3
      %v476 = vor.u32 %v472, %v475
      %v477 = vsel %vm434, %v450, %v476
      %v479 = vshrl.u32 %v409, 16
      %v481 = vrot.slane %v479, 2
      %v482 = vshll.u32 %v409, 16
      %v484 = vrot.slane %v482, 3
      %v485 = vor.u32 %v481, %v484
      %v486 = vsel %vm434, %v467, %v485
      %v488 = vshrl.u32 %v410, 16
      %v490 = vrot.slane %v488, 2
      %v491 = vshll.u32 %v410, 16
      %v493 = vrot.slane %v491, 3
      %v494 = vor.u32 %v490, %v493
      %v495 = vsel %vm434, %v476, %v494
      %v497 = vshrl.u32 %v411, 16
      %v499 = vrot.slane %v497, 2
      %v500 = vshll.u32 %v411, 16
      %v502 = vrot.slane %v500, 3
      %v503 = vor.u32 %v499, %v502
      %v504 = vsel %vm434, %v485, %v503
      %v506 = vshrl.u32 %v412, 16
      %v508 = vrot.slane %v506, 2
      %v509 = vshll.u32 %v412, 16
      %v511 = vrot.slane %v509, 3
      %v512 = vor.u32 %v508, %v511
      %v513 = vsel %vm434, %v494, %v512
      %v515 = vshrl.u32 %v413, 16
      %v517 = vrot.slane %v515, 2
      %v518 = vshll.u32 %v413, 16
      %v520 = vrot.slane %v518, 3
      %v521 = vor.u32 %v517, %v520
      %v522 = vsel %vm434, %v503, %v521
      %v524 = vshrl.u32 %v414, 16
      %v526 = vrot.slane %v524, 2
      %v527 = vshll.u32 %v414, 16
      %v529 = vrot.slane %v527, 3
      %v530 = vor.u32 %v526, %v529
      %v531 = vsel %vm434, %v512, %v530
      %v533 = vshrl.u32 %v415, 16
      %v535 = vrot.slane %v533, 2
      %v536 = vshll.u32 %v415, 16
      %v538 = vrot.slane %v536, 3
      %v539 = vor.u32 %v535, %v538
      %v540 = vsel %vm434, %v521, %v539
      %v542 = vshrl.u32 %v416, 16
      %v544 = vrot.slane %v542, 2
      %v545 = vshll.u32 %v416, 16
      %v547 = vrot.slane %v545, 3
      %v548 = vor.u32 %v544, %v547
      %v549 = vsel %vm434, %v530, %v548
      %v551 = vshrl.u32 %v417, 16
      %v553 = vrot.slane %v551, 2
      %v554 = vshll.u32 %v417, 16
      %v556 = vrot.slane %v554, 3
      %v557 = vor.u32 %v553, %v556
      %v558 = vsel %vm434, %v539, %v557
      %v560 = vshrl.u32 %v418, 16
      %v562 = vrot.slane %v560, 2
      %v563 = vshll.u32 %v418, 16
      %v565 = vrot.slane %v563, 3
      %v566 = vor.u32 %v562, %v565
      %v567 = vsel %vm434, %v548, %v566
      %v569 = vshrl.u32 %v419, 16
      %v571 = vrot.slane %v569, 2
      %v572 = vshll.u32 %v419, 16
      %v574 = vrot.slane %v572, 3
      %v575 = vor.u32 %v571, %v574
      %v576 = vsel %vm434, %v557, %v575
      %v578 = vshrl.u32 %v420, 16
      %v580 = vrot.slane %v578, 2
      %v581 = vshll.u32 %v420, 16
      %v583 = vrot.slane %v581, 3
      %v584 = vor.u32 %v580, %v583
      %v585 = vsel %vm434, %v566, %v584
      %v587 = vshrl.u32 %v421, 16
      %v589 = vrot.slane %v587, 2
      %v590 = vshll.u32 %v421, 16
      %v592 = vrot.slane %v590, 3
      %v593 = vor.u32 %v589, %v592
      %v594 = vsel %vm434, %v575, %v593
      %v596 = vshrl.u32 %v422, 16
      %v598 = vrot.slane %v596, 2
      %v599 = vshll.u32 %v422, 16
      %v601 = vrot.slane %v599, 3
      %v602 = vor.u32 %v598, %v601
      %v603 = vsel %vm434, %v584, %v602
      %v605 = vshrl.u32 %v423, 16
      %v607 = vrot.slane %v605, 2
      %v608 = vshll.u32 %v423, 16
      %v610 = vrot.slane %v608, 3
      %v611 = vor.u32 %v607, %v610
      %v612 = vsel %vm434, %v593, %v611
      %v614 = vshrl.u32 %v424, 16
      %v616 = vrot.slane %v614, 2
      %v617 = vshll.u32 %v424, 16
      %v619 = vrot.slane %v617, 3
      %v620 = vor.u32 %v616, %v619
      %v621 = vsel %vm434, %v602, %v620
      %v623 = vshrl.u32 %v425, 16
      %v625 = vrot.slane %v623, 2
      %v626 = vshll.u32 %v425, 16
      %v628 = vrot.slane %v626, 3
      %v629 = vor.u32 %v625, %v628
      %v630 = vsel %vm434, %v611, %v629
      %v632 = vshrl.u32 %v426, 16
      %v634 = vrot.slane %v632, 2
      %v635 = vshll.u32 %v426, 16
      %v637 = vrot.slane %v635, 3
      %v638 = vor.u32 %v634, %v637
      %v639 = vsel %vm434, %v620, %v638
      %v641 = vshrl.u32 %v427, 16
      %v643 = vrot.slane %v641, 2
      %v644 = vshll.u32 %v427, 16
      %v646 = vrot.slane %v644, 3
      %v647 = vor.u32 %v643, %v646
      %v648 = vsel %vm434, %v629, %v647
      %v650 = vshrl.u32 %v428, 16
      %v652 = vrot.slane %v650, 2
      %v653 = vshll.u32 %v428, 16
      %v655 = vrot.slane %v653, 3
      %v656 = vor.u32 %v652, %v655
      %v657 = vsel %vm434, %v638, %v656
      %v659 = vshrl.u32 %v429, 16
      %v661 = vrot.slane %v659, 2
      %v662 = vshll.u32 %v429, 16
      %v664 = vrot.slane %v662, 3
      %v665 = vor.u32 %v661, %v664
      %v666 = vsel %vm434, %v647, %v665
      %v668 = vshrl.u32 %v430, 16
      %v670 = vrot.slane %v668, 2
      %v671 = vshll.u32 %v430, 16
      %v673 = vrot.slane %v671, 3
      %v674 = vor.u32 %v670, %v673
      %v675 = vsel %vm434, %v656, %v674
      %v677 = vshrl.u32 %v431, 16
      %v679 = vrot.slane %v677, 2
      %v680 = vshll.u32 %v431, 16
      %v682 = vrot.slane %v680, 3
      %v683 = vor.u32 %v679, %v682
      %v684 = vsel %vm434, %v665, %v683
      %v686 = vshrl.u32 %v432, 16
      %v688 = vrot.slane %v686, 2
      %v689 = vshll.u32 %v432, 16
      %v691 = vrot.slane %v689, 3
      %v692 = vor.u32 %v688, %v691
      %v693 = vsel %vm434, %v674, %v692
      %v695 = vshrl.u32 %v433, 16
      %v697 = vrot.slane %v695, 2
      %v698 = vshll.u32 %v433, 16
      %v700 = vrot.slane %v698, 3
      %v701 = vor.u32 %v697, %v700
      %v702 = vsel %vm434, %v683, %v701
      %731 = vst [vmem:[#allocation4] sm:$0xff] %v451
      %732 = vst [vmem:[#allocation4 + $0x8] sm:$0xff] %v468
      %733 = vst [vmem:[#allocation4 + $0x90] sm:$0xff] %v477
      %734 = vst [vmem:[#allocation4 + $0x98] sm:$0xff] %v486
      %735 = vst [vmem:[#allocation4 + $0x120] sm:$0xff] %v495
      %736 = vst [vmem:[#allocation4 + $0x128] sm:$0xff] %v504
      %737 = vst [vmem:[#allocation4 + $0x1b0] sm:$0xff] %v513
      %738 = vst [vmem:[#allocation4 + $0x1b8] sm:$0xff] %v522
      %739 = vst [vmem:[#allocation4 + $0x240] sm:$0xff] %v531
      %740 = vst [vmem:[#allocation4 + $0x248] sm:$0xff] %v540
      %741 = vst [vmem:[#allocation4 + $0x2d0] sm:$0xff] %v549
      %742 = vst [vmem:[#allocation4 + $0x2d8] sm:$0xff] %v558
      %743 = vst [vmem:[#allocation4 + $0x360] sm:$0xff] %v567
      %744 = vst [vmem:[#allocation4 + $0x368] sm:$0xff] %v576
      %745 = vst [vmem:[#allocation4 + $0x3f0] sm:$0xff] %v585
      %746 = vst [vmem:[#allocation4 + $0x3f8] sm:$0xff] %v594
      %747 = vst [vmem:[#allocation4 + $0x480] sm:$0xff] %v603
      %748 = vst [vmem:[#allocation4 + $0x488] sm:$0xff] %v612
      %749 = vst [vmem:[#allocation4 + $0x510] sm:$0xff] %v621
      %750 = vst [vmem:[#allocation4 + $0x518] sm:$0xff] %v630
      %751 = vst [vmem:[#allocation4 + $0x5a0] sm:$0xff] %v639
      %752 = vst [vmem:[#allocation4 + $0x5a8] sm:$0xff] %v648
      %753 = vst [vmem:[#allocation4 + $0x630] sm:$0xff] %v657
      %754 = vst [vmem:[#allocation4 + $0x638] sm:$0xff] %v666
      %755 = vst [vmem:[#allocation4 + $0x6c0] sm:$0xff] %v675
      %756 = vst [vmem:[#allocation4 + $0x6c8] sm:$0xff] %v684
      %757 = vst [vmem:[#allocation4 + $0x750] sm:$0xff] %v693
      %758 = vst [vmem:[#allocation4 + $0x758] sm:$0xff] %v702
      %v759 = vld [vmem:[#allocation2] sm:$0xf8]
      %v760 = vld [vmem:[#allocation2 + $0x8] sm:$0xf8]
      %v761 = vld [vmem:[#allocation2 + $0x10] sm:$0xff]
      %v762 = vld [vmem:[#allocation2 + $0x18] sm:$0xff]
      %v763 = vld [vmem:[#allocation2 + $0x20] sm:$0xff]
      %v764 = vld [vmem:[#allocation2 + $0x28] sm:$0xff]
      %v765 = vld [vmem:[#allocation2 + $0x30] sm:$0xff]
      %v766 = vld [vmem:[#allocation2 + $0x38] sm:$0xff]
      %v767 = vld [vmem:[#allocation2 + $0x40] sm:$0xff]
      %v768 = vld [vmem:[#allocation2 + $0x48] sm:$0xff]
      %v769 = vld [vmem:[#allocation2 + $0x50] sm:$0xff]
      %v770 = vld [vmem:[#allocation2 + $0x58] sm:$0xff]
      %v771 = vld [vmem:[#allocation2 + $0x60] sm:$0xff]
      %v772 = vld [vmem:[#allocation2 + $0x68] sm:$0xff]
      %v773 = vld [vmem:[#allocation2 + $0x70] sm:$0xff]
      %v774 = vld [vmem:[#allocation2 + $0x78] sm:$0xff]
      %v775 = vld [vmem:[#allocation2 + $0x80] sm:$0xff]
      %v776 = vld [vmem:[#allocation2 + $0x88] sm:$0xff]
      %v777 = vld [vmem:[#allocation2 + $0x90] sm:$0xff]
      %v778 = vld [vmem:[#allocation2 + $0x98] sm:$0xff]
      %v779 = vld [vmem:[#allocation2 + $0xa0] sm:$0xff]
      %v780 = vld [vmem:[#allocation2 + $0xa8] sm:$0xff]
      %v781 = vld [vmem:[#allocation2 + $0xb0] sm:$0xff]
      %v782 = vld [vmem:[#allocation2 + $0xb8] sm:$0xff]
      %v783 = vld [vmem:[#allocation2 + $0xc0] sm:$0xff]
      %v784 = vld [vmem:[#allocation2 + $0xc8] sm:$0xff]
      %v785 = vld [vmem:[#allocation2 + $0xd0] sm:$0xff]
      %v786 = vld [vmem:[#allocation2 + $0xd8] sm:$0xff]
      %v787 = vld [vmem:[#allocation2 + $0xe0] sm:$0x7]
      %v788 = vld [vmem:[#allocation2 + $0xe8] sm:$0x7]
      %vm819 = vcmask 1044480
      %v820 = vrot.slane %v759, 3
      %v821 = vrot.slane %v761, 3
      %v822 = vsel %vm819, %v820, %v821
      %v823 = vrot.slane %v760, 3
      %v824 = vrot.slane %v762, 3
      %v825 = vsel %vm819, %v823, %v824
      %v826 = vrot.slane %v763, 3
      %v827 = vsel %vm819, %v821, %v826
      %v828 = vrot.slane %v764, 3
      %v829 = vsel %vm819, %v824, %v828
      %v830 = vrot.slane %v765, 3
      %v831 = vsel %vm819, %v826, %v830
      %v832 = vrot.slane %v766, 3
      %v833 = vsel %vm819, %v828, %v832
      %v834 = vrot.slane %v767, 3
      %v835 = vsel %vm819, %v830, %v834
      %v836 = vrot.slane %v768, 3
      %v837 = vsel %vm819, %v832, %v836
      %v838 = vrot.slane %v769, 3
      %v839 = vsel %vm819, %v834, %v838
      %v840 = vrot.slane %v770, 3
      %v841 = vsel %vm819, %v836, %v840
      %v842 = vrot.slane %v771, 3
      %v843 = vsel %vm819, %v838, %v842
      %v844 = vrot.slane %v772, 3
      %v845 = vsel %vm819, %v840, %v844
      %v846 = vrot.slane %v773, 3
      %v847 = vsel %vm819, %v842, %v846
      %v848 = vrot.slane %v774, 3
      %v849 = vsel %vm819, %v844, %v848
      %v850 = vrot.slane %v775, 3
      %v851 = vsel %vm819, %v846, %v850
      %v852 = vrot.slane %v776, 3
      %v853 = vsel %vm819, %v848, %v852
      %v854 = vrot.slane %v777, 3
      %v855 = vsel %vm819, %v850, %v854
      %v856 = vrot.slane %v778, 3
      %v857 = vsel %vm819, %v852, %v856
      %v858 = vrot.slane %v779, 3
      %v859 = vsel %vm819, %v854, %v858
      %v860 = vrot.slane %v780, 3
      %v861 = vsel %vm819, %v856, %v860
      %v862 = vrot.slane %v781, 3
      %v863 = vsel %vm819, %v858, %v862
      %v864 = vrot.slane %v782, 3
      %v865 = vsel %vm819, %v860, %v864
      %v866 = vrot.slane %v783, 3
      %v867 = vsel %vm819, %v862, %v866
      %v868 = vrot.slane %v784, 3
      %v869 = vsel %vm819, %v864, %v868
      %v870 = vrot.slane %v785, 3
      %v871 = vsel %vm819, %v866, %v870
      %v872 = vrot.slane %v786, 3
      %v873 = vsel %vm819, %v868, %v872
      %v874 = vrot.slane %v787, 3
      %v875 = vsel %vm819, %v870, %v874
      %v876 = vrot.slane %v788, 3
      %v877 = vsel %vm819, %v872, %v876
      %906 = vst [vmem:[#allocation4 + $0x10] sm:$0xff] %v822
      %907 = vst [vmem:[#allocation4 + $0x18] sm:$0xff] %v825
      %908 = vst [vmem:[#allocation4 + $0xa0] sm:$0xff] %v827
      %909 = vst [vmem:[#allocation4 + $0xa8] sm:$0xff] %v829
      %910 = vst [vmem:[#allocation4 + $0x130] sm:$0xff] %v831
      %911 = vst [vmem:[#allocation4 + $0x138] sm:$0xff] %v833
      %912 = vst [vmem:[#allocation4 + $0x1c0] sm:$0xff] %v835
      %913 = vst [vmem:[#allocation4 + $0x1c8] sm:$0xff] %v837
      %914 = vst [vmem:[#allocation4 + $0x250] sm:$0xff] %v839
      %915 = vst [vmem:[#allocation4 + $0x258] sm:$0xff] %v841
      %916 = vst [vmem:[#allocation4 + $0x2e0] sm:$0xff] %v843
      %917 = vst [vmem:[#allocation4 + $0x2e8] sm:$0xff] %v845
      %918 = vst [vmem:[#allocation4 + $0x370] sm:$0xff] %v847
      %919 = vst [vmem:[#allocation4 + $0x378] sm:$0xff] %v849
      %920 = vst [vmem:[#allocation4 + $0x400] sm:$0xff] %v851
      %921 = vst [vmem:[#allocation4 + $0x408] sm:$0xff] %v853
      %922 = vst [vmem:[#allocation4 + $0x490] sm:$0xff] %v855
      %923 = vst [vmem:[#allocation4 + $0x498] sm:$0xff] %v857
      %924 = vst [vmem:[#allocation4 + $0x520] sm:$0xff] %v859
      %925 = vst [vmem:[#allocation4 + $0x528] sm:$0xff] %v861
      %926 = vst [vmem:[#allocation4 + $0x5b0] sm:$0xff] %v863
      %927 = vst [vmem:[#allocation4 + $0x5b8] sm:$0xff] %v865
      %928 = vst [vmem:[#allocation4 + $0x640] sm:$0xff] %v867
      %929 = vst [vmem:[#allocation4 + $0x648] sm:$0xff] %v869
      %930 = vst [vmem:[#allocation4 + $0x6d0] sm:$0xff] %v871
      %931 = vst [vmem:[#allocation4 + $0x6d8] sm:$0xff] %v873
      %932 = vst [vmem:[#allocation4 + $0x760] sm:$0xff] %v875
      %933 = vst [vmem:[#allocation4 + $0x768] sm:$0xff] %v877
      %v934 = vld [vmem:[#allocation2] sm:$0xf8]
      %v935 = vld [vmem:[#allocation2 + $0x8] sm:$0xf8]
      %v936 = vld [vmem:[#allocation2 + $0x10] sm:$0xff]
      %v937 = vld [vmem:[#allocation2 + $0x18] sm:$0xff]
      %v938 = vld [vmem:[#allocation2 + $0x20] sm:$0xff]
      %v939 = vld [vmem:[#allocation2 + $0x28] sm:$0xff]
      %v940 = vld [vmem:[#allocation2 + $0x30] sm:$0xff]
      %v941 = vld [vmem:[#allocation2 + $0x38] sm:$0xff]
      %v942 = vld [vmem:[#allocation2 + $0x40] sm:$0xff]
      %v943 = vld [vmem:[#allocation2 + $0x48] sm:$0xff]
      %v944 = vld [vmem:[#allocation2 + $0x50] sm:$0xff]
      %v945 = vld [vmem:[#allocation2 + $0x58] sm:$0xff]
      %v946 = vld [vmem:[#allocation2 + $0x60] sm:$0xff]
      %v947 = vld [vmem:[#allocation2 + $0x68] sm:$0xff]
      %v948 = vld [vmem:[#allocation2 + $0x70] sm:$0xff]
      %v949 = vld [vmem:[#allocation2 + $0x78] sm:$0xff]
      %v950 = vld [vmem:[#allocation2 + $0x80] sm:$0xff]
      %v951 = vld [vmem:[#allocation2 + $0x88] sm:$0xff]
      %v952 = vld [vmem:[#allocation2 + $0x90] sm:$0xff]
      %v953 = vld [vmem:[#allocation2 + $0x98] sm:$0xff]
      %v954 = vld [vmem:[#allocation2 + $0xa0] sm:$0xff]
      %v955 = vld [vmem:[#allocation2 + $0xa8] sm:$0xff]
      %v956 = vld [vmem:[#allocation2 + $0xb0] sm:$0xff]
      %v957 = vld [vmem:[#allocation2 + $0xb8] sm:$0xff]
      %v958 = vld [vmem:[#allocation2 + $0xc0] sm:$0xff]
      %v959 = vld [vmem:[#allocation2 + $0xc8] sm:$0xff]
      %v960 = vld [vmem:[#allocation2 + $0xd0] sm:$0xff]
      %v961 = vld [vmem:[#allocation2 + $0xd8] sm:$0xff]
      %v962 = vld [vmem:[#allocation2 + $0xe0] sm:$0xf]
      %v963 = vld [vmem:[#allocation2 + $0xe8] sm:$0xf]
      %vm964 = vsmask.f32 4352
      %v966 = vshrl.u32 %v934, 16
      %v968 = vrot.slane %v966, 3
      %v969 = vshll.u32 %v934, 16
      %v971 = vrot.slane %v969, 4
      %v972 = vor.u32 %v968, %v971
      %v974 = vshrl.u32 %v936, 16
      %v976 = vrot.slane %v974, 3
      %v977 = vshll.u32 %v936, 16
      %v979 = vrot.slane %v977, 4
      %v980 = vor.u32 %v976, %v979
      %v981 = vsel %vm964, %v972, %v980
      %v983 = vshrl.u32 %v935, 16
      %v985 = vrot.slane %v983, 3
      %v986 = vshll.u32 %v935, 16
      %v988 = vrot.slane %v986, 4
      %v989 = vor.u32 %v985, %v988
      %v991 = vshrl.u32 %v937, 16
      %v993 = vrot.slane %v991, 3
      %v994 = vshll.u32 %v937, 16
      %v996 = vrot.slane %v994, 4
      %v997 = vor.u32 %v993, %v996
      %v998 = vsel %vm964, %v989, %v997
      %v1000 = vshrl.u32 %v938, 16
      %v1002 = vrot.slane %v1000, 3
      %v1003 = vshll.u32 %v938, 16
      %v1005 = vrot.slane %v1003, 4
      %v1006 = vor.u32 %v1002, %v1005
      %v1007 = vsel %vm964, %v980, %v1006
      %v1009 = vshrl.u32 %v939, 16
      %v1011 = vrot.slane %v1009, 3
      %v1012 = vshll.u32 %v939, 16
      %v1014 = vrot.slane %v1012, 4
      %v1015 = vor.u32 %v1011, %v1014
      %v1016 = vsel %vm964, %v997, %v1015
      %v1018 = vshrl.u32 %v940, 16
      %v1020 = vrot.slane %v1018, 3
      %v1021 = vshll.u32 %v940, 16
      %v1023 = vrot.slane %v1021, 4
      %v1024 = vor.u32 %v1020, %v1023
      %v1025 = vsel %vm964, %v1006, %v1024
      %v1027 = vshrl.u32 %v941, 16
      %v1029 = vrot.slane %v1027, 3
      %v1030 = vshll.u32 %v941, 16
      %v1032 = vrot.slane %v1030, 4
      %v1033 = vor.u32 %v1029, %v1032
      %v1034 = vsel %vm964, %v1015, %v1033
      %v1036 = vshrl.u32 %v942, 16
      %v1038 = vrot.slane %v1036, 3
      %v1039 = vshll.u32 %v942, 16
      %v1041 = vrot.slane %v1039, 4
      %v1042 = vor.u32 %v1038, %v1041
      %v1043 = vsel %vm964, %v1024, %v1042
      %v1045 = vshrl.u32 %v943, 16
      %v1047 = vrot.slane %v1045, 3
      %v1048 = vshll.u32 %v943, 16
      %v1050 = vrot.slane %v1048, 4
      %v1051 = vor.u32 %v1047, %v1050
      %v1052 = vsel %vm964, %v1033, %v1051
      %v1054 = vshrl.u32 %v944, 16
      %v1056 = vrot.slane %v1054, 3
      %v1057 = vshll.u32 %v944, 16
      %v1059 = vrot.slane %v1057, 4
      %v1060 = vor.u32 %v1056, %v1059
      %v1061 = vsel %vm964, %v1042, %v1060
      %v1063 = vshrl.u32 %v945, 16
      %v1065 = vrot.slane %v1063, 3
      %v1066 = vshll.u32 %v945, 16
      %v1068 = vrot.slane %v1066, 4
      %v1069 = vor.u32 %v1065, %v1068
      %v1070 = vsel %vm964, %v1051, %v1069
      %v1072 = vshrl.u32 %v946, 16
      %v1074 = vrot.slane %v1072, 3
      %v1075 = vshll.u32 %v946, 16
      %v1077 = vrot.slane %v1075, 4
      %v1078 = vor.u32 %v1074, %v1077
      %v1079 = vsel %vm964, %v1060, %v1078
      %v1081 = vshrl.u32 %v947, 16
      %v1083 = vrot.slane %v1081, 3
      %v1084 = vshll.u32 %v947, 16
      %v1086 = vrot.slane %v1084, 4
      %v1087 = vor.u32 %v1083, %v1086
      %v1088 = vsel %vm964, %v1069, %v1087
      %v1090 = vshrl.u32 %v948, 16
      %v1092 = vrot.slane %v1090, 3
      %v1093 = vshll.u32 %v948, 16
      %v1095 = vrot.slane %v1093, 4
      %v1096 = vor.u32 %v1092, %v1095
      %v1097 = vsel %vm964, %v1078, %v1096
      %v1099 = vshrl.u32 %v949, 16
      %v1101 = vrot.slane %v1099, 3
      %v1102 = vshll.u32 %v949, 16
      %v1104 = vrot.slane %v1102, 4
      %v1105 = vor.u32 %v1101, %v1104
      %v1106 = vsel %vm964, %v1087, %v1105
      %v1108 = vshrl.u32 %v950, 16
      %v1110 = vrot.slane %v1108, 3
      %v1111 = vshll.u32 %v950, 16
      %v1113 = vrot.slane %v1111, 4
      %v1114 = vor.u32 %v1110, %v1113
      %v1115 = vsel %vm964, %v1096, %v1114
      %v1117 = vshrl.u32 %v951, 16
      %v1119 = vrot.slane %v1117, 3
      %v1120 = vshll.u32 %v951, 16
      %v1122 = vrot.slane %v1120, 4
      %v1123 = vor.u32 %v1119, %v1122
      %v1124 = vsel %vm964, %v1105, %v1123
      %v1126 = vshrl.u32 %v952, 16
      %v1128 = vrot.slane %v1126, 3
      %v1129 = vshll.u32 %v952, 16
      %v1131 = vrot.slane %v1129, 4
      %v1132 = vor.u32 %v1128, %v1131
      %v1133 = vsel %vm964, %v1114, %v1132
      %v1135 = vshrl.u32 %v953, 16
      %v1137 = vrot.slane %v1135, 3
      %v1138 = vshll.u32 %v953, 16
      %v1140 = vrot.slane %v1138, 4
      %v1141 = vor.u32 %v1137, %v1140
      %v1142 = vsel %vm964, %v1123, %v1141
      %v1144 = vshrl.u32 %v954, 16
      %v1146 = vrot.slane %v1144, 3
      %v1147 = vshll.u32 %v954, 16
      %v1149 = vrot.slane %v1147, 4
      %v1150 = vor.u32 %v1146, %v1149
      %v1151 = vsel %vm964, %v1132, %v1150
      %v1153 = vshrl.u32 %v955, 16
      %v1155 = vrot.slane %v1153, 3
      %v1156 = vshll.u32 %v955, 16
      %v1158 = vrot.slane %v1156, 4
      %v1159 = vor.u32 %v1155, %v1158
      %v1160 = vsel %vm964, %v1141, %v1159
      %v1162 = vshrl.u32 %v956, 16
      %v1164 = vrot.slane %v1162, 3
      %v1165 = vshll.u32 %v956, 16
      %v1167 = vrot.slane %v1165, 4
      %v1168 = vor.u32 %v1164, %v1167
      %v1169 = vsel %vm964, %v1150, %v1168
      %v1171 = vshrl.u32 %v957, 16
      %v1173 = vrot.slane %v1171, 3
      %v1174 = vshll.u32 %v957, 16
      %v1176 = vrot.slane %v1174, 4
      %v1177 = vor.u32 %v1173, %v1176
      %v1178 = vsel %vm964, %v1159, %v1177
      %v1180 = vshrl.u32 %v958, 16
      %v1182 = vrot.slane %v1180, 3
      %v1183 = vshll.u32 %v958, 16
      %v1185 = vrot.slane %v1183, 4
      %v1186 = vor.u32 %v1182, %v1185
      %v1187 = vsel %vm964, %v1168, %v1186
      %v1189 = vshrl.u32 %v959, 16
      %v1191 = vrot.slane %v1189, 3
      %v1192 = vshll.u32 %v959, 16
      %v1194 = vrot.slane %v1192, 4
      %v1195 = vor.u32 %v1191, %v1194
      %v1196 = vsel %vm964, %v1177, %v1195
      %v1198 = vshrl.u32 %v960, 16
      %v1200 = vrot.slane %v1198, 3
      %v1201 = vshll.u32 %v960, 16
      %v1203 = vrot.slane %v1201, 4
      %v1204 = vor.u32 %v1200, %v1203
      %v1205 = vsel %vm964, %v1186, %v1204
      %v1207 = vshrl.u32 %v961, 16
      %v1209 = vrot.slane %v1207, 3
      %v1210 = vshll.u32 %v961, 16
      %v1212 = vrot.slane %v1210, 4
      %v1213 = vor.u32 %v1209, %v1212
      %v1214 = vsel %vm964, %v1195, %v1213
      %v1216 = vshrl.u32 %v962, 16
      %v1218 = vrot.slane %v1216, 3
      %v1219 = vshll.u32 %v962, 16
      %v1221 = vrot.slane %v1219, 4
      %v1222 = vor.u32 %v1218, %v1221
      %v1223 = vsel %vm964, %v1204, %v1222
      %v1225 = vshrl.u32 %v963, 16
      %v1227 = vrot.slane %v1225, 3
      %v1228 = vshll.u32 %v963, 16
      %v1230 = vrot.slane %v1228, 4
      %v1231 = vor.u32 %v1227, %v1230
      %v1232 = vsel %vm964, %v1213, %v1231
      %1261 = vst [vmem:[#allocation4 + $0x20] sm:$0xff] %v981
      %1262 = vst [vmem:[#allocation4 + $0x28] sm:$0xff] %v998
      %1263 = vst [vmem:[#allocation4 + $0xb0] sm:$0xff] %v1007
      %1264 = vst [vmem:[#allocation4 + $0xb8] sm:$0xff] %v1016
      %1265 = vst [vmem:[#allocation4 + $0x140] sm:$0xff] %v1025
      %1266 = vst [vmem:[#allocation4 + $0x148] sm:$0xff] %v1034
      %1267 = vst [vmem:[#allocation4 + $0x1d0] sm:$0xff] %v1043
      %1268 = vst [vmem:[#allocation4 + $0x1d8] sm:$0xff] %v1052
      %1269 = vst [vmem:[#allocation4 + $0x260] sm:$0xff] %v1061
      %1270 = vst [vmem:[#allocation4 + $0x268] sm:$0xff] %v1070
      %1271 = vst [vmem:[#allocation4 + $0x2f0] sm:$0xff] %v1079
      %1272 = vst [vmem:[#allocation4 + $0x2f8] sm:$0xff] %v1088
      %1273 = vst [vmem:[#allocation4 + $0x380] sm:$0xff] %v1097
      %1274 = vst [vmem:[#allocation4 + $0x388] sm:$0xff] %v1106
      %1275 = vst [vmem:[#allocation4 + $0x410] sm:$0xff] %v1115
      %1276 = vst [vmem:[#allocation4 + $0x418] sm:$0xff] %v1124
      %1277 = vst [vmem:[#allocation4 + $0x4a0] sm:$0xff] %v1133
      %1278 = vst [vmem:[#allocation4 + $0x4a8] sm:$0xff] %v1142
      %1279 = vst [vmem:[#allocation4 + $0x530] sm:$0xff] %v1151
      %1280 = vst [vmem:[#allocation4 + $0x538] sm:$0xff] %v1160
      %1281 = vst [vmem:[#allocation4 + $0x5c0] sm:$0xff] %v1169
      %1282 = vst [vmem:[#allocation4 + $0x5c8] sm:$0xff] %v1178
      %1283 = vst [vmem:[#allocation4 + $0x650] sm:$0xff] %v1187
      %1284 = vst [vmem:[#allocation4 + $0x658] sm:$0xff] %v1196
      %1285 = vst [vmem:[#allocation4 + $0x6e0] sm:$0xff] %v1205
      %1286 = vst [vmem:[#allocation4 + $0x6e8] sm:$0xff] %v1214
      %1287 = vst [vmem:[#allocation4 + $0x770] sm:$0xff] %v1223
      %1288 = vst [vmem:[#allocation4 + $0x778] sm:$0xff] %v1232
      %v1289 = vld [vmem:[#allocation2] sm:$0x80]
      %v1290 = vld [vmem:[#allocation2 + $0x8] sm:$0x80]
      %v1291 = vld [vmem:[#allocation2 + $0x10] sm:$0xff]
      %v1292 = vld [vmem:[#allocation2 + $0x18] sm:$0xff]
      %v1293 = vld [vmem:[#allocation2 + $0x20] sm:$0xff]
      %v1294 = vld [vmem:[#allocation2 + $0x28] sm:$0xff]
      %v1295 = vld [vmem:[#allocation2 + $0x30] sm:$0xff]
      %v1296 = vld [vmem:[#allocation2 + $0x38] sm:$0xff]
      %v1297 = vld [vmem:[#allocation2 + $0x40] sm:$0xff]
      %v1298 = vld [vmem:[#allocation2 + $0x48] sm:$0xff]
      %v1299 = vld [vmem:[#allocation2 + $0x50] sm:$0xff]
      %v1300 = vld [vmem:[#allocation2 + $0x58] sm:$0xff]
      %v1301 = vld [vmem:[#allocation2 + $0x60] sm:$0xff]
      %v1302 = vld [vmem:[#allocation2 + $0x68] sm:$0xff]
      %v1303 = vld [vmem:[#allocation2 + $0x70] sm:$0xff]
      %v1304 = vld [vmem:[#allocation2 + $0x78] sm:$0xff]
      %v1305 = vld [vmem:[#allocation2 + $0x80] sm:$0xff]
      %v1306 = vld [vmem:[#allocation2 + $0x88] sm:$0xff]
      %v1307 = vld [vmem:[#allocation2 + $0x90] sm:$0xff]
      %v1308 = vld [vmem:[#allocation2 + $0x98] sm:$0xff]
      %v1309 = vld [vmem:[#allocation2 + $0xa0] sm:$0xff]
      %v1310 = vld [vmem:[#allocation2 + $0xa8] sm:$0xff]
      %v1311 = vld [vmem:[#allocation2 + $0xb0] sm:$0xff]
      %v1312 = vld [vmem:[#allocation2 + $0xb8] sm:$0xff]
      %v1313 = vld [vmem:[#allocation2 + $0xc0] sm:$0xff]
      %v1314 = vld [vmem:[#allocation2 + $0xc8] sm:$0xff]
      %v1315 = vld [vmem:[#allocation2 + $0xd0] sm:$0xff]
      %v1316 = vld [vmem:[#allocation2 + $0xd8] sm:$0xff]
      %v1317 = vld [vmem:[#allocation2 + $0xe0] sm:$0xff]
      %v1318 = vld [vmem:[#allocation2 + $0xe8] sm:$0xff]
      %vm1319 = vsmask.f32 256
      %v1321 = vshrl.u32 %v1289, 16
      %v1323 = vrot.slane %v1321, 7
      %v1325 = vshrl.u32 %v1291, 16
      %v1327 = vrot.slane %v1325, 7
      %v1328 = vshll.u32 %v1291, 16
      %v1330 = vor.u32 %v1327, %v1328
      %v1331 = vsel %vm1319, %v1323, %v1330
      %v1333 = vshrl.u32 %v1290, 16
      %v1335 = vrot.slane %v1333, 7
      %v1337 = vshrl.u32 %v1292, 16
      %v1339 = vrot.slane %v1337, 7
      %v1340 = vshll.u32 %v1292, 16
      %v1342 = vor.u32 %v1339, %v1340
      %v1343 = vsel %vm1319, %v1335, %v1342
      %v1345 = vshrl.u32 %v1293, 16
      %v1347 = vrot.slane %v1345, 7
      %v1348 = vshll.u32 %v1293, 16
      %v1350 = vor.u32 %v1347, %v1348
      %v1351 = vsel %vm1319, %v1327, %v1350
      %v1353 = vshrl.u32 %v1294, 16
      %v1355 = vrot.slane %v1353, 7
      %v1356 = vshll.u32 %v1294, 16
      %v1358 = vor.u32 %v1355, %v1356
      %v1359 = vsel %vm1319, %v1339, %v1358
      %v1361 = vshrl.u32 %v1295, 16
      %v1363 = vrot.slane %v1361, 7
      %v1364 = vshll.u32 %v1295, 16
      %v1366 = vor.u32 %v1363, %v1364
      %v1367 = vsel %vm1319, %v1347, %v1366
      %v1369 = vshrl.u32 %v1296, 16
      %v1371 = vrot.slane %v1369, 7
      %v1372 = vshll.u32 %v1296, 16
      %v1374 = vor.u32 %v1371, %v1372
      %v1375 = vsel %vm1319, %v1355, %v1374
      %v1377 = vshrl.u32 %v1297, 16
      %v1379 = vrot.slane %v1377, 7
      %v1380 = vshll.u32 %v1297, 16
      %v1382 = vor.u32 %v1379, %v1380
      %v1383 = vsel %vm1319, %v1363, %v1382
      %v1385 = vshrl.u32 %v1298, 16
      %v1387 = vrot.slane %v1385, 7
      %v1388 = vshll.u32 %v1298, 16
      %v1390 = vor.u32 %v1387, %v1388
      %v1391 = vsel %vm1319, %v1371, %v1390
      %v1393 = vshrl.u32 %v1299, 16
      %v1395 = vrot.slane %v1393, 7
      %v1396 = vshll.u32 %v1299, 16
      %v1398 = vor.u32 %v1395, %v1396
      %v1399 = vsel %vm1319, %v1379, %v1398
      %v1401 = vshrl.u32 %v1300, 16
      %v1403 = vrot.slane %v1401, 7
      %v1404 = vshll.u32 %v1300, 16
      %v1406 = vor.u32 %v1403, %v1404
      %v1407 = vsel %vm1319, %v1387, %v1406
      %v1409 = vshrl.u32 %v1301, 16
      %v1411 = vrot.slane %v1409, 7
      %v1412 = vshll.u32 %v1301, 16
      %v1414 = vor.u32 %v1411, %v1412
      %v1415 = vsel %vm1319, %v1395, %v1414
      %v1417 = vshrl.u32 %v1302, 16
      %v1419 = vrot.slane %v1417, 7
      %v1420 = vshll.u32 %v1302, 16
      %v1422 = vor.u32 %v1419, %v1420
      %v1423 = vsel %vm1319, %v1403, %v1422
      %v1425 = vshrl.u32 %v1303, 16
      %v1427 = vrot.slane %v1425, 7
      %v1428 = vshll.u32 %v1303, 16
      %v1430 = vor.u32 %v1427, %v1428
      %v1431 = vsel %vm1319, %v1411, %v1430
      %v1433 = vshrl.u32 %v1304, 16
      %v1435 = vrot.slane %v1433, 7
      %v1436 = vshll.u32 %v1304, 16
      %v1438 = vor.u32 %v1435, %v1436
      %v1439 = vsel %vm1319, %v1419, %v1438
      %v1441 = vshrl.u32 %v1305, 16
      %v1443 = vrot.slane %v1441, 7
      %v1444 = vshll.u32 %v1305, 16
      %v1446 = vor.u32 %v1443, %v1444
      %v1447 = vsel %vm1319, %v1427, %v1446
      %v1449 = vshrl.u32 %v1306, 16
      %v1451 = vrot.slane %v1449, 7
      %v1452 = vshll.u32 %v1306, 16
      %v1454 = vor.u32 %v1451, %v1452
      %v1455 = vsel %vm1319, %v1435, %v1454
      %v1457 = vshrl.u32 %v1307, 16
      %v1459 = vrot.slane %v1457, 7
      %v1460 = vshll.u32 %v1307, 16
      %v1462 = vor.u32 %v1459, %v1460
      %v1463 = vsel %vm1319, %v1443, %v1462
      %v1465 = vshrl.u32 %v1308, 16
      %v1467 = vrot.slane %v1465, 7
      %v1468 = vshll.u32 %v1308, 16
      %v1470 = vor.u32 %v1467, %v1468
      %v1471 = vsel %vm1319, %v1451, %v1470
      %v1473 = vshrl.u32 %v1309, 16
      %v1475 = vrot.slane %v1473, 7
      %v1476 = vshll.u32 %v1309, 16
      %v1478 = vor.u32 %v1475, %v1476
      %v1479 = vsel %vm1319, %v1459, %v1478
      %v1481 = vshrl.u32 %v1310, 16
      %v1483 = vrot.slane %v1481, 7
      %v1484 = vshll.u32 %v1310, 16
      %v1486 = vor.u32 %v1483, %v1484
      %v1487 = vsel %vm1319, %v1467, %v1486
      %v1489 = vshrl.u32 %v1311, 16
      %v1491 = vrot.slane %v1489, 7
      %v1492 = vshll.u32 %v1311, 16
      %v1494 = vor.u32 %v1491, %v1492
      %v1495 = vsel %vm1319, %v1475, %v1494
      %v1497 = vshrl.u32 %v1312, 16
      %v1499 = vrot.slane %v1497, 7
      %v1500 = vshll.u32 %v1312, 16
      %v1502 = vor.u32 %v1499, %v1500
      %v1503 = vsel %vm1319, %v1483, %v1502
      %v1505 = vshrl.u32 %v1313, 16
      %v1507 = vrot.slane %v1505, 7
      %v1508 = vshll.u32 %v1313, 16
      %v1510 = vor.u32 %v1507, %v1508
      %v1511 = vsel %vm1319, %v1491, %v1510
      %v1513 = vshrl.u32 %v1314, 16
      %v1515 = vrot.slane %v1513, 7
      %v1516 = vshll.u32 %v1314, 16
      %v1518 = vor.u32 %v1515, %v1516
      %v1519 = vsel %vm1319, %v1499, %v1518
      %v1521 = vshrl.u32 %v1315, 16
      %v1523 = vrot.slane %v1521, 7
      %v1524 = vshll.u32 %v1315, 16
      %v1526 = vor.u32 %v1523, %v1524
      %v1527 = vsel %vm1319, %v1507, %v1526
      %v1529 = vshrl.u32 %v1316, 16
      %v1531 = vrot.slane %v1529, 7
      %v1532 = vshll.u32 %v1316, 16
      %v1534 = vor.u32 %v1531, %v1532
      %v1535 = vsel %vm1319, %v1515, %v1534
      %v1537 = vshrl.u32 %v1317, 16
      %v1539 = vrot.slane %v1537, 7
      %v1540 = vshll.u32 %v1317, 16
      %v1542 = vor.u32 %v1539, %v1540
      %v1543 = vsel %vm1319, %v1523, %v1542
      %v1545 = vshrl.u32 %v1318, 16
      %v1547 = vrot.slane %v1545, 7
      %v1548 = vshll.u32 %v1318, 16
      %v1550 = vor.u32 %v1547, %v1548
      %v1551 = vsel %vm1319, %v1531, %v1550
      %1580 = vst [vmem:[#allocation4 + $0x30] sm:$0xff] %v1331
      %1581 = vst [vmem:[#allocation4 + $0x38] sm:$0xff] %v1343
      %1582 = vst [vmem:[#allocation4 + $0xc0] sm:$0xff] %v1351
      %1583 = vst [vmem:[#allocation4 + $0xc8] sm:$0xff] %v1359
      %1584 = vst [vmem:[#allocation4 + $0x150] sm:$0xff] %v1367
      %1585 = vst [vmem:[#allocation4 + $0x158] sm:$0xff] %v1375
      %1586 = vst [vmem:[#allocation4 + $0x1e0] sm:$0xff] %v1383
      %1587 = vst [vmem:[#allocation4 + $0x1e8] sm:$0xff] %v1391
      %1588 = vst [vmem:[#allocation4 + $0x270] sm:$0xff] %v1399
      %1589 = vst [vmem:[#allocation4 + $0x278] sm:$0xff] %v1407
      %1590 = vst [vmem:[#allocation4 + $0x300] sm:$0xff] %v1415
      %1591 = vst [vmem:[#allocation4 + $0x308] sm:$0xff] %v1423
      %1592 = vst [vmem:[#allocation4 + $0x390] sm:$0xff] %v1431
      %1593 = vst [vmem:[#allocation4 + $0x398] sm:$0xff] %v1439
      %1594 = vst [vmem:[#allocation4 + $0x420] sm:$0xff] %v1447
      %1595 = vst [vmem:[#allocation4 + $0x428] sm:$0xff] %v1455
      %1596 = vst [vmem:[#allocation4 + $0x4b0] sm:$0xff] %v1463
      %1597 = vst [vmem:[#allocation4 + $0x4b8] sm:$0xff] %v1471
      %1598 = vst [vmem:[#allocation4 + $0x540] sm:$0xff] %v1479
      %1599 = vst [vmem:[#allocation4 + $0x548] sm:$0xff] %v1487
      %1600 = vst [vmem:[#allocation4 + $0x5d0] sm:$0xff] %v1495
      %1601 = vst [vmem:[#allocation4 + $0x5d8] sm:$0xff] %v1503
      %1602 = vst [vmem:[#allocation4 + $0x660] sm:$0xff] %v1511
      %1603 = vst [vmem:[#allocation4 + $0x668] sm:$0xff] %v1519
      %1604 = vst [vmem:[#allocation4 + $0x6f0] sm:$0xff] %v1527
      %1605 = vst [vmem:[#allocation4 + $0x6f8] sm:$0xff] %v1535
      %1606 = vst [vmem:[#allocation4 + $0x780] sm:$0xff] %v1543
      %1607 = vst [vmem:[#allocation4 + $0x788] sm:$0xff] %v1551
      %v1608 = vld [vmem:[#allocation2 + $0x10] sm:$0xff]
      %v1609 = vld [vmem:[#allocation2 + $0x18] sm:$0xff]
      %v1610 = vld [vmem:[#allocation2 + $0x20] sm:$0xff]
      %v1611 = vld [vmem:[#allocation2 + $0x28] sm:$0xff]
      %v1612 = vld [vmem:[#allocation2 + $0x30] sm:$0xff]
      %v1613 = vld [vmem:[#allocation2 + $0x38] sm:$0xff]
      %v1614 = vld [vmem:[#allocation2 + $0x40] sm:$0xff]
      %v1615 = vld [vmem:[#allocation2 + $0x48] sm:$0xff]
      %v1616 = vld [vmem:[#allocation2 + $0x50] sm:$0xff]
      %v1617 = vld [vmem:[#allocation2 + $0x58] sm:$0xff]
      %v1618 = vld [vmem:[#allocation2 + $0x60] sm:$0xff]
      %v1619 = vld [vmem:[#allocation2 + $0x68] sm:$0xff]
      %v1620 = vld [vmem:[#allocation2 + $0x70] sm:$0xff]
      %v1621 = vld [vmem:[#allocation2 + $0x78] sm:$0xff]
      %v1622 = vld [vmem:[#allocation2 + $0x80] sm:$0xff]
      %v1623 = vld [vmem:[#allocation2 + $0x88] sm:$0xff]
      %v1624 = vld [vmem:[#allocation2 + $0x90] sm:$0xff]
      %v1625 = vld [vmem:[#allocation2 + $0x98] sm:$0xff]
      %v1626 = vld [vmem:[#allocation2 + $0xa0] sm:$0xff]
      %v1627 = vld [vmem:[#allocation2 + $0xa8] sm:$0xff]
      %v1628 = vld [vmem:[#allocation2 + $0xb0] sm:$0xff]
      %v1629 = vld [vmem:[#allocation2 + $0xb8] sm:$0xff]
      %v1630 = vld [vmem:[#allocation2 + $0xc0] sm:$0xff]
      %v1631 = vld [vmem:[#allocation2 + $0xc8] sm:$0xff]
      %v1632 = vld [vmem:[#allocation2 + $0xd0] sm:$0xff]
      %v1633 = vld [vmem:[#allocation2 + $0xd8] sm:$0xff]
      %v1634 = vld [vmem:[#allocation2 + $0xe0] sm:$0xff]
      %v1635 = vld [vmem:[#allocation2 + $0xe8] sm:$0xff]
      %1636 = vst [vmem:[#allocation4 + $0x40] sm:$0xff] %v1608
      %1637 = vst [vmem:[#allocation4 + $0x48] sm:$0xff] %v1609
      %1638 = vst [vmem:[#allocation4 + $0xd0] sm:$0xff] %v1610
      %1639 = vst [vmem:[#allocation4 + $0xd8] sm:$0xff] %v1611
      %1640 = vst [vmem:[#allocation4 + $0x160] sm:$0xff] %v1612
      %1641 = vst [vmem:[#allocation4 + $0x168] sm:$0xff] %v1613
      %1642 = vst [vmem:[#allocation4 + $0x1f0] sm:$0xff] %v1614
      %1643 = vst [vmem:[#allocation4 + $0x1f8] sm:$0xff] %v1615
      %1644 = vst [vmem:[#allocation4 + $0x280] sm:$0xff] %v1616
      %1645 = vst [vmem:[#allocation4 + $0x288] sm:$0xff] %v1617
      %1646 = vst [vmem:[#allocation4 + $0x310] sm:$0xff] %v1618
      %1647 = vst [vmem:[#allocation4 + $0x318] sm:$0xff] %v1619
      %1648 = vst [vmem:[#allocation4 + $0x3a0] sm:$0xff] %v1620
      %1649 = vst [vmem:[#allocation4 + $0x3a8] sm:$0xff] %v1621
      %1650 = vst [vmem:[#allocation4 + $0x430] sm:$0xff] %v1622
      %1651 = vst [vmem:[#allocation4 + $0x438] sm:$0xff] %v1623
      %1652 = vst [vmem:[#allocation4 + $0x4c0] sm:$0xff] %v1624
      %1653 = vst [vmem:[#allocation4 + $0x4c8] sm:$0xff] %v1625
      %1654 = vst [vmem:[#allocation4 + $0x550] sm:$0xff] %v1626
      %1655 = vst [vmem:[#allocation4 + $0x558] sm:$0xff] %v1627
      %1656 = vst [vmem:[#allocation4 + $0x5e0] sm:$0xff] %v1628
      %1657 = vst [vmem:[#allocation4 + $0x5e8] sm:$0xff] %v1629
      %1658 = vst [vmem:[#allocation4 + $0x670] sm:$0xff] %v1630
      %1659 = vst [vmem:[#allocation4 + $0x678] sm:$0xff] %v1631
      %1660 = vst [vmem:[#allocation4 + $0x700] sm:$0xff] %v1632
      %1661 = vst [vmem:[#allocation4 + $0x708] sm:$0xff] %v1633
      %1662 = vst [vmem:[#allocation4 + $0x790] sm:$0xff] %v1634
      %1663 = vst [vmem:[#allocation4 + $0x798] sm:$0xff] %v1635
      %v1664 = vld [vmem:[#allocation2 + $0x10] sm:$0xff]
      %v1665 = vld [vmem:[#allocation2 + $0x18] sm:$0xff]
      %v1666 = vld [vmem:[#allocation2 + $0x20] sm:$0xff]
      %v1667 = vld [vmem:[#allocation2 + $0x28] sm:$0xff]
      %v1668 = vld [vmem:[#allocation2 + $0x30] sm:$0xff]
      %v1669 = vld [vmem:[#allocation2 + $0x38] sm:$0xff]
      %v1670 = vld [vmem:[#allocation2 + $0x40] sm:$0xff]
      %v1671 = vld [vmem:[#allocation2 + $0x48] sm:$0xff]
      %v1672 = vld [vmem:[#allocation2 + $0x50] sm:$0xff]
      %v1673 = vld [vmem:[#allocation2 + $0x58] sm:$0xff]
      %v1674 = vld [vmem:[#allocation2 + $0x60] sm:$0xff]
      %v1675 = vld [vmem:[#allocation2 + $0x68] sm:$0xff]
      %v1676 = vld [vmem:[#allocation2 + $0x70] sm:$0xff]
      %v1677 = vld [vmem:[#allocation2 + $0x78] sm:$0xff]
      %v1678 = vld [vmem:[#allocation2 + $0x80] sm:$0xff]
      %v1679 = vld [vmem:[#allocation2 + $0x88] sm:$0xff]
      %v1680 = vld [vmem:[#allocation2 + $0x90] sm:$0xff]
      %v1681 = vld [vmem:[#allocation2 + $0x98] sm:$0xff]
      %v1682 = vld [vmem:[#allocation2 + $0xa0] sm:$0xff]
      %v1683 = vld [vmem:[#allocation2 + $0xa8] sm:$0xff]
      %v1684 = vld [vmem:[#allocation2 + $0xb0] sm:$0xff]
      %v1685 = vld [vmem:[#allocation2 + $0xb8] sm:$0xff]
      %v1686 = vld [vmem:[#allocation2 + $0xc0] sm:$0xff]
      %v1687 = vld [vmem:[#allocation2 + $0xc8] sm:$0xff]
      %v1688 = vld [vmem:[#allocation2 + $0xd0] sm:$0xff]
      %v1689 = vld [vmem:[#allocation2 + $0xd8] sm:$0xff]
      %v1690 = vld [vmem:[#allocation2 + $0xe0] sm:$0xff]
      %v1691 = vld [vmem:[#allocation2 + $0xe8] sm:$0xff]
      %v1692 = vld [vmem:[#allocation2 + $0xf0] sm:$0x1]
      %v1693 = vld [vmem:[#allocation2 + $0xf8] sm:$0x1]
      %vm1694 = vsmask.f32 7424
      %v1696 = vshrl.u32 %v1664, 16
      %v1698 = vshll.u32 %v1664, 16
      %v1700 = vrot.slane %v1698, 1
      %v1701 = vor.u32 %v1696, %v1700
      %v1703 = vshll.u32 %v1666, 16
      %v1705 = vrot.slane %v1703, 1
      %v1706 = vsel %vm1694, %v1701, %v1705
      %v1708 = vshrl.u32 %v1665, 16
      %v1710 = vshll.u32 %v1665, 16
      %v1712 = vrot.slane %v1710, 1
      %v1713 = vor.u32 %v1708, %v1712
      %v1715 = vshll.u32 %v1667, 16
      %v1717 = vrot.slane %v1715, 1
      %v1718 = vsel %vm1694, %v1713, %v1717
      %v1719 = vshrl.u32 %v1666, 16
      %v1721 = vor.u32 %v1719, %v1705
      %v1723 = vshll.u32 %v1668, 16
      %v1725 = vrot.slane %v1723, 1
      %v1726 = vsel %vm1694, %v1721, %v1725
      %v1727 = vshrl.u32 %v1667, 16
      %v1729 = vor.u32 %v1727, %v1717
      %v1731 = vshll.u32 %v1669, 16
      %v1733 = vrot.slane %v1731, 1
      %v1734 = vsel %vm1694, %v1729, %v1733
      %v1735 = vshrl.u32 %v1668, 16
      %v1737 = vor.u32 %v1735, %v1725
      %v1739 = vshll.u32 %v1670, 16
      %v1741 = vrot.slane %v1739, 1
      %v1742 = vsel %vm1694, %v1737, %v1741
      %v1743 = vshrl.u32 %v1669, 16
      %v1745 = vor.u32 %v1743, %v1733
      %v1747 = vshll.u32 %v1671, 16
      %v1749 = vrot.slane %v1747, 1
      %v1750 = vsel %vm1694, %v1745, %v1749
      %v1751 = vshrl.u32 %v1670, 16
      %v1753 = vor.u32 %v1751, %v1741
      %v1755 = vshll.u32 %v1672, 16
      %v1757 = vrot.slane %v1755, 1
      %v1758 = vsel %vm1694, %v1753, %v1757
      %v1759 = vshrl.u32 %v1671, 16
      %v1761 = vor.u32 %v1759, %v1749
      %v1763 = vshll.u32 %v1673, 16
      %v1765 = vrot.slane %v1763, 1
      %v1766 = vsel %vm1694, %v1761, %v1765
      %v1767 = vshrl.u32 %v1672, 16
      %v1769 = vor.u32 %v1767, %v1757
      %v1771 = vshll.u32 %v1674, 16
      %v1773 = vrot.slane %v1771, 1
      %v1774 = vsel %vm1694, %v1769, %v1773
      %v1775 = vshrl.u32 %v1673, 16
      %v1777 = vor.u32 %v1775, %v1765
      %v1779 = vshll.u32 %v1675, 16
      %v1781 = vrot.slane %v1779, 1
      %v1782 = vsel %vm1694, %v1777, %v1781
      %v1783 = vshrl.u32 %v1674, 16
      %v1785 = vor.u32 %v1783, %v1773
      %v1787 = vshll.u32 %v1676, 16
      %v1789 = vrot.slane %v1787, 1
      %v1790 = vsel %vm1694, %v1785, %v1789
      %v1791 = vshrl.u32 %v1675, 16
      %v1793 = vor.u32 %v1791, %v1781
      %v1795 = vshll.u32 %v1677, 16
      %v1797 = vrot.slane %v1795, 1
      %v1798 = vsel %vm1694, %v1793, %v1797
      %v1799 = vshrl.u32 %v1676, 16
      %v1801 = vor.u32 %v1799, %v1789
      %v1803 = vshll.u32 %v1678, 16
      %v1805 = vrot.slane %v1803, 1
      %v1806 = vsel %vm1694, %v1801, %v1805
      %v1807 = vshrl.u32 %v1677, 16
      %v1809 = vor.u32 %v1807, %v1797
      %v1811 = vshll.u32 %v1679, 16
      %v1813 = vrot.slane %v1811, 1
      %v1814 = vsel %vm1694, %v1809, %v1813
      %v1815 = vshrl.u32 %v1678, 16
      %v1817 = vor.u32 %v1815, %v1805
      %v1819 = vshll.u32 %v1680, 16
      %v1821 = vrot.slane %v1819, 1
      %v1822 = vsel %vm1694, %v1817, %v1821
      %v1823 = vshrl.u32 %v1679, 16
      %v1825 = vor.u32 %v1823, %v1813
      %v1827 = vshll.u32 %v1681, 16
      %v1829 = vrot.slane %v1827, 1
      %v1830 = vsel %vm1694, %v1825, %v1829
      %v1831 = vshrl.u32 %v1680, 16
      %v1833 = vor.u32 %v1831, %v1821
      %v1835 = vshll.u32 %v1682, 16
      %v1837 = vrot.slane %v1835, 1
      %v1838 = vsel %vm1694, %v1833, %v1837
      %v1839 = vshrl.u32 %v1681, 16
      %v1841 = vor.u32 %v1839, %v1829
      %v1843 = vshll.u32 %v1683, 16
      %v1845 = vrot.slane %v1843, 1
      %v1846 = vsel %vm1694, %v1841, %v1845
      %v1847 = vshrl.u32 %v1682, 16
      %v1849 = vor.u32 %v1847, %v1837
      %v1851 = vshll.u32 %v1684, 16
      %v1853 = vrot.slane %v1851, 1
      %v1854 = vsel %vm1694, %v1849, %v1853
      %v1855 = vshrl.u32 %v1683, 16
      %v1857 = vor.u32 %v1855, %v1845
      %v1859 = vshll.u32 %v1685, 16
      %v1861 = vrot.slane %v1859, 1
      %v1862 = vsel %vm1694, %v1857, %v1861
      %v1863 = vshrl.u32 %v1684, 16
      %v1865 = vor.u32 %v1863, %v1853
      %v1867 = vshll.u32 %v1686, 16
      %v1869 = vrot.slane %v1867, 1
      %v1870 = vsel %vm1694, %v1865, %v1869
      %v1871 = vshrl.u32 %v1685, 16
      %v1873 = vor.u32 %v1871, %v1861
      %v1875 = vshll.u32 %v1687, 16
      %v1877 = vrot.slane %v1875, 1
      %v1878 = vsel %vm1694, %v1873, %v1877
      %v1879 = vshrl.u32 %v1686, 16
      %v1881 = vor.u32 %v1879, %v1869
      %v1883 = vshll.u32 %v1688, 16
      %v1885 = vrot.slane %v1883, 1
      %v1886 = vsel %vm1694, %v1881, %v1885
      %v1887 = vshrl.u32 %v1687, 16
      %v1889 = vor.u32 %v1887, %v1877
      %v1891 = vshll.u32 %v1689, 16
      %v1893 = vrot.slane %v1891, 1
      %v1894 = vsel %vm1694, %v1889, %v1893
      %v1895 = vshrl.u32 %v1688, 16
      %v1897 = vor.u32 %v1895, %v1885
      %v1899 = vshll.u32 %v1690, 16
      %v1901 = vrot.slane %v1899, 1
      %v1902 = vsel %vm1694, %v1897, %v1901
      %v1903 = vshrl.u32 %v1689, 16
      %v1905 = vor.u32 %v1903, %v1893
      %v1907 = vshll.u32 %v1691, 16
      %v1909 = vrot.slane %v1907, 1
      %v1910 = vsel %vm1694, %v1905, %v1909
      %v1911 = vshrl.u32 %v1690, 16
      %v1913 = vor.u32 %v1911, %v1901
      %v1915 = vshll.u32 %v1692, 16
      %v1917 = vrot.slane %v1915, 1
      %v1918 = vsel %vm1694, %v1913, %v1917
      %v1919 = vshrl.u32 %v1691, 16
      %v1921 = vor.u32 %v1919, %v1909
      %v1923 = vshll.u32 %v1693, 16
      %v1925 = vrot.slane %v1923, 1
      %v1926 = vsel %vm1694, %v1921, %v1925
      %1955 = vst [vmem:[#allocation4 + $0x50] sm:$0xff] %v1706
      %1956 = vst [vmem:[#allocation4 + $0x58] sm:$0xff] %v1718
      %1957 = vst [vmem:[#allocation4 + $0xe0] sm:$0xff] %v1726
      %1958 = vst [vmem:[#allocation4 + $0xe8] sm:$0xff] %v1734
      %1959 = vst [vmem:[#allocation4 + $0x170] sm:$0xff] %v1742
      %1960 = vst [vmem:[#allocation4 + $0x178] sm:$0xff] %v1750
      %1961 = vst [vmem:[#allocation4 + $0x200] sm:$0xff] %v1758
      %1962 = vst [vmem:[#allocation4 + $0x208] sm:$0xff] %v1766
      %1963 = vst [vmem:[#allocation4 + $0x290] sm:$0xff] %v1774
      %1964 = vst [vmem:[#allocation4 + $0x298] sm:$0xff] %v1782
      %1965 = vst [vmem:[#allocation4 + $0x320] sm:$0xff] %v1790
      %1966 = vst [vmem:[#allocation4 + $0x328] sm:$0xff] %v1798
      %1967 = vst [vmem:[#allocation4 + $0x3b0] sm:$0xff] %v1806
      %1968 = vst [vmem:[#allocation4 + $0x3b8] sm:$0xff] %v1814
      %1969 = vst [vmem:[#allocation4 + $0x440] sm:$0xff] %v1822
      %1970 = vst [vmem:[#allocation4 + $0x448] sm:$0xff] %v1830
      %1971 = vst [vmem:[#allocation4 + $0x4d0] sm:$0xff] %v1838
      %1972 = vst [vmem:[#allocation4 + $0x4d8] sm:$0xff] %v1846
      %1973 = vst [vmem:[#allocation4 + $0x560] sm:$0xff] %v1854
      %1974 = vst [vmem:[#allocation4 + $0x568] sm:$0xff] %v1862
      %1975 = vst [vmem:[#allocation4 + $0x5f0] sm:$0xff] %v1870
      %1976 = vst [vmem:[#allocation4 + $0x5f8] sm:$0xff] %v1878
      %1977 = vst [vmem:[#allocation4 + $0x680] sm:$0xff] %v1886
      %1978 = vst [vmem:[#allocation4 + $0x688] sm:$0xff] %v1894
      %1979 = vst [vmem:[#allocation4 + $0x710] sm:$0xff] %v1902
      %1980 = vst [vmem:[#allocation4 + $0x718] sm:$0xff] %v1910
      %1981 = vst [vmem:[#allocation4 + $0x7a0] sm:$0xff] %v1918
      %1982 = vst [vmem:[#allocation4 + $0x7a8] sm:$0xff] %v1926
      %v1983 = vld [vmem:[#allocation2 + $0x10] sm:$0xf0]
      %v1984 = vld [vmem:[#allocation2 + $0x18] sm:$0xf0]
      %v1985 = vld [vmem:[#allocation2 + $0x20] sm:$0xff]
      %v1986 = vld [vmem:[#allocation2 + $0x28] sm:$0xff]
      %v1987 = vld [vmem:[#allocation2 + $0x30] sm:$0xff]
      %v1988 = vld [vmem:[#allocation2 + $0x38] sm:$0xff]
      %v1989 = vld [vmem:[#allocation2 + $0x40] sm:$0xff]
      %v1990 = vld [vmem:[#allocation2 + $0x48] sm:$0xff]
      %v1991 = vld [vmem:[#allocation2 + $0x50] sm:$0xff]
      %v1992 = vld [vmem:[#allocation2 + $0x58] sm:$0xff]
      %v1993 = vld [vmem:[#allocation2 + $0x60] sm:$0xff]
      %v1994 = vld [vmem:[#allocation2 + $0x68] sm:$0xff]
      %v1995 = vld [vmem:[#allocation2 + $0x70] sm:$0xff]
      %v1996 = vld [vmem:[#allocation2 + $0x78] sm:$0xff]
      %v1997 = vld [vmem:[#allocation2 + $0x80] sm:$0xff]
      %v1998 = vld [vmem:[#allocation2 + $0x88] sm:$0xff]
      %v1999 = vld [vmem:[#allocation2 + $0x90] sm:$0xff]
      %v2000 = vld [vmem:[#allocation2 + $0x98] sm:$0xff]
      %v2001 = vld [vmem:[#allocation2 + $0xa0] sm:$0xff]
      %v2002 = vld [vmem:[#allocation2 + $0xa8] sm:$0xff]
      %v2003 = vld [vmem:[#allocation2 + $0xb0] sm:$0xff]
      %v2004 = vld [vmem:[#allocation2 + $0xb8] sm:$0xff]
      %v2005 = vld [vmem:[#allocation2 + $0xc0] sm:$0xff]
      %v2006 = vld [vmem:[#allocation2 + $0xc8] sm:$0xff]
      %v2007 = vld [vmem:[#allocation2 + $0xd0] sm:$0xff]
      %v2008 = vld [vmem:[#allocation2 + $0xd8] sm:$0xff]
      %v2009 = vld [vmem:[#allocation2 + $0xe0] sm:$0xff]
      %v2010 = vld [vmem:[#allocation2 + $0xe8] sm:$0xff]
      %v2011 = vld [vmem:[#allocation2 + $0xf0] sm:$0x1f]
      %v2012 = vld [vmem:[#allocation2 + $0xf8] sm:$0x1f]
      %vm2013 = vsmask.f32 3328
      %v2015 = vshrl.u32 %v1983, 16
      %v2017 = vrot.slane %v2015, 4
      %v2018 = vshll.u32 %v1983, 16
      %v2020 = vrot.slane %v2018, 5
      %v2021 = vor.u32 %v2017, %v2020
      %v2023 = vshrl.u32 %v1985, 16
      %v2025 = vrot.slane %v2023, 4
      %v2026 = vshll.u32 %v1985, 16
      %v2028 = vrot.slane %v2026, 5
      %v2029 = vor.u32 %v2025, %v2028
      %v2030 = vsel %vm2013, %v2021, %v2029
      %v2032 = vshrl.u32 %v1984, 16
      %v2034 = vrot.slane %v2032, 4
      %v2035 = vshll.u32 %v1984, 16
      %v2037 = vrot.slane %v2035, 5
      %v2038 = vor.u32 %v2034, %v2037
      %v2040 = vshrl.u32 %v1986, 16
      %v2042 = vrot.slane %v2040, 4
      %v2043 = vshll.u32 %v1986, 16
      %v2045 = vrot.slane %v2043, 5
      %v2046 = vor.u32 %v2042, %v2045
      %v2047 = vsel %vm2013, %v2038, %v2046
      %v2049 = vshrl.u32 %v1987, 16
      %v2051 = vrot.slane %v2049, 4
      %v2052 = vshll.u32 %v1987, 16
      %v2054 = vrot.slane %v2052, 5
      %v2055 = vor.u32 %v2051, %v2054
      %v2056 = vsel %vm2013, %v2029, %v2055
      %v2058 = vshrl.u32 %v1988, 16
      %v2060 = vrot.slane %v2058, 4
      %v2061 = vshll.u32 %v1988, 16
      %v2063 = vrot.slane %v2061, 5
      %v2064 = vor.u32 %v2060, %v2063
      %v2065 = vsel %vm2013, %v2046, %v2064
      %v2067 = vshrl.u32 %v1989, 16
      %v2069 = vrot.slane %v2067, 4
      %v2070 = vshll.u32 %v1989, 16
      %v2072 = vrot.slane %v2070, 5
      %v2073 = vor.u32 %v2069, %v2072
      %v2074 = vsel %vm2013, %v2055, %v2073
      %v2076 = vshrl.u32 %v1990, 16
      %v2078 = vrot.slane %v2076, 4
      %v2079 = vshll.u32 %v1990, 16
      %v2081 = vrot.slane %v2079, 5
      %v2082 = vor.u32 %v2078, %v2081
      %v2083 = vsel %vm2013, %v2064, %v2082
      %v2085 = vshrl.u32 %v1991, 16
      %v2087 = vrot.slane %v2085, 4
      %v2088 = vshll.u32 %v1991, 16
      %v2090 = vrot.slane %v2088, 5
      %v2091 = vor.u32 %v2087, %v2090
      %v2092 = vsel %vm2013, %v2073, %v2091
      %v2094 = vshrl.u32 %v1992, 16
      %v2096 = vrot.slane %v2094, 4
      %v2097 = vshll.u32 %v1992, 16
      %v2099 = vrot.slane %v2097, 5
      %v2100 = vor.u32 %v2096, %v2099
      %v2101 = vsel %vm2013, %v2082, %v2100
      %v2103 = vshrl.u32 %v1993, 16
      %v2105 = vrot.slane %v2103, 4
      %v2106 = vshll.u32 %v1993, 16
      %v2108 = vrot.slane %v2106, 5
      %v2109 = vor.u32 %v2105, %v2108
      %v2110 = vsel %vm2013, %v2091, %v2109
      %v2112 = vshrl.u32 %v1994, 16
      %v2114 = vrot.slane %v2112, 4
      %v2115 = vshll.u32 %v1994, 16
      %v2117 = vrot.slane %v2115, 5
      %v2118 = vor.u32 %v2114, %v2117
      %v2119 = vsel %vm2013, %v2100, %v2118
      %v2121 = vshrl.u32 %v1995, 16
      %v2123 = vrot.slane %v2121, 4
      %v2124 = vshll.u32 %v1995, 16
      %v2126 = vrot.slane %v2124, 5
      %v2127 = vor.u32 %v2123, %v2126
      %v2128 = vsel %vm2013, %v2109, %v2127
      %v2130 = vshrl.u32 %v1996, 16
      %v2132 = vrot.slane %v2130, 4
      %v2133 = vshll.u32 %v1996, 16
      %v2135 = vrot.slane %v2133, 5
      %v2136 = vor.u32 %v2132, %v2135
      %v2137 = vsel %vm2013, %v2118, %v2136
      %v2139 = vshrl.u32 %v1997, 16
      %v2141 = vrot.slane %v2139, 4
      %v2142 = vshll.u32 %v1997, 16
      %v2144 = vrot.slane %v2142, 5
      %v2145 = vor.u32 %v2141, %v2144
      %v2146 = vsel %vm2013, %v2127, %v2145
      %v2148 = vshrl.u32 %v1998, 16
      %v2150 = vrot.slane %v2148, 4
      %v2151 = vshll.u32 %v1998, 16
      %v2153 = vrot.slane %v2151, 5
      %v2154 = vor.u32 %v2150, %v2153
      %v2155 = vsel %vm2013, %v2136, %v2154
      %v2157 = vshrl.u32 %v1999, 16
      %v2159 = vrot.slane %v2157, 4
      %v2160 = vshll.u32 %v1999, 16
      %v2162 = vrot.slane %v2160, 5
      %v2163 = vor.u32 %v2159, %v2162
      %v2164 = vsel %vm2013, %v2145, %v2163
      %v2166 = vshrl.u32 %v2000, 16
      %v2168 = vrot.slane %v2166, 4
      %v2169 = vshll.u32 %v2000, 16
      %v2171 = vrot.slane %v2169, 5
      %v2172 = vor.u32 %v2168, %v2171
      %v2173 = vsel %vm2013, %v2154, %v2172
      %v2175 = vshrl.u32 %v2001, 16
      %v2177 = vrot.slane %v2175, 4
      %v2178 = vshll.u32 %v2001, 16
      %v2180 = vrot.slane %v2178, 5
      %v2181 = vor.u32 %v2177, %v2180
      %v2182 = vsel %vm2013, %v2163, %v2181
      %v2184 = vshrl.u32 %v2002, 16
      %v2186 = vrot.slane %v2184, 4
      %v2187 = vshll.u32 %v2002, 16
      %v2189 = vrot.slane %v2187, 5
      %v2190 = vor.u32 %v2186, %v2189
      %v2191 = vsel %vm2013, %v2172, %v2190
      %v2193 = vshrl.u32 %v2003, 16
      %v2195 = vrot.slane %v2193, 4
      %v2196 = vshll.u32 %v2003, 16
      %v2198 = vrot.slane %v2196, 5
      %v2199 = vor.u32 %v2195, %v2198
      %v2200 = vsel %vm2013, %v2181, %v2199
      %v2202 = vshrl.u32 %v2004, 16
      %v2204 = vrot.slane %v2202, 4
      %v2205 = vshll.u32 %v2004, 16
      %v2207 = vrot.slane %v2205, 5
      %v2208 = vor.u32 %v2204, %v2207
      %v2209 = vsel %vm2013, %v2190, %v2208
      %v2211 = vshrl.u32 %v2005, 16
      %v2213 = vrot.slane %v2211, 4
      %v2214 = vshll.u32 %v2005, 16
      %v2216 = vrot.slane %v2214, 5
      %v2217 = vor.u32 %v2213, %v2216
      %v2218 = vsel %vm2013, %v2199, %v2217
      %v2220 = vshrl.u32 %v2006, 16
      %v2222 = vrot.slane %v2220, 4
      %v2223 = vshll.u32 %v2006, 16
      %v2225 = vrot.slane %v2223, 5
      %v2226 = vor.u32 %v2222, %v2225
      %v2227 = vsel %vm2013, %v2208, %v2226
      %v2229 = vshrl.u32 %v2007, 16
      %v2231 = vrot.slane %v2229, 4
      %v2232 = vshll.u32 %v2007, 16
      %v2234 = vrot.slane %v2232, 5
      %v2235 = vor.u32 %v2231, %v2234
      %v2236 = vsel %vm2013, %v2217, %v2235
      %v2238 = vshrl.u32 %v2008, 16
      %v2240 = vrot.slane %v2238, 4
      %v2241 = vshll.u32 %v2008, 16
      %v2243 = vrot.slane %v2241, 5
      %v2244 = vor.u32 %v2240, %v2243
      %v2245 = vsel %vm2013, %v2226, %v2244
      %v2247 = vshrl.u32 %v2009, 16
      %v2249 = vrot.slane %v2247, 4
      %v2250 = vshll.u32 %v2009, 16
      %v2252 = vrot.slane %v2250, 5
      %v2253 = vor.u32 %v2249, %v2252
      %v2254 = vsel %vm2013, %v2235, %v2253
      %v2256 = vshrl.u32 %v2010, 16
      %v2258 = vrot.slane %v2256, 4
      %v2259 = vshll.u32 %v2010, 16
      %v2261 = vrot.slane %v2259, 5
      %v2262 = vor.u32 %v2258, %v2261
      %v2263 = vsel %vm2013, %v2244, %v2262
      %v2265 = vshrl.u32 %v2011, 16
      %v2267 = vrot.slane %v2265, 4
      %v2268 = vshll.u32 %v2011, 16
      %v2270 = vrot.slane %v2268, 5
      %v2271 = vor.u32 %v2267, %v2270
      %v2272 = vsel %vm2013, %v2253, %v2271
      %v2274 = vshrl.u32 %v2012, 16
      %v2276 = vrot.slane %v2274, 4
      %v2277 = vshll.u32 %v2012, 16
      %v2279 = vrot.slane %v2277, 5
      %v2280 = vor.u32 %v2276, %v2279
      %v2281 = vsel %vm2013, %v2262, %v2280
      %2310 = vst [vmem:[#allocation4 + $0x60] sm:$0xff] %v2030
      %2311 = vst [vmem:[#allocation4 + $0x68] sm:$0xff] %v2047
      %2312 = vst [vmem:[#allocation4 + $0xf0] sm:$0xff] %v2056
      %2313 = vst [vmem:[#allocation4 + $0xf8] sm:$0xff] %v2065
      %2314 = vst [vmem:[#allocation4 + $0x180] sm:$0xff] %v2074
      %2315 = vst [vmem:[#allocation4 + $0x188] sm:$0xff] %v2083
      %2316 = vst [vmem:[#allocation4 + $0x210] sm:$0xff] %v2092
      %2317 = vst [vmem:[#allocation4 + $0x218] sm:$0xff] %v2101
      %2318 = vst [vmem:[#allocation4 + $0x2a0] sm:$0xff] %v2110
      %2319 = vst [vmem:[#allocation4 + $0x2a8] sm:$0xff] %v2119
      %2320 = vst [vmem:[#allocation4 + $0x330] sm:$0xff] %v2128
      %2321 = vst [vmem:[#allocation4 + $0x338] sm:$0xff] %v2137
      %2322 = vst [vmem:[#allocation4 + $0x3c0] sm:$0xff] %v2146
      %2323 = vst [vmem:[#allocation4 + $0x3c8] sm:$0xff] %v2155
      %2324 = vst [vmem:[#allocation4 + $0x450] sm:$0xff] %v2164
      %2325 = vst [vmem:[#allocation4 + $0x458] sm:$0xff] %v2173
      %2326 = vst [vmem:[#allocation4 + $0x4e0] sm:$0xff] %v2182
      %2327 = vst [vmem:[#allocation4 + $0x4e8] sm:$0xff] %v2191
      %2328 = vst [vmem:[#allocation4 + $0x570] sm:$0xff] %v2200
      %2329 = vst [vmem:[#allocation4 + $0x578] sm:$0xff] %v2209
      %2330 = vst [vmem:[#allocation4 + $0x600] sm:$0xff] %v2218
      %2331 = vst [vmem:[#allocation4 + $0x608] sm:$0xff] %v2227
      %2332 = vst [vmem:[#allocation4 + $0x690] sm:$0xff] %v2236
      %2333 = vst [vmem:[#allocation4 + $0x698] sm:$0xff] %v2245
      %2334 = vst [vmem:[#allocation4 + $0x720] sm:$0xff] %v2254
      %2335 = vst [vmem:[#allocation4 + $0x728] sm:$0xff] %v2263
      %2336 = vst [vmem:[#allocation4 + $0x7b0] sm:$0xff] %v2272
      %2337 = vst [vmem:[#allocation4 + $0x7b8] sm:$0xff] %v2281
      %v2338 = vld [vmem:[#allocation2 + $0x10] sm:$0xe0]
      %v2339 = vld [vmem:[#allocation2 + $0x18] sm:$0xe0]
      %v2340 = vld [vmem:[#allocation2 + $0x20] sm:$0xff]
      %v2341 = vld [vmem:[#allocation2 + $0x28] sm:$0xff]
      %v2342 = vld [vmem:[#allocation2 + $0x30] sm:$0xff]
      %v2343 = vld [vmem:[#allocation2 + $0x38] sm:$0xff]
      %v2344 = vld [vmem:[#allocation2 + $0x40] sm:$0xff]
      %v2345 = vld [vmem:[#allocation2 + $0x48] sm:$0xff]
      %v2346 = vld [vmem:[#allocation2 + $0x50] sm:$0xff]
      %v2347 = vld [vmem:[#allocation2 + $0x58] sm:$0xff]
      %v2348 = vld [vmem:[#allocation2 + $0x60] sm:$0xff]
      %v2349 = vld [vmem:[#allocation2 + $0x68] sm:$0xff]
      %v2350 = vld [vmem:[#allocation2 + $0x70] sm:$0xff]
      %v2351 = vld [vmem:[#allocation2 + $0x78] sm:$0xff]
      %v2352 = vld [vmem:[#allocation2 + $0x80] sm:$0xff]
      %v2353 = vld [vmem:[#allocation2 + $0x88] sm:$0xff]
      %v2354 = vld [vmem:[#allocation2 + $0x90] sm:$0xff]
      %v2355 = vld [vmem:[#allocation2 + $0x98] sm:$0xff]
      %v2356 = vld [vmem:[#allocation2 + $0xa0] sm:$0xff]
      %v2357 = vld [vmem:[#allocation2 + $0xa8] sm:$0xff]
      %v2358 = vld [vmem:[#allocation2 + $0xb0] sm:$0xff]
      %v2359 = vld [vmem:[#allocation2 + $0xb8] sm:$0xff]
      %v2360 = vld [vmem:[#allocation2 + $0xc0] sm:$0xff]
      %v2361 = vld [vmem:[#allocation2 + $0xc8] sm:$0xff]
      %v2362 = vld [vmem:[#allocation2 + $0xd0] sm:$0xff]
      %v2363 = vld [vmem:[#allocation2 + $0xd8] sm:$0xff]
      %v2364 = vld [vmem:[#allocation2 + $0xe0] sm:$0xff]
      %v2365 = vld [vmem:[#allocation2 + $0xe8] sm:$0xff]
      %v2366 = vld [vmem:[#allocation2 + $0xf0] sm:$0x1f]
      %v2367 = vld [vmem:[#allocation2 + $0xf8] sm:$0x1f]
      %vm2398 = vcmask 1042432
      %v2399 = vrot.slane %v2338, 5
      %v2400 = vrot.slane %v2340, 5
      %v2401 = vsel %vm2398, %v2399, %v2400
      %v2402 = vrot.slane %v2339, 5
      %v2403 = vrot.slane %v2341, 5
      %v2404 = vsel %vm2398, %v2402, %v2403
      %v2405 = vrot.slane %v2342, 5
      %v2406 = vsel %vm2398, %v2400, %v2405
      %v2407 = vrot.slane %v2343, 5
      %v2408 = vsel %vm2398, %v2403, %v2407
      %v2409 = vrot.slane %v2344, 5
      %v2410 = vsel %vm2398, %v2405, %v2409
      %v2411 = vrot.slane %v2345, 5
      %v2412 = vsel %vm2398, %v2407, %v2411
      %v2413 = vrot.slane %v2346, 5
      %v2414 = vsel %vm2398, %v2409, %v2413
      %v2415 = vrot.slane %v2347, 5
      %v2416 = vsel %vm2398, %v2411, %v2415
      %v2417 = vrot.slane %v2348, 5
      %v2418 = vsel %vm2398, %v2413, %v2417
      %v2419 = vrot.slane %v2349, 5
      %v2420 = vsel %vm2398, %v2415, %v2419
      %v2421 = vrot.slane %v2350, 5
      %v2422 = vsel %vm2398, %v2417, %v2421
      %v2423 = vrot.slane %v2351, 5
      %v2424 = vsel %vm2398, %v2419, %v2423
      %v2425 = vrot.slane %v2352, 5
      %v2426 = vsel %vm2398, %v2421, %v2425
      %v2427 = vrot.slane %v2353, 5
      %v2428 = vsel %vm2398, %v2423, %v2427
      %v2429 = vrot.slane %v2354, 5
      %v2430 = vsel %vm2398, %v2425, %v2429
      %v2431 = vrot.slane %v2355, 5
      %v2432 = vsel %vm2398, %v2427, %v2431
      %v2433 = vrot.slane %v2356, 5
      %v2434 = vsel %vm2398, %v2429, %v2433
      %v2435 = vrot.slane %v2357, 5
      %v2436 = vsel %vm2398, %v2431, %v2435
      %v2437 = vrot.slane %v2358, 5
      %v2438 = vsel %vm2398, %v2433, %v2437
      %v2439 = vrot.slane %v2359, 5
      %v2440 = vsel %vm2398, %v2435, %v2439
      %v2441 = vrot.slane %v2360, 5
      %v2442 = vsel %vm2398, %v2437, %v2441
      %v2443 = vrot.slane %v2361, 5
      %v2444 = vsel %vm2398, %v2439, %v2443
      %v2445 = vrot.slane %v2362, 5
      %v2446 = vsel %vm2398, %v2441, %v2445
      %v2447 = vrot.slane %v2363, 5
      %v2448 = vsel %vm2398, %v2443, %v2447
      %v2449 = vrot.slane %v2364, 5
      %v2450 = vsel %vm2398, %v2445, %v2449
      %v2451 = vrot.slane %v2365, 5
      %v2452 = vsel %vm2398, %v2447, %v2451
      %v2453 = vrot.slane %v2366, 5
      %v2454 = vsel %vm2398, %v2449, %v2453
      %v2455 = vrot.slane %v2367, 5
      %v2456 = vsel %vm2398, %v2451, %v2455
      %2485 = vst [vmem:[#allocation4 + $0x70] sm:$0xff] %v2401
      %2486 = vst [vmem:[#allocation4 + $0x78] sm:$0xff] %v2404
      %2487 = vst [vmem:[#allocation4 + $0x100] sm:$0xff] %v2406
      %2488 = vst [vmem:[#allocation4 + $0x108] sm:$0xff] %v2408
      %2489 = vst [vmem:[#allocation4 + $0x190] sm:$0xff] %v2410
      %2490 = vst [vmem:[#allocation4 + $0x198] sm:$0xff] %v2412
      %2491 = vst [vmem:[#allocation4 + $0x220] sm:$0xff] %v2414
      %2492 = vst [vmem:[#allocation4 + $0x228] sm:$0xff] %v2416
      %2493 = vst [vmem:[#allocation4 + $0x2b0] sm:$0xff] %v2418
      %2494 = vst [vmem:[#allocation4 + $0x2b8] sm:$0xff] %v2420
      %2495 = vst [vmem:[#allocation4 + $0x340] sm:$0xff] %v2422
      %2496 = vst [vmem:[#allocation4 + $0x348] sm:$0xff] %v2424
      %2497 = vst [vmem:[#allocation4 + $0x3d0] sm:$0xff] %v2426
      %2498 = vst [vmem:[#allocation4 + $0x3d8] sm:$0xff] %v2428
      %2499 = vst [vmem:[#allocation4 + $0x460] sm:$0xff] %v2430
      %2500 = vst [vmem:[#allocation4 + $0x468] sm:$0xff] %v2432
      %2501 = vst [vmem:[#allocation4 + $0x4f0] sm:$0xff] %v2434
      %2502 = vst [vmem:[#allocation4 + $0x4f8] sm:$0xff] %v2436
      %2503 = vst [vmem:[#allocation4 + $0x580] sm:$0xff] %v2438
      %2504 = vst [vmem:[#allocation4 + $0x588] sm:$0xff] %v2440
      %2505 = vst [vmem:[#allocation4 + $0x610] sm:$0xff] %v2442
      %2506 = vst [vmem:[#allocation4 + $0x618] sm:$0xff] %v2444
      %2507 = vst [vmem:[#allocation4 + $0x6a0] sm:$0xff] %v2446
      %2508 = vst [vmem:[#allocation4 + $0x6a8] sm:$0xff] %v2448
      %2509 = vst [vmem:[#allocation4 + $0x730] sm:$0xff] %v2450
      %2510 = vst [vmem:[#allocation4 + $0x738] sm:$0xff] %v2452
      %2511 = vst [vmem:[#allocation4 + $0x7c0] sm:$0xff] %v2454
      %2512 = vst [vmem:[#allocation4 + $0x7c8] sm:$0xff] %v2456
      %v2513 = vld [vmem:[#allocation2 + $0x10] sm:$0xe0]
      %v2514 = vld [vmem:[#allocation2 + $0x18] sm:$0xe0]
      %v2515 = vld [vmem:[#allocation2 + $0x20] sm:$0xff]
      %v2516 = vld [vmem:[#allocation2 + $0x28] sm:$0xff]
      %v2517 = vld [vmem:[#allocation2 + $0x30] sm:$0xff]
      %v2518 = vld [vmem:[#allocation2 + $0x38] sm:$0xff]
      %v2519 = vld [vmem:[#allocation2 + $0x40] sm:$0xff]
      %v2520 = vld [vmem:[#allocation2 + $0x48] sm:$0xff]
      %v2521 = vld [vmem:[#allocation2 + $0x50] sm:$0xff]
      %v2522 = vld [vmem:[#allocation2 + $0x58] sm:$0xff]
      %v2523 = vld [vmem:[#allocation2 + $0x60] sm:$0xff]
      %v2524 = vld [vmem:[#allocation2 + $0x68] sm:$0xff]
      %v2525 = vld [vmem:[#allocation2 + $0x70] sm:$0xff]
      %v2526 = vld [vmem:[#allocation2 + $0x78] sm:$0xff]
      %v2527 = vld [vmem:[#allocation2 + $0x80] sm:$0xff]
      %v2528 = vld [vmem:[#allocation2 + $0x88] sm:$0xff]
      %v2529 = vld [vmem:[#allocation2 + $0x90] sm:$0xff]
      %v2530 = vld [vmem:[#allocation2 + $0x98] sm:$0xff]
      %v2531 = vld [vmem:[#allocation2 + $0xa0] sm:$0xff]
      %v2532 = vld [vmem:[#allocation2 + $0xa8] sm:$0xff]
      %v2533 = vld [vmem:[#allocation2 + $0xb0] sm:$0xff]
      %v2534 = vld [vmem:[#allocation2 + $0xb8] sm:$0xff]
      %v2535 = vld [vmem:[#allocation2 + $0xc0] sm:$0xff]
      %v2536 = vld [vmem:[#allocation2 + $0xc8] sm:$0xff]
      %v2537 = vld [vmem:[#allocation2 + $0xd0] sm:$0xff]
      %v2538 = vld [vmem:[#allocation2 + $0xd8] sm:$0xff]
      %v2539 = vld [vmem:[#allocation2 + $0xe0] sm:$0xff]
      %v2540 = vld [vmem:[#allocation2 + $0xe8] sm:$0xff]
      %v2541 = vld [vmem:[#allocation2 + $0xf0] sm:$0x3f]
      %v2542 = vld [vmem:[#allocation2 + $0xf8] sm:$0x3f]
      %vm2543 = vsmask.f32 2304
      %v2545 = vshrl.u32 %v2513, 16
      %v2547 = vrot.slane %v2545, 5
      %v2548 = vshll.u32 %v2513, 16
      %v2550 = vrot.slane %v2548, 6
      %v2551 = vor.u32 %v2547, %v2550
      %v2553 = vshrl.u32 %v2515, 16
      %v2555 = vrot.slane %v2553, 5
      %v2556 = vshll.u32 %v2515, 16
      %v2558 = vrot.slane %v2556, 6
      %v2559 = vor.u32 %v2555, %v2558
      %v2560 = vsel %vm2543, %v2551, %v2559
      %v2562 = vshrl.u32 %v2514, 16
      %v2564 = vrot.slane %v2562, 5
      %v2565 = vshll.u32 %v2514, 16
      %v2567 = vrot.slane %v2565, 6
      %v2568 = vor.u32 %v2564, %v2567
      %v2570 = vshrl.u32 %v2516, 16
      %v2572 = vrot.slane %v2570, 5
      %v2573 = vshll.u32 %v2516, 16
      %v2575 = vrot.slane %v2573, 6
      %v2576 = vor.u32 %v2572, %v2575
      %v2577 = vsel %vm2543, %v2568, %v2576
      %v2579 = vshrl.u32 %v2517, 16
      %v2581 = vrot.slane %v2579, 5
      %v2582 = vshll.u32 %v2517, 16
      %v2584 = vrot.slane %v2582, 6
      %v2585 = vor.u32 %v2581, %v2584
      %v2586 = vsel %vm2543, %v2559, %v2585
      %v2588 = vshrl.u32 %v2518, 16
      %v2590 = vrot.slane %v2588, 5
      %v2591 = vshll.u32 %v2518, 16
      %v2593 = vrot.slane %v2591, 6
      %v2594 = vor.u32 %v2590, %v2593
      %v2595 = vsel %vm2543, %v2576, %v2594
      %v2597 = vshrl.u32 %v2519, 16
      %v2599 = vrot.slane %v2597, 5
      %v2600 = vshll.u32 %v2519, 16
      %v2602 = vrot.slane %v2600, 6
      %v2603 = vor.u32 %v2599, %v2602
      %v2604 = vsel %vm2543, %v2585, %v2603
      %v2606 = vshrl.u32 %v2520, 16
      %v2608 = vrot.slane %v2606, 5
      %v2609 = vshll.u32 %v2520, 16
      %v2611 = vrot.slane %v2609, 6
      %v2612 = vor.u32 %v2608, %v2611
      %v2613 = vsel %vm2543, %v2594, %v2612
      %v2615 = vshrl.u32 %v2521, 16
      %v2617 = vrot.slane %v2615, 5
      %v2618 = vshll.u32 %v2521, 16
      %v2620 = vrot.slane %v2618, 6
      %v2621 = vor.u32 %v2617, %v2620
      %v2622 = vsel %vm2543, %v2603, %v2621
      %v2624 = vshrl.u32 %v2522, 16
      %v2626 = vrot.slane %v2624, 5
      %v2627 = vshll.u32 %v2522, 16
      %v2629 = vrot.slane %v2627, 6
      %v2630 = vor.u32 %v2626, %v2629
      %v2631 = vsel %vm2543, %v2612, %v2630
      %v2633 = vshrl.u32 %v2523, 16
      %v2635 = vrot.slane %v2633, 5
      %v2636 = vshll.u32 %v2523, 16
      %v2638 = vrot.slane %v2636, 6
      %v2639 = vor.u32 %v2635, %v2638
      %v2640 = vsel %vm2543, %v2621, %v2639
      %v2642 = vshrl.u32 %v2524, 16
      %v2644 = vrot.slane %v2642, 5
      %v2645 = vshll.u32 %v2524, 16
      %v2647 = vrot.slane %v2645, 6
      %v2648 = vor.u32 %v2644, %v2647
      %v2649 = vsel %vm2543, %v2630, %v2648
      %v2651 = vshrl.u32 %v2525, 16
      %v2653 = vrot.slane %v2651, 5
      %v2654 = vshll.u32 %v2525, 16
      %v2656 = vrot.slane %v2654, 6
      %v2657 = vor.u32 %v2653, %v2656
      %v2658 = vsel %vm2543, %v2639, %v2657
      %v2660 = vshrl.u32 %v2526, 16
      %v2662 = vrot.slane %v2660, 5
      %v2663 = vshll.u32 %v2526, 16
      %v2665 = vrot.slane %v2663, 6
      %v2666 = vor.u32 %v2662, %v2665
      %v2667 = vsel %vm2543, %v2648, %v2666
      %v2669 = vshrl.u32 %v2527, 16
      %v2671 = vrot.slane %v2669, 5
      %v2672 = vshll.u32 %v2527, 16
      %v2674 = vrot.slane %v2672, 6
      %v2675 = vor.u32 %v2671, %v2674
      %v2676 = vsel %vm2543, %v2657, %v2675
      %v2678 = vshrl.u32 %v2528, 16
      %v2680 = vrot.slane %v2678, 5
      %v2681 = vshll.u32 %v2528, 16
      %v2683 = vrot.slane %v2681, 6
      %v2684 = vor.u32 %v2680, %v2683
      %v2685 = vsel %vm2543, %v2666, %v2684
      %v2687 = vshrl.u32 %v2529, 16
      %v2689 = vrot.slane %v2687, 5
      %v2690 = vshll.u32 %v2529, 16
      %v2692 = vrot.slane %v2690, 6
      %v2693 = vor.u32 %v2689, %v2692
      %v2694 = vsel %vm2543, %v2675, %v2693
      %v2696 = vshrl.u32 %v2530, 16
      %v2698 = vrot.slane %v2696, 5
      %v2699 = vshll.u32 %v2530, 16
      %v2701 = vrot.slane %v2699, 6
      %v2702 = vor.u32 %v2698, %v2701
      %v2703 = vsel %vm2543, %v2684, %v2702
      %v2705 = vshrl.u32 %v2531, 16
      %v2707 = vrot.slane %v2705, 5
      %v2708 = vshll.u32 %v2531, 16
      %v2710 = vrot.slane %v2708, 6
      %v2711 = vor.u32 %v2707, %v2710
      %v2712 = vsel %vm2543, %v2693, %v2711
      %v2714 = vshrl.u32 %v2532, 16
      %v2716 = vrot.slane %v2714, 5
      %v2717 = vshll.u32 %v2532, 16
      %v2719 = vrot.slane %v2717, 6
      %v2720 = vor.u32 %v2716, %v2719
      %v2721 = vsel %vm2543, %v2702, %v2720
      %v2723 = vshrl.u32 %v2533, 16
      %v2725 = vrot.slane %v2723, 5
      %v2726 = vshll.u32 %v2533, 16
      %v2728 = vrot.slane %v2726, 6
      %v2729 = vor.u32 %v2725, %v2728
      %v2730 = vsel %vm2543, %v2711, %v2729
      %v2732 = vshrl.u32 %v2534, 16
      %v2734 = vrot.slane %v2732, 5
      %v2735 = vshll.u32 %v2534, 16
      %v2737 = vrot.slane %v2735, 6
      %v2738 = vor.u32 %v2734, %v2737
      %v2739 = vsel %vm2543, %v2720, %v2738
      %v2741 = vshrl.u32 %v2535, 16
      %v2743 = vrot.slane %v2741, 5
      %v2744 = vshll.u32 %v2535, 16
      %v2746 = vrot.slane %v2744, 6
      %v2747 = vor.u32 %v2743, %v2746
      %v2748 = vsel %vm2543, %v2729, %v2747
      %v2750 = vshrl.u32 %v2536, 16
      %v2752 = vrot.slane %v2750, 5
      %v2753 = vshll.u32 %v2536, 16
      %v2755 = vrot.slane %v2753, 6
      %v2756 = vor.u32 %v2752, %v2755
      %v2757 = vsel %vm2543, %v2738, %v2756
      %v2759 = vshrl.u32 %v2537, 16
      %v2761 = vrot.slane %v2759, 5
      %v2762 = vshll.u32 %v2537, 16
      %v2764 = vrot.slane %v2762, 6
      %v2765 = vor.u32 %v2761, %v2764
      %v2766 = vsel %vm2543, %v2747, %v2765
      %v2768 = vshrl.u32 %v2538, 16
      %v2770 = vrot.slane %v2768, 5
      %v2771 = vshll.u32 %v2538, 16
      %v2773 = vrot.slane %v2771, 6
      %v2774 = vor.u32 %v2770, %v2773
      %v2775 = vsel %vm2543, %v2756, %v2774
      %v2777 = vshrl.u32 %v2539, 16
      %v2779 = vrot.slane %v2777, 5
      %v2780 = vshll.u32 %v2539, 16
      %v2782 = vrot.slane %v2780, 6
      %v2783 = vor.u32 %v2779, %v2782
      %v2784 = vsel %vm2543, %v2765, %v2783
      %v2786 = vshrl.u32 %v2540, 16
      %v2788 = vrot.slane %v2786, 5
      %v2789 = vshll.u32 %v2540, 16
      %v2791 = vrot.slane %v2789, 6
      %v2792 = vor.u32 %v2788, %v2791
      %v2793 = vsel %vm2543, %v2774, %v2792
      %v2795 = vshrl.u32 %v2541, 16
      %v2797 = vrot.slane %v2795, 5
      %v2798 = vshll.u32 %v2541, 16
      %v2800 = vrot.slane %v2798, 6
      %v2801 = vor.u32 %v2797, %v2800
      %v2802 = vsel %vm2543, %v2783, %v2801
      %v2804 = vshrl.u32 %v2542, 16
      %v2806 = vrot.slane %v2804, 5
      %v2807 = vshll.u32 %v2542, 16
      %v2809 = vrot.slane %v2807, 6
      %v2810 = vor.u32 %v2806, %v2809
      %v2811 = vsel %vm2543, %v2792, %v2810
      %2840 = vst [vmem:[#allocation4 + $0x80] sm:$0xff] %v2560
      %2841 = vst [vmem:[#allocation4 + $0x88] sm:$0xff] %v2577
      %2842 = vst [vmem:[#allocation4 + $0x110] sm:$0xff] %v2586
      %2843 = vst [vmem:[#allocation4 + $0x118] sm:$0xff] %v2595
      %2844 = vst [vmem:[#allocation4 + $0x1a0] sm:$0xff] %v2604
      %2845 = vst [vmem:[#allocation4 + $0x1a8] sm:$0xff] %v2613
      %2846 = vst [vmem:[#allocation4 + $0x230] sm:$0xff] %v2622
      %2847 = vst [vmem:[#allocation4 + $0x238] sm:$0xff] %v2631
      %2848 = vst [vmem:[#allocation4 + $0x2c0] sm:$0xff] %v2640
      %2849 = vst [vmem:[#allocation4 + $0x2c8] sm:$0xff] %v2649
      %2850 = vst [vmem:[#allocation4 + $0x350] sm:$0xff] %v2658
      %2851 = vst [vmem:[#allocation4 + $0x358] sm:$0xff] %v2667
      %2852 = vst [vmem:[#allocation4 + $0x3e0] sm:$0xff] %v2676
      %2853 = vst [vmem:[#allocation4 + $0x3e8] sm:$0xff] %v2685
      %2854 = vst [vmem:[#allocation4 + $0x470] sm:$0xff] %v2694
      %2855 = vst [vmem:[#allocation4 + $0x478] sm:$0xff] %v2703
      %2856 = vst [vmem:[#allocation4 + $0x500] sm:$0xff] %v2712
      %2857 = vst [vmem:[#allocation4 + $0x508] sm:$0xff] %v2721
      %2858 = vst [vmem:[#allocation4 + $0x590] sm:$0xff] %v2730
      %2859 = vst [vmem:[#allocation4 + $0x598] sm:$0xff] %v2739
      %2860 = vst [vmem:[#allocation4 + $0x620] sm:$0xff] %v2748
      %2861 = vst [vmem:[#allocation4 + $0x628] sm:$0xff] %v2757
      %2862 = vst [vmem:[#allocation4 + $0x6b0] sm:$0xff] %v2766
      %2863 = vst [vmem:[#allocation4 + $0x6b8] sm:$0xff] %v2775
      %2864 = vst [vmem:[#allocation4 + $0x740] sm:$0xff] %v2784
      %2865 = vst [vmem:[#allocation4 + $0x748] sm:$0xff] %v2793
      %2866 = vst [vmem:[#allocation4 + $0x7d0] sm:$0xff] %v2802
      %2867 = vst [vmem:[#allocation4 + $0x7d8] sm:$0xff] %v2811
      %v2868 = vld [vmem:[#allocation4] sm:$0xff]
      %v2869 = vld [vmem:[#allocation4 + $0x8] sm:$0xff]
      %v2870 = vld [vmem:[#allocation4 + $0x10] sm:$0xff]
      %v2871 = vld [vmem:[#allocation4 + $0x18] sm:$0xff]
      %v2872 = vld [vmem:[#allocation4 + $0x20] sm:$0xff]
      %v2873 = vld [vmem:[#allocation4 + $0x28] sm:$0xff]
      %v2874 = vld [vmem:[#allocation4 + $0x30] sm:$0xff]
      %v2875 = vld [vmem:[#allocation4 + $0x38] sm:$0xff]
      %v2876 = vld [vmem:[#allocation4 + $0x40] sm:$0xff]
      %v2877 = vld [vmem:[#allocation4 + $0x48] sm:$0xff]
      %v2878 = vld [vmem:[#allocation4 + $0x50] sm:$0xff]
      %v2879 = vld [vmem:[#allocation4 + $0x58] sm:$0xff]
      %v2880 = vld [vmem:[#allocation4 + $0x60] sm:$0xff]
      %v2881 = vld [vmem:[#allocation4 + $0x68] sm:$0xff]
      %v2882 = vld [vmem:[#allocation4 + $0x70] sm:$0xff]
      %v2883 = vld [vmem:[#allocation4 + $0x78] sm:$0xff]
      %v2884 = vld [vmem:[#allocation4 + $0x80] sm:$0xff]
      %v2885 = vld [vmem:[#allocation4 + $0x88] sm:$0xff]
      %v2886 = vld [vmem:[#allocation4 + $0x90] sm:$0xff]
      %v2887 = vld [vmem:[#allocation4 + $0x98] sm:$0xff]
      %v2888 = vld [vmem:[#allocation4 + $0xa0] sm:$0xff]
      %v2889 = vld [vmem:[#allocation4 + $0xa8] sm:$0xff]
      %v2890 = vld [vmem:[#allocation4 + $0xb0] sm:$0xff]
      %v2891 = vld [vmem:[#allocation4 + $0xb8] sm:$0xff]
      %v2892 = vld [vmem:[#allocation4 + $0xc0] sm:$0xff]
      %v2893 = vld [vmem:[#allocation4 + $0xc8] sm:$0xff]
      %v2894 = vld [vmem:[#allocation4 + $0xd0] sm:$0xff]
      %v2895 = vld [vmem:[#allocation4 + $0xd8] sm:$0xff]
      %v2896 = vld [vmem:[#allocation4 + $0xe0] sm:$0xff]
      %v2897 = vld [vmem:[#allocation4 + $0xe8] sm:$0xff]
      %v2898 = vld [vmem:[#allocation4 + $0xf0] sm:$0xff]
      %v2899 = vld [vmem:[#allocation4 + $0xf8] sm:$0xff]
      %v2900 = vld [vmem:[#allocation4 + $0x100] sm:$0xff]
      %v2901 = vld [vmem:[#allocation4 + $0x108] sm:$0xff]
      %v2902 = vld [vmem:[#allocation4 + $0x110] sm:$0xff]
      %v2903 = vld [vmem:[#allocation4 + $0x118] sm:$0xff]
      %v2904 = vld [vmem:[#allocation4 + $0x120] sm:$0xff]
      %v2905 = vld [vmem:[#allocation4 + $0x128] sm:$0xff]
      %v2906 = vld [vmem:[#allocation4 + $0x130] sm:$0xff]
      %v2907 = vld [vmem:[#allocation4 + $0x138] sm:$0xff]
      %v2908 = vld [vmem:[#allocation4 + $0x140] sm:$0xff]
      %v2909 = vld [vmem:[#allocation4 + $0x148] sm:$0xff]
      %v2910 = vld [vmem:[#allocation4 + $0x150] sm:$0xff]
      %v2911 = vld [vmem:[#allocation4 + $0x158] sm:$0xff]
      %v2912 = vld [vmem:[#allocation4 + $0x160] sm:$0xff]
      %v2913 = vld [vmem:[#allocation4 + $0x168] sm:$0xff]
      %v2914 = vld [vmem:[#allocation4 + $0x170] sm:$0xff]
      %v2915 = vld [vmem:[#allocation4 + $0x178] sm:$0xff]
      %v2916 = vld [vmem:[#allocation4 + $0x180] sm:$0xff]
      %v2917 = vld [vmem:[#allocation4 + $0x188] sm:$0xff]
      %v2918 = vld [vmem:[#allocation4 + $0x190] sm:$0xff]
      %v2919 = vld [vmem:[#allocation4 + $0x198] sm:$0xff]
      %v2920 = vld [vmem:[#allocation4 + $0x1a0] sm:$0xff]
      %v2921 = vld [vmem:[#allocation4 + $0x1a8] sm:$0xff]
      %v2922 = vld [vmem:[#allocation4 + $0x1b0] sm:$0xff]
      %v2923 = vld [vmem:[#allocation4 + $0x1b8] sm:$0xff]
      %v2924 = vld [vmem:[#allocation4 + $0x1c0] sm:$0xff]
      %v2925 = vld [vmem:[#allocation4 + $0x1c8] sm:$0xff]
      %v2926 = vld [vmem:[#allocation4 + $0x1d0] sm:$0xff]
      %v2927 = vld [vmem:[#allocation4 + $0x1d8] sm:$0xff]
      %v2928 = vld [vmem:[#allocation4 + $0x1e0] sm:$0xff]
      %v2929 = vld [vmem:[#allocation4 + $0x1e8] sm:$0xff]
      %v2930 = vld [vmem:[#allocation4 + $0x1f0] sm:$0xff]
      %v2931 = vld [vmem:[#allocation4 + $0x1f8] sm:$0xff]
      %v2932 = vld [vmem:[#allocation4 + $0x200] sm:$0xff]
      %v2933 = vld [vmem:[#allocation4 + $0x208] sm:$0xff]
      %v2934 = vld [vmem:[#allocation4 + $0x210] sm:$0xff]
      %v2935 = vld [vmem:[#allocation4 + $0x218] sm:$0xff]
      %v2936 = vld [vmem:[#allocation4 + $0x220] sm:$0xff]
      %v2937 = vld [vmem:[#allocation4 + $0x228] sm:$0xff]
      %v2938 = vld [vmem:[#allocation4 + $0x230] sm:$0xff]
      %v2939 = vld [vmem:[#allocation4 + $0x238] sm:$0xff]
      %v2940 = vld [vmem:[#allocation4 + $0x240] sm:$0xff]
      %v2941 = vld [vmem:[#allocation4 + $0x248] sm:$0xff]
      %v2942 = vld [vmem:[#allocation4 + $0x250] sm:$0xff]
      %v2943 = vld [vmem:[#allocation4 + $0x258] sm:$0xff]
      %v2944 = vld [vmem:[#allocation4 + $0x260] sm:$0xff]
      %v2945 = vld [vmem:[#allocation4 + $0x268] sm:$0xff]
      %v2946 = vld [vmem:[#allocation4 + $0x270] sm:$0xff]
      %v2947 = vld [vmem:[#allocation4 + $0x278] sm:$0xff]
      %v2948 = vld [vmem:[#allocation4 + $0x280] sm:$0xff]
      %v2949 = vld [vmem:[#allocation4 + $0x288] sm:$0xff]
      %v2950 = vld [vmem:[#allocation4 + $0x290] sm:$0xff]
      %v2951 = vld [vmem:[#allocation4 + $0x298] sm:$0xff]
      %v2952 = vld [vmem:[#allocation4 + $0x2a0] sm:$0xff]
      %v2953 = vld [vmem:[#allocation4 + $0x2a8] sm:$0xff]
      %v2954 = vld [vmem:[#allocation4 + $0x2b0] sm:$0xff]
      %v2955 = vld [vmem:[#allocation4 + $0x2b8] sm:$0xff]
      %v2956 = vld [vmem:[#allocation4 + $0x2c0] sm:$0xff]
      %v2957 = vld [vmem:[#allocation4 + $0x2c8] sm:$0xff]
      %v2958 = vld [vmem:[#allocation4 + $0x2d0] sm:$0xff]
      %v2959 = vld [vmem:[#allocation4 + $0x2d8] sm:$0xff]
      %v2960 = vld [vmem:[#allocation4 + $0x2e0] sm:$0xff]
      %v2961 = vld [vmem:[#allocation4 + $0x2e8] sm:$0xff]
      %v2962 = vld [vmem:[#allocation4 + $0x2f0] sm:$0xff]
      %v2963 = vld [vmem:[#allocation4 + $0x2f8] sm:$0xff]
      %v2964 = vld [vmem:[#allocation4 + $0x300] sm:$0xff]
      %v2965 = vld [vmem:[#allocation4 + $0x308] sm:$0xff]
      %v2966 = vld [vmem:[#allocation4 + $0x310] sm:$0xff]
      %v2967 = vld [vmem:[#allocation4 + $0x318] sm:$0xff]
      %v2968 = vld [vmem:[#allocation4 + $0x320] sm:$0xff]
      %v2969 = vld [vmem:[#allocation4 + $0x328] sm:$0xff]
      %v2970 = vld [vmem:[#allocation4 + $0x330] sm:$0xff]
      %v2971 = vld [vmem:[#allocation4 + $0x338] sm:$0xff]
      %v2972 = vld [vmem:[#allocation4 + $0x340] sm:$0xff]
      %v2973 = vld [vmem:[#allocation4 + $0x348] sm:$0xff]
      %v2974 = vld [vmem:[#allocation4 + $0x350] sm:$0xff]
      %v2975 = vld [vmem:[#allocation4 + $0x358] sm:$0xff]
      %v2976 = vld [vmem:[#allocation4 + $0x360] sm:$0xff]
      %v2977 = vld [vmem:[#allocation4 + $0x368] sm:$0xff]
      %v2978 = vld [vmem:[#allocation4 + $0x370] sm:$0xff]
      %v2979 = vld [vmem:[#allocation4 + $0x378] sm:$0xff]
      %v2980 = vld [vmem:[#allocation4 + $0x380] sm:$0xff]
      %v2981 = vld [vmem:[#allocation4 + $0x388] sm:$0xff]
      %v2982 = vld [vmem:[#allocation4 + $0x390] sm:$0xff]
      %v2983 = vld [vmem:[#allocation4 + $0x398] sm:$0xff]
      %v2984 = vld [vmem:[#allocation4 + $0x3a0] sm:$0xff]
      %v2985 = vld [vmem:[#allocation4 + $0x3a8] sm:$0xff]
      %v2986 = vld [vmem:[#allocation4 + $0x3b0] sm:$0xff]
      %v2987 = vld [vmem:[#allocation4 + $0x3b8] sm:$0xff]
      %v2988 = vld [vmem:[#allocation4 + $0x3c0] sm:$0xff]
      %v2989 = vld [vmem:[#allocation4 + $0x3c8] sm:$0xff]
      %v2990 = vld [vmem:[#allocation4 + $0x3d0] sm:$0xff]
      %v2991 = vld [vmem:[#allocation4 + $0x3d8] sm:$0xff]
      %v2992 = vld [vmem:[#allocation4 + $0x3e0] sm:$0xff]
      %v2993 = vld [vmem:[#allocation4 + $0x3e8] sm:$0xff]
      %v2994 = vld [vmem:[#allocation4 + $0x3f0] sm:$0xff]
      %v2995 = vld [vmem:[#allocation4 + $0x3f8] sm:$0xff]
      %v2996 = vld [vmem:[#allocation4 + $0x400] sm:$0xff]
      %v2997 = vld [vmem:[#allocation4 + $0x408] sm:$0xff]
      %v2998 = vld [vmem:[#allocation4 + $0x410] sm:$0xff]
      %v2999 = vld [vmem:[#allocation4 + $0x418] sm:$0xff]
      %v3000 = vld [vmem:[#allocation4 + $0x420] sm:$0xff]
      %v3001 = vld [vmem:[#allocation4 + $0x428] sm:$0xff]
      %v3002 = vld [vmem:[#allocation4 + $0x430] sm:$0xff]
      %v3003 = vld [vmem:[#allocation4 + $0x438] sm:$0xff]
      %v3004 = vld [vmem:[#allocation4 + $0x440] sm:$0xff]
      %v3005 = vld [vmem:[#allocation4 + $0x448] sm:$0xff]
      %v3006 = vld [vmem:[#allocation4 + $0x450] sm:$0xff]
      %v3007 = vld [vmem:[#allocation4 + $0x458] sm:$0xff]
      %v3008 = vld [vmem:[#allocation4 + $0x460] sm:$0xff]
      %v3009 = vld [vmem:[#allocation4 + $0x468] sm:$0xff]
      %v3010 = vld [vmem:[#allocation4 + $0x470] sm:$0xff]
      %v3011 = vld [vmem:[#allocation4 + $0x478] sm:$0xff]
      %v3012 = vld [vmem:[#allocation4 + $0x480] sm:$0xff]
      %v3013 = vld [vmem:[#allocation4 + $0x488] sm:$0xff]
      %v3014 = vld [vmem:[#allocation4 + $0x490] sm:$0xff]
      %v3015 = vld [vmem:[#allocation4 + $0x498] sm:$0xff]
      %v3016 = vld [vmem:[#allocation4 + $0x4a0] sm:$0xff]
      %v3017 = vld [vmem:[#allocation4 + $0x4a8] sm:$0xff]
      %v3018 = vld [vmem:[#allocation4 + $0x4b0] sm:$0xff]
      %v3019 = vld [vmem:[#allocation4 + $0x4b8] sm:$0xff]
      %v3020 = vld [vmem:[#allocation4 + $0x4c0] sm:$0xff]
      %v3021 = vld [vmem:[#allocation4 + $0x4c8] sm:$0xff]
      %v3022 = vld [vmem:[#allocation4 + $0x4d0] sm:$0xff]
      %v3023 = vld [vmem:[#allocation4 + $0x4d8] sm:$0xff]
      %v3024 = vld [vmem:[#allocation4 + $0x4e0] sm:$0xff]
      %v3025 = vld [vmem:[#allocation4 + $0x4e8] sm:$0xff]
      %v3026 = vld [vmem:[#allocation4 + $0x4f0] sm:$0xff]
      %v3027 = vld [vmem:[#allocation4 + $0x4f8] sm:$0xff]
      %v3028 = vld [vmem:[#allocation4 + $0x500] sm:$0xff]
      %v3029 = vld [vmem:[#allocation4 + $0x508] sm:$0xff]
      %v3030 = vld [vmem:[#allocation4 + $0x510] sm:$0xff]
      %v3031 = vld [vmem:[#allocation4 + $0x518] sm:$0xff]
      %v3032 = vld [vmem:[#allocation4 + $0x520] sm:$0xff]
      %v3033 = vld [vmem:[#allocation4 + $0x528] sm:$0xff]
      %v3034 = vld [vmem:[#allocation4 + $0x530] sm:$0xff]
      %v3035 = vld [vmem:[#allocation4 + $0x538] sm:$0xff]
      %v3036 = vld [vmem:[#allocation4 + $0x540] sm:$0xff]
      %v3037 = vld [vmem:[#allocation4 + $0x548] sm:$0xff]
      %v3038 = vld [vmem:[#allocation4 + $0x550] sm:$0xff]
      %v3039 = vld [vmem:[#allocation4 + $0x558] sm:$0xff]
      %v3040 = vld [vmem:[#allocation4 + $0x560] sm:$0xff]
      %v3041 = vld [vmem:[#allocation4 + $0x568] sm:$0xff]
      %v3042 = vld [vmem:[#allocation4 + $0x570] sm:$0xff]
      %v3043 = vld [vmem:[#allocation4 + $0x578] sm:$0xff]
      %v3044 = vld [vmem:[#allocation4 + $0x580] sm:$0xff]
      %v3045 = vld [vmem:[#allocation4 + $0x588] sm:$0xff]
      %v3046 = vld [vmem:[#allocation4 + $0x590] sm:$0xff]
      %v3047 = vld [vmem:[#allocation4 + $0x598] sm:$0xff]
      %v3048 = vld [vmem:[#allocation4 + $0x5a0] sm:$0xff]
      %v3049 = vld [vmem:[#allocation4 + $0x5a8] sm:$0xff]
      %v3050 = vld [vmem:[#allocation4 + $0x5b0] sm:$0xff]
      %v3051 = vld [vmem:[#allocation4 + $0x5b8] sm:$0xff]
      %v3052 = vld [vmem:[#allocation4 + $0x5c0] sm:$0xff]
      %v3053 = vld [vmem:[#allocation4 + $0x5c8] sm:$0xff]
      %v3054 = vld [vmem:[#allocation4 + $0x5d0] sm:$0xff]
      %v3055 = vld [vmem:[#allocation4 + $0x5d8] sm:$0xff]
      %v3056 = vld [vmem:[#allocation4 + $0x5e0] sm:$0xff]
      %v3057 = vld [vmem:[#allocation4 + $0x5e8] sm:$0xff]
      %v3058 = vld [vmem:[#allocation4 + $0x5f0] sm:$0xff]
      %v3059 = vld [vmem:[#allocation4 + $0x5f8] sm:$0xff]
      %v3060 = vld [vmem:[#allocation4 + $0x600] sm:$0xff]
      %v3061 = vld [vmem:[#allocation4 + $0x608] sm:$0xff]
      %v3062 = vld [vmem:[#allocation4 + $0x610] sm:$0xff]
      %v3063 = vld [vmem:[#allocation4 + $0x618] sm:$0xff]
      %v3064 = vld [vmem:[#allocation4 + $0x620] sm:$0xff]
      %v3065 = vld [vmem:[#allocation4 + $0x628] sm:$0xff]
      %v3066 = vld [vmem:[#allocation4 + $0x630] sm:$0xff]
      %v3067 = vld [vmem:[#allocation4 + $0x638] sm:$0xff]
      %v3068 = vld [vmem:[#allocation4 + $0x640] sm:$0xff]
      %v3069 = vld [vmem:[#allocation4 + $0x648] sm:$0xff]
      %v3070 = vld [vmem:[#allocation4 + $0x650] sm:$0xff]
      %v3071 = vld [vmem:[#allocation4 + $0x658] sm:$0xff]
      %v3072 = vld [vmem:[#allocation4 + $0x660] sm:$0xff]
      %v3073 = vld [vmem:[#allocation4 + $0x668] sm:$0xff]
      %v3074 = vld [vmem:[#allocation4 + $0x670] sm:$0xff]
      %v3075 = vld [vmem:[#allocation4 + $0x678] sm:$0xff]
      %v3076 = vld [vmem:[#allocation4 + $0x680] sm:$0xff]
      %v3077 = vld [vmem:[#allocation4 + $0x688] sm:$0xff]
      %v3078 = vld [vmem:[#allocation4 + $0x690] sm:$0xff]
      %v3079 = vld [vmem:[#allocation4 + $0x698] sm:$0xff]
      %v3080 = vld [vmem:[#allocation4 + $0x6a0] sm:$0xff]
      %v3081 = vld [vmem:[#allocation4 + $0x6a8] sm:$0xff]
      %v3082 = vld [vmem:[#allocation4 + $0x6b0] sm:$0xff]
      %v3083 = vld [vmem:[#allocation4 + $0x6b8] sm:$0xff]
      %v3084 = vld [vmem:[#allocation4 + $0x6c0] sm:$0xff]
      %v3085 = vld [vmem:[#allocation4 + $0x6c8] sm:$0xff]
      %v3086 = vld [vmem:[#allocation4 + $0x6d0] sm:$0xff]
      %v3087 = vld [vmem:[#allocation4 + $0x6d8] sm:$0xff]
      %v3088 = vld [vmem:[#allocation4 + $0x6e0] sm:$0xff]
      %v3089 = vld [vmem:[#allocation4 + $0x6e8] sm:$0xff]
      %v3090 = vld [vmem:[#allocation4 + $0x6f0] sm:$0xff]
      %v3091 = vld [vmem:[#allocation4 + $0x6f8] sm:$0xff]
      %v3092 = vld [vmem:[#allocation4 + $0x700] sm:$0xff]
      %v3093 = vld [vmem:[#allocation4 + $0x708] sm:$0xff]
      %v3094 = vld [vmem:[#allocation4 + $0x710] sm:$0xff]
      %v3095 = vld [vmem:[#allocation4 + $0x718] sm:$0xff]
      %v3096 = vld [vmem:[#allocation4 + $0x720] sm:$0xff]
      %v3097 = vld [vmem:[#allocation4 + $0x728] sm:$0xff]
      %v3098 = vld [vmem:[#allocation4 + $0x730] sm:$0xff]
      %v3099 = vld [vmem:[#allocation4 + $0x738] sm:$0xff]
      %v3100 = vld [vmem:[#allocation4 + $0x740] sm:$0xff]
      %v3101 = vld [vmem:[#allocation4 + $0x748] sm:$0xff]
      %v3102 = vld [vmem:[#allocation4 + $0x750] sm:$0xff]
      %v3103 = vld [vmem:[#allocation4 + $0x758] sm:$0xff]
      %v3104 = vld [vmem:[#allocation4 + $0x760] sm:$0xff]
      %v3105 = vld [vmem:[#allocation4 + $0x768] sm:$0xff]
      %v3106 = vld [vmem:[#allocation4 + $0x770] sm:$0xff]
      %v3107 = vld [vmem:[#allocation4 + $0x778] sm:$0xff]
      %v3108 = vld [vmem:[#allocation4 + $0x780] sm:$0xff]
      %v3109 = vld [vmem:[#allocation4 + $0x788] sm:$0xff]
      %v3110 = vld [vmem:[#allocation4 + $0x790] sm:$0xff]
      %v3111 = vld [vmem:[#allocation4 + $0x798] sm:$0xff]
      %v3112 = vld [vmem:[#allocation4 + $0x7a0] sm:$0xff]
      %v3113 = vld [vmem:[#allocation4 + $0x7a8] sm:$0xff]
      %v3114 = vld [vmem:[#allocation4 + $0x7b0] sm:$0xff]
      %v3115 = vld [vmem:[#allocation4 + $0x7b8] sm:$0xff]
      %v3116 = vld [vmem:[#allocation4 + $0x7c0] sm:$0xff]
      %v3117 = vld [vmem:[#allocation4 + $0x7c8] sm:$0xff]
      %v3118 = vld [vmem:[#allocation4 + $0x7d0] sm:$0xff]
      %v3119 = vld [vmem:[#allocation4 + $0x7d8] sm:$0xff]
      %v3120 = vld [vmem:[%s162] sm:$0xff]
      %v3121 = vld [vmem:[%s162 + $0x8] sm:$0xff]
      %v3122 = vld [vmem:[%s162 + $0x10] sm:$0xff]
      %v3123 = vld [vmem:[%s162 + $0x18] sm:$0xff]
      %v3124 = vld [vmem:[%s162 + $0x20] sm:$0xff]
      %v3125 = vld [vmem:[%s162 + $0x28] sm:$0xff]
      %v3126 = vld [vmem:[%s162 + $0x30] sm:$0xff]
      %v3127 = vld [vmem:[%s162 + $0x38] sm:$0xff]
      %v3128 = vld [vmem:[%s162 + $0x40] sm:$0xff]
      %v3129 = vld [vmem:[%s162 + $0x48] sm:$0xff]
      %v3130 = vld [vmem:[%s162 + $0x50] sm:$0xff]
      %v3131 = vld [vmem:[%s162 + $0x58] sm:$0xff]
      %v3132 = vld [vmem:[%s162 + $0x60] sm:$0xff]
      %v3133 = vld [vmem:[%s162 + $0x68] sm:$0xff]
      %v3134 = vld [vmem:[%s162 + $0x70] sm:$0xff]
      %v3135 = vld [vmem:[%s162 + $0x78] sm:$0xff]
      %v3136 = vld [vmem:[%s162 + $0x80] sm:$0xff]
      %v3137 = vld [vmem:[%s162 + $0x88] sm:$0xff]
      %v3138 = vld [vmem:[%s162 + $0x90] sm:$0xff]
      %v3139 = vld [vmem:[%s162 + $0x98] sm:$0xff]
      %v3140 = vld [vmem:[%s162 + $0xa0] sm:$0xff]
      %v3141 = vld [vmem:[%s162 + $0xa8] sm:$0xff]
      %v3142 = vld [vmem:[%s162 + $0xb0] sm:$0xff]
      %v3143 = vld [vmem:[%s162 + $0xb8] sm:$0xff]
      %v3144 = vld [vmem:[%s162 + $0xc0] sm:$0xff]
      %v3145 = vld [vmem:[%s162 + $0xc8] sm:$0xff]
      %v3146 = vld [vmem:[%s162 + $0xd0] sm:$0xff]
      %v3147 = vld [vmem:[%s162 + $0xd8] sm:$0xff]
      %v3148 = vld [vmem:[%s162 + $0xe0] sm:$0xff]
      %v3149 = vld [vmem:[%s162 + $0xe8] sm:$0xff]
      %v3150 = vld [vmem:[%s162 + $0xf0] sm:$0xff]
      %v3151 = vld [vmem:[%s162 + $0xf8] sm:$0xff]
      %v3152 = vld [vmem:[%s162 + $0x100] sm:$0xff]
      %v3153 = vld [vmem:[%s162 + $0x108] sm:$0xff]
      %v3154 = vld [vmem:[%s162 + $0x110] sm:$0xff]
      %v3155 = vld [vmem:[%s162 + $0x118] sm:$0xff]
      %v3156 = vld [vmem:[%s162 + $0x120] sm:$0xff]
      %v3157 = vld [vmem:[%s162 + $0x128] sm:$0xff]
      %v3158 = vld [vmem:[%s162 + $0x130] sm:$0xff]
      %v3159 = vld [vmem:[%s162 + $0x138] sm:$0xff]
      %v3160 = vld [vmem:[%s162 + $0x140] sm:$0xff]
      %v3161 = vld [vmem:[%s162 + $0x148] sm:$0xff]
      %v3162 = vld [vmem:[%s162 + $0x150] sm:$0xff]
      %v3163 = vld [vmem:[%s162 + $0x158] sm:$0xff]
      %v3164 = vld [vmem:[%s162 + $0x160] sm:$0xff]
      %v3165 = vld [vmem:[%s162 + $0x168] sm:$0xff]
      %v3166 = vld [vmem:[%s162 + $0x170] sm:$0xff]
      %v3167 = vld [vmem:[%s162 + $0x178] sm:$0xff]
      %v3168 = vld [vmem:[%s162 + $0x180] sm:$0xff]
      %v3169 = vld [vmem:[%s162 + $0x188] sm:$0xff]
      %v3170 = vld [vmem:[%s162 + $0x190] sm:$0xff]
      %v3171 = vld [vmem:[%s162 + $0x198] sm:$0xff]
      %v3172 = vld [vmem:[%s162 + $0x1a0] sm:$0xff]
      %v3173 = vld [vmem:[%s162 + $0x1a8] sm:$0xff]
      %v3174 = vld [vmem:[%s162 + $0x1b0] sm:$0xff]
      %v3175 = vld [vmem:[%s162 + $0x1b8] sm:$0xff]
      %v3176 = vld [vmem:[%s162 + $0x1c0] sm:$0xff]
      %v3177 = vld [vmem:[%s162 + $0x1c8] sm:$0xff]
      %v3178 = vld [vmem:[%s162 + $0x1d0] sm:$0xff]
      %v3179 = vld [vmem:[%s162 + $0x1d8] sm:$0xff]
      %v3180 = vld [vmem:[%s162 + $0x1e0] sm:$0xff]
      %v3181 = vld [vmem:[%s162 + $0x1e8] sm:$0xff]
      %v3182 = vld [vmem:[%s162 + $0x1f0] sm:$0xff]
      %v3183 = vld [vmem:[%s162 + $0x1f8] sm:$0xff]
      %v3184 = vld [vmem:[%s162 + $0x200] sm:$0xff]
      %v3185 = vld [vmem:[%s162 + $0x208] sm:$0xff]
      %v3186 = vld [vmem:[%s162 + $0x210] sm:$0xff]
      %v3187 = vld [vmem:[%s162 + $0x218] sm:$0xff]
      %v3188 = vld [vmem:[%s162 + $0x220] sm:$0xff]
      %v3189 = vld [vmem:[%s162 + $0x228] sm:$0xff]
      %v3190 = vld [vmem:[%s162 + $0x230] sm:$0xff]
      %v3191 = vld [vmem:[%s162 + $0x238] sm:$0xff]
      %v3192 = vld [vmem:[%s162 + $0x240] sm:$0xff]
      %v3193 = vld [vmem:[%s162 + $0x248] sm:$0xff]
      %v3194 = vld [vmem:[%s162 + $0x250] sm:$0xff]
      %v3195 = vld [vmem:[%s162 + $0x258] sm:$0xff]
      %v3196 = vld [vmem:[%s162 + $0x260] sm:$0xff]
      %v3197 = vld [vmem:[%s162 + $0x268] sm:$0xff]
      %v3198 = vld [vmem:[%s162 + $0x270] sm:$0xff]
      %v3199 = vld [vmem:[%s162 + $0x278] sm:$0xff]
      %v3200 = vld [vmem:[%s162 + $0x280] sm:$0xff]
      %v3201 = vld [vmem:[%s162 + $0x288] sm:$0xff]
      %v3202 = vld [vmem:[%s162 + $0x290] sm:$0xff]
      %v3203 = vld [vmem:[%s162 + $0x298] sm:$0xff]
      %v3204 = vld [vmem:[%s162 + $0x2a0] sm:$0xff]
      %v3205 = vld [vmem:[%s162 + $0x2a8] sm:$0xff]
      %v3206 = vld [vmem:[%s162 + $0x2b0] sm:$0xff]
      %v3207 = vld [vmem:[%s162 + $0x2b8] sm:$0xff]
      %v3208 = vld [vmem:[%s162 + $0x2c0] sm:$0xff]
      %v3209 = vld [vmem:[%s162 + $0x2c8] sm:$0xff]
      %v3210 = vld [vmem:[%s162 + $0x2d0] sm:$0xff]
      %v3211 = vld [vmem:[%s162 + $0x2d8] sm:$0xff]
      %v3212 = vld [vmem:[%s162 + $0x2e0] sm:$0xff]
      %v3213 = vld [vmem:[%s162 + $0x2e8] sm:$0xff]
      %v3214 = vld [vmem:[%s162 + $0x2f0] sm:$0xff]
      %v3215 = vld [vmem:[%s162 + $0x2f8] sm:$0xff]
      %v3216 = vld [vmem:[%s162 + $0x300] sm:$0xff]
      %v3217 = vld [vmem:[%s162 + $0x308] sm:$0xff]
      %v3218 = vld [vmem:[%s162 + $0x310] sm:$0xff]
      %v3219 = vld [vmem:[%s162 + $0x318] sm:$0xff]
      %v3220 = vld [vmem:[%s162 + $0x320] sm:$0xff]
      %v3221 = vld [vmem:[%s162 + $0x328] sm:$0xff]
      %v3222 = vld [vmem:[%s162 + $0x330] sm:$0xff]
      %v3223 = vld [vmem:[%s162 + $0x338] sm:$0xff]
      %v3224 = vld [vmem:[%s162 + $0x340] sm:$0xff]
      %v3225 = vld [vmem:[%s162 + $0x348] sm:$0xff]
      %v3226 = vld [vmem:[%s162 + $0x350] sm:$0xff]
      %v3227 = vld [vmem:[%s162 + $0x358] sm:$0xff]
      %v3228 = vld [vmem:[%s162 + $0x360] sm:$0xff]
      %v3229 = vld [vmem:[%s162 + $0x368] sm:$0xff]
      %v3230 = vld [vmem:[%s162 + $0x370] sm:$0xff]
      %v3231 = vld [vmem:[%s162 + $0x378] sm:$0xff]
      %v3232 = vld [vmem:[%s162 + $0x380] sm:$0xff]
      %v3233 = vld [vmem:[%s162 + $0x388] sm:$0xff]
      %v3234 = vld [vmem:[%s162 + $0x390] sm:$0xff]
      %v3235 = vld [vmem:[%s162 + $0x398] sm:$0xff]
      %v3236 = vld [vmem:[%s162 + $0x3a0] sm:$0xff]
      %v3237 = vld [vmem:[%s162 + $0x3a8] sm:$0xff]
      %v3238 = vld [vmem:[%s162 + $0x3b0] sm:$0xff]
      %v3239 = vld [vmem:[%s162 + $0x3b8] sm:$0xff]
      %v3240 = vld [vmem:[%s162 + $0x3c0] sm:$0xff]
      %v3241 = vld [vmem:[%s162 + $0x3c8] sm:$0xff]
      %v3242 = vld [vmem:[%s162 + $0x3d0] sm:$0xff]
      %v3243 = vld [vmem:[%s162 + $0x3d8] sm:$0xff]
      %v3244 = vld [vmem:[%s162 + $0x3e0] sm:$0xff]
      %v3245 = vld [vmem:[%s162 + $0x3e8] sm:$0xff]
      %v3246 = vld [vmem:[%s162 + $0x3f0] sm:$0xff]
      %v3247 = vld [vmem:[%s162 + $0x3f8] sm:$0xff]
      %v3248 = vld [vmem:[%s162 + $0x400] sm:$0xff]
      %v3249 = vld [vmem:[%s162 + $0x408] sm:$0xff]
      %v3250 = vld [vmem:[%s162 + $0x410] sm:$0xff]
      %v3251 = vld [vmem:[%s162 + $0x418] sm:$0xff]
      %v3252 = vld [vmem:[%s162 + $0x420] sm:$0xff]
      %v3253 = vld [vmem:[%s162 + $0x428] sm:$0xff]
      %v3254 = vld [vmem:[%s162 + $0x430] sm:$0xff]
      %v3255 = vld [vmem:[%s162 + $0x438] sm:$0xff]
      %v3256 = vld [vmem:[%s162 + $0x440] sm:$0xff]
      %v3257 = vld [vmem:[%s162 + $0x448] sm:$0xff]
      %v3258 = vld [vmem:[%s162 + $0x450] sm:$0xff]
      %v3259 = vld [vmem:[%s162 + $0x458] sm:$0xff]
      %v3260 = vld [vmem:[%s162 + $0x460] sm:$0xff]
      %v3261 = vld [vmem:[%s162 + $0x468] sm:$0xff]
      %v3262 = vld [vmem:[%s162 + $0x470] sm:$0xff]
      %v3263 = vld [vmem:[%s162 + $0x478] sm:$0xff]
      %v3264 = vld [vmem:[%s162 + $0x480] sm:$0xff]
      %v3265 = vld [vmem:[%s162 + $0x488] sm:$0xff]
      %v3266 = vld [vmem:[%s162 + $0x490] sm:$0xff]
      %v3267 = vld [vmem:[%s162 + $0x498] sm:$0xff]
      %v3268 = vld [vmem:[%s162 + $0x4a0] sm:$0xff]
      %v3269 = vld [vmem:[%s162 + $0x4a8] sm:$0xff]
      %v3270 = vld [vmem:[%s162 + $0x4b0] sm:$0xff]
      %v3271 = vld [vmem:[%s162 + $0x4b8] sm:$0xff]
      %v3272 = vld [vmem:[%s162 + $0x4c0] sm:$0xff]
      %v3273 = vld [vmem:[%s162 + $0x4c8] sm:$0xff]
      %v3274 = vld [vmem:[%s162 + $0x4d0] sm:$0xff]
      %v3275 = vld [vmem:[%s162 + $0x4d8] sm:$0xff]
      %v3276 = vld [vmem:[%s162 + $0x4e0] sm:$0xff]
      %v3277 = vld [vmem:[%s162 + $0x4e8] sm:$0xff]
      %v3278 = vld [vmem:[%s162 + $0x4f0] sm:$0xff]
      %v3279 = vld [vmem:[%s162 + $0x4f8] sm:$0xff]
      %v3280 = vld [vmem:[%s162 + $0x500] sm:$0xff]
      %v3281 = vld [vmem:[%s162 + $0x508] sm:$0xff]
      %v3282 = vld [vmem:[%s162 + $0x510] sm:$0xff]
      %v3283 = vld [vmem:[%s162 + $0x518] sm:$0xff]
      %v3284 = vld [vmem:[%s162 + $0x520] sm:$0xff]
      %v3285 = vld [vmem:[%s162 + $0x528] sm:$0xff]
      %v3286 = vld [vmem:[%s162 + $0x530] sm:$0xff]
      %v3287 = vld [vmem:[%s162 + $0x538] sm:$0xff]
      %v3288 = vld [vmem:[%s162 + $0x540] sm:$0xff]
      %v3289 = vld [vmem:[%s162 + $0x548] sm:$0xff]
      %v3290 = vld [vmem:[%s162 + $0x550] sm:$0xff]
      %v3291 = vld [vmem:[%s162 + $0x558] sm:$0xff]
      %v3292 = vld [vmem:[%s162 + $0x560] sm:$0xff]
      %v3293 = vld [vmem:[%s162 + $0x568] sm:$0xff]
      %v3294 = vld [vmem:[%s162 + $0x570] sm:$0xff]
      %v3295 = vld [vmem:[%s162 + $0x578] sm:$0xff]
      %v3296 = vld [vmem:[%s162 + $0x580] sm:$0xff]
      %v3297 = vld [vmem:[%s162 + $0x588] sm:$0xff]
      %v3298 = vld [vmem:[%s162 + $0x590] sm:$0xff]
      %v3299 = vld [vmem:[%s162 + $0x598] sm:$0xff]
      %v3300 = vld [vmem:[%s162 + $0x5a0] sm:$0xff]
      %v3301 = vld [vmem:[%s162 + $0x5a8] sm:$0xff]
      %v3302 = vld [vmem:[%s162 + $0x5b0] sm:$0xff]
      %v3303 = vld [vmem:[%s162 + $0x5b8] sm:$0xff]
      %v3304 = vld [vmem:[%s162 + $0x5c0] sm:$0xff]
      %v3305 = vld [vmem:[%s162 + $0x5c8] sm:$0xff]
      %v3306 = vld [vmem:[%s162 + $0x5d0] sm:$0xff]
      %v3307 = vld [vmem:[%s162 + $0x5d8] sm:$0xff]
      %v3308 = vld [vmem:[%s162 + $0x5e0] sm:$0xff]
      %v3309 = vld [vmem:[%s162 + $0x5e8] sm:$0xff]
      %v3310 = vld [vmem:[%s162 + $0x5f0] sm:$0xff]
      %v3311 = vld [vmem:[%s162 + $0x5f8] sm:$0xff]
      %v3312 = vld [vmem:[%s162 + $0x600] sm:$0xff]
      %v3313 = vld [vmem:[%s162 + $0x608] sm:$0xff]
      %v3314 = vld [vmem:[%s162 + $0x610] sm:$0xff]
      %v3315 = vld [vmem:[%s162 + $0x618] sm:$0xff]
      %v3316 = vld [vmem:[%s162 + $0x620] sm:$0xff]
      %v3317 = vld [vmem:[%s162 + $0x628] sm:$0xff]
      %v3318 = vld [vmem:[%s162 + $0x630] sm:$0xff]
      %v3319 = vld [vmem:[%s162 + $0x638] sm:$0xff]
      %v3320 = vld [vmem:[%s162 + $0x640] sm:$0xff]
      %v3321 = vld [vmem:[%s162 + $0x648] sm:$0xff]
      %v3322 = vld [vmem:[%s162 + $0x650] sm:$0xff]
      %v3323 = vld [vmem:[%s162 + $0x658] sm:$0xff]
      %v3324 = vld [vmem:[%s162 + $0x660] sm:$0xff]
      %v3325 = vld [vmem:[%s162 + $0x668] sm:$0xff]
      %v3326 = vld [vmem:[%s162 + $0x670] sm:$0xff]
      %v3327 = vld [vmem:[%s162 + $0x678] sm:$0xff]
      %v3328 = vld [vmem:[%s162 + $0x680] sm:$0xff]
      %v3329 = vld [vmem:[%s162 + $0x688] sm:$0xff]
      %v3330 = vld [vmem:[%s162 + $0x690] sm:$0xff]
      %v3331 = vld [vmem:[%s162 + $0x698] sm:$0xff]
      %v3332 = vld [vmem:[%s162 + $0x6a0] sm:$0xff]
      %v3333 = vld [vmem:[%s162 + $0x6a8] sm:$0xff]
      %v3334 = vld [vmem:[%s162 + $0x6b0] sm:$0xff]
      %v3335 = vld [vmem:[%s162 + $0x6b8] sm:$0xff]
      %v3336 = vld [vmem:[%s162 + $0x6c0] sm:$0xff]
      %v3337 = vld [vmem:[%s162 + $0x6c8] sm:$0xff]
      %v3338 = vld [vmem:[%s162 + $0x6d0] sm:$0xff]
      %v3339 = vld [vmem:[%s162 + $0x6d8] sm:$0xff]
      %v3340 = vld [vmem:[%s162 + $0x6e0] sm:$0xff]
      %v3341 = vld [vmem:[%s162 + $0x6e8] sm:$0xff]
      %v3342 = vld [vmem:[%s162 + $0x6f0] sm:$0xff]
      %v3343 = vld [vmem:[%s162 + $0x6f8] sm:$0xff]
      %v3344 = vld [vmem:[%s162 + $0x700] sm:$0xff]
      %v3345 = vld [vmem:[%s162 + $0x708] sm:$0xff]
      %v3346 = vld [vmem:[%s162 + $0x710] sm:$0xff]
      %v3347 = vld [vmem:[%s162 + $0x718] sm:$0xff]
      %v3348 = vld [vmem:[%s162 + $0x720] sm:$0xff]
      %v3349 = vld [vmem:[%s162 + $0x728] sm:$0xff]
      %v3350 = vld [vmem:[%s162 + $0x730] sm:$0xff]
      %v3351 = vld [vmem:[%s162 + $0x738] sm:$0xff]
      %v3352 = vld [vmem:[%s162 + $0x740] sm:$0xff]
      %v3353 = vld [vmem:[%s162 + $0x748] sm:$0xff]
      %v3354 = vld [vmem:[%s162 + $0x750] sm:$0xff]
      %v3355 = vld [vmem:[%s162 + $0x758] sm:$0xff]
      %v3356 = vld [vmem:[%s162 + $0x760] sm:$0xff]
      %v3357 = vld [vmem:[%s162 + $0x768] sm:$0xff]
      %v3358 = vld [vmem:[%s162 + $0x770] sm:$0xff]
      %v3359 = vld [vmem:[%s162 + $0x778] sm:$0xff]
      %v3360 = vld [vmem:[%s162 + $0x780] sm:$0xff]
      %v3361 = vld [vmem:[%s162 + $0x788] sm:$0xff]
      %v3362 = vld [vmem:[%s162 + $0x790] sm:$0xff]
      %v3363 = vld [vmem:[%s162 + $0x798] sm:$0xff]
      %v3364 = vld [vmem:[%s162 + $0x7a0] sm:$0xff]
      %v3365 = vld [vmem:[%s162 + $0x7a8] sm:$0xff]
      %v3366 = vld [vmem:[%s162 + $0x7b0] sm:$0xff]
      %v3367 = vld [vmem:[%s162 + $0x7b8] sm:$0xff]
      %v3368 = vld [vmem:[%s162 + $0x7c0] sm:$0xff]
      %v3369 = vld [vmem:[%s162 + $0x7c8] sm:$0xff]
      %v3370 = vld [vmem:[%s162 + $0x7d0] sm:$0xff]
      %v3371 = vld [vmem:[%s162 + $0x7d8] sm:$0xff]
      %v3372 = vld [vmem:[%s162 + $0x7e0] sm:$0xff]
      %v3373 = vld [vmem:[%s162 + $0x7e8] sm:$0xff]
      %v3374 = vld [vmem:[%s162 + $0x7f0] sm:$0xff]
      %v3375 = vld [vmem:[%s162 + $0x7f8] sm:$0xff]
      %v3376 = vld [vmem:[%s162 + $0x800] sm:$0xff]
      %v3377 = vld [vmem:[%s162 + $0x808] sm:$0xff]
      %v3378 = vld [vmem:[%s162 + $0x810] sm:$0xff]
      %v3379 = vld [vmem:[%s162 + $0x818] sm:$0xff]
      %v3380 = vld [vmem:[%s162 + $0x820] sm:$0xff]
      %v3381 = vld [vmem:[%s162 + $0x828] sm:$0xff]
      %v3382 = vld [vmem:[%s162 + $0x830] sm:$0xff]
      %v3383 = vld [vmem:[%s162 + $0x838] sm:$0xff]
      %v3384 = vld [vmem:[%s162 + $0x840] sm:$0xff]
      %v3385 = vld [vmem:[%s162 + $0x848] sm:$0xff]
      %v3386 = vld [vmem:[%s162 + $0x850] sm:$0xff]
      %v3387 = vld [vmem:[%s162 + $0x858] sm:$0xff]
      %v3388 = vld [vmem:[%s162 + $0x860] sm:$0xff]
      %v3389 = vld [vmem:[%s162 + $0x868] sm:$0xff]
      %v3390 = vld [vmem:[%s162 + $0x870] sm:$0xff]
      %v3391 = vld [vmem:[%s162 + $0x878] sm:$0xff]
      %v3392 = vld [vmem:[%s162 + $0x880] sm:$0xff]
      %v3393 = vld [vmem:[%s162 + $0x888] sm:$0xff]
      %v3394 = vld [vmem:[%s162 + $0x890] sm:$0xff]
      %v3395 = vld [vmem:[%s162 + $0x898] sm:$0xff]
      %v3396 = vld [vmem:[%s162 + $0x8a0] sm:$0xff]
      %v3397 = vld [vmem:[%s162 + $0x8a8] sm:$0xff]
      %v3398 = vld [vmem:[%s162 + $0x8b0] sm:$0xff]
      %v3399 = vld [vmem:[%s162 + $0x8b8] sm:$0xff]
      %v3400 = vld [vmem:[%s162 + $0x8c0] sm:$0xff]
      %v3401 = vld [vmem:[%s162 + $0x8c8] sm:$0xff]
      %v3402 = vld [vmem:[%s162 + $0x8d0] sm:$0xff]
      %v3403 = vld [vmem:[%s162 + $0x8d8] sm:$0xff]
      %v3404 = vld [vmem:[%s162 + $0x8e0] sm:$0xff]
      %v3405 = vld [vmem:[%s162 + $0x8e8] sm:$0xff]
      %v3406 = vld [vmem:[%s162 + $0x8f0] sm:$0xff]
      %v3407 = vld [vmem:[%s162 + $0x8f8] sm:$0xff]
      %v3696 = vunpack.c.l.b16 %v3120
      %v3697 = vunpack.c.h.b16 %v3120
      %v3698 = vunpack.c.l.b16 %v3121
      %v3699 = vunpack.c.h.b16 %v3121
      %v3700 = vunpack.c.l.b16 %v3122
      %v3701 = vunpack.c.h.b16 %v3122
      %v3702 = vunpack.c.l.b16 %v3123
      %v3703 = vunpack.c.h.b16 %v3123
      %v3704 = vunpack.c.l.b16 %v3124
      %v3705 = vunpack.c.h.b16 %v3124
      %v3706 = vunpack.c.l.b16 %v3125
      %v3707 = vunpack.c.h.b16 %v3125
      %v3708 = vunpack.c.l.b16 %v3126
      %v3709 = vunpack.c.h.b16 %v3126
      %v3710 = vunpack.c.l.b16 %v3127
      %v3711 = vunpack.c.h.b16 %v3127
      %v3712 = vunpack.c.l.b16 %v3128
      %v3713 = vunpack.c.h.b16 %v3128
      %v3714 = vunpack.c.l.b16 %v3129
      %v3715 = vunpack.c.h.b16 %v3129
      %v3716 = vunpack.c.l.b16 %v3130
      %v3717 = vunpack.c.h.b16 %v3130
      %v3718 = vunpack.c.l.b16 %v3131
      %v3719 = vunpack.c.h.b16 %v3131
      %v3720 = vunpack.c.l.b16 %v3132
      %v3721 = vunpack.c.h.b16 %v3132
      %v3722 = vunpack.c.l.b16 %v3133
      %v3723 = vunpack.c.h.b16 %v3133
      %v3724 = vunpack.c.l.b16 %v3134
      %v3725 = vunpack.c.h.b16 %v3134
      %v3726 = vunpack.c.l.b16 %v3135
      %v3727 = vunpack.c.h.b16 %v3135
      %v3728 = vunpack.c.l.b16 %v3136
      %v3729 = vunpack.c.h.b16 %v3136
      %v3730 = vunpack.c.l.b16 %v3137
      %v3731 = vunpack.c.h.b16 %v3137
      %v3732 = vunpack.c.l.b16 %v3138
      %v3733 = vunpack.c.h.b16 %v3138
      %v3734 = vunpack.c.l.b16 %v3139
      %v3735 = vunpack.c.h.b16 %v3139
      %v3736 = vunpack.c.l.b16 %v3140
      %v3737 = vunpack.c.h.b16 %v3140
      %v3738 = vunpack.c.l.b16 %v3141
      %v3739 = vunpack.c.h.b16 %v3141
      %v3740 = vunpack.c.l.b16 %v3142
      %v3741 = vunpack.c.h.b16 %v3142
      %v3742 = vunpack.c.l.b16 %v3143
      %v3743 = vunpack.c.h.b16 %v3143
      %v3744 = vunpack.c.l.b16 %v3144
      %v3745 = vunpack.c.h.b16 %v3144
      %v3746 = vunpack.c.l.b16 %v3145
      %v3747 = vunpack.c.h.b16 %v3145
      %v3748 = vunpack.c.l.b16 %v3146
      %v3749 = vunpack.c.h.b16 %v3146
      %v3750 = vunpack.c.l.b16 %v3147
      %v3751 = vunpack.c.h.b16 %v3147
      %v3752 = vunpack.c.l.b16 %v3148
      %v3753 = vunpack.c.h.b16 %v3148
      %v3754 = vunpack.c.l.b16 %v3149
      %v3755 = vunpack.c.h.b16 %v3149
      %v3756 = vunpack.c.l.b16 %v3150
      %v3757 = vunpack.c.h.b16 %v3150
      %v3758 = vunpack.c.l.b16 %v3151
      %v3759 = vunpack.c.h.b16 %v3151
      %v3760 = vunpack.c.l.b16 %v3152
      %v3761 = vunpack.c.h.b16 %v3152
      %v3762 = vunpack.c.l.b16 %v3153
      %v3763 = vunpack.c.h.b16 %v3153
      %v3764 = vunpack.c.l.b16 %v3154
      %v3765 = vunpack.c.h.b16 %v3154
      %v3766 = vunpack.c.l.b16 %v3155
      %v3767 = vunpack.c.h.b16 %v3155
      %v3768 = vunpack.c.l.b16 %v3156
      %v3769 = vunpack.c.h.b16 %v3156
      %v3770 = vunpack.c.l.b16 %v3157
      %v3771 = vunpack.c.h.b16 %v3157
      %v3772 = vunpack.c.l.b16 %v3158
      %v3773 = vunpack.c.h.b16 %v3158
      %v3774 = vunpack.c.l.b16 %v3159
      %v3775 = vunpack.c.h.b16 %v3159
      %v3776 = vunpack.c.l.b16 %v3160
      %v3777 = vunpack.c.h.b16 %v3160
      %v3778 = vunpack.c.l.b16 %v3161
      %v3779 = vunpack.c.h.b16 %v3161
      %v3780 = vunpack.c.l.b16 %v3162
      %v3781 = vunpack.c.h.b16 %v3162
      %v3782 = vunpack.c.l.b16 %v3163
      %v3783 = vunpack.c.h.b16 %v3163
      %v3784 = vunpack.c.l.b16 %v3164
      %v3785 = vunpack.c.h.b16 %v3164
      %v3786 = vunpack.c.l.b16 %v3165
      %v3787 = vunpack.c.h.b16 %v3165
      %v3788 = vunpack.c.l.b16 %v3166
      %v3789 = vunpack.c.h.b16 %v3166
      %v3790 = vunpack.c.l.b16 %v3167
      %v3791 = vunpack.c.h.b16 %v3167
      %v3792 = vunpack.c.l.b16 %v3168
      %v3793 = vunpack.c.h.b16 %v3168
      %v3794 = vunpack.c.l.b16 %v3169
      %v3795 = vunpack.c.h.b16 %v3169
      %v3796 = vunpack.c.l.b16 %v3170
      %v3797 = vunpack.c.h.b16 %v3170
      %v3798 = vunpack.c.l.b16 %v3171
      %v3799 = vunpack.c.h.b16 %v3171
      %v3800 = vunpack.c.l.b16 %v3172
      %v3801 = vunpack.c.h.b16 %v3172
      %v3802 = vunpack.c.l.b16 %v3173
      %v3803 = vunpack.c.h.b16 %v3173
      %v3804 = vunpack.c.l.b16 %v3174
      %v3805 = vunpack.c.h.b16 %v3174
      %v3806 = vunpack.c.l.b16 %v3175
      %v3807 = vunpack.c.h.b16 %v3175
      %v3808 = vunpack.c.l.b16 %v3176
      %v3809 = vunpack.c.h.b16 %v3176
      %v3810 = vunpack.c.l.b16 %v3177
      %v3811 = vunpack.c.h.b16 %v3177
      %v3812 = vunpack.c.l.b16 %v3178
      %v3813 = vunpack.c.h.b16 %v3178
      %v3814 = vunpack.c.l.b16 %v3179
      %v3815 = vunpack.c.h.b16 %v3179
      %v3816 = vunpack.c.l.b16 %v3180
      %v3817 = vunpack.c.h.b16 %v3180
      %v3818 = vunpack.c.l.b16 %v3181
      %v3819 = vunpack.c.h.b16 %v3181
      %v3820 = vunpack.c.l.b16 %v3182
      %v3821 = vunpack.c.h.b16 %v3182
      %v3822 = vunpack.c.l.b16 %v3183
      %v3823 = vunpack.c.h.b16 %v3183
      %v3824 = vunpack.c.l.b16 %v3184
      %v3825 = vunpack.c.h.b16 %v3184
      %v3826 = vunpack.c.l.b16 %v3185
      %v3827 = vunpack.c.h.b16 %v3185
      %v3828 = vunpack.c.l.b16 %v3186
      %v3829 = vunpack.c.h.b16 %v3186
      %v3830 = vunpack.c.l.b16 %v3187
      %v3831 = vunpack.c.h.b16 %v3187
      %v3832 = vunpack.c.l.b16 %v3188
      %v3833 = vunpack.c.h.b16 %v3188
      %v3834 = vunpack.c.l.b16 %v3189
      %v3835 = vunpack.c.h.b16 %v3189
      %v3836 = vunpack.c.l.b16 %v3190
      %v3837 = vunpack.c.h.b16 %v3190
      %v3838 = vunpack.c.l.b16 %v3191
      %v3839 = vunpack.c.h.b16 %v3191
      %v3840 = vunpack.c.l.b16 %v3192
      %v3841 = vunpack.c.h.b16 %v3192
      %v3842 = vunpack.c.l.b16 %v3193
      %v3843 = vunpack.c.h.b16 %v3193
      %v3844 = vunpack.c.l.b16 %v3194
      %v3845 = vunpack.c.h.b16 %v3194
      %v3846 = vunpack.c.l.b16 %v3195
      %v3847 = vunpack.c.h.b16 %v3195
      %v3848 = vunpack.c.l.b16 %v3196
      %v3849 = vunpack.c.h.b16 %v3196
      %v3850 = vunpack.c.l.b16 %v3197
      %v3851 = vunpack.c.h.b16 %v3197
      %v3852 = vunpack.c.l.b16 %v3198
      %v3853 = vunpack.c.h.b16 %v3198
      %v3854 = vunpack.c.l.b16 %v3199
      %v3855 = vunpack.c.h.b16 %v3199
      %v3856 = vunpack.c.l.b16 %v3200
      %v3857 = vunpack.c.h.b16 %v3200
      %v3858 = vunpack.c.l.b16 %v3201
      %v3859 = vunpack.c.h.b16 %v3201
      %v3860 = vunpack.c.l.b16 %v3202
      %v3861 = vunpack.c.h.b16 %v3202
      %v3862 = vunpack.c.l.b16 %v3203
      %v3863 = vunpack.c.h.b16 %v3203
      %v3864 = vunpack.c.l.b16 %v3204
      %v3865 = vunpack.c.h.b16 %v3204
      %v3866 = vunpack.c.l.b16 %v3205
      %v3867 = vunpack.c.h.b16 %v3205
      %v3868 = vunpack.c.l.b16 %v3206
      %v3869 = vunpack.c.h.b16 %v3206
      %v3870 = vunpack.c.l.b16 %v3207
      %v3871 = vunpack.c.h.b16 %v3207
      %v3872 = vunpack.c.l.b16 %v3208
      %v3873 = vunpack.c.h.b16 %v3208
      %v3874 = vunpack.c.l.b16 %v3209
      %v3875 = vunpack.c.h.b16 %v3209
      %v3876 = vunpack.c.l.b16 %v3210
      %v3877 = vunpack.c.h.b16 %v3210
      %v3878 = vunpack.c.l.b16 %v3211
      %v3879 = vunpack.c.h.b16 %v3211
      %v3880 = vunpack.c.l.b16 %v3212
      %v3881 = vunpack.c.h.b16 %v3212
      %v3882 = vunpack.c.l.b16 %v3213
      %v3883 = vunpack.c.h.b16 %v3213
      %v3884 = vunpack.c.l.b16 %v3214
      %v3885 = vunpack.c.h.b16 %v3214
      %v3886 = vunpack.c.l.b16 %v3215
      %v3887 = vunpack.c.h.b16 %v3215
      %v3888 = vunpack.c.l.b16 %v3216
      %v3889 = vunpack.c.h.b16 %v3216
      %v3890 = vunpack.c.l.b16 %v3217
      %v3891 = vunpack.c.h.b16 %v3217
      %v3892 = vunpack.c.l.b16 %v3218
      %v3893 = vunpack.c.h.b16 %v3218
      %v3894 = vunpack.c.l.b16 %v3219
      %v3895 = vunpack.c.h.b16 %v3219
      %v3896 = vunpack.c.l.b16 %v3220
      %v3897 = vunpack.c.h.b16 %v3220
      %v3898 = vunpack.c.l.b16 %v3221
      %v3899 = vunpack.c.h.b16 %v3221
      %v3900 = vunpack.c.l.b16 %v3222
      %v3901 = vunpack.c.h.b16 %v3222
      %v3902 = vunpack.c.l.b16 %v3223
      %v3903 = vunpack.c.h.b16 %v3223
      %v3904 = vunpack.c.l.b16 %v3224
      %v3905 = vunpack.c.h.b16 %v3224
      %v3906 = vunpack.c.l.b16 %v3225
      %v3907 = vunpack.c.h.b16 %v3225
      %v3908 = vunpack.c.l.b16 %v3226
      %v3909 = vunpack.c.h.b16 %v3226
      %v3910 = vunpack.c.l.b16 %v3227
      %v3911 = vunpack.c.h.b16 %v3227
      %v3912 = vunpack.c.l.b16 %v3228
      %v3913 = vunpack.c.h.b16 %v3228
      %v3914 = vunpack.c.l.b16 %v3229
      %v3915 = vunpack.c.h.b16 %v3229
      %v3916 = vunpack.c.l.b16 %v3230
      %v3917 = vunpack.c.h.b16 %v3230
      %v3918 = vunpack.c.l.b16 %v3231
      %v3919 = vunpack.c.h.b16 %v3231
      %v3920 = vunpack.c.l.b16 %v3232
      %v3921 = vunpack.c.h.b16 %v3232
      %v3922 = vunpack.c.l.b16 %v3233
      %v3923 = vunpack.c.h.b16 %v3233
      %v3924 = vunpack.c.l.b16 %v3234
      %v3925 = vunpack.c.h.b16 %v3234
      %v3926 = vunpack.c.l.b16 %v3235
      %v3927 = vunpack.c.h.b16 %v3235
      %v3928 = vunpack.c.l.b16 %v3236
      %v3929 = vunpack.c.h.b16 %v3236
      %v3930 = vunpack.c.l.b16 %v3237
      %v3931 = vunpack.c.h.b16 %v3237
      %v3932 = vunpack.c.l.b16 %v3238
      %v3933 = vunpack.c.h.b16 %v3238
      %v3934 = vunpack.c.l.b16 %v3239
      %v3935 = vunpack.c.h.b16 %v3239
      %v3936 = vunpack.c.l.b16 %v3240
      %v3937 = vunpack.c.h.b16 %v3240
      %v3938 = vunpack.c.l.b16 %v3241
      %v3939 = vunpack.c.h.b16 %v3241
      %v3940 = vunpack.c.l.b16 %v3242
      %v3941 = vunpack.c.h.b16 %v3242
      %v3942 = vunpack.c.l.b16 %v3243
      %v3943 = vunpack.c.h.b16 %v3243
      %v3944 = vunpack.c.l.b16 %v3244
      %v3945 = vunpack.c.h.b16 %v3244
      %v3946 = vunpack.c.l.b16 %v3245
      %v3947 = vunpack.c.h.b16 %v3245
      %v3948 = vunpack.c.l.b16 %v3246
      %v3949 = vunpack.c.h.b16 %v3246
      %v3950 = vunpack.c.l.b16 %v3247
      %v3951 = vunpack.c.h.b16 %v3247
      %v3952 = vunpack.c.l.b16 %v3248
      %v3953 = vunpack.c.h.b16 %v3248
      %v3954 = vunpack.c.l.b16 %v3249
      %v3955 = vunpack.c.h.b16 %v3249
      %v3956 = vunpack.c.l.b16 %v3250
      %v3957 = vunpack.c.h.b16 %v3250
      %v3958 = vunpack.c.l.b16 %v3251
      %v3959 = vunpack.c.h.b16 %v3251
      %v3960 = vunpack.c.l.b16 %v3252
      %v3961 = vunpack.c.h.b16 %v3252
      %v3962 = vunpack.c.l.b16 %v3253
      %v3963 = vunpack.c.h.b16 %v3253
      %v3964 = vunpack.c.l.b16 %v3254
      %v3965 = vunpack.c.h.b16 %v3254
      %v3966 = vunpack.c.l.b16 %v3255
      %v3967 = vunpack.c.h.b16 %v3255
      %v3968 = vunpack.c.l.b16 %v3256
      %v3969 = vunpack.c.h.b16 %v3256
      %v3970 = vunpack.c.l.b16 %v3257
      %v3971 = vunpack.c.h.b16 %v3257
      %v3972 = vunpack.c.l.b16 %v3258
      %v3973 = vunpack.c.h.b16 %v3258
      %v3974 = vunpack.c.l.b16 %v3259
      %v3975 = vunpack.c.h.b16 %v3259
      %v3976 = vunpack.c.l.b16 %v3260
      %v3977 = vunpack.c.h.b16 %v3260
      %v3978 = vunpack.c.l.b16 %v3261
      %v3979 = vunpack.c.h.b16 %v3261
      %v3980 = vunpack.c.l.b16 %v3262
      %v3981 = vunpack.c.h.b16 %v3262
      %v3982 = vunpack.c.l.b16 %v3263
      %v3983 = vunpack.c.h.b16 %v3263
      %v3984 = vunpack.c.l.b16 %v3264
      %v3985 = vunpack.c.h.b16 %v3264
      %v3986 = vunpack.c.l.b16 %v3265
      %v3987 = vunpack.c.h.b16 %v3265
      %v3988 = vunpack.c.l.b16 %v3266
      %v3989 = vunpack.c.h.b16 %v3266
      %v3990 = vunpack.c.l.b16 %v3267
      %v3991 = vunpack.c.h.b16 %v3267
      %v3992 = vunpack.c.l.b16 %v3268
      %v3993 = vunpack.c.h.b16 %v3268
      %v3994 = vunpack.c.l.b16 %v3269
      %v3995 = vunpack.c.h.b16 %v3269
      %v3996 = vunpack.c.l.b16 %v3270
      %v3997 = vunpack.c.h.b16 %v3270
      %v3998 = vunpack.c.l.b16 %v3271
      %v3999 = vunpack.c.h.b16 %v3271
      %v4000 = vunpack.c.l.b16 %v3272
      %v4001 = vunpack.c.h.b16 %v3272
      %v4002 = vunpack.c.l.b16 %v3273
      %v4003 = vunpack.c.h.b16 %v3273
      %v4004 = vunpack.c.l.b16 %v3274
      %v4005 = vunpack.c.h.b16 %v3274
      %v4006 = vunpack.c.l.b16 %v3275
      %v4007 = vunpack.c.h.b16 %v3275
      %v4008 = vunpack.c.l.b16 %v3276
      %v4009 = vunpack.c.h.b16 %v3276
      %v4010 = vunpack.c.l.b16 %v3277
      %v4011 = vunpack.c.h.b16 %v3277
      %v4012 = vunpack.c.l.b16 %v3278
      %v4013 = vunpack.c.h.b16 %v3278
      %v4014 = vunpack.c.l.b16 %v3279
      %v4015 = vunpack.c.h.b16 %v3279
      %v4016 = vunpack.c.l.b16 %v3280
      %v4017 = vunpack.c.h.b16 %v3280
      %v4018 = vunpack.c.l.b16 %v3281
      %v4019 = vunpack.c.h.b16 %v3281
      %v4020 = vunpack.c.l.b16 %v3282
      %v4021 = vunpack.c.h.b16 %v3282
      %v4022 = vunpack.c.l.b16 %v3283
      %v4023 = vunpack.c.h.b16 %v3283
      %v4024 = vunpack.c.l.b16 %v3284
      %v4025 = vunpack.c.h.b16 %v3284
      %v4026 = vunpack.c.l.b16 %v3285
      %v4027 = vunpack.c.h.b16 %v3285
      %v4028 = vunpack.c.l.b16 %v3286
      %v4029 = vunpack.c.h.b16 %v3286
      %v4030 = vunpack.c.l.b16 %v3287
      %v4031 = vunpack.c.h.b16 %v3287
      %v4032 = vunpack.c.l.b16 %v3288
      %v4033 = vunpack.c.h.b16 %v3288
      %v4034 = vunpack.c.l.b16 %v3289
      %v4035 = vunpack.c.h.b16 %v3289
      %v4036 = vunpack.c.l.b16 %v3290
      %v4037 = vunpack.c.h.b16 %v3290
      %v4038 = vunpack.c.l.b16 %v3291
      %v4039 = vunpack.c.h.b16 %v3291
      %v4040 = vunpack.c.l.b16 %v3292
      %v4041 = vunpack.c.h.b16 %v3292
      %v4042 = vunpack.c.l.b16 %v3293
      %v4043 = vunpack.c.h.b16 %v3293
      %v4044 = vunpack.c.l.b16 %v3294
      %v4045 = vunpack.c.h.b16 %v3294
      %v4046 = vunpack.c.l.b16 %v3295
      %v4047 = vunpack.c.h.b16 %v3295
      %v4048 = vunpack.c.l.b16 %v3296
      %v4049 = vunpack.c.h.b16 %v3296
      %v4050 = vunpack.c.l.b16 %v3297
      %v4051 = vunpack.c.h.b16 %v3297
      %v4052 = vunpack.c.l.b16 %v3298
      %v4053 = vunpack.c.h.b16 %v3298
      %v4054 = vunpack.c.l.b16 %v3299
      %v4055 = vunpack.c.h.b16 %v3299
      %v4056 = vunpack.c.l.b16 %v3300
      %v4057 = vunpack.c.h.b16 %v3300
      %v4058 = vunpack.c.l.b16 %v3301
      %v4059 = vunpack.c.h.b16 %v3301
      %v4060 = vunpack.c.l.b16 %v3302
      %v4061 = vunpack.c.h.b16 %v3302
      %v4062 = vunpack.c.l.b16 %v3303
      %v4063 = vunpack.c.h.b16 %v3303
      %v4064 = vunpack.c.l.b16 %v3304
      %v4065 = vunpack.c.h.b16 %v3304
      %v4066 = vunpack.c.l.b16 %v3305
      %v4067 = vunpack.c.h.b16 %v3305
      %v4068 = vunpack.c.l.b16 %v3306
      %v4069 = vunpack.c.h.b16 %v3306
      %v4070 = vunpack.c.l.b16 %v3307
      %v4071 = vunpack.c.h.b16 %v3307
      %v4072 = vunpack.c.l.b16 %v3308
      %v4073 = vunpack.c.h.b16 %v3308
      %v4074 = vunpack.c.l.b16 %v3309
      %v4075 = vunpack.c.h.b16 %v3309
      %v4076 = vunpack.c.l.b16 %v3310
      %v4077 = vunpack.c.h.b16 %v3310
      %v4078 = vunpack.c.l.b16 %v3311
      %v4079 = vunpack.c.h.b16 %v3311
      %v4080 = vunpack.c.l.b16 %v3312
      %v4081 = vunpack.c.h.b16 %v3312
      %v4082 = vunpack.c.l.b16 %v3313
      %v4083 = vunpack.c.h.b16 %v3313
      %v4084 = vunpack.c.l.b16 %v3314
      %v4085 = vunpack.c.h.b16 %v3314
      %v4086 = vunpack.c.l.b16 %v3315
      %v4087 = vunpack.c.h.b16 %v3315
      %v4088 = vunpack.c.l.b16 %v3316
      %v4089 = vunpack.c.h.b16 %v3316
      %v4090 = vunpack.c.l.b16 %v3317
      %v4091 = vunpack.c.h.b16 %v3317
      %v4092 = vunpack.c.l.b16 %v3318
      %v4093 = vunpack.c.h.b16 %v3318
      %v4094 = vunpack.c.l.b16 %v3319
      %v4095 = vunpack.c.h.b16 %v3319
      %v4096 = vunpack.c.l.b16 %v3320
      %v4097 = vunpack.c.h.b16 %v3320
      %v4098 = vunpack.c.l.b16 %v3321
      %v4099 = vunpack.c.h.b16 %v3321
      %v4100 = vunpack.c.l.b16 %v3322
      %v4101 = vunpack.c.h.b16 %v3322
      %v4102 = vunpack.c.l.b16 %v3323
      %v4103 = vunpack.c.h.b16 %v3323
      %v4104 = vunpack.c.l.b16 %v3324
      %v4105 = vunpack.c.h.b16 %v3324
      %v4106 = vunpack.c.l.b16 %v3325
      %v4107 = vunpack.c.h.b16 %v3325
      %v4108 = vunpack.c.l.b16 %v3326
      %v4109 = vunpack.c.h.b16 %v3326
      %v4110 = vunpack.c.l.b16 %v3327
      %v4111 = vunpack.c.h.b16 %v3327
      %v4112 = vunpack.c.l.b16 %v3328
      %v4113 = vunpack.c.h.b16 %v3328
      %v4114 = vunpack.c.l.b16 %v3329
      %v4115 = vunpack.c.h.b16 %v3329
      %v4116 = vunpack.c.l.b16 %v3330
      %v4117 = vunpack.c.h.b16 %v3330
      %v4118 = vunpack.c.l.b16 %v3331
      %v4119 = vunpack.c.h.b16 %v3331
      %v4120 = vunpack.c.l.b16 %v3332
      %v4121 = vunpack.c.h.b16 %v3332
      %v4122 = vunpack.c.l.b16 %v3333
      %v4123 = vunpack.c.h.b16 %v3333
      %v4124 = vunpack.c.l.b16 %v3334
      %v4125 = vunpack.c.h.b16 %v3334
      %v4126 = vunpack.c.l.b16 %v3335
      %v4127 = vunpack.c.h.b16 %v3335
      %v4128 = vunpack.c.l.b16 %v3336
      %v4129 = vunpack.c.h.b16 %v3336
      %v4130 = vunpack.c.l.b16 %v3337
      %v4131 = vunpack.c.h.b16 %v3337
      %v4132 = vunpack.c.l.b16 %v3338
      %v4133 = vunpack.c.h.b16 %v3338
      %v4134 = vunpack.c.l.b16 %v3339
      %v4135 = vunpack.c.h.b16 %v3339
      %v4136 = vunpack.c.l.b16 %v3340
      %v4137 = vunpack.c.h.b16 %v3340
      %v4138 = vunpack.c.l.b16 %v3341
      %v4139 = vunpack.c.h.b16 %v3341
      %v4140 = vunpack.c.l.b16 %v3342
      %v4141 = vunpack.c.h.b16 %v3342
      %v4142 = vunpack.c.l.b16 %v3343
      %v4143 = vunpack.c.h.b16 %v3343
      %v4144 = vunpack.c.l.b16 %v3344
      %v4145 = vunpack.c.h.b16 %v3344
      %v4146 = vunpack.c.l.b16 %v3345
      %v4147 = vunpack.c.h.b16 %v3345
      %v4148 = vunpack.c.l.b16 %v3346
      %v4149 = vunpack.c.h.b16 %v3346
      %v4150 = vunpack.c.l.b16 %v3347
      %v4151 = vunpack.c.h.b16 %v3347
      %v4152 = vunpack.c.l.b16 %v3348
      %v4153 = vunpack.c.h.b16 %v3348
      %v4154 = vunpack.c.l.b16 %v3349
      %v4155 = vunpack.c.h.b16 %v3349
      %v4156 = vunpack.c.l.b16 %v3350
      %v4157 = vunpack.c.h.b16 %v3350
      %v4158 = vunpack.c.l.b16 %v3351
      %v4159 = vunpack.c.h.b16 %v3351
      %v4160 = vunpack.c.l.b16 %v3352
      %v4161 = vunpack.c.h.b16 %v3352
      %v4162 = vunpack.c.l.b16 %v3353
      %v4163 = vunpack.c.h.b16 %v3353
      %v4164 = vunpack.c.l.b16 %v3354
      %v4165 = vunpack.c.h.b16 %v3354
      %v4166 = vunpack.c.l.b16 %v3355
      %v4167 = vunpack.c.h.b16 %v3355
      %v4168 = vunpack.c.l.b16 %v3356
      %v4169 = vunpack.c.h.b16 %v3356
      %v4170 = vunpack.c.l.b16 %v3357
      %v4171 = vunpack.c.h.b16 %v3357
      %v4172 = vunpack.c.l.b16 %v3358
      %v4173 = vunpack.c.h.b16 %v3358
      %v4174 = vunpack.c.l.b16 %v3359
      %v4175 = vunpack.c.h.b16 %v3359
      %v4176 = vunpack.c.l.b16 %v3360
      %v4177 = vunpack.c.h.b16 %v3360
      %v4178 = vunpack.c.l.b16 %v3361
      %v4179 = vunpack.c.h.b16 %v3361
      %v4180 = vunpack.c.l.b16 %v3362
      %v4181 = vunpack.c.h.b16 %v3362
      %v4182 = vunpack.c.l.b16 %v3363
      %v4183 = vunpack.c.h.b16 %v3363
      %v4184 = vunpack.c.l.b16 %v3364
      %v4185 = vunpack.c.h.b16 %v3364
      %v4186 = vunpack.c.l.b16 %v3365
      %v4187 = vunpack.c.h.b16 %v3365
      %v4188 = vunpack.c.l.b16 %v3366
      %v4189 = vunpack.c.h.b16 %v3366
      %v4190 = vunpack.c.l.b16 %v3367
      %v4191 = vunpack.c.h.b16 %v3367
      %v4192 = vunpack.c.l.b16 %v3368
      %v4193 = vunpack.c.h.b16 %v3368
      %v4194 = vunpack.c.l.b16 %v3369
      %v4195 = vunpack.c.h.b16 %v3369
      %v4196 = vunpack.c.l.b16 %v3370
      %v4197 = vunpack.c.h.b16 %v3370
      %v4198 = vunpack.c.l.b16 %v3371
      %v4199 = vunpack.c.h.b16 %v3371
      %v4200 = vunpack.c.l.b16 %v3372
      %v4201 = vunpack.c.h.b16 %v3372
      %v4202 = vunpack.c.l.b16 %v3373
      %v4203 = vunpack.c.h.b16 %v3373
      %v4204 = vunpack.c.l.b16 %v3374
      %v4205 = vunpack.c.h.b16 %v3374
      %v4206 = vunpack.c.l.b16 %v3375
      %v4207 = vunpack.c.h.b16 %v3375
      %v4208 = vunpack.c.l.b16 %v3376
      %v4209 = vunpack.c.h.b16 %v3376
      %v4210 = vunpack.c.l.b16 %v3377
      %v4211 = vunpack.c.h.b16 %v3377
      %v4212 = vunpack.c.l.b16 %v3378
      %v4213 = vunpack.c.h.b16 %v3378
      %v4214 = vunpack.c.l.b16 %v3379
      %v4215 = vunpack.c.h.b16 %v3379
      %v4216 = vunpack.c.l.b16 %v3380
      %v4217 = vunpack.c.h.b16 %v3380
      %v4218 = vunpack.c.l.b16 %v3381
      %v4219 = vunpack.c.h.b16 %v3381
      %v4220 = vunpack.c.l.b16 %v3382
      %v4221 = vunpack.c.h.b16 %v3382
      %v4222 = vunpack.c.l.b16 %v3383
      %v4223 = vunpack.c.h.b16 %v3383
      %v4224 = vunpack.c.l.b16 %v3384
      %v4225 = vunpack.c.h.b16 %v3384
      %v4226 = vunpack.c.l.b16 %v3385
      %v4227 = vunpack.c.h.b16 %v3385
      %v4228 = vunpack.c.l.b16 %v3386
      %v4229 = vunpack.c.h.b16 %v3386
      %v4230 = vunpack.c.l.b16 %v3387
      %v4231 = vunpack.c.h.b16 %v3387
      %v4232 = vunpack.c.l.b16 %v3388
      %v4233 = vunpack.c.h.b16 %v3388
      %v4234 = vunpack.c.l.b16 %v3389
      %v4235 = vunpack.c.h.b16 %v3389
      %v4236 = vunpack.c.l.b16 %v3390
      %v4237 = vunpack.c.h.b16 %v3390
      %v4238 = vunpack.c.l.b16 %v3391
      %v4239 = vunpack.c.h.b16 %v3391
      %v4240 = vunpack.c.l.b16 %v3392
      %v4241 = vunpack.c.h.b16 %v3392
      %v4242 = vunpack.c.l.b16 %v3393
      %v4243 = vunpack.c.h.b16 %v3393
      %v4244 = vunpack.c.l.b16 %v3394
      %v4245 = vunpack.c.h.b16 %v3394
      %v4246 = vunpack.c.l.b16 %v3395
      %v4247 = vunpack.c.h.b16 %v3395
      %v4248 = vunpack.c.l.b16 %v3396
      %v4249 = vunpack.c.h.b16 %v3396
      %v4250 = vunpack.c.l.b16 %v3397
      %v4251 = vunpack.c.h.b16 %v3397
      %v4252 = vunpack.c.l.b16 %v3398
      %v4253 = vunpack.c.h.b16 %v3398
      %v4254 = vunpack.c.l.b16 %v3399
      %v4255 = vunpack.c.h.b16 %v3399
      %v4256 = vunpack.c.l.b16 %v3400
      %v4257 = vunpack.c.h.b16 %v3400
      %v4258 = vunpack.c.l.b16 %v3401
      %v4259 = vunpack.c.h.b16 %v3401
      %v4260 = vunpack.c.l.b16 %v3402
      %v4261 = vunpack.c.h.b16 %v3402
      %v4262 = vunpack.c.l.b16 %v3403
      %v4263 = vunpack.c.h.b16 %v3403
      %v4264 = vunpack.c.l.b16 %v3404
      %v4265 = vunpack.c.h.b16 %v3404
      %v4266 = vunpack.c.l.b16 %v3405
      %v4267 = vunpack.c.h.b16 %v3405
      %v4268 = vunpack.c.l.b16 %v3406
      %v4269 = vunpack.c.h.b16 %v3406
      %v4270 = vunpack.c.l.b16 %v3407
      %v4271 = vunpack.c.h.b16 %v3407
      %v4272 = vpack.c.b16 %v3698, %v3696
      %v4273 = vpack.c.b16 %v3699, %v3697
      %v4274 = vpack.c.b16 %v3702, %v3700
      %v4275 = vpack.c.b16 %v3703, %v3701
      %v4276 = vpack.c.b16 %v3706, %v3704
      %v4277 = vpack.c.b16 %v3707, %v3705
      %v4278 = vpack.c.b16 %v3710, %v3708
      %v4279 = vpack.c.b16 %v3711, %v3709
      %v4280 = vpack.c.b16 %v3714, %v3712
      %v4281 = vpack.c.b16 %v3715, %v3713
      %v4282 = vpack.c.b16 %v3718, %v3716
      %v4283 = vpack.c.b16 %v3719, %v3717
      %v4284 = vpack.c.b16 %v3722, %v3720
      %v4285 = vpack.c.b16 %v3723, %v3721
      %v4286 = vpack.c.b16 %v3726, %v3724
      %v4287 = vpack.c.b16 %v3727, %v3725
      %v4288 = vpack.c.b16 %v3730, %v3728
      %v4289 = vpack.c.b16 %v3731, %v3729
      %v4290 = vpack.c.b16 %v3734, %v3732
      %v4291 = vpack.c.b16 %v3735, %v3733
      %v4292 = vpack.c.b16 %v3738, %v3736
      %v4293 = vpack.c.b16 %v3739, %v3737
      %v4294 = vpack.c.b16 %v3742, %v3740
      %v4295 = vpack.c.b16 %v3743, %v3741
      %v4296 = vpack.c.b16 %v3746, %v3744
      %v4297 = vpack.c.b16 %v3747, %v3745
      %v4298 = vpack.c.b16 %v3750, %v3748
      %v4299 = vpack.c.b16 %v3751, %v3749
      %v4300 = vpack.c.b16 %v3754, %v3752
      %v4301 = vpack.c.b16 %v3755, %v3753
      %v4302 = vpack.c.b16 %v3758, %v3756
      %v4303 = vpack.c.b16 %v3759, %v3757
      %v4304 = vpack.c.b16 %v3762, %v3760
      %v4305 = vpack.c.b16 %v3763, %v3761
      %v4306 = vpack.c.b16 %v3766, %v3764
      %v4307 = vpack.c.b16 %v3767, %v3765
      %v4308 = vpack.c.b16 %v3770, %v3768
      %v4309 = vpack.c.b16 %v3771, %v3769
      %v4310 = vpack.c.b16 %v3774, %v3772
      %v4311 = vpack.c.b16 %v3775, %v3773
      %v4312 = vpack.c.b16 %v3778, %v3776
      %v4313 = vpack.c.b16 %v3779, %v3777
      %v4314 = vpack.c.b16 %v3782, %v3780
      %v4315 = vpack.c.b16 %v3783, %v3781
      %v4316 = vpack.c.b16 %v3786, %v3784
      %v4317 = vpack.c.b16 %v3787, %v3785
      %v4318 = vpack.c.b16 %v3790, %v3788
      %v4319 = vpack.c.b16 %v3791, %v3789
      %v4320 = vpack.c.b16 %v3794, %v3792
      %v4321 = vpack.c.b16 %v3795, %v3793
      %v4322 = vpack.c.b16 %v3798, %v3796
      %v4323 = vpack.c.b16 %v3799, %v3797
      %v4324 = vpack.c.b16 %v3802, %v3800
      %v4325 = vpack.c.b16 %v3803, %v3801
      %v4326 = vpack.c.b16 %v3806, %v3804
      %v4327 = vpack.c.b16 %v3807, %v3805
      %v4328 = vpack.c.b16 %v3810, %v3808
      %v4329 = vpack.c.b16 %v3811, %v3809
      %v4330 = vpack.c.b16 %v3814, %v3812
      %v4331 = vpack.c.b16 %v3815, %v3813
      %v4332 = vpack.c.b16 %v3818, %v3816
      %v4333 = vpack.c.b16 %v3819, %v3817
      %v4334 = vpack.c.b16 %v3822, %v3820
      %v4335 = vpack.c.b16 %v3823, %v3821
      %v4336 = vpack.c.b16 %v3826, %v3824
      %v4337 = vpack.c.b16 %v3827, %v3825
      %v4338 = vpack.c.b16 %v3830, %v3828
      %v4339 = vpack.c.b16 %v3831, %v3829
      %v4340 = vpack.c.b16 %v3834, %v3832
      %v4341 = vpack.c.b16 %v3835, %v3833
      %v4342 = vpack.c.b16 %v3838, %v3836
      %v4343 = vpack.c.b16 %v3839, %v3837
      %v4344 = vpack.c.b16 %v3842, %v3840
      %v4345 = vpack.c.b16 %v3843, %v3841
      %v4346 = vpack.c.b16 %v3846, %v3844
      %v4347 = vpack.c.b16 %v3847, %v3845
      %v4348 = vpack.c.b16 %v3850, %v3848
      %v4349 = vpack.c.b16 %v3851, %v3849
      %v4350 = vpack.c.b16 %v3854, %v3852
      %v4351 = vpack.c.b16 %v3855, %v3853
      %v4352 = vpack.c.b16 %v3858, %v3856
      %v4353 = vpack.c.b16 %v3859, %v3857
      %v4354 = vpack.c.b16 %v3862, %v3860
      %v4355 = vpack.c.b16 %v3863, %v3861
      %v4356 = vpack.c.b16 %v3866, %v3864
      %v4357 = vpack.c.b16 %v3867, %v3865
      %v4358 = vpack.c.b16 %v3870, %v3868
      %v4359 = vpack.c.b16 %v3871, %v3869
      %v4360 = vpack.c.b16 %v3874, %v3872
      %v4361 = vpack.c.b16 %v3875, %v3873
      %v4362 = vpack.c.b16 %v3878, %v3876
      %v4363 = vpack.c.b16 %v3879, %v3877
      %v4364 = vpack.c.b16 %v3882, %v3880
      %v4365 = vpack.c.b16 %v3883, %v3881
      %v4366 = vpack.c.b16 %v3886, %v3884
      %v4367 = vpack.c.b16 %v3887, %v3885
      %v4368 = vpack.c.b16 %v3890, %v3888
      %v4369 = vpack.c.b16 %v3891, %v3889
      %v4370 = vpack.c.b16 %v3894, %v3892
      %v4371 = vpack.c.b16 %v3895, %v3893
      %v4372 = vpack.c.b16 %v3898, %v3896
      %v4373 = vpack.c.b16 %v3899, %v3897
      %v4374 = vpack.c.b16 %v3902, %v3900
      %v4375 = vpack.c.b16 %v3903, %v3901
      %v4376 = vpack.c.b16 %v3906, %v3904
      %v4377 = vpack.c.b16 %v3907, %v3905
      %v4378 = vpack.c.b16 %v3910, %v3908
      %v4379 = vpack.c.b16 %v3911, %v3909
      %v4380 = vpack.c.b16 %v3914, %v3912
      %v4381 = vpack.c.b16 %v3915, %v3913
      %v4382 = vpack.c.b16 %v3918, %v3916
      %v4383 = vpack.c.b16 %v3919, %v3917
      %v4384 = vpack.c.b16 %v3922, %v3920
      %v4385 = vpack.c.b16 %v3923, %v3921
      %v4386 = vpack.c.b16 %v3926, %v3924
      %v4387 = vpack.c.b16 %v3927, %v3925
      %v4388 = vpack.c.b16 %v3930, %v3928
      %v4389 = vpack.c.b16 %v3931, %v3929
      %v4390 = vpack.c.b16 %v3934, %v3932
      %v4391 = vpack.c.b16 %v3935, %v3933
      %v4392 = vpack.c.b16 %v3938, %v3936
      %v4393 = vpack.c.b16 %v3939, %v3937
      %v4394 = vpack.c.b16 %v3942, %v3940
      %v4395 = vpack.c.b16 %v3943, %v3941
      %v4396 = vpack.c.b16 %v3946, %v3944
      %v4397 = vpack.c.b16 %v3947, %v3945
      %v4398 = vpack.c.b16 %v3950, %v3948
      %v4399 = vpack.c.b16 %v3951, %v3949
      %v4400 = vpack.c.b16 %v3954, %v3952
      %v4401 = vpack.c.b16 %v3955, %v3953
      %v4402 = vpack.c.b16 %v3958, %v3956
      %v4403 = vpack.c.b16 %v3959, %v3957
      %v4404 = vpack.c.b16 %v3962, %v3960
      %v4405 = vpack.c.b16 %v3963, %v3961
      %v4406 = vpack.c.b16 %v3966, %v3964
      %v4407 = vpack.c.b16 %v3967, %v3965
      %v4408 = vpack.c.b16 %v3970, %v3968
      %v4409 = vpack.c.b16 %v3971, %v3969
      %v4410 = vpack.c.b16 %v3974, %v3972
      %v4411 = vpack.c.b16 %v3975, %v3973
      %v4412 = vpack.c.b16 %v3978, %v3976
      %v4413 = vpack.c.b16 %v3979, %v3977
      %v4414 = vpack.c.b16 %v3982, %v3980
      %v4415 = vpack.c.b16 %v3983, %v3981
      %v4416 = vpack.c.b16 %v3986, %v3984
      %v4417 = vpack.c.b16 %v3987, %v3985
      %v4418 = vpack.c.b16 %v3990, %v3988
      %v4419 = vpack.c.b16 %v3991, %v3989
      %v4420 = vpack.c.b16 %v3994, %v3992
      %v4421 = vpack.c.b16 %v3995, %v3993
      %v4422 = vpack.c.b16 %v3998, %v3996
      %v4423 = vpack.c.b16 %v3999, %v3997
      %v4424 = vpack.c.b16 %v4002, %v4000
      %v4425 = vpack.c.b16 %v4003, %v4001
      %v4426 = vpack.c.b16 %v4006, %v4004
      %v4427 = vpack.c.b16 %v4007, %v4005
      %v4428 = vpack.c.b16 %v4010, %v4008
      %v4429 = vpack.c.b16 %v4011, %v4009
      %v4430 = vpack.c.b16 %v4014, %v4012
      %v4431 = vpack.c.b16 %v4015, %v4013
      %v4432 = vpack.c.b16 %v4018, %v4016
      %v4433 = vpack.c.b16 %v4019, %v4017
      %v4434 = vpack.c.b16 %v4022, %v4020
      %v4435 = vpack.c.b16 %v4023, %v4021
      %v4436 = vpack.c.b16 %v4026, %v4024
      %v4437 = vpack.c.b16 %v4027, %v4025
      %v4438 = vpack.c.b16 %v4030, %v4028
      %v4439 = vpack.c.b16 %v4031, %v4029
      %v4440 = vpack.c.b16 %v4034, %v4032
      %v4441 = vpack.c.b16 %v4035, %v4033
      %v4442 = vpack.c.b16 %v4038, %v4036
      %v4443 = vpack.c.b16 %v4039, %v4037
      %v4444 = vpack.c.b16 %v4042, %v4040
      %v4445 = vpack.c.b16 %v4043, %v4041
      %v4446 = vpack.c.b16 %v4046, %v4044
      %v4447 = vpack.c.b16 %v4047, %v4045
      %v4448 = vpack.c.b16 %v4050, %v4048
      %v4449 = vpack.c.b16 %v4051, %v4049
      %v4450 = vpack.c.b16 %v4054, %v4052
      %v4451 = vpack.c.b16 %v4055, %v4053
      %v4452 = vpack.c.b16 %v4058, %v4056
      %v4453 = vpack.c.b16 %v4059, %v4057
      %v4454 = vpack.c.b16 %v4062, %v4060
      %v4455 = vpack.c.b16 %v4063, %v4061
      %v4456 = vpack.c.b16 %v4066, %v4064
      %v4457 = vpack.c.b16 %v4067, %v4065
      %v4458 = vpack.c.b16 %v4070, %v4068
      %v4459 = vpack.c.b16 %v4071, %v4069
      %v4460 = vpack.c.b16 %v4074, %v4072
      %v4461 = vpack.c.b16 %v4075, %v4073
      %v4462 = vpack.c.b16 %v4078, %v4076
      %v4463 = vpack.c.b16 %v4079, %v4077
      %v4464 = vpack.c.b16 %v4082, %v4080
      %v4465 = vpack.c.b16 %v4083, %v4081
      %v4466 = vpack.c.b16 %v4086, %v4084
      %v4467 = vpack.c.b16 %v4087, %v4085
      %v4468 = vpack.c.b16 %v4090, %v4088
      %v4469 = vpack.c.b16 %v4091, %v4089
      %v4470 = vpack.c.b16 %v4094, %v4092
      %v4471 = vpack.c.b16 %v4095, %v4093
      %v4472 = vpack.c.b16 %v4098, %v4096
      %v4473 = vpack.c.b16 %v4099, %v4097
      %v4474 = vpack.c.b16 %v4102, %v4100
      %v4475 = vpack.c.b16 %v4103, %v4101
      %v4476 = vpack.c.b16 %v4106, %v4104
      %v4477 = vpack.c.b16 %v4107, %v4105
      %v4478 = vpack.c.b16 %v4110, %v4108
      %v4479 = vpack.c.b16 %v4111, %v4109
      %v4480 = vpack.c.b16 %v4114, %v4112
      %v4481 = vpack.c.b16 %v4115, %v4113
      %v4482 = vpack.c.b16 %v4118, %v4116
      %v4483 = vpack.c.b16 %v4119, %v4117
      %v4484 = vpack.c.b16 %v4122, %v4120
      %v4485 = vpack.c.b16 %v4123, %v4121
      %v4486 = vpack.c.b16 %v4126, %v4124
      %v4487 = vpack.c.b16 %v4127, %v4125
      %v4488 = vpack.c.b16 %v4130, %v4128
      %v4489 = vpack.c.b16 %v4131, %v4129
      %v4490 = vpack.c.b16 %v4134, %v4132
      %v4491 = vpack.c.b16 %v4135, %v4133
      %v4492 = vpack.c.b16 %v4138, %v4136
      %v4493 = vpack.c.b16 %v4139, %v4137
      %v4494 = vpack.c.b16 %v4142, %v4140
      %v4495 = vpack.c.b16 %v4143, %v4141
      %v4496 = vpack.c.b16 %v4146, %v4144
      %v4497 = vpack.c.b16 %v4147, %v4145
      %v4498 = vpack.c.b16 %v4150, %v4148
      %v4499 = vpack.c.b16 %v4151, %v4149
      %v4500 = vpack.c.b16 %v4154, %v4152
      %v4501 = vpack.c.b16 %v4155, %v4153
      %v4502 = vpack.c.b16 %v4158, %v4156
      %v4503 = vpack.c.b16 %v4159, %v4157
      %v4504 = vpack.c.b16 %v4162, %v4160
      %v4505 = vpack.c.b16 %v4163, %v4161
      %v4506 = vpack.c.b16 %v4166, %v4164
      %v4507 = vpack.c.b16 %v4167, %v4165
      %v4508 = vpack.c.b16 %v4170, %v4168
      %v4509 = vpack.c.b16 %v4171, %v4169
      %v4510 = vpack.c.b16 %v4174, %v4172
      %v4511 = vpack.c.b16 %v4175, %v4173
      %v4512 = vpack.c.b16 %v4178, %v4176
      %v4513 = vpack.c.b16 %v4179, %v4177
      %v4514 = vpack.c.b16 %v4182, %v4180
      %v4515 = vpack.c.b16 %v4183, %v4181
      %v4516 = vpack.c.b16 %v4186, %v4184
      %v4517 = vpack.c.b16 %v4187, %v4185
      %v4518 = vpack.c.b16 %v4190, %v4188
      %v4519 = vpack.c.b16 %v4191, %v4189
      %v4520 = vpack.c.b16 %v4194, %v4192
      %v4521 = vpack.c.b16 %v4195, %v4193
      %v4522 = vpack.c.b16 %v4198, %v4196
      %v4523 = vpack.c.b16 %v4199, %v4197
      %v4524 = vpack.c.b16 %v4202, %v4200
      %v4525 = vpack.c.b16 %v4203, %v4201
      %v4526 = vpack.c.b16 %v4206, %v4204
      %v4527 = vpack.c.b16 %v4207, %v4205
      %v4528 = vpack.c.b16 %v4210, %v4208
      %v4529 = vpack.c.b16 %v4211, %v4209
      %v4530 = vpack.c.b16 %v4214, %v4212
      %v4531 = vpack.c.b16 %v4215, %v4213
      %v4532 = vpack.c.b16 %v4218, %v4216
      %v4533 = vpack.c.b16 %v4219, %v4217
      %v4534 = vpack.c.b16 %v4222, %v4220
      %v4535 = vpack.c.b16 %v4223, %v4221
      %v4536 = vpack.c.b16 %v4226, %v4224
      %v4537 = vpack.c.b16 %v4227, %v4225
      %v4538 = vpack.c.b16 %v4230, %v4228
      %v4539 = vpack.c.b16 %v4231, %v4229
      %v4540 = vpack.c.b16 %v4234, %v4232
      %v4541 = vpack.c.b16 %v4235, %v4233
      %v4542 = vpack.c.b16 %v4238, %v4236
      %v4543 = vpack.c.b16 %v4239, %v4237
      %v4544 = vpack.c.b16 %v4242, %v4240
      %v4545 = vpack.c.b16 %v4243, %v4241
      %v4546 = vpack.c.b16 %v4246, %v4244
      %v4547 = vpack.c.b16 %v4247, %v4245
      %v4548 = vpack.c.b16 %v4250, %v4248
      %v4549 = vpack.c.b16 %v4251, %v4249
      %v4550 = vpack.c.b16 %v4254, %v4252
      %v4551 = vpack.c.b16 %v4255, %v4253
      %v4552 = vpack.c.b16 %v4258, %v4256
      %v4553 = vpack.c.b16 %v4259, %v4257
      %v4554 = vpack.c.b16 %v4262, %v4260
      %v4555 = vpack.c.b16 %v4263, %v4261
      %v4556 = vpack.c.b16 %v4266, %v4264
      %v4557 = vpack.c.b16 %v4267, %v4265
      %v4558 = vpack.c.b16 %v4270, %v4268
      %v4559 = vpack.c.b16 %v4271, %v4269
      %4848 = vmatprep.subr.bf16.mxu0 %v4273
      %4849 = vmatpush1.bf16.msra.mxu0 %v4272
      %4850 = vmatprep.subr.bf16.mxu0 %v4275
      %4851 = vmatpush1.bf16.msra.mxu0 %v4274
      %4852 = vmatprep.subr.bf16.mxu0 %v4277
      %4853 = vmatpush1.bf16.msra.mxu0 %v4276
      %4854 = vmatprep.subr.bf16.mxu0 %v4279
      %4855 = vmatpush1.bf16.msra.mxu0 %v4278
      %4856 = vmatprep.subr.bf16.mxu0 %v4281
      %4857 = vmatpush1.bf16.msra.mxu0 %v4280
      %4858 = vmatprep.subr.bf16.mxu0 %v4283
      %4859 = vmatpush1.bf16.msra.mxu0 %v4282
      %4860 = vmatprep.subr.bf16.mxu0 %v4285
      %4861 = vmatpush1.bf16.msra.mxu0 %v4284
      %4862 = vmatprep.subr.bf16.mxu0 %v4287
      %4863 = vmatpush1.bf16.msra.mxu0 %v4286
      %4864 = vmatprep.subr.bf16.mxu0 %v4289
      %4865 = vmatpush1.bf16.msra.mxu0 %v4288
      %4866 = vmatprep.subr.bf16.mxu0 %v4291
      %4867 = vmatpush1.bf16.msra.mxu0 %v4290
      %4868 = vmatprep.subr.bf16.mxu0 %v4293
      %4869 = vmatpush1.bf16.msra.mxu0 %v4292
      %4870 = vmatprep.subr.bf16.mxu0 %v4295
      %4871 = vmatpush1.bf16.msra.mxu0 %v4294
      %4872 = vmatprep.subr.bf16.mxu0 %v4297
      %4873 = vmatpush1.bf16.msra.mxu0 %v4296
      %4874 = vmatprep.subr.bf16.mxu0 %v4299
      %4875 = vmatpush1.bf16.msra.mxu0 %v4298
      %4876 = vmatprep.subr.bf16.mxu0 %v4301
      %4877 = vmatpush1.bf16.msra.mxu0 %v4300
      %4878 = vmatprep.subr.bf16.mxu0 %v4303
      %4879 = vmatpush1.bf16.msra.mxu0 %v4302
      %4880 = vmatprep.mubr.bf16.mxu0 %v2869
      %4881 = vmatmul.mubr.bf16.gmra.mrb[0].mxu0 %v2868
      %v4882 = vpop.f32.mrb[0].mxu0
      %v4883 = vadd.f32 0.0, %v4882
      %v4884 = vpop.f32.mrb[0].mxu0
      %v4885 = vadd.f32 0.0, %v4884
      %v4886 = vpop.f32.mrb[0].mxu0
      %v4887 = vadd.f32 0.0, %v4886
      %v4888 = vpop.f32.mrb[0].mxu0
      %v4889 = vadd.f32 0.0, %v4888
      %4890 = vmatprep.mubr.bf16.mxu0 %v2887
      %4891 = vmatmul.mubr.bf16.gmra.mrb[0].mxu0 %v2886
      %v4892 = vpop.f32.mrb[0].mxu0
      %v4893 = vadd.f32 0.0, %v4892
      %v4894 = vpop.f32.mrb[0].mxu0
      %v4895 = vadd.f32 0.0, %v4894
      %v4896 = vpop.f32.mrb[0].mxu0
      %v4897 = vadd.f32 0.0, %v4896
      %v4898 = vpop.f32.mrb[0].mxu0
      %v4899 = vadd.f32 0.0, %v4898
      %4900 = vmatprep.mubr.bf16.mxu0 %v2905
      %4901 = vmatmul.mubr.bf16.gmra.mrb[0].mxu0 %v2904
      %v4902 = vpop.f32.mrb[0].mxu0
      %v4903 = vadd.f32 0.0, %v4902
      %v4904 = vpop.f32.mrb[0].mxu0
      %v4905 = vadd.f32 0.0, %v4904
      %v4906 = vpop.f32.mrb[0].mxu0
      %v4907 = vadd.f32 0.0, %v4906
      %v4908 = vpop.f32.mrb[0].mxu0
      %v4909 = vadd.f32 0.0, %v4908
      %4910 = vmatprep.mubr.bf16.mxu0 %v2923
      %4911 = vmatmul.mubr.bf16.gmra.mrb[0].mxu0 %v2922
      %v4912 = vpop.f32.mrb[0].mxu0
      %v4913 = vadd.f32 0.0, %v4912
      %v4914 = vpop.f32.mrb[0].mxu0
      %v4915 = vadd.f32 0.0, %v4914
      %v4916 = vpop.f32.mrb[0].mxu0
      %v4917 = vadd.f32 0.0, %v4916
      %v4918 = vpop.f32.mrb[0].mxu0
      %v4919 = vadd.f32 0.0, %v4918
      %4920 = vmatprep.mubr.bf16.mxu0 %v2941
      %4921 = vmatmul.mubr.bf16.gmra.mrb[0].mxu0 %v2940
      %v4922 = vpop.f32.mrb[0].mxu0
      %v4923 = vadd.f32 0.0, %v4922
      %v4924 = vpop.f32.mrb[0].mxu0
      %v4925 = vadd.f32 0.0, %v4924
      %v4926 = vpop.f32.mrb[0].mxu0
      %v4927 = vadd.f32 0.0, %v4926
      %v4928 = vpop.f32.mrb[0].mxu0
      %v4929 = vadd.f32 0.0, %v4928
      %4930 = vmatprep.mubr.bf16.mxu0 %v2959
      %4931 = vmatmul.mubr.bf16.gmra.mrb[0].mxu0 %v2958
      %v4932 = vpop.f32.mrb[0].mxu0
      %v4933 = vadd.f32 0.0, %v4932
      %v4934 = vpop.f32.mrb[0].mxu0
      %v4935 = vadd.f32 0.0, %v4934
      %v4936 = vpop.f32.mrb[0].mxu0
      %v4937 = vadd.f32 0.0, %v4936
      %v4938 = vpop.f32.mrb[0].mxu0
      %v4939 = vadd.f32 0.0, %v4938
      %4940 = vmatprep.mubr.bf16.mxu0 %v2977
      %4941 = vmatmul.mubr.bf16.gmra.mrb[0].mxu0 %v2976
      %v4942 = vpop.f32.mrb[0].mxu0
      %v4943 = vadd.f32 0.0, %v4942
      %v4944 = vpop.f32.mrb[0].mxu0
      %v4945 = vadd.f32 0.0, %v4944
      %v4946 = vpop.f32.mrb[0].mxu0
      %v4947 = vadd.f32 0.0, %v4946
      %v4948 = vpop.f32.mrb[0].mxu0
      %v4949 = vadd.f32 0.0, %v4948
      %4950 = vmatprep.mubr.bf16.mxu0 %v2995
      %4951 = vmatmul.mubr.bf16.gmra.mrb[0].mxu0 %v2994
      %v4952 = vpop.f32.mrb[0].mxu0
      %v4953 = vadd.f32 0.0, %v4952
      %v4954 = vpop.f32.mrb[0].mxu0
      %v4955 = vadd.f32 0.0, %v4954
      %v4956 = vpop.f32.mrb[0].mxu0
      %v4957 = vadd.f32 0.0, %v4956
      %v4958 = vpop.f32.mrb[0].mxu0
      %v4959 = vadd.f32 0.0, %v4958
      %4960 = vmatprep.mubr.bf16.mxu0 %v3013
      %4961 = vmatmul.mubr.bf16.gmra.mrb[0].mxu0 %v3012
      %v4962 = vpop.f32.mrb[0].mxu0
      %v4963 = vadd.f32 0.0, %v4962
      %v4964 = vpop.f32.mrb[0].mxu0
      %v4965 = vadd.f32 0.0, %v4964
      %v4966 = vpop.f32.mrb[0].mxu0
      %v4967 = vadd.f32 0.0, %v4966
      %v4968 = vpop.f32.mrb[0].mxu0
      %v4969 = vadd.f32 0.0, %v4968
      %4970 = vmatprep.mubr.bf16.mxu0 %v3031
      %4971 = vmatmul.mubr.bf16.gmra.mrb[0].mxu0 %v3030
      %v4972 = vpop.f32.mrb[0].mxu0
      %v4973 = vadd.f32 0.0, %v4972
      %v4974 = vpop.f32.mrb[0].mxu0
      %v4975 = vadd.f32 0.0, %v4974
      %v4976 = vpop.f32.mrb[0].mxu0
      %v4977 = vadd.f32 0.0, %v4976
      %v4978 = vpop.f32.mrb[0].mxu0
      %v4979 = vadd.f32 0.0, %v4978
      %4980 = vmatprep.mubr.bf16.mxu0 %v3049
      %4981 = vmatmul.mubr.bf16.gmra.mrb[0].mxu0 %v3048
      %v4982 = vpop.f32.mrb[0].mxu0
      %v4983 = vadd.f32 0.0, %v4982
      %v4984 = vpop.f32.mrb[0].mxu0
      %v4985 = vadd.f32 0.0, %v4984
      %v4986 = vpop.f32.mrb[0].mxu0
      %v4987 = vadd.f32 0.0, %v4986
      %v4988 = vpop.f32.mrb[0].mxu0
      %v4989 = vadd.f32 0.0, %v4988
      %4990 = vmatprep.mubr.bf16.mxu0 %v3067
      %4991 = vmatmul.mubr.bf16.gmra.mrb[0].mxu0 %v3066
      %v4992 = vpop.f32.mrb[0].mxu0
      %v4993 = vadd.f32 0.0, %v4992
      %v4994 = vpop.f32.mrb[0].mxu0
      %v4995 = vadd.f32 0.0, %v4994
      %v4996 = vpop.f32.mrb[0].mxu0
      %v4997 = vadd.f32 0.0, %v4996
      %v4998 = vpop.f32.mrb[0].mxu0
      %v4999 = vadd.f32 0.0, %v4998
      %5000 = vmatprep.mubr.bf16.mxu0 %v3085
      %5001 = vmatmul.mubr.bf16.gmra.mrb[0].mxu0 %v3084
      %v5002 = vpop.f32.mrb[0].mxu0
      %v5003 = vadd.f32 0.0, %v5002
      %v5004 = vpop.f32.mrb[0].mxu0
      %v5005 = vadd.f32 0.0, %v5004
      %v5006 = vpop.f32.mrb[0].mxu0
      %v5007 = vadd.f32 0.0, %v5006
      %v5008 = vpop.f32.mrb[0].mxu0
      %v5009 = vadd.f32 0.0, %v5008
      %5010 = vmatprep.mubr.bf16.mxu0 %v3103
      %5011 = vmatmul.mubr.bf16.gmra.mrb[0].mxu0 %v3102
      %v5012 = vpop.f32.mrb[0].mxu0
      %v5013 = vadd.f32 0.0, %v5012
      %v5014 = vpop.f32.mrb[0].mxu0
      %v5015 = vadd.f32 0.0, %v5014
      %v5016 = vpop.f32.mrb[0].mxu0
      %v5017 = vadd.f32 0.0, %v5016
      %v5018 = vpop.f32.mrb[0].mxu0
      %v5019 = vadd.f32 0.0, %v5018
      %5020 = vdwg.mxu0
      %5021 = vmatprep.subr.bf16.mxu0 %v4305
      %5022 = vmatpush1.bf16.msra.mxu0 %v4304
      %5023 = vmatprep.subr.bf16.mxu0 %v4307
      %5024 = vmatpush1.bf16.msra.mxu0 %v4306
      %5025 = vmatprep.subr.bf16.mxu0 %v4309
      %5026 = vmatpush1.bf16.msra.mxu0 %v4308
      %5027 = vmatprep.subr.bf16.mxu0 %v4311
      %5028 = vmatpush1.bf16.msra.mxu0 %v4310
      %5029 = vmatprep.subr.bf16.mxu0 %v4313
      %5030 = vmatpush1.bf16.msra.mxu0 %v4312
      %5031 = vmatprep.subr.bf16.mxu0 %v4315
      %5032 = vmatpush1.bf16.msra.mxu0 %v4314
      %5033 = vmatprep.subr.bf16.mxu0 %v4317
      %5034 = vmatpush1.bf16.msra.mxu0 %v4316
      %5035 = vmatprep.subr.bf16.mxu0 %v4319
      %5036 = vmatpush1.bf16.msra.mxu0 %v4318
      %5037 = vmatprep.subr.bf16.mxu0 %v4321
      %5038 = vmatpush1.bf16.msra.mxu0 %v4320
      %5039 = vmatprep.subr.bf16.mxu0 %v4323
      %5040 = vmatpush1.bf16.msra.mxu0 %v4322
      %5041 = vmatprep.subr.bf16.mxu0 %v4325
      %5042 = vmatpush1.bf16.msra.mxu0 %v4324
      %5043 = vmatprep.subr.bf16.mxu0 %v4327
      %5044 = vmatpush1.bf16.msra.mxu0 %v4326
      %5045 = vmatprep.subr.bf16.mxu0 %v4329
      %5046 = vmatpush1.bf16.msra.mxu0 %v4328
      %5047 = vmatprep.subr.bf16.mxu0 %v4331
      %5048 = vmatpush1.bf16.msra.mxu0 %v4330
      %5049 = vmatprep.subr.bf16.mxu0 %v4333
      %5050 = vmatpush1.bf16.msra.mxu0 %v4332
      %5051 = vmatprep.subr.bf16.mxu0 %v4335
      %5052 = vmatpush1.bf16.msra.mxu0 %v4334
      %5053 = vmatprep.mubr.bf16.mxu0 %v2871
      %5054 = vmatmul.mubr.bf16.gmra.mrb[0].mxu0 %v2870
      %v5055 = vpop.f32.mrb[0].mxu0
      %v5056 = vadd.f32 %v4883, %v5055
      %v5057 = vpop.f32.mrb[0].mxu0
      %v5058 = vadd.f32 %v4885, %v5057
      %v5059 = vpop.f32.mrb[0].mxu0
      %v5060 = vadd.f32 %v4887, %v5059
      %v5061 = vpop.f32.mrb[0].mxu0
      %v5062 = vadd.f32 %v4889, %v5061
      %5063 = vmatprep.mubr.bf16.mxu0 %v2889
      %5064 = vmatmul.mubr.bf16.gmra.mrb[0].mxu0 %v2888
      %v5065 = vpop.f32.mrb[0].mxu0
      %v5066 = vadd.f32 %v4893, %v5065
      %v5067 = vpop.f32.mrb[0].mxu0
      %v5068 = vadd.f32 %v4895, %v5067
      %v5069 = vpop.f32.mrb[0].mxu0
      %v5070 = vadd.f32 %v4897, %v5069
      %v5071 = vpop.f32.mrb[0].mxu0
      %v5072 = vadd.f32 %v4899, %v5071
      %5073 = vmatprep.mubr.bf16.mxu0 %v2907
      %5074 = vmatmul.mubr.bf16.gmra.mrb[0].mxu0 %v2906
      %v5075 = vpop.f32.mrb[0].mxu0
      %v5076 = vadd.f32 %v4903, %v5075
      %v5077 = vpop.f32.mrb[0].mxu0
      %v5078 = vadd.f32 %v4905, %v5077
      %v5079 = vpop.f32.mrb[0].mxu0
      %v5080 = vadd.f32 %v4907, %v5079
      %v5081 = vpop.f32.mrb[0].mxu0
      %v5082 = vadd.f32 %v4909, %v5081
      %5083 = vmatprep.mubr.bf16.mxu0 %v2925
      %5084 = vmatmul.mubr.bf16.gmra.mrb[0].mxu0 %v2924
      %v5085 = vpop.f32.mrb[0].mxu0
      %v5086 = vadd.f32 %v4913, %v5085
      %v5087 = vpop.f32.mrb[0].mxu0
      %v5088 = vadd.f32 %v4915, %v5087
      %v5089 = vpop.f32.mrb[0].mxu0
      %v5090 = vadd.f32 %v4917, %v5089
      %v5091 = vpop.f32.mrb[0].mxu0
      %v5092 = vadd.f32 %v4919, %v5091
      %5093 = vmatprep.mubr.bf16.mxu0 %v2943
      %5094 = vmatmul.mubr.bf16.gmra.mrb[0].mxu0 %v2942
      %v5095 = vpop.f32.mrb[0].mxu0
      %v5096 = vadd.f32 %v4923, %v5095
      %v5097 = vpop.f32.mrb[0].mxu0
      %v5098 = vadd.f32 %v4925, %v5097
      %v5099 = vpop.f32.mrb[0].mxu0
      %v5100 = vadd.f32 %v4927, %v5099
      %v5101 = vpop.f32.mrb[0].mxu0
      %v5102 = vadd.f32 %v4929, %v5101
      %5103 = vmatprep.mubr.bf16.mxu0 %v2961
      %5104 = vmatmul.mubr.bf16.gmra.mrb[0].mxu0 %v2960
      %v5105 = vpop.f32.mrb[0].mxu0
      %v5106 = vadd.f32 %v4933, %v5105
      %v5107 = vpop.f32.mrb[0].mxu0
      %v5108 = vadd.f32 %v4935, %v5107
      %v5109 = vpop.f32.mrb[0].mxu0
      %v5110 = vadd.f32 %v4937, %v5109
      %v5111 = vpop.f32.mrb[0].mxu0
      %v5112 = vadd.f32 %v4939, %v5111
      %5113 = vmatprep.mubr.bf16.mxu0 %v2979
      %5114 = vmatmul.mubr.bf16.gmra.mrb[0].mxu0 %v2978
      %v5115 = vpop.f32.mrb[0].mxu0
      %v5116 = vadd.f32 %v4943, %v5115
      %v5117 = vpop.f32.mrb[0].mxu0
      %v5118 = vadd.f32 %v4945, %v5117
      %v5119 = vpop.f32.mrb[0].mxu0
      %v5120 = vadd.f32 %v4947, %v5119
      %v5121 = vpop.f32.mrb[0].mxu0
      %v5122 = vadd.f32 %v4949, %v5121
      %5123 = vmatprep.mubr.bf16.mxu0 %v2997
      %5124 = vmatmul.mubr.bf16.gmra.mrb[0].mxu0 %v2996
      %v5125 = vpop.f32.mrb[0].mxu0
      %v5126 = vadd.f32 %v4953, %v5125
      %v5127 = vpop.f32.mrb[0].mxu0
      %v5128 = vadd.f32 %v4955, %v5127
      %v5129 = vpop.f32.mrb[0].mxu0
      %v5130 = vadd.f32 %v4957, %v5129
      %v5131 = vpop.f32.mrb[0].mxu0
      %v5132 = vadd.f32 %v4959, %v5131
      %5133 = vmatprep.mubr.bf16.mxu0 %v3015
      %5134 = vmatmul.mubr.bf16.gmra.mrb[0].mxu0 %v3014
      %v5135 = vpop.f32.mrb[0].mxu0
      %v5136 = vadd.f32 %v4963, %v5135
      %v5137 = vpop.f32.mrb[0].mxu0
      %v5138 = vadd.f32 %v4965, %v5137
      %v5139 = vpop.f32.mrb[0].mxu0
      %v5140 = vadd.f32 %v4967, %v5139
      %v5141 = vpop.f32.mrb[0].mxu0
      %v5142 = vadd.f32 %v4969, %v5141
      %5143 = vmatprep.mubr.bf16.mxu0 %v3033
      %5144 = vmatmul.mubr.bf16.gmra.mrb[0].mxu0 %v3032
      %v5145 = vpop.f32.mrb[0].mxu0
      %v5146 = vadd.f32 %v4973, %v5145
      %v5147 = vpop.f32.mrb[0].mxu0
      %v5148 = vadd.f32 %v4975, %v5147
      %v5149 = vpop.f32.mrb[0].mxu0
      %v5150 = vadd.f32 %v4977, %v5149
      %v5151 = vpop.f32.mrb[0].mxu0
      %v5152 = vadd.f32 %v4979, %v5151
      %5153 = vmatprep.mubr.bf16.mxu0 %v3051
      %5154 = vmatmul.mubr.bf16.gmra.mrb[0].mxu0 %v3050
      %v5155 = vpop.f32.mrb[0].mxu0
      %v5156 = vadd.f32 %v4983, %v5155
      %v5157 = vpop.f32.mrb[0].mxu0
      %v5158 = vadd.f32 %v4985, %v5157
      %v5159 = vpop.f32.mrb[0].mxu0
      %v5160 = vadd.f32 %v4987, %v5159
      %v5161 = vpop.f32.mrb[0].mxu0
      %v5162 = vadd.f32 %v4989, %v5161
      %5163 = vmatprep.mubr.bf16.mxu0 %v3069
      %5164 = vmatmul.mubr.bf16.gmra.mrb[0].mxu0 %v3068
      %v5165 = vpop.f32.mrb[0].mxu0
      %v5166 = vadd.f32 %v4993, %v5165
      %v5167 = vpop.f32.mrb[0].mxu0
      %v5168 = vadd.f32 %v4995, %v5167
      %v5169 = vpop.f32.mrb[0].mxu0
      %v5170 = vadd.f32 %v4997, %v5169
      %v5171 = vpop.f32.mrb[0].mxu0
      %v5172 = vadd.f32 %v4999, %v5171
      %5173 = vmatprep.mubr.bf16.mxu0 %v3087
      %5174 = vmatmul.mubr.bf16.gmra.mrb[0].mxu0 %v3086
      %v5175 = vpop.f32.mrb[0].mxu0
      %v5176 = vadd.f32 %v5003, %v5175
      %v5177 = vpop.f32.mrb[0].mxu0
      %v5178 = vadd.f32 %v5005, %v5177
      %v5179 = vpop.f32.mrb[0].mxu0
      %v5180 = vadd.f32 %v5007, %v5179
      %v5181 = vpop.f32.mrb[0].mxu0
      %v5182 = vadd.f32 %v5009, %v5181
      %5183 = vmatprep.mubr.bf16.mxu0 %v3105
      %5184 = vmatmul.mubr.bf16.gmra.mrb[0].mxu0 %v3104
      %v5185 = vpop.f32.mrb[0].mxu0
      %v5186 = vadd.f32 %v5013, %v5185
      %v5187 = vpop.f32.mrb[0].mxu0
      %v5188 = vadd.f32 %v5015, %v5187
      %v5189 = vpop.f32.mrb[0].mxu0
      %v5190 = vadd.f32 %v5017, %v5189
      %v5191 = vpop.f32.mrb[0].mxu0
      %v5192 = vadd.f32 %v5019, %v5191
      %5193 = vdwg.mxu0
      %5194 = vmatprep.subr.bf16.mxu0 %v4337
      %5195 = vmatpush1.bf16.msra.mxu0 %v4336
      %5196 = vmatprep.subr.bf16.mxu0 %v4339
      %5197 = vmatpush1.bf16.msra.mxu0 %v4338
      %5198 = vmatprep.subr.bf16.mxu0 %v4341
      %5199 = vmatpush1.bf16.msra.mxu0 %v4340
      %5200 = vmatprep.subr.bf16.mxu0 %v4343
      %5201 = vmatpush1.bf16.msra.mxu0 %v4342
      %5202 = vmatprep.subr.bf16.mxu0 %v4345
      %5203 = vmatpush1.bf16.msra.mxu0 %v4344
      %5204 = vmatprep.subr.bf16.mxu0 %v4347
      %5205 = vmatpush1.bf16.msra.mxu0 %v4346
      %5206 = vmatprep.subr.bf16.mxu0 %v4349
      %5207 = vmatpush1.bf16.msra.mxu0 %v4348
      %5208 = vmatprep.subr.bf16.mxu0 %v4351
      %5209 = vmatpush1.bf16.msra.mxu0 %v4350
      %5210 = vmatprep.subr.bf16.mxu0 %v4353
      %5211 = vmatpush1.bf16.msra.mxu0 %v4352
      %5212 = vmatprep.subr.bf16.mxu0 %v4355
      %5213 = vmatpush1.bf16.msra.mxu0 %v4354
      %5214 = vmatprep.subr.bf16.mxu0 %v4357
      %5215 = vmatpush1.bf16.msra.mxu0 %v4356
      %5216 = vmatprep.subr.bf16.mxu0 %v4359
      %5217 = vmatpush1.bf16.msra.mxu0 %v4358
      %5218 = vmatprep.subr.bf16.mxu0 %v4361
      %5219 = vmatpush1.bf16.msra.mxu0 %v4360
      %5220 = vmatprep.subr.bf16.mxu0 %v4363
      %5221 = vmatpush1.bf16.msra.mxu0 %v4362
      %5222 = vmatprep.subr.bf16.mxu0 %v4365
      %5223 = vmatpush1.bf16.msra.mxu0 %v4364
      %5224 = vmatprep.subr.bf16.mxu0 %v4367
      %5225 = vmatpush1.bf16.msra.mxu0 %v4366
      %5226 = vmatprep.mubr.bf16.mxu0 %v2873
      %5227 = vmatmul.mubr.bf16.gmra.mrb[0].mxu0 %v2872
      %v5228 = vpop.f32.mrb[0].mxu0
      %v5229 = vadd.f32 %v5056, %v5228
      %v5230 = vpop.f32.mrb[0].mxu0
      %v5231 = vadd.f32 %v5058, %v5230
      %v5232 = vpop.f32.mrb[0].mxu0
      %v5233 = vadd.f32 %v5060, %v5232
      %v5234 = vpop.f32.mrb[0].mxu0
      %v5235 = vadd.f32 %v5062, %v5234
      %5236 = vmatprep.mubr.bf16.mxu0 %v2891
      %5237 = vmatmul.mubr.bf16.gmra.mrb[0].mxu0 %v2890
      %v5238 = vpop.f32.mrb[0].mxu0
      %v5239 = vadd.f32 %v5066, %v5238
      %v5240 = vpop.f32.mrb[0].mxu0
      %v5241 = vadd.f32 %v5068, %v5240
      %v5242 = vpop.f32.mrb[0].mxu0
      %v5243 = vadd.f32 %v5070, %v5242
      %v5244 = vpop.f32.mrb[0].mxu0
      %v5245 = vadd.f32 %v5072, %v5244
      %5246 = vmatprep.mubr.bf16.mxu0 %v2909
      %5247 = vmatmul.mubr.bf16.gmra.mrb[0].mxu0 %v2908
      %v5248 = vpop.f32.mrb[0].mxu0
      %v5249 = vadd.f32 %v5076, %v5248
      %v5250 = vpop.f32.mrb[0].mxu0
      %v5251 = vadd.f32 %v5078, %v5250
      %v5252 = vpop.f32.mrb[0].mxu0
      %v5253 = vadd.f32 %v5080, %v5252
      %v5254 = vpop.f32.mrb[0].mxu0
      %v5255 = vadd.f32 %v5082, %v5254
      %5256 = vmatprep.mubr.bf16.mxu0 %v2927
      %5257 = vmatmul.mubr.bf16.gmra.mrb[0].mxu0 %v2926
      %v5258 = vpop.f32.mrb[0].mxu0
      %v5259 = vadd.f32 %v5086, %v5258
      %v5260 = vpop.f32.mrb[0].mxu0
      %v5261 = vadd.f32 %v5088, %v5260
      %v5262 = vpop.f32.mrb[0].mxu0
      %v5263 = vadd.f32 %v5090, %v5262
      %v5264 = vpop.f32.mrb[0].mxu0
      %v5265 = vadd.f32 %v5092, %v5264
      %5266 = vmatprep.mubr.bf16.mxu0 %v2945
      %5267 = vmatmul.mubr.bf16.gmra.mrb[0].mxu0 %v2944
      %v5268 = vpop.f32.mrb[0].mxu0
      %v5269 = vadd.f32 %v5096, %v5268
      %v5270 = vpop.f32.mrb[0].mxu0
      %v5271 = vadd.f32 %v5098, %v5270
      %v5272 = vpop.f32.mrb[0].mxu0
      %v5273 = vadd.f32 %v5100, %v5272
      %v5274 = vpop.f32.mrb[0].mxu0
      %v5275 = vadd.f32 %v5102, %v5274
      %5276 = vmatprep.mubr.bf16.mxu0 %v2963
      %5277 = vmatmul.mubr.bf16.gmra.mrb[0].mxu0 %v2962
      %v5278 = vpop.f32.mrb[0].mxu0
      %v5279 = vadd.f32 %v5106, %v5278
      %v5280 = vpop.f32.mrb[0].mxu0
      %v5281 = vadd.f32 %v5108, %v5280
      %v5282 = vpop.f32.mrb[0].mxu0
      %v5283 = vadd.f32 %v5110, %v5282
      %v5284 = vpop.f32.mrb[0].mxu0
      %v5285 = vadd.f32 %v5112, %v5284
      %5286 = vmatprep.mubr.bf16.mxu0 %v2981
      %5287 = vmatmul.mubr.bf16.gmra.mrb[0].mxu0 %v2980
      %v5288 = vpop.f32.mrb[0].mxu0
      %v5289 = vadd.f32 %v5116, %v5288
      %v5290 = vpop.f32.mrb[0].mxu0
      %v5291 = vadd.f32 %v5118, %v5290
      %v5292 = vpop.f32.mrb[0].mxu0
      %v5293 = vadd.f32 %v5120, %v5292
      %v5294 = vpop.f32.mrb[0].mxu0
      %v5295 = vadd.f32 %v5122, %v5294
      %5296 = vmatprep.mubr.bf16.mxu0 %v2999
      %5297 = vmatmul.mubr.bf16.gmra.mrb[0].mxu0 %v2998
      %v5298 = vpop.f32.mrb[0].mxu0
      %v5299 = vadd.f32 %v5126, %v5298
      %v5300 = vpop.f32.mrb[0].mxu0
      %v5301 = vadd.f32 %v5128, %v5300
      %v5302 = vpop.f32.mrb[0].mxu0
      %v5303 = vadd.f32 %v5130, %v5302
      %v5304 = vpop.f32.mrb[0].mxu0
      %v5305 = vadd.f32 %v5132, %v5304
      %5306 = vmatprep.mubr.bf16.mxu0 %v3017
      %5307 = vmatmul.mubr.bf16.gmra.mrb[0].mxu0 %v3016
      %v5308 = vpop.f32.mrb[0].mxu0
      %v5309 = vadd.f32 %v5136, %v5308
      %v5310 = vpop.f32.mrb[0].mxu0
      %v5311 = vadd.f32 %v5138, %v5310
      %v5312 = vpop.f32.mrb[0].mxu0
      %v5313 = vadd.f32 %v5140, %v5312
      %v5314 = vpop.f32.mrb[0].mxu0
      %v5315 = vadd.f32 %v5142, %v5314
      %5316 = vmatprep.mubr.bf16.mxu0 %v3035
      %5317 = vmatmul.mubr.bf16.gmra.mrb[0].mxu0 %v3034
      %v5318 = vpop.f32.mrb[0].mxu0
      %v5319 = vadd.f32 %v5146, %v5318
      %v5320 = vpop.f32.mrb[0].mxu0
      %v5321 = vadd.f32 %v5148, %v5320
      %v5322 = vpop.f32.mrb[0].mxu0
      %v5323 = vadd.f32 %v5150, %v5322
      %v5324 = vpop.f32.mrb[0].mxu0
      %v5325 = vadd.f32 %v5152, %v5324
      %5326 = vmatprep.mubr.bf16.mxu0 %v3053
      %5327 = vmatmul.mubr.bf16.gmra.mrb[0].mxu0 %v3052
      %v5328 = vpop.f32.mrb[0].mxu0
      %v5329 = vadd.f32 %v5156, %v5328
      %v5330 = vpop.f32.mrb[0].mxu0
      %v5331 = vadd.f32 %v5158, %v5330
      %v5332 = vpop.f32.mrb[0].mxu0
      %v5333 = vadd.f32 %v5160, %v5332
      %v5334 = vpop.f32.mrb[0].mxu0
      %v5335 = vadd.f32 %v5162, %v5334
      %5336 = vmatprep.mubr.bf16.mxu0 %v3071
      %5337 = vmatmul.mubr.bf16.gmra.mrb[0].mxu0 %v3070
      %v5338 = vpop.f32.mrb[0].mxu0
      %v5339 = vadd.f32 %v5166, %v5338
      %v5340 = vpop.f32.mrb[0].mxu0
      %v5341 = vadd.f32 %v5168, %v5340
      %v5342 = vpop.f32.mrb[0].mxu0
      %v5343 = vadd.f32 %v5170, %v5342
      %v5344 = vpop.f32.mrb[0].mxu0
      %v5345 = vadd.f32 %v5172, %v5344
      %5346 = vmatprep.mubr.bf16.mxu0 %v3089
      %5347 = vmatmul.mubr.bf16.gmra.mrb[0].mxu0 %v3088
      %v5348 = vpop.f32.mrb[0].mxu0
      %v5349 = vadd.f32 %v5176, %v5348
      %v5350 = vpop.f32.mrb[0].mxu0
      %v5351 = vadd.f32 %v5178, %v5350
      %v5352 = vpop.f32.mrb[0].mxu0
      %v5353 = vadd.f32 %v5180, %v5352
      %v5354 = vpop.f32.mrb[0].mxu0
      %v5355 = vadd.f32 %v5182, %v5354
      %5356 = vmatprep.mubr.bf16.mxu0 %v3107
      %5357 = vmatmul.mubr.bf16.gmra.mrb[0].mxu0 %v3106
      %v5358 = vpop.f32.mrb[0].mxu0
      %v5359 = vadd.f32 %v5186, %v5358
      %v5360 = vpop.f32.mrb[0].mxu0
      %v5361 = vadd.f32 %v5188, %v5360
      %v5362 = vpop.f32.mrb[0].mxu0
      %v5363 = vadd.f32 %v5190, %v5362
      %v5364 = vpop.f32.mrb[0].mxu0
      %v5365 = vadd.f32 %v5192, %v5364
      %5366 = vdwg.mxu0
      %5367 = vmatprep.subr.bf16.mxu0 %v4369
      %5368 = vmatpush1.bf16.msra.mxu0 %v4368
      %5369 = vmatprep.subr.bf16.mxu0 %v4371
      %5370 = vmatpush1.bf16.msra.mxu0 %v4370
      %5371 = vmatprep.subr.bf16.mxu0 %v4373
      %5372 = vmatpush1.bf16.msra.mxu0 %v4372
      %5373 = vmatprep.subr.bf16.mxu0 %v4375
      %5374 = vmatpush1.bf16.msra.mxu0 %v4374
      %5375 = vmatprep.subr.bf16.mxu0 %v4377
      %5376 = vmatpush1.bf16.msra.mxu0 %v4376
      %5377 = vmatprep.subr.bf16.mxu0 %v4379
      %5378 = vmatpush1.bf16.msra.mxu0 %v4378
      %5379 = vmatprep.subr.bf16.mxu0 %v4381
      %5380 = vmatpush1.bf16.msra.mxu0 %v4380
      %5381 = vmatprep.subr.bf16.mxu0 %v4383
      %5382 = vmatpush1.bf16.msra.mxu0 %v4382
      %5383 = vmatprep.subr.bf16.mxu0 %v4385
      %5384 = vmatpush1.bf16.msra.mxu0 %v4384
      %5385 = vmatprep.subr.bf16.mxu0 %v4387
      %5386 = vmatpush1.bf16.msra.mxu0 %v4386
      %5387 = vmatprep.subr.bf16.mxu0 %v4389
      %5388 = vmatpush1.bf16.msra.mxu0 %v4388
      %5389 = vmatprep.subr.bf16.mxu0 %v4391
      %5390 = vmatpush1.bf16.msra.mxu0 %v4390
      %5391 = vmatprep.subr.bf16.mxu0 %v4393
      %5392 = vmatpush1.bf16.msra.mxu0 %v4392
      %5393 = vmatprep.subr.bf16.mxu0 %v4395
      %5394 = vmatpush1.bf16.msra.mxu0 %v4394
      %5395 = vmatprep.subr.bf16.mxu0 %v4397
      %5396 = vmatpush1.bf16.msra.mxu0 %v4396
      %5397 = vmatprep.subr.bf16.mxu0 %v4399
      %5398 = vmatpush1.bf16.msra.mxu0 %v4398
      %5399 = vmatprep.mubr.bf16.mxu0 %v2875
      %5400 = vmatmul.mubr.bf16.gmra.mrb[0].mxu0 %v2874
      %v5401 = vpop.f32.mrb[0].mxu0
      %v5402 = vadd.f32 %v5229, %v5401
      %v5403 = vpop.f32.mrb[0].mxu0
      %v5404 = vadd.f32 %v5231, %v5403
      %v5405 = vpop.f32.mrb[0].mxu0
      %v5406 = vadd.f32 %v5233, %v5405
      %v5407 = vpop.f32.mrb[0].mxu0
      %v5408 = vadd.f32 %v5235, %v5407
      %5409 = vmatprep.mubr.bf16.mxu0 %v2893
      %5410 = vmatmul.mubr.bf16.gmra.mrb[0].mxu0 %v2892
      %v5411 = vpop.f32.mrb[0].mxu0
      %v5412 = vadd.f32 %v5239, %v5411
      %v5413 = vpop.f32.mrb[0].mxu0
      %v5414 = vadd.f32 %v5241, %v5413
      %v5415 = vpop.f32.mrb[0].mxu0
      %v5416 = vadd.f32 %v5243, %v5415
      %v5417 = vpop.f32.mrb[0].mxu0
      %v5418 = vadd.f32 %v5245, %v5417
      %5419 = vmatprep.mubr.bf16.mxu0 %v2911
      %5420 = vmatmul.mubr.bf16.gmra.mrb[0].mxu0 %v2910
      %v5421 = vpop.f32.mrb[0].mxu0
      %v5422 = vadd.f32 %v5249, %v5421
      %v5423 = vpop.f32.mrb[0].mxu0
      %v5424 = vadd.f32 %v5251, %v5423
      %v5425 = vpop.f32.mrb[0].mxu0
      %v5426 = vadd.f32 %v5253, %v5425
      %v5427 = vpop.f32.mrb[0].mxu0
      %v5428 = vadd.f32 %v5255, %v5427
      %5429 = vmatprep.mubr.bf16.mxu0 %v2929
      %5430 = vmatmul.mubr.bf16.gmra.mrb[0].mxu0 %v2928
      %v5431 = vpop.f32.mrb[0].mxu0
      %v5432 = vadd.f32 %v5259, %v5431
      %v5433 = vpop.f32.mrb[0].mxu0
      %v5434 = vadd.f32 %v5261, %v5433
      %v5435 = vpop.f32.mrb[0].mxu0
      %v5436 = vadd.f32 %v5263, %v5435
      %v5437 = vpop.f32.mrb[0].mxu0
      %v5438 = vadd.f32 %v5265, %v5437
      %5439 = vmatprep.mubr.bf16.mxu0 %v2947
      %5440 = vmatmul.mubr.bf16.gmra.mrb[0].mxu0 %v2946
      %v5441 = vpop.f32.mrb[0].mxu0
      %v5442 = vadd.f32 %v5269, %v5441
      %v5443 = vpop.f32.mrb[0].mxu0
      %v5444 = vadd.f32 %v5271, %v5443
      %v5445 = vpop.f32.mrb[0].mxu0
      %v5446 = vadd.f32 %v5273, %v5445
      %v5447 = vpop.f32.mrb[0].mxu0
      %v5448 = vadd.f32 %v5275, %v5447
      %5449 = vmatprep.mubr.bf16.mxu0 %v2965
      %5450 = vmatmul.mubr.bf16.gmra.mrb[0].mxu0 %v2964
      %v5451 = vpop.f32.mrb[0].mxu0
      %v5452 = vadd.f32 %v5279, %v5451
      %v5453 = vpop.f32.mrb[0].mxu0
      %v5454 = vadd.f32 %v5281, %v5453
      %v5455 = vpop.f32.mrb[0].mxu0
      %v5456 = vadd.f32 %v5283, %v5455
      %v5457 = vpop.f32.mrb[0].mxu0
      %v5458 = vadd.f32 %v5285, %v5457
      %5459 = vmatprep.mubr.bf16.mxu0 %v2983
      %5460 = vmatmul.mubr.bf16.gmra.mrb[0].mxu0 %v2982
      %v5461 = vpop.f32.mrb[0].mxu0
      %v5462 = vadd.f32 %v5289, %v5461
      %v5463 = vpop.f32.mrb[0].mxu0
      %v5464 = vadd.f32 %v5291, %v5463
      %v5465 = vpop.f32.mrb[0].mxu0
      %v5466 = vadd.f32 %v5293, %v5465
      %v5467 = vpop.f32.mrb[0].mxu0
      %v5468 = vadd.f32 %v5295, %v5467
      %5469 = vmatprep.mubr.bf16.mxu0 %v3001
      %5470 = vmatmul.mubr.bf16.gmra.mrb[0].mxu0 %v3000
      %v5471 = vpop.f32.mrb[0].mxu0
      %v5472 = vadd.f32 %v5299, %v5471
      %v5473 = vpop.f32.mrb[0].mxu0
      %v5474 = vadd.f32 %v5301, %v5473
      %v5475 = vpop.f32.mrb[0].mxu0
      %v5476 = vadd.f32 %v5303, %v5475
      %v5477 = vpop.f32.mrb[0].mxu0
      %v5478 = vadd.f32 %v5305, %v5477
      %5479 = vmatprep.mubr.bf16.mxu0 %v3019
      %5480 = vmatmul.mubr.bf16.gmra.mrb[0].mxu0 %v3018
      %v5481 = vpop.f32.mrb[0].mxu0
      %v5482 = vadd.f32 %v5309, %v5481
      %v5483 = vpop.f32.mrb[0].mxu0
      %v5484 = vadd.f32 %v5311, %v5483
      %v5485 = vpop.f32.mrb[0].mxu0
      %v5486 = vadd.f32 %v5313, %v5485
      %v5487 = vpop.f32.mrb[0].mxu0
      %v5488 = vadd.f32 %v5315, %v5487
      %5489 = vmatprep.mubr.bf16.mxu0 %v3037
      %5490 = vmatmul.mubr.bf16.gmra.mrb[0].mxu0 %v3036
      %v5491 = vpop.f32.mrb[0].mxu0
      %v5492 = vadd.f32 %v5319, %v5491
      %v5493 = vpop.f32.mrb[0].mxu0
      %v5494 = vadd.f32 %v5321, %v5493
      %v5495 = vpop.f32.mrb[0].mxu0
      %v5496 = vadd.f32 %v5323, %v5495
      %v5497 = vpop.f32.mrb[0].mxu0
      %v5498 = vadd.f32 %v5325, %v5497
      %5499 = vmatprep.mubr.bf16.mxu0 %v3055
      %5500 = vmatmul.mubr.bf16.gmra.mrb[0].mxu0 %v3054
      %v5501 = vpop.f32.mrb[0].mxu0
      %v5502 = vadd.f32 %v5329, %v5501
      %v5503 = vpop.f32.mrb[0].mxu0
      %v5504 = vadd.f32 %v5331, %v5503
      %v5505 = vpop.f32.mrb[0].mxu0
      %v5506 = vadd.f32 %v5333, %v5505
      %v5507 = vpop.f32.mrb[0].mxu0
      %v5508 = vadd.f32 %v5335, %v5507
      %5509 = vmatprep.mubr.bf16.mxu0 %v3073
      %5510 = vmatmul.mubr.bf16.gmra.mrb[0].mxu0 %v3072
      %v5511 = vpop.f32.mrb[0].mxu0
      %v5512 = vadd.f32 %v5339, %v5511
      %v5513 = vpop.f32.mrb[0].mxu0
      %v5514 = vadd.f32 %v5341, %v5513
      %v5515 = vpop.f32.mrb[0].mxu0
      %v5516 = vadd.f32 %v5343, %v5515
      %v5517 = vpop.f32.mrb[0].mxu0
      %v5518 = vadd.f32 %v5345, %v5517
      %5519 = vmatprep.mubr.bf16.mxu0 %v3091
      %5520 = vmatmul.mubr.bf16.gmra.mrb[0].mxu0 %v3090
      %v5521 = vpop.f32.mrb[0].mxu0
      %v5522 = vadd.f32 %v5349, %v5521
      %v5523 = vpop.f32.mrb[0].mxu0
      %v5524 = vadd.f32 %v5351, %v5523
      %v5525 = vpop.f32.mrb[0].mxu0
      %v5526 = vadd.f32 %v5353, %v5525
      %v5527 = vpop.f32.mrb[0].mxu0
      %v5528 = vadd.f32 %v5355, %v5527
      %5529 = vmatprep.mubr.bf16.mxu0 %v3109
      %5530 = vmatmul.mubr.bf16.gmra.mrb[0].mxu0 %v3108
      %v5531 = vpop.f32.mrb[0].mxu0
      %v5532 = vadd.f32 %v5359, %v5531
      %v5533 = vpop.f32.mrb[0].mxu0
      %v5534 = vadd.f32 %v5361, %v5533
      %v5535 = vpop.f32.mrb[0].mxu0
      %v5536 = vadd.f32 %v5363, %v5535
      %v5537 = vpop.f32.mrb[0].mxu0
      %v5538 = vadd.f32 %v5365, %v5537
      %5539 = vdwg.mxu0
      %5540 = vmatprep.subr.bf16.mxu0 %v4401
      %5541 = vmatpush1.bf16.msra.mxu0 %v4400
      %5542 = vmatprep.subr.bf16.mxu0 %v4403
      %5543 = vmatpush1.bf16.msra.mxu0 %v4402
      %5544 = vmatprep.subr.bf16.mxu0 %v4405
      %5545 = vmatpush1.bf16.msra.mxu0 %v4404
      %5546 = vmatprep.subr.bf16.mxu0 %v4407
      %5547 = vmatpush1.bf16.msra.mxu0 %v4406
      %5548 = vmatprep.subr.bf16.mxu0 %v4409
      %5549 = vmatpush1.bf16.msra.mxu0 %v4408
      %5550 = vmatprep.subr.bf16.mxu0 %v4411
      %5551 = vmatpush1.bf16.msra.mxu0 %v4410
      %5552 = vmatprep.subr.bf16.mxu0 %v4413
      %5553 = vmatpush1.bf16.msra.mxu0 %v4412
      %5554 = vmatprep.subr.bf16.mxu0 %v4415
      %5555 = vmatpush1.bf16.msra.mxu0 %v4414
      %5556 = vmatprep.subr.bf16.mxu0 %v4417
      %5557 = vmatpush1.bf16.msra.mxu0 %v4416
      %5558 = vmatprep.subr.bf16.mxu0 %v4419
      %5559 = vmatpush1.bf16.msra.mxu0 %v4418
      %5560 = vmatprep.subr.bf16.mxu0 %v4421
      %5561 = vmatpush1.bf16.msra.mxu0 %v4420
      %5562 = vmatprep.subr.bf16.mxu0 %v4423
      %5563 = vmatpush1.bf16.msra.mxu0 %v4422
      %5564 = vmatprep.subr.bf16.mxu0 %v4425
      %5565 = vmatpush1.bf16.msra.mxu0 %v4424
      %5566 = vmatprep.subr.bf16.mxu0 %v4427
      %5567 = vmatpush1.bf16.msra.mxu0 %v4426
      %5568 = vmatprep.subr.bf16.mxu0 %v4429
      %5569 = vmatpush1.bf16.msra.mxu0 %v4428
      %5570 = vmatprep.subr.bf16.mxu0 %v4431
      %5571 = vmatpush1.bf16.msra.mxu0 %v4430
      %5572 = vmatprep.mubr.bf16.mxu0 %v2877
      %5573 = vmatmul.mubr.bf16.gmra.mrb[0].mxu0 %v2876
      %v5574 = vpop.f32.mrb[0].mxu0
      %v5575 = vadd.f32 %v5402, %v5574
      %v5576 = vpop.f32.mrb[0].mxu0
      %v5577 = vadd.f32 %v5404, %v5576
      %v5578 = vpop.f32.mrb[0].mxu0
      %v5579 = vadd.f32 %v5406, %v5578
      %v5580 = vpop.f32.mrb[0].mxu0
      %v5581 = vadd.f32 %v5408, %v5580
      %5582 = vmatprep.mubr.bf16.mxu0 %v2895
      %5583 = vmatmul.mubr.bf16.gmra.mrb[0].mxu0 %v2894
      %v5584 = vpop.f32.mrb[0].mxu0
      %v5585 = vadd.f32 %v5412, %v5584
      %v5586 = vpop.f32.mrb[0].mxu0
      %v5587 = vadd.f32 %v5414, %v5586
      %v5588 = vpop.f32.mrb[0].mxu0
      %v5589 = vadd.f32 %v5416, %v5588
      %v5590 = vpop.f32.mrb[0].mxu0
      %v5591 = vadd.f32 %v5418, %v5590
      %5592 = vmatprep.mubr.bf16.mxu0 %v2913
      %5593 = vmatmul.mubr.bf16.gmra.mrb[0].mxu0 %v2912
      %v5594 = vpop.f32.mrb[0].mxu0
      %v5595 = vadd.f32 %v5422, %v5594
      %v5596 = vpop.f32.mrb[0].mxu0
      %v5597 = vadd.f32 %v5424, %v5596
      %v5598 = vpop.f32.mrb[0].mxu0
      %v5599 = vadd.f32 %v5426, %v5598
      %v5600 = vpop.f32.mrb[0].mxu0
      %v5601 = vadd.f32 %v5428, %v5600
      %5602 = vmatprep.mubr.bf16.mxu0 %v2931
      %5603 = vmatmul.mubr.bf16.gmra.mrb[0].mxu0 %v2930
      %v5604 = vpop.f32.mrb[0].mxu0
      %v5605 = vadd.f32 %v5432, %v5604
      %v5606 = vpop.f32.mrb[0].mxu0
      %v5607 = vadd.f32 %v5434, %v5606
      %v5608 = vpop.f32.mrb[0].mxu0
      %v5609 = vadd.f32 %v5436, %v5608
      %v5610 = vpop.f32.mrb[0].mxu0
      %v5611 = vadd.f32 %v5438, %v5610
      %5612 = vmatprep.mubr.bf16.mxu0 %v2949
      %5613 = vmatmul.mubr.bf16.gmra.mrb[0].mxu0 %v2948
      %v5614 = vpop.f32.mrb[0].mxu0
      %v5615 = vadd.f32 %v5442, %v5614
      %v5616 = vpop.f32.mrb[0].mxu0
      %v5617 = vadd.f32 %v5444, %v5616
      %v5618 = vpop.f32.mrb[0].mxu0
      %v5619 = vadd.f32 %v5446, %v5618
      %v5620 = vpop.f32.mrb[0].mxu0
      %v5621 = vadd.f32 %v5448, %v5620
      %5622 = vmatprep.mubr.bf16.mxu0 %v2967
      %5623 = vmatmul.mubr.bf16.gmra.mrb[0].mxu0 %v2966
      %v5624 = vpop.f32.mrb[0].mxu0
      %v5625 = vadd.f32 %v5452, %v5624
      %v5626 = vpop.f32.mrb[0].mxu0
      %v5627 = vadd.f32 %v5454, %v5626
      %v5628 = vpop.f32.mrb[0].mxu0
      %v5629 = vadd.f32 %v5456, %v5628
      %v5630 = vpop.f32.mrb[0].mxu0
      %v5631 = vadd.f32 %v5458, %v5630
      %5632 = vmatprep.mubr.bf16.mxu0 %v2985
      %5633 = vmatmul.mubr.bf16.gmra.mrb[0].mxu0 %v2984
      %v5634 = vpop.f32.mrb[0].mxu0
      %v5635 = vadd.f32 %v5462, %v5634
      %v5636 = vpop.f32.mrb[0].mxu0
      %v5637 = vadd.f32 %v5464, %v5636
      %v5638 = vpop.f32.mrb[0].mxu0
      %v5639 = vadd.f32 %v5466, %v5638
      %v5640 = vpop.f32.mrb[0].mxu0
      %v5641 = vadd.f32 %v5468, %v5640
      %5642 = vmatprep.mubr.bf16.mxu0 %v3003
      %5643 = vmatmul.mubr.bf16.gmra.mrb[0].mxu0 %v3002
      %v5644 = vpop.f32.mrb[0].mxu0
      %v5645 = vadd.f32 %v5472, %v5644
      %v5646 = vpop.f32.mrb[0].mxu0
      %v5647 = vadd.f32 %v5474, %v5646
      %v5648 = vpop.f32.mrb[0].mxu0
      %v5649 = vadd.f32 %v5476, %v5648
      %v5650 = vpop.f32.mrb[0].mxu0
      %v5651 = vadd.f32 %v5478, %v5650
      %5652 = vmatprep.mubr.bf16.mxu0 %v3021
      %5653 = vmatmul.mubr.bf16.gmra.mrb[0].mxu0 %v3020
      %v5654 = vpop.f32.mrb[0].mxu0
      %v5655 = vadd.f32 %v5482, %v5654
      %v5656 = vpop.f32.mrb[0].mxu0
      %v5657 = vadd.f32 %v5484, %v5656
      %v5658 = vpop.f32.mrb[0].mxu0
      %v5659 = vadd.f32 %v5486, %v5658
      %v5660 = vpop.f32.mrb[0].mxu0
      %v5661 = vadd.f32 %v5488, %v5660
      %5662 = vmatprep.mubr.bf16.mxu0 %v3039
      %5663 = vmatmul.mubr.bf16.gmra.mrb[0].mxu0 %v3038
      %v5664 = vpop.f32.mrb[0].mxu0
      %v5665 = vadd.f32 %v5492, %v5664
      %v5666 = vpop.f32.mrb[0].mxu0
      %v5667 = vadd.f32 %v5494, %v5666
      %v5668 = vpop.f32.mrb[0].mxu0
      %v5669 = vadd.f32 %v5496, %v5668
      %v5670 = vpop.f32.mrb[0].mxu0
      %v5671 = vadd.f32 %v5498, %v5670
      %5672 = vmatprep.mubr.bf16.mxu0 %v3057
      %5673 = vmatmul.mubr.bf16.gmra.mrb[0].mxu0 %v3056
      %v5674 = vpop.f32.mrb[0].mxu0
      %v5675 = vadd.f32 %v5502, %v5674
      %v5676 = vpop.f32.mrb[0].mxu0
      %v5677 = vadd.f32 %v5504, %v5676
      %v5678 = vpop.f32.mrb[0].mxu0
      %v5679 = vadd.f32 %v5506, %v5678
      %v5680 = vpop.f32.mrb[0].mxu0
      %v5681 = vadd.f32 %v5508, %v5680
      %5682 = vmatprep.mubr.bf16.mxu0 %v3075
      %5683 = vmatmul.mubr.bf16.gmra.mrb[0].mxu0 %v3074
      %v5684 = vpop.f32.mrb[0].mxu0
      %v5685 = vadd.f32 %v5512, %v5684
      %v5686 = vpop.f32.mrb[0].mxu0
      %v5687 = vadd.f32 %v5514, %v5686
      %v5688 = vpop.f32.mrb[0].mxu0
      %v5689 = vadd.f32 %v5516, %v5688
      %v5690 = vpop.f32.mrb[0].mxu0
      %v5691 = vadd.f32 %v5518, %v5690
      %5692 = vmatprep.mubr.bf16.mxu0 %v3093
      %5693 = vmatmul.mubr.bf16.gmra.mrb[0].mxu0 %v3092
      %v5694 = vpop.f32.mrb[0].mxu0
      %v5695 = vadd.f32 %v5522, %v5694
      %v5696 = vpop.f32.mrb[0].mxu0
      %v5697 = vadd.f32 %v5524, %v5696
      %v5698 = vpop.f32.mrb[0].mxu0
      %v5699 = vadd.f32 %v5526, %v5698
      %v5700 = vpop.f32.mrb[0].mxu0
      %v5701 = vadd.f32 %v5528, %v5700
      %5702 = vmatprep.mubr.bf16.mxu0 %v3111
      %5703 = vmatmul.mubr.bf16.gmra.mrb[0].mxu0 %v3110
      %v5704 = vpop.f32.mrb[0].mxu0
      %v5705 = vadd.f32 %v5532, %v5704
      %v5706 = vpop.f32.mrb[0].mxu0
      %v5707 = vadd.f32 %v5534, %v5706
      %v5708 = vpop.f32.mrb[0].mxu0
      %v5709 = vadd.f32 %v5536, %v5708
      %v5710 = vpop.f32.mrb[0].mxu0
      %v5711 = vadd.f32 %v5538, %v5710
      %5712 = vdwg.mxu0
      %5713 = vmatprep.subr.bf16.mxu0 %v4433
      %5714 = vmatpush1.bf16.msra.mxu0 %v4432
      %5715 = vmatprep.subr.bf16.mxu0 %v4435
      %5716 = vmatpush1.bf16.msra.mxu0 %v4434
      %5717 = vmatprep.subr.bf16.mxu0 %v4437
      %5718 = vmatpush1.bf16.msra.mxu0 %v4436
      %5719 = vmatprep.subr.bf16.mxu0 %v4439
      %5720 = vmatpush1.bf16.msra.mxu0 %v4438
      %5721 = vmatprep.subr.bf16.mxu0 %v4441
      %5722 = vmatpush1.bf16.msra.mxu0 %v4440
      %5723 = vmatprep.subr.bf16.mxu0 %v4443
      %5724 = vmatpush1.bf16.msra.mxu0 %v4442
      %5725 = vmatprep.subr.bf16.mxu0 %v4445
      %5726 = vmatpush1.bf16.msra.mxu0 %v4444
      %5727 = vmatprep.subr.bf16.mxu0 %v4447
      %5728 = vmatpush1.bf16.msra.mxu0 %v4446
      %5729 = vmatprep.subr.bf16.mxu0 %v4449
      %5730 = vmatpush1.bf16.msra.mxu0 %v4448
      %5731 = vmatprep.subr.bf16.mxu0 %v4451
      %5732 = vmatpush1.bf16.msra.mxu0 %v4450
      %5733 = vmatprep.subr.bf16.mxu0 %v4453
      %5734 = vmatpush1.bf16.msra.mxu0 %v4452
      %5735 = vmatprep.subr.bf16.mxu0 %v4455
      %5736 = vmatpush1.bf16.msra.mxu0 %v4454
      %5737 = vmatprep.subr.bf16.mxu0 %v4457
      %5738 = vmatpush1.bf16.msra.mxu0 %v4456
      %5739 = vmatprep.subr.bf16.mxu0 %v4459
      %5740 = vmatpush1.bf16.msra.mxu0 %v4458
      %5741 = vmatprep.subr.bf16.mxu0 %v4461
      %5742 = vmatpush1.bf16.msra.mxu0 %v4460
      %5743 = vmatprep.subr.bf16.mxu0 %v4463
      %5744 = vmatpush1.bf16.msra.mxu0 %v4462
      %5745 = vmatprep.mubr.bf16.mxu0 %v2879
      %5746 = vmatmul.mubr.bf16.gmra.mrb[0].mxu0 %v2878
      %v5747 = vpop.f32.mrb[0].mxu0
      %v5748 = vadd.f32 %v5575, %v5747
      %v5749 = vpop.f32.mrb[0].mxu0
      %v5750 = vadd.f32 %v5577, %v5749
      %v5751 = vpop.f32.mrb[0].mxu0
      %v5752 = vadd.f32 %v5579, %v5751
      %v5753 = vpop.f32.mrb[0].mxu0
      %v5754 = vadd.f32 %v5581, %v5753
      %5755 = vmatprep.mubr.bf16.mxu0 %v2897
      %5756 = vmatmul.mubr.bf16.gmra.mrb[0].mxu0 %v2896
      %v5757 = vpop.f32.mrb[0].mxu0
      %v5758 = vadd.f32 %v5585, %v5757
      %v5759 = vpop.f32.mrb[0].mxu0
      %v5760 = vadd.f32 %v5587, %v5759
      %v5761 = vpop.f32.mrb[0].mxu0
      %v5762 = vadd.f32 %v5589, %v5761
      %v5763 = vpop.f32.mrb[0].mxu0
      %v5764 = vadd.f32 %v5591, %v5763
      %5765 = vmatprep.mubr.bf16.mxu0 %v2915
      %5766 = vmatmul.mubr.bf16.gmra.mrb[0].mxu0 %v2914
      %v5767 = vpop.f32.mrb[0].mxu0
      %v5768 = vadd.f32 %v5595, %v5767
      %v5769 = vpop.f32.mrb[0].mxu0
      %v5770 = vadd.f32 %v5597, %v5769
      %v5771 = vpop.f32.mrb[0].mxu0
      %v5772 = vadd.f32 %v5599, %v5771
      %v5773 = vpop.f32.mrb[0].mxu0
      %v5774 = vadd.f32 %v5601, %v5773
      %5775 = vmatprep.mubr.bf16.mxu0 %v2933
      %5776 = vmatmul.mubr.bf16.gmra.mrb[0].mxu0 %v2932
      %v5777 = vpop.f32.mrb[0].mxu0
      %v5778 = vadd.f32 %v5605, %v5777
      %v5779 = vpop.f32.mrb[0].mxu0
      %v5780 = vadd.f32 %v5607, %v5779
      %v5781 = vpop.f32.mrb[0].mxu0
      %v5782 = vadd.f32 %v5609, %v5781
      %v5783 = vpop.f32.mrb[0].mxu0
      %v5784 = vadd.f32 %v5611, %v5783
      %5785 = vmatprep.mubr.bf16.mxu0 %v2951
      %5786 = vmatmul.mubr.bf16.gmra.mrb[0].mxu0 %v2950
      %v5787 = vpop.f32.mrb[0].mxu0
      %v5788 = vadd.f32 %v5615, %v5787
      %v5789 = vpop.f32.mrb[0].mxu0
      %v5790 = vadd.f32 %v5617, %v5789
      %v5791 = vpop.f32.mrb[0].mxu0
      %v5792 = vadd.f32 %v5619, %v5791
      %v5793 = vpop.f32.mrb[0].mxu0
      %v5794 = vadd.f32 %v5621, %v5793
      %5795 = vmatprep.mubr.bf16.mxu0 %v2969
      %5796 = vmatmul.mubr.bf16.gmra.mrb[0].mxu0 %v2968
      %v5797 = vpop.f32.mrb[0].mxu0
      %v5798 = vadd.f32 %v5625, %v5797
      %v5799 = vpop.f32.mrb[0].mxu0
      %v5800 = vadd.f32 %v5627, %v5799
      %v5801 = vpop.f32.mrb[0].mxu0
      %v5802 = vadd.f32 %v5629, %v5801
      %v5803 = vpop.f32.mrb[0].mxu0
      %v5804 = vadd.f32 %v5631, %v5803
      %5805 = vmatprep.mubr.bf16.mxu0 %v2987
      %5806 = vmatmul.mubr.bf16.gmra.mrb[0].mxu0 %v2986
      %v5807 = vpop.f32.mrb[0].mxu0
      %v5808 = vadd.f32 %v5635, %v5807
      %v5809 = vpop.f32.mrb[0].mxu0
      %v5810 = vadd.f32 %v5637, %v5809
      %v5811 = vpop.f32.mrb[0].mxu0
      %v5812 = vadd.f32 %v5639, %v5811
      %v5813 = vpop.f32.mrb[0].mxu0
      %v5814 = vadd.f32 %v5641, %v5813
      %5815 = vmatprep.mubr.bf16.mxu0 %v3005
      %5816 = vmatmul.mubr.bf16.gmra.mrb[0].mxu0 %v3004
      %v5817 = vpop.f32.mrb[0].mxu0
      %v5818 = vadd.f32 %v5645, %v5817
      %v5819 = vpop.f32.mrb[0].mxu0
      %v5820 = vadd.f32 %v5647, %v5819
      %v5821 = vpop.f32.mrb[0].mxu0
      %v5822 = vadd.f32 %v5649, %v5821
      %v5823 = vpop.f32.mrb[0].mxu0
      %v5824 = vadd.f32 %v5651, %v5823
      %5825 = vmatprep.mubr.bf16.mxu0 %v3023
      %5826 = vmatmul.mubr.bf16.gmra.mrb[0].mxu0 %v3022
      %v5827 = vpop.f32.mrb[0].mxu0
      %v5828 = vadd.f32 %v5655, %v5827
      %v5829 = vpop.f32.mrb[0].mxu0
      %v5830 = vadd.f32 %v5657, %v5829
      %v5831 = vpop.f32.mrb[0].mxu0
      %v5832 = vadd.f32 %v5659, %v5831
      %v5833 = vpop.f32.mrb[0].mxu0
      %v5834 = vadd.f32 %v5661, %v5833
      %5835 = vmatprep.mubr.bf16.mxu0 %v3041
      %5836 = vmatmul.mubr.bf16.gmra.mrb[0].mxu0 %v3040
      %v5837 = vpop.f32.mrb[0].mxu0
      %v5838 = vadd.f32 %v5665, %v5837
      %v5839 = vpop.f32.mrb[0].mxu0
      %v5840 = vadd.f32 %v5667, %v5839
      %v5841 = vpop.f32.mrb[0].mxu0
      %v5842 = vadd.f32 %v5669, %v5841
      %v5843 = vpop.f32.mrb[0].mxu0
      %v5844 = vadd.f32 %v5671, %v5843
      %5845 = vmatprep.mubr.bf16.mxu0 %v3059
      %5846 = vmatmul.mubr.bf16.gmra.mrb[0].mxu0 %v3058
      %v5847 = vpop.f32.mrb[0].mxu0
      %v5848 = vadd.f32 %v5675, %v5847
      %v5849 = vpop.f32.mrb[0].mxu0
      %v5850 = vadd.f32 %v5677, %v5849
      %v5851 = vpop.f32.mrb[0].mxu0
      %v5852 = vadd.f32 %v5679, %v5851
      %v5853 = vpop.f32.mrb[0].mxu0
      %v5854 = vadd.f32 %v5681, %v5853
      %5855 = vmatprep.mubr.bf16.mxu0 %v3077
      %5856 = vmatmul.mubr.bf16.gmra.mrb[0].mxu0 %v3076
      %v5857 = vpop.f32.mrb[0].mxu0
      %v5858 = vadd.f32 %v5685, %v5857
      %v5859 = vpop.f32.mrb[0].mxu0
      %v5860 = vadd.f32 %v5687, %v5859
      %v5861 = vpop.f32.mrb[0].mxu0
      %v5862 = vadd.f32 %v5689, %v5861
      %v5863 = vpop.f32.mrb[0].mxu0
      %v5864 = vadd.f32 %v5691, %v5863
      %5865 = vmatprep.mubr.bf16.mxu0 %v3095
      %5866 = vmatmul.mubr.bf16.gmra.mrb[0].mxu0 %v3094
      %v5867 = vpop.f32.mrb[0].mxu0
      %v5868 = vadd.f32 %v5695, %v5867
      %v5869 = vpop.f32.mrb[0].mxu0
      %v5870 = vadd.f32 %v5697, %v5869
      %v5871 = vpop.f32.mrb[0].mxu0
      %v5872 = vadd.f32 %v5699, %v5871
      %v5873 = vpop.f32.mrb[0].mxu0
      %v5874 = vadd.f32 %v5701, %v5873
      %5875 = vmatprep.mubr.bf16.mxu0 %v3113
      %5876 = vmatmul.mubr.bf16.gmra.mrb[0].mxu0 %v3112
      %v5877 = vpop.f32.mrb[0].mxu0
      %v5878 = vadd.f32 %v5705, %v5877
      %v5879 = vpop.f32.mrb[0].mxu0
      %v5880 = vadd.f32 %v5707, %v5879
      %v5881 = vpop.f32.mrb[0].mxu0
      %v5882 = vadd.f32 %v5709, %v5881
      %v5883 = vpop.f32.mrb[0].mxu0
      %v5884 = vadd.f32 %v5711, %v5883
      %5885 = vdwg.mxu0
      %5886 = vmatprep.subr.bf16.mxu0 %v4465
      %5887 = vmatpush1.bf16.msra.mxu0 %v4464
      %5888 = vmatprep.subr.bf16.mxu0 %v4467
      %5889 = vmatpush1.bf16.msra.mxu0 %v4466
      %5890 = vmatprep.subr.bf16.mxu0 %v4469
      %5891 = vmatpush1.bf16.msra.mxu0 %v4468
      %5892 = vmatprep.subr.bf16.mxu0 %v4471
      %5893 = vmatpush1.bf16.msra.mxu0 %v4470
      %5894 = vmatprep.subr.bf16.mxu0 %v4473
      %5895 = vmatpush1.bf16.msra.mxu0 %v4472
      %5896 = vmatprep.subr.bf16.mxu0 %v4475
      %5897 = vmatpush1.bf16.msra.mxu0 %v4474
      %5898 = vmatprep.subr.bf16.mxu0 %v4477
      %5899 = vmatpush1.bf16.msra.mxu0 %v4476
      %5900 = vmatprep.subr.bf16.mxu0 %v4479
      %5901 = vmatpush1.bf16.msra.mxu0 %v4478
      %5902 = vmatprep.subr.bf16.mxu0 %v4481
      %5903 = vmatpush1.bf16.msra.mxu0 %v4480
      %5904 = vmatprep.subr.bf16.mxu0 %v4483
      %5905 = vmatpush1.bf16.msra.mxu0 %v4482
      %5906 = vmatprep.subr.bf16.mxu0 %v4485
      %5907 = vmatpush1.bf16.msra.mxu0 %v4484
      %5908 = vmatprep.subr.bf16.mxu0 %v4487
      %5909 = vmatpush1.bf16.msra.mxu0 %v4486
      %5910 = vmatprep.subr.bf16.mxu0 %v4489
      %5911 = vmatpush1.bf16.msra.mxu0 %v4488
      %5912 = vmatprep.subr.bf16.mxu0 %v4491
      %5913 = vmatpush1.bf16.msra.mxu0 %v4490
      %5914 = vmatprep.subr.bf16.mxu0 %v4493
      %5915 = vmatpush1.bf16.msra.mxu0 %v4492
      %5916 = vmatprep.subr.bf16.mxu0 %v4495
      %5917 = vmatpush1.bf16.msra.mxu0 %v4494
      %5918 = vmatprep.mubr.bf16.mxu0 %v2881
      %5919 = vmatmul.mubr.bf16.gmra.mrb[0].mxu0 %v2880
      %v5920 = vpop.f32.mrb[0].mxu0
      %v5921 = vadd.f32 %v5748, %v5920
      %v5922 = vpop.f32.mrb[0].mxu0
      %v5923 = vadd.f32 %v5750, %v5922
      %v5924 = vpop.f32.mrb[0].mxu0
      %v5925 = vadd.f32 %v5752, %v5924
      %v5926 = vpop.f32.mrb[0].mxu0
      %v5927 = vadd.f32 %v5754, %v5926
      %5928 = vmatprep.mubr.bf16.mxu0 %v2899
      %5929 = vmatmul.mubr.bf16.gmra.mrb[0].mxu0 %v2898
      %v5930 = vpop.f32.mrb[0].mxu0
      %v5931 = vadd.f32 %v5758, %v5930
      %v5932 = vpop.f32.mrb[0].mxu0
      %v5933 = vadd.f32 %v5760, %v5932
      %v5934 = vpop.f32.mrb[0].mxu0
      %v5935 = vadd.f32 %v5762, %v5934
      %v5936 = vpop.f32.mrb[0].mxu0
      %v5937 = vadd.f32 %v5764, %v5936
      %5938 = vmatprep.mubr.bf16.mxu0 %v2917
      %5939 = vmatmul.mubr.bf16.gmra.mrb[0].mxu0 %v2916
      %v5940 = vpop.f32.mrb[0].mxu0
      %v5941 = vadd.f32 %v5768, %v5940
      %v5942 = vpop.f32.mrb[0].mxu0
      %v5943 = vadd.f32 %v5770, %v5942
      %v5944 = vpop.f32.mrb[0].mxu0
      %v5945 = vadd.f32 %v5772, %v5944
      %v5946 = vpop.f32.mrb[0].mxu0
      %v5947 = vadd.f32 %v5774, %v5946
      %5948 = vmatprep.mubr.bf16.mxu0 %v2935
      %5949 = vmatmul.mubr.bf16.gmra.mrb[0].mxu0 %v2934
      %v5950 = vpop.f32.mrb[0].mxu0
      %v5951 = vadd.f32 %v5778, %v5950
      %v5952 = vpop.f32.mrb[0].mxu0
      %v5953 = vadd.f32 %v5780, %v5952
      %v5954 = vpop.f32.mrb[0].mxu0
      %v5955 = vadd.f32 %v5782, %v5954
      %v5956 = vpop.f32.mrb[0].mxu0
      %v5957 = vadd.f32 %v5784, %v5956
      %5958 = vmatprep.mubr.bf16.mxu0 %v2953
      %5959 = vmatmul.mubr.bf16.gmra.mrb[0].mxu0 %v2952
      %v5960 = vpop.f32.mrb[0].mxu0
      %v5961 = vadd.f32 %v5788, %v5960
      %v5962 = vpop.f32.mrb[0].mxu0
      %v5963 = vadd.f32 %v5790, %v5962
      %v5964 = vpop.f32.mrb[0].mxu0
      %v5965 = vadd.f32 %v5792, %v5964
      %v5966 = vpop.f32.mrb[0].mxu0
      %v5967 = vadd.f32 %v5794, %v5966
      %5968 = vmatprep.mubr.bf16.mxu0 %v2971
      %5969 = vmatmul.mubr.bf16.gmra.mrb[0].mxu0 %v2970
      %v5970 = vpop.f32.mrb[0].mxu0
      %v5971 = vadd.f32 %v5798, %v5970
      %v5972 = vpop.f32.mrb[0].mxu0
      %v5973 = vadd.f32 %v5800, %v5972
      %v5974 = vpop.f32.mrb[0].mxu0
      %v5975 = vadd.f32 %v5802, %v5974
      %v5976 = vpop.f32.mrb[0].mxu0
      %v5977 = vadd.f32 %v5804, %v5976
      %5978 = vmatprep.mubr.bf16.mxu0 %v2989
      %5979 = vmatmul.mubr.bf16.gmra.mrb[0].mxu0 %v2988
      %v5980 = vpop.f32.mrb[0].mxu0
      %v5981 = vadd.f32 %v5808, %v5980
      %v5982 = vpop.f32.mrb[0].mxu0
      %v5983 = vadd.f32 %v5810, %v5982
      %v5984 = vpop.f32.mrb[0].mxu0
      %v5985 = vadd.f32 %v5812, %v5984
      %v5986 = vpop.f32.mrb[0].mxu0
      %v5987 = vadd.f32 %v5814, %v5986
      %5988 = vmatprep.mubr.bf16.mxu0 %v3007
      %5989 = vmatmul.mubr.bf16.gmra.mrb[0].mxu0 %v3006
      %v5990 = vpop.f32.mrb[0].mxu0
      %v5991 = vadd.f32 %v5818, %v5990
      %v5992 = vpop.f32.mrb[0].mxu0
      %v5993 = vadd.f32 %v5820, %v5992
      %v5994 = vpop.f32.mrb[0].mxu0
      %v5995 = vadd.f32 %v5822, %v5994
      %v5996 = vpop.f32.mrb[0].mxu0
      %v5997 = vadd.f32 %v5824, %v5996
      %5998 = vmatprep.mubr.bf16.mxu0 %v3025
      %5999 = vmatmul.mubr.bf16.gmra.mrb[0].mxu0 %v3024
      %v6000 = vpop.f32.mrb[0].mxu0
      %v6001 = vadd.f32 %v5828, %v6000
      %v6002 = vpop.f32.mrb[0].mxu0
      %v6003 = vadd.f32 %v5830, %v6002
      %v6004 = vpop.f32.mrb[0].mxu0
      %v6005 = vadd.f32 %v5832, %v6004
      %v6006 = vpop.f32.mrb[0].mxu0
      %v6007 = vadd.f32 %v5834, %v6006
      %6008 = vmatprep.mubr.bf16.mxu0 %v3043
      %6009 = vmatmul.mubr.bf16.gmra.mrb[0].mxu0 %v3042
      %v6010 = vpop.f32.mrb[0].mxu0
      %v6011 = vadd.f32 %v5838, %v6010
      %v6012 = vpop.f32.mrb[0].mxu0
      %v6013 = vadd.f32 %v5840, %v6012
      %v6014 = vpop.f32.mrb[0].mxu0
      %v6015 = vadd.f32 %v5842, %v6014
      %v6016 = vpop.f32.mrb[0].mxu0
      %v6017 = vadd.f32 %v5844, %v6016
      %6018 = vmatprep.mubr.bf16.mxu0 %v3061
      %6019 = vmatmul.mubr.bf16.gmra.mrb[0].mxu0 %v3060
      %v6020 = vpop.f32.mrb[0].mxu0
      %v6021 = vadd.f32 %v5848, %v6020
      %v6022 = vpop.f32.mrb[0].mxu0
      %v6023 = vadd.f32 %v5850, %v6022
      %v6024 = vpop.f32.mrb[0].mxu0
      %v6025 = vadd.f32 %v5852, %v6024
      %v6026 = vpop.f32.mrb[0].mxu0
      %v6027 = vadd.f32 %v5854, %v6026
      %6028 = vmatprep.mubr.bf16.mxu0 %v3079
      %6029 = vmatmul.mubr.bf16.gmra.mrb[0].mxu0 %v3078
      %v6030 = vpop.f32.mrb[0].mxu0
      %v6031 = vadd.f32 %v5858, %v6030
      %v6032 = vpop.f32.mrb[0].mxu0
      %v6033 = vadd.f32 %v5860, %v6032
      %v6034 = vpop.f32.mrb[0].mxu0
      %v6035 = vadd.f32 %v5862, %v6034
      %v6036 = vpop.f32.mrb[0].mxu0
      %v6037 = vadd.f32 %v5864, %v6036
      %6038 = vmatprep.mubr.bf16.mxu0 %v3097
      %6039 = vmatmul.mubr.bf16.gmra.mrb[0].mxu0 %v3096
      %v6040 = vpop.f32.mrb[0].mxu0
      %v6041 = vadd.f32 %v5868, %v6040
      %v6042 = vpop.f32.mrb[0].mxu0
      %v6043 = vadd.f32 %v5870, %v6042
      %v6044 = vpop.f32.mrb[0].mxu0
      %v6045 = vadd.f32 %v5872, %v6044
      %v6046 = vpop.f32.mrb[0].mxu0
      %v6047 = vadd.f32 %v5874, %v6046
      %6048 = vmatprep.mubr.bf16.mxu0 %v3115
      %6049 = vmatmul.mubr.bf16.gmra.mrb[0].mxu0 %v3114
      %v6050 = vpop.f32.mrb[0].mxu0
      %v6051 = vadd.f32 %v5878, %v6050
      %v6052 = vpop.f32.mrb[0].mxu0
      %v6053 = vadd.f32 %v5880, %v6052
      %v6054 = vpop.f32.mrb[0].mxu0
      %v6055 = vadd.f32 %v5882, %v6054
      %v6056 = vpop.f32.mrb[0].mxu0
      %v6057 = vadd.f32 %v5884, %v6056
      %6058 = vdwg.mxu0
      %6059 = vmatprep.subr.bf16.mxu0 %v4497
      %6060 = vmatpush1.bf16.msra.mxu0 %v4496
      %6061 = vmatprep.subr.bf16.mxu0 %v4499
      %6062 = vmatpush1.bf16.msra.mxu0 %v4498
      %6063 = vmatprep.subr.bf16.mxu0 %v4501
      %6064 = vmatpush1.bf16.msra.mxu0 %v4500
      %6065 = vmatprep.subr.bf16.mxu0 %v4503
      %6066 = vmatpush1.bf16.msra.mxu0 %v4502
      %6067 = vmatprep.subr.bf16.mxu0 %v4505
      %6068 = vmatpush1.bf16.msra.mxu0 %v4504
      %6069 = vmatprep.subr.bf16.mxu0 %v4507
      %6070 = vmatpush1.bf16.msra.mxu0 %v4506
      %6071 = vmatprep.subr.bf16.mxu0 %v4509
      %6072 = vmatpush1.bf16.msra.mxu0 %v4508
      %6073 = vmatprep.subr.bf16.mxu0 %v4511
      %6074 = vmatpush1.bf16.msra.mxu0 %v4510
      %6075 = vmatprep.subr.bf16.mxu0 %v4513
      %6076 = vmatpush1.bf16.msra.mxu0 %v4512
      %6077 = vmatprep.subr.bf16.mxu0 %v4515
      %6078 = vmatpush1.bf16.msra.mxu0 %v4514
      %6079 = vmatprep.subr.bf16.mxu0 %v4517
      %6080 = vmatpush1.bf16.msra.mxu0 %v4516
      %6081 = vmatprep.subr.bf16.mxu0 %v4519
      %6082 = vmatpush1.bf16.msra.mxu0 %v4518
      %6083 = vmatprep.subr.bf16.mxu0 %v4521
      %6084 = vmatpush1.bf16.msra.mxu0 %v4520
      %6085 = vmatprep.subr.bf16.mxu0 %v4523
      %6086 = vmatpush1.bf16.msra.mxu0 %v4522
      %6087 = vmatprep.subr.bf16.mxu0 %v4525
      %6088 = vmatpush1.bf16.msra.mxu0 %v4524
      %6089 = vmatprep.subr.bf16.mxu0 %v4527
      %6090 = vmatpush1.bf16.msra.mxu0 %v4526
      %6091 = vmatprep.mubr.bf16.mxu0 %v2883
      %6092 = vmatmul.mubr.bf16.gmra.mrb[0].mxu0 %v2882
      %v6093 = vpop.f32.mrb[0].mxu0
      %v6094 = vadd.f32 %v5921, %v6093
      %v6095 = vpop.f32.mrb[0].mxu0
      %v6096 = vadd.f32 %v5923, %v6095
      %v6097 = vpop.f32.mrb[0].mxu0
      %v6098 = vadd.f32 %v5925, %v6097
      %v6099 = vpop.f32.mrb[0].mxu0
      %v6100 = vadd.f32 %v5927, %v6099
      %6101 = vmatprep.mubr.bf16.mxu0 %v2901
      %6102 = vmatmul.mubr.bf16.gmra.mrb[0].mxu0 %v2900
      %v6103 = vpop.f32.mrb[0].mxu0
      %v6104 = vadd.f32 %v5931, %v6103
      %v6105 = vpop.f32.mrb[0].mxu0
      %v6106 = vadd.f32 %v5933, %v6105
      %v6107 = vpop.f32.mrb[0].mxu0
      %v6108 = vadd.f32 %v5935, %v6107
      %v6109 = vpop.f32.mrb[0].mxu0
      %v6110 = vadd.f32 %v5937, %v6109
      %6111 = vmatprep.mubr.bf16.mxu0 %v2919
      %6112 = vmatmul.mubr.bf16.gmra.mrb[0].mxu0 %v2918
      %v6113 = vpop.f32.mrb[0].mxu0
      %v6114 = vadd.f32 %v5941, %v6113
      %v6115 = vpop.f32.mrb[0].mxu0
      %v6116 = vadd.f32 %v5943, %v6115
      %v6117 = vpop.f32.mrb[0].mxu0
      %v6118 = vadd.f32 %v5945, %v6117
      %v6119 = vpop.f32.mrb[0].mxu0
      %v6120 = vadd.f32 %v5947, %v6119
      %6121 = vmatprep.mubr.bf16.mxu0 %v2937
      %6122 = vmatmul.mubr.bf16.gmra.mrb[0].mxu0 %v2936
      %v6123 = vpop.f32.mrb[0].mxu0
      %v6124 = vadd.f32 %v5951, %v6123
      %v6125 = vpop.f32.mrb[0].mxu0
      %v6126 = vadd.f32 %v5953, %v6125
      %v6127 = vpop.f32.mrb[0].mxu0
      %v6128 = vadd.f32 %v5955, %v6127
      %v6129 = vpop.f32.mrb[0].mxu0
      %v6130 = vadd.f32 %v5957, %v6129
      %6131 = vmatprep.mubr.bf16.mxu0 %v2955
      %6132 = vmatmul.mubr.bf16.gmra.mrb[0].mxu0 %v2954
      %v6133 = vpop.f32.mrb[0].mxu0
      %v6134 = vadd.f32 %v5961, %v6133
      %v6135 = vpop.f32.mrb[0].mxu0
      %v6136 = vadd.f32 %v5963, %v6135
      %v6137 = vpop.f32.mrb[0].mxu0
      %v6138 = vadd.f32 %v5965, %v6137
      %v6139 = vpop.f32.mrb[0].mxu0
      %v6140 = vadd.f32 %v5967, %v6139
      %6141 = vmatprep.mubr.bf16.mxu0 %v2973
      %6142 = vmatmul.mubr.bf16.gmra.mrb[0].mxu0 %v2972
      %v6143 = vpop.f32.mrb[0].mxu0
      %v6144 = vadd.f32 %v5971, %v6143
      %v6145 = vpop.f32.mrb[0].mxu0
      %v6146 = vadd.f32 %v5973, %v6145
      %v6147 = vpop.f32.mrb[0].mxu0
      %v6148 = vadd.f32 %v5975, %v6147
      %v6149 = vpop.f32.mrb[0].mxu0
      %v6150 = vadd.f32 %v5977, %v6149
      %6151 = vmatprep.mubr.bf16.mxu0 %v2991
      %6152 = vmatmul.mubr.bf16.gmra.mrb[0].mxu0 %v2990
      %v6153 = vpop.f32.mrb[0].mxu0
      %v6154 = vadd.f32 %v5981, %v6153
      %v6155 = vpop.f32.mrb[0].mxu0
      %v6156 = vadd.f32 %v5983, %v6155
      %v6157 = vpop.f32.mrb[0].mxu0
      %v6158 = vadd.f32 %v5985, %v6157
      %v6159 = vpop.f32.mrb[0].mxu0
      %v6160 = vadd.f32 %v5987, %v6159
      %6161 = vmatprep.mubr.bf16.mxu0 %v3009
      %6162 = vmatmul.mubr.bf16.gmra.mrb[0].mxu0 %v3008
      %v6163 = vpop.f32.mrb[0].mxu0
      %v6164 = vadd.f32 %v5991, %v6163
      %v6165 = vpop.f32.mrb[0].mxu0
      %v6166 = vadd.f32 %v5993, %v6165
      %v6167 = vpop.f32.mrb[0].mxu0
      %v6168 = vadd.f32 %v5995, %v6167
      %v6169 = vpop.f32.mrb[0].mxu0
      %v6170 = vadd.f32 %v5997, %v6169
      %6171 = vmatprep.mubr.bf16.mxu0 %v3027
      %6172 = vmatmul.mubr.bf16.gmra.mrb[0].mxu0 %v3026
      %v6173 = vpop.f32.mrb[0].mxu0
      %v6174 = vadd.f32 %v6001, %v6173
      %v6175 = vpop.f32.mrb[0].mxu0
      %v6176 = vadd.f32 %v6003, %v6175
      %v6177 = vpop.f32.mrb[0].mxu0
      %v6178 = vadd.f32 %v6005, %v6177
      %v6179 = vpop.f32.mrb[0].mxu0
      %v6180 = vadd.f32 %v6007, %v6179
      %6181 = vmatprep.mubr.bf16.mxu0 %v3045
      %6182 = vmatmul.mubr.bf16.gmra.mrb[0].mxu0 %v3044
      %v6183 = vpop.f32.mrb[0].mxu0
      %v6184 = vadd.f32 %v6011, %v6183
      %v6185 = vpop.f32.mrb[0].mxu0
      %v6186 = vadd.f32 %v6013, %v6185
      %v6187 = vpop.f32.mrb[0].mxu0
      %v6188 = vadd.f32 %v6015, %v6187
      %v6189 = vpop.f32.mrb[0].mxu0
      %v6190 = vadd.f32 %v6017, %v6189
      %6191 = vmatprep.mubr.bf16.mxu0 %v3063
      %6192 = vmatmul.mubr.bf16.gmra.mrb[0].mxu0 %v3062
      %v6193 = vpop.f32.mrb[0].mxu0
      %v6194 = vadd.f32 %v6021, %v6193
      %v6195 = vpop.f32.mrb[0].mxu0
      %v6196 = vadd.f32 %v6023, %v6195
      %v6197 = vpop.f32.mrb[0].mxu0
      %v6198 = vadd.f32 %v6025, %v6197
      %v6199 = vpop.f32.mrb[0].mxu0
      %v6200 = vadd.f32 %v6027, %v6199
      %6201 = vmatprep.mubr.bf16.mxu0 %v3081
      %6202 = vmatmul.mubr.bf16.gmra.mrb[0].mxu0 %v3080
      %v6203 = vpop.f32.mrb[0].mxu0
      %v6204 = vadd.f32 %v6031, %v6203
      %v6205 = vpop.f32.mrb[0].mxu0
      %v6206 = vadd.f32 %v6033, %v6205
      %v6207 = vpop.f32.mrb[0].mxu0
      %v6208 = vadd.f32 %v6035, %v6207
      %v6209 = vpop.f32.mrb[0].mxu0
      %v6210 = vadd.f32 %v6037, %v6209
      %6211 = vmatprep.mubr.bf16.mxu0 %v3099
      %6212 = vmatmul.mubr.bf16.gmra.mrb[0].mxu0 %v3098
      %v6213 = vpop.f32.mrb[0].mxu0
      %v6214 = vadd.f32 %v6041, %v6213
      %v6215 = vpop.f32.mrb[0].mxu0
      %v6216 = vadd.f32 %v6043, %v6215
      %v6217 = vpop.f32.mrb[0].mxu0
      %v6218 = vadd.f32 %v6045, %v6217
      %v6219 = vpop.f32.mrb[0].mxu0
      %v6220 = vadd.f32 %v6047, %v6219
      %6221 = vmatprep.mubr.bf16.mxu0 %v3117
      %6222 = vmatmul.mubr.bf16.gmra.mrb[0].mxu0 %v3116
      %v6223 = vpop.f32.mrb[0].mxu0
      %v6224 = vadd.f32 %v6051, %v6223
      %v6225 = vpop.f32.mrb[0].mxu0
      %v6226 = vadd.f32 %v6053, %v6225
      %v6227 = vpop.f32.mrb[0].mxu0
      %v6228 = vadd.f32 %v6055, %v6227
      %v6229 = vpop.f32.mrb[0].mxu0
      %v6230 = vadd.f32 %v6057, %v6229
      %6231 = vdwg.mxu0
      %6232 = vmatprep.subr.bf16.mxu0 %v4529
      %6233 = vmatpush1.bf16.msra.mxu0 %v4528
      %6234 = vmatprep.subr.bf16.mxu0 %v4531
      %6235 = vmatpush1.bf16.msra.mxu0 %v4530
      %6236 = vmatprep.subr.bf16.mxu0 %v4533
      %6237 = vmatpush1.bf16.msra.mxu0 %v4532
      %6238 = vmatprep.subr.bf16.mxu0 %v4535
      %6239 = vmatpush1.bf16.msra.mxu0 %v4534
      %6240 = vmatprep.subr.bf16.mxu0 %v4537
      %6241 = vmatpush1.bf16.msra.mxu0 %v4536
      %6242 = vmatprep.subr.bf16.mxu0 %v4539
      %6243 = vmatpush1.bf16.msra.mxu0 %v4538
      %6244 = vmatprep.subr.bf16.mxu0 %v4541
      %6245 = vmatpush1.bf16.msra.mxu0 %v4540
      %6246 = vmatprep.subr.bf16.mxu0 %v4543
      %6247 = vmatpush1.bf16.msra.mxu0 %v4542
      %6248 = vmatprep.subr.bf16.mxu0 %v4545
      %6249 = vmatpush1.bf16.msra.mxu0 %v4544
      %6250 = vmatprep.subr.bf16.mxu0 %v4547
      %6251 = vmatpush1.bf16.msra.mxu0 %v4546
      %6252 = vmatprep.subr.bf16.mxu0 %v4549
      %6253 = vmatpush1.bf16.msra.mxu0 %v4548
      %6254 = vmatprep.subr.bf16.mxu0 %v4551
      %6255 = vmatpush1.bf16.msra.mxu0 %v4550
      %6256 = vmatprep.subr.bf16.mxu0 %v4553
      %6257 = vmatpush1.bf16.msra.mxu0 %v4552
      %6258 = vmatprep.subr.bf16.mxu0 %v4555
      %6259 = vmatpush1.bf16.msra.mxu0 %v4554
      %6260 = vmatprep.subr.bf16.mxu0 %v4557
      %6261 = vmatpush1.bf16.msra.mxu0 %v4556
      %6262 = vmatprep.subr.bf16.mxu0 %v4559
      %6263 = vmatpush1.bf16.msra.mxu0 %v4558
      %6264 = vmatprep.mubr.bf16.mxu0 %v2885
      %6265 = vmatmul.mubr.bf16.gmra.mrb[0].mxu0 %v2884
      %v6266 = vpop.f32.mrb[0].mxu0
      %v6267 = vadd.f32 %v6094, %v6266
      %v6268 = vpop.f32.mrb[0].mxu0
      %v6269 = vadd.f32 %v6096, %v6268
      %v6270 = vpop.f32.mrb[0].mxu0
      %v6271 = vadd.f32 %v6098, %v6270
      %v6272 = vpop.f32.mrb[0].mxu0
      %v6273 = vadd.f32 %v6100, %v6272
      %6274 = vmatprep.mubr.bf16.mxu0 %v2903
      %6275 = vmatmul.mubr.bf16.gmra.mrb[0].mxu0 %v2902
      %v6276 = vpop.f32.mrb[0].mxu0
      %v6277 = vadd.f32 %v6104, %v6276
      %v6278 = vpop.f32.mrb[0].mxu0
      %v6279 = vadd.f32 %v6106, %v6278
      %v6280 = vpop.f32.mrb[0].mxu0
      %v6281 = vadd.f32 %v6108, %v6280
      %v6282 = vpop.f32.mrb[0].mxu0
      %v6283 = vadd.f32 %v6110, %v6282
      %6284 = vmatprep.mubr.bf16.mxu0 %v2921
      %6285 = vmatmul.mubr.bf16.gmra.mrb[0].mxu0 %v2920
      %v6286 = vpop.f32.mrb[0].mxu0
      %v6287 = vadd.f32 %v6114, %v6286
      %v6288 = vpop.f32.mrb[0].mxu0
      %v6289 = vadd.f32 %v6116, %v6288
      %v6290 = vpop.f32.mrb[0].mxu0
      %v6291 = vadd.f32 %v6118, %v6290
      %v6292 = vpop.f32.mrb[0].mxu0
      %v6293 = vadd.f32 %v6120, %v6292
      %6294 = vmatprep.mubr.bf16.mxu0 %v2939
      %6295 = vmatmul.mubr.bf16.gmra.mrb[0].mxu0 %v2938
      %v6296 = vpop.f32.mrb[0].mxu0
      %v6297 = vadd.f32 %v6124, %v6296
      %v6298 = vpop.f32.mrb[0].mxu0
      %v6299 = vadd.f32 %v6126, %v6298
      %v6300 = vpop.f32.mrb[0].mxu0
      %v6301 = vadd.f32 %v6128, %v6300
      %v6302 = vpop.f32.mrb[0].mxu0
      %v6303 = vadd.f32 %v6130, %v6302
      %6304 = vmatprep.mubr.bf16.mxu0 %v2957
      %6305 = vmatmul.mubr.bf16.gmra.mrb[0].mxu0 %v2956
      %v6306 = vpop.f32.mrb[0].mxu0
      %v6307 = vadd.f32 %v6134, %v6306
      %v6308 = vpop.f32.mrb[0].mxu0
      %v6309 = vadd.f32 %v6136, %v6308
      %v6310 = vpop.f32.mrb[0].mxu0
      %v6311 = vadd.f32 %v6138, %v6310
      %v6312 = vpop.f32.mrb[0].mxu0
      %v6313 = vadd.f32 %v6140, %v6312
      %6314 = vmatprep.mubr.bf16.mxu0 %v2975
      %6315 = vmatmul.mubr.bf16.gmra.mrb[0].mxu0 %v2974
      %v6316 = vpop.f32.mrb[0].mxu0
      %v6317 = vadd.f32 %v6144, %v6316
      %v6318 = vpop.f32.mrb[0].mxu0
      %v6319 = vadd.f32 %v6146, %v6318
      %v6320 = vpop.f32.mrb[0].mxu0
      %v6321 = vadd.f32 %v6148, %v6320
      %v6322 = vpop.f32.mrb[0].mxu0
      %v6323 = vadd.f32 %v6150, %v6322
      %6324 = vmatprep.mubr.bf16.mxu0 %v2993
      %6325 = vmatmul.mubr.bf16.gmra.mrb[0].mxu0 %v2992
      %v6326 = vpop.f32.mrb[0].mxu0
      %v6327 = vadd.f32 %v6154, %v6326
      %v6328 = vpop.f32.mrb[0].mxu0
      %v6329 = vadd.f32 %v6156, %v6328
      %v6330 = vpop.f32.mrb[0].mxu0
      %v6331 = vadd.f32 %v6158, %v6330
      %v6332 = vpop.f32.mrb[0].mxu0
      %v6333 = vadd.f32 %v6160, %v6332
      %6334 = vmatprep.mubr.bf16.mxu0 %v3011
      %6335 = vmatmul.mubr.bf16.gmra.mrb[0].mxu0 %v3010
      %v6336 = vpop.f32.mrb[0].mxu0
      %v6337 = vadd.f32 %v6164, %v6336
      %v6338 = vpop.f32.mrb[0].mxu0
      %v6339 = vadd.f32 %v6166, %v6338
      %v6340 = vpop.f32.mrb[0].mxu0
      %v6341 = vadd.f32 %v6168, %v6340
      %v6342 = vpop.f32.mrb[0].mxu0
      %v6343 = vadd.f32 %v6170, %v6342
      %6344 = vmatprep.mubr.bf16.mxu0 %v3029
      %6345 = vmatmul.mubr.bf16.gmra.mrb[0].mxu0 %v3028
      %v6346 = vpop.f32.mrb[0].mxu0
      %v6347 = vadd.f32 %v6174, %v6346
      %v6348 = vpop.f32.mrb[0].mxu0
      %v6349 = vadd.f32 %v6176, %v6348
      %v6350 = vpop.f32.mrb[0].mxu0
      %v6351 = vadd.f32 %v6178, %v6350
      %v6352 = vpop.f32.mrb[0].mxu0
      %v6353 = vadd.f32 %v6180, %v6352
      %6354 = vmatprep.mubr.bf16.mxu0 %v3047
      %6355 = vmatmul.mubr.bf16.gmra.mrb[0].mxu0 %v3046
      %v6356 = vpop.f32.mrb[0].mxu0
      %v6357 = vadd.f32 %v6184, %v6356
      %v6358 = vpop.f32.mrb[0].mxu0
      %v6359 = vadd.f32 %v6186, %v6358
      %v6360 = vpop.f32.mrb[0].mxu0
      %v6361 = vadd.f32 %v6188, %v6360
      %v6362 = vpop.f32.mrb[0].mxu0
      %v6363 = vadd.f32 %v6190, %v6362
      %6364 = vmatprep.mubr.bf16.mxu0 %v3065
      %6365 = vmatmul.mubr.bf16.gmra.mrb[0].mxu0 %v3064
      %v6366 = vpop.f32.mrb[0].mxu0
      %v6367 = vadd.f32 %v6194, %v6366
      %v6368 = vpop.f32.mrb[0].mxu0
      %v6369 = vadd.f32 %v6196, %v6368
      %v6370 = vpop.f32.mrb[0].mxu0
      %v6371 = vadd.f32 %v6198, %v6370
      %v6372 = vpop.f32.mrb[0].mxu0
      %v6373 = vadd.f32 %v6200, %v6372
      %6374 = vmatprep.mubr.bf16.mxu0 %v3083
      %6375 = vmatmul.mubr.bf16.gmra.mrb[0].mxu0 %v3082
      %v6376 = vpop.f32.mrb[0].mxu0
      %v6377 = vadd.f32 %v6204, %v6376
      %v6378 = vpop.f32.mrb[0].mxu0
      %v6379 = vadd.f32 %v6206, %v6378
      %v6380 = vpop.f32.mrb[0].mxu0
      %v6381 = vadd.f32 %v6208, %v6380
      %v6382 = vpop.f32.mrb[0].mxu0
      %v6383 = vadd.f32 %v6210, %v6382
      %6384 = vmatprep.mubr.bf16.mxu0 %v3101
      %6385 = vmatmul.mubr.bf16.gmra.mrb[0].mxu0 %v3100
      %v6386 = vpop.f32.mrb[0].mxu0
      %v6387 = vadd.f32 %v6214, %v6386
      %v6388 = vpop.f32.mrb[0].mxu0
      %v6389 = vadd.f32 %v6216, %v6388
      %v6390 = vpop.f32.mrb[0].mxu0
      %v6391 = vadd.f32 %v6218, %v6390
      %v6392 = vpop.f32.mrb[0].mxu0
      %v6393 = vadd.f32 %v6220, %v6392
      %6394 = vmatprep.mubr.bf16.mxu0 %v3119
      %6395 = vmatmul.mubr.bf16.gmra.mrb[0].mxu0 %v3118
      %v6396 = vpop.f32.mrb[0].mxu0
      %v6397 = vadd.f32 %v6224, %v6396
      %v6398 = vpop.f32.mrb[0].mxu0
      %v6399 = vadd.f32 %v6226, %v6398
      %v6400 = vpop.f32.mrb[0].mxu0
      %v6401 = vadd.f32 %v6228, %v6400
      %v6402 = vpop.f32.mrb[0].mxu0
      %v6403 = vadd.f32 %v6230, %v6402
      %6404 = vdwg.mxu0
      %s6405 = sld [smem:[#allocation6 + %s21]]
      %vm6406 = vcmp.ge.f32.partialorder %v6267, 0.0
      %vm6407 = vcmp.ge.f32.partialorder %v6269, 0.0
      %vm6408 = vcmp.ge.f32.partialorder %v6271, 0.0
      %vm6409 = vcmp.ge.f32.partialorder %v6273, 0.0
      %vm6410 = vcmp.ge.f32.partialorder %v6277, 0.0
      %vm6411 = vcmp.ge.f32.partialorder %v6279, 0.0
      %vm6412 = vcmp.ge.f32.partialorder %v6281, 0.0
      %vm6413 = vcmp.ge.f32.partialorder %v6283, 0.0
      %vm6414 = vcmp.ge.f32.partialorder %v6287, 0.0
      %vm6415 = vcmp.ge.f32.partialorder %v6289, 0.0
      %vm6416 = vcmp.ge.f32.partialorder %v6291, 0.0
      %vm6417 = vcmp.ge.f32.partialorder %v6293, 0.0
      %vm6418 = vcmp.ge.f32.partialorder %v6297, 0.0
      %vm6419 = vcmp.ge.f32.partialorder %v6299, 0.0
      %vm6420 = vcmp.ge.f32.partialorder %v6301, 0.0
      %vm6421 = vcmp.ge.f32.partialorder %v6303, 0.0
      %vm6422 = vcmp.ge.f32.partialorder %v6307, 0.0
      %vm6423 = vcmp.ge.f32.partialorder %v6309, 0.0
      %vm6424 = vcmp.ge.f32.partialorder %v6311, 0.0
      %vm6425 = vcmp.ge.f32.partialorder %v6313, 0.0
      %vm6426 = vcmp.ge.f32.partialorder %v6317, 0.0
      %vm6427 = vcmp.ge.f32.partialorder %v6319, 0.0
      %vm6428 = vcmp.ge.f32.partialorder %v6321, 0.0
      %vm6429 = vcmp.ge.f32.partialorder %v6323, 0.0
      %vm6430 = vcmp.ge.f32.partialorder %v6327, 0.0
      %vm6431 = vcmp.ge.f32.partialorder %v6329, 0.0
      %vm6432 = vcmp.ge.f32.partialorder %v6331, 0.0
      %vm6433 = vcmp.ge.f32.partialorder %v6333, 0.0
      %vm6434 = vcmp.ge.f32.partialorder %v6337, 0.0
      %vm6435 = vcmp.ge.f32.partialorder %v6339, 0.0
      %vm6436 = vcmp.ge.f32.partialorder %v6341, 0.0
      %vm6437 = vcmp.ge.f32.partialorder %v6343, 0.0
      %vm6438 = vcmp.ge.f32.partialorder %v6347, 0.0
      %vm6439 = vcmp.ge.f32.partialorder %v6349, 0.0
      %vm6440 = vcmp.ge.f32.partialorder %v6351, 0.0
      %vm6441 = vcmp.ge.f32.partialorder %v6353, 0.0
      %vm6442 = vcmp.ge.f32.partialorder %v6357, 0.0
      %vm6443 = vcmp.ge.f32.partialorder %v6359, 0.0
      %vm6444 = vcmp.ge.f32.partialorder %v6361, 0.0
      %vm6445 = vcmp.ge.f32.partialorder %v6363, 0.0
      %vm6446 = vcmp.ge.f32.partialorder %v6367, 0.0
      %vm6447 = vcmp.ge.f32.partialorder %v6369, 0.0
      %vm6448 = vcmp.ge.f32.partialorder %v6371, 0.0
      %vm6449 = vcmp.ge.f32.partialorder %v6373, 0.0
      %vm6450 = vcmp.ge.f32.partialorder %v6377, 0.0
      %vm6451 = vcmp.ge.f32.partialorder %v6379, 0.0
      %vm6452 = vcmp.ge.f32.partialorder %v6381, 0.0
      %vm6453 = vcmp.ge.f32.partialorder %v6383, 0.0
      %vm6454 = vcmp.ge.f32.partialorder %v6387, 0.0
      %vm6455 = vcmp.ge.f32.partialorder %v6389, 0.0
      %vm6456 = vcmp.ge.f32.partialorder %v6391, 0.0
      %vm6457 = vcmp.ge.f32.partialorder %v6393, 0.0
      %vm6458 = vcmp.ge.f32.partialorder %v6397, 0.0
      %vm6459 = vcmp.ge.f32.partialorder %v6399, 0.0
      %vm6460 = vcmp.ge.f32.partialorder %v6401, 0.0
      %vm6461 = vcmp.ge.f32.partialorder %v6403, 0.0
      %v6462 = vstv %s6405
      %v6463 = vmul.f32 %v6267, %v6462
      %v6464 = vmul.f32 %v6269, %v6462
      %v6465 = vmul.f32 %v6271, %v6462
      %v6466 = vmul.f32 %v6273, %v6462
      %v6467 = vmul.f32 %v6277, %v6462
      %v6468 = vmul.f32 %v6279, %v6462
      %v6469 = vmul.f32 %v6281, %v6462
      %v6470 = vmul.f32 %v6283, %v6462
      %v6471 = vmul.f32 %v6287, %v6462
      %v6472 = vmul.f32 %v6289, %v6462
      %v6473 = vmul.f32 %v6291, %v6462
      %v6474 = vmul.f32 %v6293, %v6462
      %v6475 = vmul.f32 %v6297, %v6462
      %v6476 = vmul.f32 %v6299, %v6462
      %v6477 = vmul.f32 %v6301, %v6462
      %v6478 = vmul.f32 %v6303, %v6462
      %v6479 = vmul.f32 %v6307, %v6462
      %v6480 = vmul.f32 %v6309, %v6462
      %v6481 = vmul.f32 %v6311, %v6462
      %v6482 = vmul.f32 %v6313, %v6462
      %v6483 = vmul.f32 %v6317, %v6462
      %v6484 = vmul.f32 %v6319, %v6462
      %v6485 = vmul.f32 %v6321, %v6462
      %v6486 = vmul.f32 %v6323, %v6462
      %v6487 = vmul.f32 %v6327, %v6462
      %v6488 = vmul.f32 %v6329, %v6462
      %v6489 = vmul.f32 %v6331, %v6462
      %v6490 = vmul.f32 %v6333, %v6462
      %v6491 = vmul.f32 %v6337, %v6462
      %v6492 = vmul.f32 %v6339, %v6462
      %v6493 = vmul.f32 %v6341, %v6462
      %v6494 = vmul.f32 %v6343, %v6462
      %v6495 = vmul.f32 %v6347, %v6462
      %v6496 = vmul.f32 %v6349, %v6462
      %v6497 = vmul.f32 %v6351, %v6462
      %v6498 = vmul.f32 %v6353, %v6462
      %v6499 = vmul.f32 %v6357, %v6462
      %v6500 = vmul.f32 %v6359, %v6462
      %v6501 = vmul.f32 %v6361, %v6462
      %v6502 = vmul.f32 %v6363, %v6462
      %v6503 = vmul.f32 %v6367, %v6462
      %v6504 = vmul.f32 %v6369, %v6462
      %v6505 = vmul.f32 %v6371, %v6462
      %v6506 = vmul.f32 %v6373, %v6462
      %v6507 = vmul.f32 %v6377, %v6462
      %v6508 = vmul.f32 %v6379, %v6462
      %v6509 = vmul.f32 %v6381, %v6462
      %v6510 = vmul.f32 %v6383, %v6462
      %v6511 = vmul.f32 %v6387, %v6462
      %v6512 = vmul.f32 %v6389, %v6462
      %v6513 = vmul.f32 %v6391, %v6462
      %v6514 = vmul.f32 %v6393, %v6462
      %v6515 = vmul.f32 %v6397, %v6462
      %v6516 = vmul.f32 %v6399, %v6462
      %v6517 = vmul.f32 %v6401, %v6462
      %v6518 = vmul.f32 %v6403, %v6462
      %v6519 = vsel %vm6406, %v6267, %v6463
      %v6520 = vsel %vm6407, %v6269, %v6464
      %v6521 = vsel %vm6408, %v6271, %v6465
      %v6522 = vsel %vm6409, %v6273, %v6466
      %v6523 = vsel %vm6410, %v6277, %v6467
      %v6524 = vsel %vm6411, %v6279, %v6468
      %v6525 = vsel %vm6412, %v6281, %v6469
      %v6526 = vsel %vm6413, %v6283, %v6470
      %v6527 = vsel %vm6414, %v6287, %v6471
      %v6528 = vsel %vm6415, %v6289, %v6472
      %v6529 = vsel %vm6416, %v6291, %v6473
      %v6530 = vsel %vm6417, %v6293, %v6474
      %v6531 = vsel %vm6418, %v6297, %v6475
      %v6532 = vsel %vm6419, %v6299, %v6476
      %v6533 = vsel %vm6420, %v6301, %v6477
      %v6534 = vsel %vm6421, %v6303, %v6478
      %v6535 = vsel %vm6422, %v6307, %v6479
      %v6536 = vsel %vm6423, %v6309, %v6480
      %v6537 = vsel %vm6424, %v6311, %v6481
      %v6538 = vsel %vm6425, %v6313, %v6482
      %v6539 = vsel %vm6426, %v6317, %v6483
      %v6540 = vsel %vm6427, %v6319, %v6484
      %v6541 = vsel %vm6428, %v6321, %v6485
      %v6542 = vsel %vm6429, %v6323, %v6486
      %v6543 = vsel %vm6430, %v6327, %v6487
      %v6544 = vsel %vm6431, %v6329, %v6488
      %v6545 = vsel %vm6432, %v6331, %v6489
      %v6546 = vsel %vm6433, %v6333, %v6490
      %v6547 = vsel %vm6434, %v6337, %v6491
      %v6548 = vsel %vm6435, %v6339, %v6492
      %v6549 = vsel %vm6436, %v6341, %v6493
      %v6550 = vsel %vm6437, %v6343, %v6494
      %v6551 = vsel %vm6438, %v6347, %v6495
      %v6552 = vsel %vm6439, %v6349, %v6496
      %v6553 = vsel %vm6440, %v6351, %v6497
      %v6554 = vsel %vm6441, %v6353, %v6498
      %v6555 = vsel %vm6442, %v6357, %v6499
      %v6556 = vsel %vm6443, %v6359, %v6500
      %v6557 = vsel %vm6444, %v6361, %v6501
      %v6558 = vsel %vm6445, %v6363, %v6502
      %v6559 = vsel %vm6446, %v6367, %v6503
      %v6560 = vsel %vm6447, %v6369, %v6504
      %v6561 = vsel %vm6448, %v6371, %v6505
      %v6562 = vsel %vm6449, %v6373, %v6506
      %v6563 = vsel %vm6450, %v6377, %v6507
      %v6564 = vsel %vm6451, %v6379, %v6508
      %v6565 = vsel %vm6452, %v6381, %v6509
      %v6566 = vsel %vm6453, %v6383, %v6510
      %v6567 = vsel %vm6454, %v6387, %v6511
      %v6568 = vsel %vm6455, %v6389, %v6512
      %v6569 = vsel %vm6456, %v6391, %v6513
      %v6570 = vsel %vm6457, %v6393, %v6514
      %v6571 = vsel %vm6458, %v6397, %v6515
      %v6572 = vsel %vm6459, %v6399, %v6516
      %v6573 = vsel %vm6460, %v6401, %v6517
      %v6574 = vsel %vm6461, %v6403, %v6518
      %p6575 = scmp.lt.s32.totalorder %s21, 0
      %s6576 = ssub.s32 0, %s21
      %s6577 = scalar_select %p6575, %s6576, %s21
      %s6578 = sand.u32 %s6577, 1
      %s6579 = ssub.s32 0, %s6578
      %s6580 = scalar_select %p6575, %s6579, %s6578
      %p6581 = scmp.ne.s32.totalorder %s6580, 0
      %p6582 = scmp.lt.s32.totalorder %s6580, 0
      %p6583 = pnand %p6582, %p6581
      %p6584 = pneg %p6583
      %s6585 = sadd.s32 %s6580, 2
      %s6586 = scalar_select %p6584, %s6585, %s6580
      %p6587 = scmp.eq.s32.totalorder %s6586, 1
      // Predicated region
      $region41: #{res_block_forward.1} parent=31 // pred_check
        %p6588 = pneg %p6587
      $region42: #{res_block_forward.1} parent=31 // pred_check_branch
        %6590 = sbr.rel (%p6588) target = $region44
      $region43: #{res_block_forward.1} parent=31 // pred_region
        %v6591 = vld [vmem:[#allocation3] sm:$0xff]
        %v6592 = vld [vmem:[#allocation3 + $0x8] sm:$0xff]
        %v6593 = vld [vmem:[#allocation3 + $0x10] sm:$0xff]
        %v6594 = vld [vmem:[#allocation3 + $0x18] sm:$0xff]
        %v6595 = vld [vmem:[#allocation3 + $0x20] sm:$0xff]
        %v6596 = vld [vmem:[#allocation3 + $0x28] sm:$0xff]
        %v6597 = vld [vmem:[#allocation3 + $0x30] sm:$0xff]
        %v6598 = vld [vmem:[#allocation3 + $0x38] sm:$0xff]
        %v6599 = vld [vmem:[#allocation3 + $0x40] sm:$0xff]
        %v6600 = vld [vmem:[#allocation3 + $0x48] sm:$0xff]
        %v6601 = vld [vmem:[#allocation3 + $0x50] sm:$0xff]
        %v6602 = vld [vmem:[#allocation3 + $0x58] sm:$0xff]
        %v6603 = vld [vmem:[#allocation3 + $0x60] sm:$0xff]
        %v6604 = vld [vmem:[#allocation3 + $0x68] sm:$0xff]
        %v6605 = vld [vmem:[#allocation3 + $0x70] sm:$0xff]
        %v6606 = vld [vmem:[#allocation3 + $0x78] sm:$0xff]
        %v6607 = vld [vmem:[#allocation3 + $0x80] sm:$0xff]
        %v6608 = vld [vmem:[#allocation3 + $0x88] sm:$0xff]
        %v6609 = vld [vmem:[#allocation3 + $0x90] sm:$0xff]
        %v6610 = vld [vmem:[#allocation3 + $0x98] sm:$0xff]
        %v6611 = vld [vmem:[#allocation3 + $0xa0] sm:$0xff]
        %v6612 = vld [vmem:[#allocation3 + $0xa8] sm:$0xff]
        %v6613 = vld [vmem:[#allocation3 + $0xb0] sm:$0xff]
        %v6614 = vld [vmem:[#allocation3 + $0xb8] sm:$0xff]
        %v6615 = vld [vmem:[#allocation3 + $0xc0] sm:$0xff]
        %v6616 = vld [vmem:[#allocation3 + $0xc8] sm:$0xff]
        %v6617 = vld [vmem:[#allocation3 + $0xd0] sm:$0xff]
        %v6618 = vld [vmem:[#allocation3 + $0xd8] sm:$0xff]
        %v6619 = vunpack.c.l.bf16 %v6591
        %v6620 = vunpack.c.l.bf16 %v6592
        %v6621 = vunpack.c.h.bf16 %v6591
        %v6622 = vunpack.c.h.bf16 %v6592
        %v6623 = vunpack.c.l.bf16 %v6593
        %v6624 = vunpack.c.l.bf16 %v6594
        %v6625 = vunpack.c.h.bf16 %v6593
        %v6626 = vunpack.c.h.bf16 %v6594
        %v6627 = vunpack.c.l.bf16 %v6595
        %v6628 = vunpack.c.l.bf16 %v6596
        %v6629 = vunpack.c.h.bf16 %v6595
        %v6630 = vunpack.c.h.bf16 %v6596
        %v6631 = vunpack.c.l.bf16 %v6597
        %v6632 = vunpack.c.l.bf16 %v6598
        %v6633 = vunpack.c.h.bf16 %v6597
        %v6634 = vunpack.c.h.bf16 %v6598
        %v6635 = vunpack.c.l.bf16 %v6599
        %v6636 = vunpack.c.l.bf16 %v6600
        %v6637 = vunpack.c.h.bf16 %v6599
        %v6638 = vunpack.c.h.bf16 %v6600
        %v6639 = vunpack.c.l.bf16 %v6601
        %v6640 = vunpack.c.l.bf16 %v6602
        %v6641 = vunpack.c.h.bf16 %v6601
        %v6642 = vunpack.c.h.bf16 %v6602
        %v6643 = vunpack.c.l.bf16 %v6603
        %v6644 = vunpack.c.l.bf16 %v6604
        %v6645 = vunpack.c.h.bf16 %v6603
        %v6646 = vunpack.c.h.bf16 %v6604
        %v6647 = vunpack.c.l.bf16 %v6605
        %v6648 = vunpack.c.l.bf16 %v6606
        %v6649 = vunpack.c.h.bf16 %v6605
        %v6650 = vunpack.c.h.bf16 %v6606
        %v6651 = vunpack.c.l.bf16 %v6607
        %v6652 = vunpack.c.l.bf16 %v6608
        %v6653 = vunpack.c.h.bf16 %v6607
        %v6654 = vunpack.c.h.bf16 %v6608
        %v6655 = vunpack.c.l.bf16 %v6609
        %v6656 = vunpack.c.l.bf16 %v6610
        %v6657 = vunpack.c.h.bf16 %v6609
        %v6658 = vunpack.c.h.bf16 %v6610
        %v6659 = vunpack.c.l.bf16 %v6611
        %v6660 = vunpack.c.l.bf16 %v6612
        %v6661 = vunpack.c.h.bf16 %v6611
        %v6662 = vunpack.c.h.bf16 %v6612
        %v6663 = vunpack.c.l.bf16 %v6613
        %v6664 = vunpack.c.l.bf16 %v6614
        %v6665 = vunpack.c.h.bf16 %v6613
        %v6666 = vunpack.c.h.bf16 %v6614
        %v6667 = vunpack.c.l.bf16 %v6615
        %v6668 = vunpack.c.l.bf16 %v6616
        %v6669 = vunpack.c.h.bf16 %v6615
        %v6670 = vunpack.c.h.bf16 %v6616
        %v6671 = vunpack.c.l.bf16 %v6617
        %v6672 = vunpack.c.l.bf16 %v6618
        %v6673 = vunpack.c.h.bf16 %v6617
        %v6674 = vunpack.c.h.bf16 %v6618
        %v6675 = vadd.f32 %v6519, %v6619
        %v6676 = vadd.f32 %v6520, %v6620
        %v6677 = vadd.f32 %v6521, %v6621
        %v6678 = vadd.f32 %v6522, %v6622
        %v6679 = vadd.f32 %v6523, %v6623
        %v6680 = vadd.f32 %v6524, %v6624
        %v6681 = vadd.f32 %v6525, %v6625
        %v6682 = vadd.f32 %v6526, %v6626
        %v6683 = vadd.f32 %v6527, %v6627
        %v6684 = vadd.f32 %v6528, %v6628
        %v6685 = vadd.f32 %v6529, %v6629
        %v6686 = vadd.f32 %v6530, %v6630
        %v6687 = vadd.f32 %v6531, %v6631
        %v6688 = vadd.f32 %v6532, %v6632
        %v6689 = vadd.f32 %v6533, %v6633
        %v6690 = vadd.f32 %v6534, %v6634
        %v6691 = vadd.f32 %v6535, %v6635
        %v6692 = vadd.f32 %v6536, %v6636
        %v6693 = vadd.f32 %v6537, %v6637
        %v6694 = vadd.f32 %v6538, %v6638
        %v6695 = vadd.f32 %v6539, %v6639
        %v6696 = vadd.f32 %v6540, %v6640
        %v6697 = vadd.f32 %v6541, %v6641
        %v6698 = vadd.f32 %v6542, %v6642
        %v6699 = vadd.f32 %v6543, %v6643
        %v6700 = vadd.f32 %v6544, %v6644
        %v6701 = vadd.f32 %v6545, %v6645
        %v6702 = vadd.f32 %v6546, %v6646
        %v6703 = vadd.f32 %v6547, %v6647
        %v6704 = vadd.f32 %v6548, %v6648
        %v6705 = vadd.f32 %v6549, %v6649
        %v6706 = vadd.f32 %v6550, %v6650
        %v6707 = vadd.f32 %v6551, %v6651
        %v6708 = vadd.f32 %v6552, %v6652
        %v6709 = vadd.f32 %v6553, %v6653
        %v6710 = vadd.f32 %v6554, %v6654
        %v6711 = vadd.f32 %v6555, %v6655
        %v6712 = vadd.f32 %v6556, %v6656
        %v6713 = vadd.f32 %v6557, %v6657
        %v6714 = vadd.f32 %v6558, %v6658
        %v6715 = vadd.f32 %v6559, %v6659
        %v6716 = vadd.f32 %v6560, %v6660
        %v6717 = vadd.f32 %v6561, %v6661
        %v6718 = vadd.f32 %v6562, %v6662
        %v6719 = vadd.f32 %v6563, %v6663
        %v6720 = vadd.f32 %v6564, %v6664
        %v6721 = vadd.f32 %v6565, %v6665
        %v6722 = vadd.f32 %v6566, %v6666
        %v6723 = vadd.f32 %v6567, %v6667
        %v6724 = vadd.f32 %v6568, %v6668
        %v6725 = vadd.f32 %v6569, %v6669
        %v6726 = vadd.f32 %v6570, %v6670
        %v6727 = vadd.f32 %v6571, %v6671
        %v6728 = vadd.f32 %v6572, %v6672
        %v6729 = vadd.f32 %v6573, %v6673
        %v6730 = vadd.f32 %v6574, %v6674
        %v6731 = vld [vmem:[%s3] sm:$0xff]
        %v6732 = vld [vmem:[%s3 + $0x8] sm:$0xff]
        %v6733 = vld [vmem:[%s3 + $0x10] sm:$0xff]
        %v6734 = vld [vmem:[%s3 + $0x18] sm:$0xff]
        %v6735 = vld [vmem:[%s3 + $0x20] sm:$0xff]
        %v6736 = vld [vmem:[%s3 + $0x28] sm:$0xff]
        %v6737 = vld [vmem:[%s3 + $0x30] sm:$0xff]
        %v6738 = vld [vmem:[%s3 + $0x38] sm:$0xff]
        %v6739 = vld [vmem:[%s3 + $0x40] sm:$0xff]
        %v6740 = vld [vmem:[%s3 + $0x48] sm:$0xff]
        %v6741 = vld [vmem:[%s3 + $0x50] sm:$0xff]
        %v6742 = vld [vmem:[%s3 + $0x58] sm:$0xff]
        %v6743 = vld [vmem:[%s3 + $0x60] sm:$0xff]
        %v6744 = vld [vmem:[%s3 + $0x68] sm:$0xff]
        %v6745 = vld [vmem:[%s3 + $0x70] sm:$0xff]
        %v6746 = vld [vmem:[%s3 + $0x78] sm:$0xff]
        %v6747 = vld [vmem:[%s3 + $0x80] sm:$0xff]
        %v6748 = vld [vmem:[%s3 + $0x88] sm:$0xff]
        %v6749 = vld [vmem:[%s3 + $0x90] sm:$0xff]
        %v6750 = vld [vmem:[%s3 + $0x98] sm:$0xff]
        %v6751 = vld [vmem:[%s3 + $0xa0] sm:$0xff]
        %v6752 = vld [vmem:[%s3 + $0xa8] sm:$0xff]
        %v6753 = vld [vmem:[%s3 + $0xb0] sm:$0xff]
        %v6754 = vld [vmem:[%s3 + $0xb8] sm:$0xff]
        %v6755 = vld [vmem:[%s3 + $0xc0] sm:$0xff]
        %v6756 = vld [vmem:[%s3 + $0xc8] sm:$0xff]
        %v6757 = vld [vmem:[%s3 + $0xd0] sm:$0xff]
        %v6758 = vld [vmem:[%s3 + $0xd8] sm:$0xff]
        %v6759 = vld [vmem:[%s3 + $0xe0] sm:$0xff]
        %v6760 = vld [vmem:[%s3 + $0xe8] sm:$0xff]
        %v6761 = vld [vmem:[%s3 + $0xf0] sm:$0xff]
        %v6762 = vld [vmem:[%s3 + $0xf8] sm:$0xff]
        %v6763 = vld [vmem:[%s3 + $0x100] sm:$0xff]
        %v6764 = vld [vmem:[%s3 + $0x108] sm:$0xff]
        %v6765 = vld [vmem:[%s3 + $0x110] sm:$0xff]
        %v6766 = vld [vmem:[%s3 + $0x118] sm:$0xff]
        %v6767 = vld [vmem:[%s3 + $0x120] sm:$0xff]
        %v6768 = vld [vmem:[%s3 + $0x128] sm:$0xff]
        %v6769 = vld [vmem:[%s3 + $0x130] sm:$0xff]
        %v6770 = vld [vmem:[%s3 + $0x138] sm:$0xff]
        %v6771 = vld [vmem:[%s3 + $0x140] sm:$0xff]
        %v6772 = vld [vmem:[%s3 + $0x148] sm:$0xff]
        %v6773 = vld [vmem:[%s3 + $0x150] sm:$0xff]
        %v6774 = vld [vmem:[%s3 + $0x158] sm:$0xff]
        %v6775 = vld [vmem:[%s3 + $0x160] sm:$0xff]
        %v6776 = vld [vmem:[%s3 + $0x168] sm:$0xff]
        %v6777 = vld [vmem:[%s3 + $0x170] sm:$0xff]
        %v6778 = vld [vmem:[%s3 + $0x178] sm:$0xff]
        %v6779 = vld [vmem:[%s3 + $0x180] sm:$0xff]
        %v6780 = vld [vmem:[%s3 + $0x188] sm:$0xff]
        %v6781 = vld [vmem:[%s3 + $0x190] sm:$0xff]
        %v6782 = vld [vmem:[%s3 + $0x198] sm:$0xff]
        %v6783 = vld [vmem:[%s3 + $0x1a0] sm:$0xff]
        %v6784 = vld [vmem:[%s3 + $0x1a8] sm:$0xff]
        %v6785 = vld [vmem:[%s3 + $0x1b0] sm:$0xff]
        %v6786 = vld [vmem:[%s3 + $0x1b8] sm:$0xff]
        %v6787 = vmul.f32 %v6675, %v6731
        %v6788 = vmul.f32 %v6676, %v6732
        %v6789 = vmul.f32 %v6677, %v6733
        %v6790 = vmul.f32 %v6678, %v6734
        %v6791 = vmul.f32 %v6679, %v6735
        %v6792 = vmul.f32 %v6680, %v6736
        %v6793 = vmul.f32 %v6681, %v6737
        %v6794 = vmul.f32 %v6682, %v6738
        %v6795 = vmul.f32 %v6683, %v6739
        %v6796 = vmul.f32 %v6684, %v6740
        %v6797 = vmul.f32 %v6685, %v6741
        %v6798 = vmul.f32 %v6686, %v6742
        %v6799 = vmul.f32 %v6687, %v6743
        %v6800 = vmul.f32 %v6688, %v6744
        %v6801 = vmul.f32 %v6689, %v6745
        %v6802 = vmul.f32 %v6690, %v6746
        %v6803 = vmul.f32 %v6691, %v6747
        %v6804 = vmul.f32 %v6692, %v6748
        %v6805 = vmul.f32 %v6693, %v6749
        %v6806 = vmul.f32 %v6694, %v6750
        %v6807 = vmul.f32 %v6695, %v6751
        %v6808 = vmul.f32 %v6696, %v6752
        %v6809 = vmul.f32 %v6697, %v6753
        %v6810 = vmul.f32 %v6698, %v6754
        %v6811 = vmul.f32 %v6699, %v6755
        %v6812 = vmul.f32 %v6700, %v6756
        %v6813 = vmul.f32 %v6701, %v6757
        %v6814 = vmul.f32 %v6702, %v6758
        %v6815 = vmul.f32 %v6703, %v6759
        %v6816 = vmul.f32 %v6704, %v6760
        %v6817 = vmul.f32 %v6705, %v6761
        %v6818 = vmul.f32 %v6706, %v6762
        %v6819 = vmul.f32 %v6707, %v6763
        %v6820 = vmul.f32 %v6708, %v6764
        %v6821 = vmul.f32 %v6709, %v6765
        %v6822 = vmul.f32 %v6710, %v6766
        %v6823 = vmul.f32 %v6711, %v6767
        %v6824 = vmul.f32 %v6712, %v6768
        %v6825 = vmul.f32 %v6713, %v6769
        %v6826 = vmul.f32 %v6714, %v6770
        %v6827 = vmul.f32 %v6715, %v6771
        %v6828 = vmul.f32 %v6716, %v6772
        %v6829 = vmul.f32 %v6717, %v6773
        %v6830 = vmul.f32 %v6718, %v6774
        %v6831 = vmul.f32 %v6719, %v6775
        %v6832 = vmul.f32 %v6720, %v6776
        %v6833 = vmul.f32 %v6721, %v6777
        %v6834 = vmul.f32 %v6722, %v6778
        %v6835 = vmul.f32 %v6723, %v6779
        %v6836 = vmul.f32 %v6724, %v6780
        %v6837 = vmul.f32 %v6725, %v6781
        %v6838 = vmul.f32 %v6726, %v6782
        %v6839 = vmul.f32 %v6727, %v6783
        %v6840 = vmul.f32 %v6728, %v6784
        %v6841 = vmul.f32 %v6729, %v6785
        %v6842 = vmul.f32 %v6730, %v6786
        %v6843 = vpack.c.bf16 %v6789, %v6787
        %v6844 = vpack.c.bf16 %v6790, %v6788
        %v6845 = vpack.c.bf16 %v6793, %v6791
        %v6846 = vpack.c.bf16 %v6794, %v6792
        %v6847 = vpack.c.bf16 %v6797, %v6795
        %v6848 = vpack.c.bf16 %v6798, %v6796
        %v6849 = vpack.c.bf16 %v6801, %v6799
        %v6850 = vpack.c.bf16 %v6802, %v6800
        %v6851 = vpack.c.bf16 %v6805, %v6803
        %v6852 = vpack.c.bf16 %v6806, %v6804
        %v6853 = vpack.c.bf16 %v6809, %v6807
        %v6854 = vpack.c.bf16 %v6810, %v6808
        %v6855 = vpack.c.bf16 %v6813, %v6811
        %v6856 = vpack.c.bf16 %v6814, %v6812
        %v6857 = vpack.c.bf16 %v6817, %v6815
        %v6858 = vpack.c.bf16 %v6818, %v6816
        %v6859 = vpack.c.bf16 %v6821, %v6819
        %v6860 = vpack.c.bf16 %v6822, %v6820
        %v6861 = vpack.c.bf16 %v6825, %v6823
        %v6862 = vpack.c.bf16 %v6826, %v6824
        %v6863 = vpack.c.bf16 %v6829, %v6827
        %v6864 = vpack.c.bf16 %v6830, %v6828
        %v6865 = vpack.c.bf16 %v6833, %v6831
        %v6866 = vpack.c.bf16 %v6834, %v6832
        %v6867 = vpack.c.bf16 %v6837, %v6835
        %v6868 = vpack.c.bf16 %v6838, %v6836
        %v6869 = vpack.c.bf16 %v6841, %v6839
        %v6870 = vpack.c.bf16 %v6842, %v6840
        %6871 = vst [vmem:[#allocation2 + $0x10] sm:$0xff] %v6843
        %6872 = vst [vmem:[#allocation2 + $0x18] sm:$0xff] %v6844
        %6873 = vst [vmem:[#allocation2 + $0x20] sm:$0xff] %v6845
        %6874 = vst [vmem:[#allocation2 + $0x28] sm:$0xff] %v6846
        %6875 = vst [vmem:[#allocation2 + $0x30] sm:$0xff] %v6847
        %6876 = vst [vmem:[#allocation2 + $0x38] sm:$0xff] %v6848
        %6877 = vst [vmem:[#allocation2 + $0x40] sm:$0xff] %v6849
        %6878 = vst [vmem:[#allocation2 + $0x48] sm:$0xff] %v6850
        %6879 = vst [vmem:[#allocation2 + $0x50] sm:$0xff] %v6851
        %6880 = vst [vmem:[#allocation2 + $0x58] sm:$0xff] %v6852
        %6881 = vst [vmem:[#allocation2 + $0x60] sm:$0xff] %v6853
        %6882 = vst [vmem:[#allocation2 + $0x68] sm:$0xff] %v6854
        %6883 = vst [vmem:[#allocation2 + $0x70] sm:$0xff] %v6855
        %6884 = vst [vmem:[#allocation2 + $0x78] sm:$0xff] %v6856
        %6885 = vst [vmem:[#allocation2 + $0x80] sm:$0xff] %v6857
        %6886 = vst [vmem:[#allocation2 + $0x88] sm:$0xff] %v6858
        %6887 = vst [vmem:[#allocation2 + $0x90] sm:$0xff] %v6859
        %6888 = vst [vmem:[#allocation2 + $0x98] sm:$0xff] %v6860
        %6889 = vst [vmem:[#allocation2 + $0xa0] sm:$0xff] %v6861
        %6890 = vst [vmem:[#allocation2 + $0xa8] sm:$0xff] %v6862
        %6891 = vst [vmem:[#allocation2 + $0xb0] sm:$0xff] %v6863
        %6892 = vst [vmem:[#allocation2 + $0xb8] sm:$0xff] %v6864
        %6893 = vst [vmem:[#allocation2 + $0xc0] sm:$0xff] %v6865
        %6894 = vst [vmem:[#allocation2 + $0xc8] sm:$0xff] %v6866
        %6895 = vst [vmem:[#allocation2 + $0xd0] sm:$0xff] %v6867
        %6896 = vst [vmem:[#allocation2 + $0xd8] sm:$0xff] %v6868
        %6897 = vst [vmem:[#allocation2 + $0xe0] sm:$0xff] %v6869
        %6898 = vst [vmem:[#allocation2 + $0xe8] sm:$0xff] %v6870
      $region44: #{res_block_forward.1} parent=31 // pred_fallthru
        _
      %p6899 = scmp.eq.s32.totalorder %s6586, 0
      %p6900 = scmp.ne.s32.totalorder %s21, 8
      %p6901 = pnand %p6899, %p6900
      %p6902 = pneg %p6901
      // Predicated region
      $region45: #{res_block_forward.1} parent=31 // pred_check
        _
      $region46: #{res_block_forward.1} parent=31 // pred_check_branch
        %6904 = sbr.rel (%p6901) target = $region48
      $region47: #{res_block_forward.1} parent=31 // pred_region
        %v6905 = vld [vmem:[%s3] sm:$0xff]
        %v6906 = vld [vmem:[%s3 + $0x8] sm:$0xff]
        %v6907 = vld [vmem:[%s3 + $0x10] sm:$0xff]
        %v6908 = vld [vmem:[%s3 + $0x18] sm:$0xff]
        %v6909 = vld [vmem:[%s3 + $0x20] sm:$0xff]
        %v6910 = vld [vmem:[%s3 + $0x28] sm:$0xff]
        %v6911 = vld [vmem:[%s3 + $0x30] sm:$0xff]
        %v6912 = vld [vmem:[%s3 + $0x38] sm:$0xff]
        %v6913 = vld [vmem:[%s3 + $0x40] sm:$0xff]
        %v6914 = vld [vmem:[%s3 + $0x48] sm:$0xff]
        %v6915 = vld [vmem:[%s3 + $0x50] sm:$0xff]
        %v6916 = vld [vmem:[%s3 + $0x58] sm:$0xff]
        %v6917 = vld [vmem:[%s3 + $0x60] sm:$0xff]
        %v6918 = vld [vmem:[%s3 + $0x68] sm:$0xff]
        %v6919 = vld [vmem:[%s3 + $0x70] sm:$0xff]
        %v6920 = vld [vmem:[%s3 + $0x78] sm:$0xff]
        %v6921 = vld [vmem:[%s3 + $0x80] sm:$0xff]
        %v6922 = vld [vmem:[%s3 + $0x88] sm:$0xff]
        %v6923 = vld [vmem:[%s3 + $0x90] sm:$0xff]
        %v6924 = vld [vmem:[%s3 + $0x98] sm:$0xff]
        %v6925 = vld [vmem:[%s3 + $0xa0] sm:$0xff]
        %v6926 = vld [vmem:[%s3 + $0xa8] sm:$0xff]
        %v6927 = vld [vmem:[%s3 + $0xb0] sm:$0xff]
        %v6928 = vld [vmem:[%s3 + $0xb8] sm:$0xff]
        %v6929 = vld [vmem:[%s3 + $0xc0] sm:$0xff]
        %v6930 = vld [vmem:[%s3 + $0xc8] sm:$0xff]
        %v6931 = vld [vmem:[%s3 + $0xd0] sm:$0xff]
        %v6932 = vld [vmem:[%s3 + $0xd8] sm:$0xff]
        %v6933 = vld [vmem:[%s3 + $0xe0] sm:$0xff]
        %v6934 = vld [vmem:[%s3 + $0xe8] sm:$0xff]
        %v6935 = vld [vmem:[%s3 + $0xf0] sm:$0xff]
        %v6936 = vld [vmem:[%s3 + $0xf8] sm:$0xff]
        %v6937 = vld [vmem:[%s3 + $0x100] sm:$0xff]
        %v6938 = vld [vmem:[%s3 + $0x108] sm:$0xff]
        %v6939 = vld [vmem:[%s3 + $0x110] sm:$0xff]
        %v6940 = vld [vmem:[%s3 + $0x118] sm:$0xff]
        %v6941 = vld [vmem:[%s3 + $0x120] sm:$0xff]
        %v6942 = vld [vmem:[%s3 + $0x128] sm:$0xff]
        %v6943 = vld [vmem:[%s3 + $0x130] sm:$0xff]
        %v6944 = vld [vmem:[%s3 + $0x138] sm:$0xff]
        %v6945 = vld [vmem:[%s3 + $0x140] sm:$0xff]
        %v6946 = vld [vmem:[%s3 + $0x148] sm:$0xff]
        %v6947 = vld [vmem:[%s3 + $0x150] sm:$0xff]
        %v6948 = vld [vmem:[%s3 + $0x158] sm:$0xff]
        %v6949 = vld [vmem:[%s3 + $0x160] sm:$0xff]
        %v6950 = vld [vmem:[%s3 + $0x168] sm:$0xff]
        %v6951 = vld [vmem:[%s3 + $0x170] sm:$0xff]
        %v6952 = vld [vmem:[%s3 + $0x178] sm:$0xff]
        %v6953 = vld [vmem:[%s3 + $0x180] sm:$0xff]
        %v6954 = vld [vmem:[%s3 + $0x188] sm:$0xff]
        %v6955 = vld [vmem:[%s3 + $0x190] sm:$0xff]
        %v6956 = vld [vmem:[%s3 + $0x198] sm:$0xff]
        %v6957 = vld [vmem:[%s3 + $0x1a0] sm:$0xff]
        %v6958 = vld [vmem:[%s3 + $0x1a8] sm:$0xff]
        %v6959 = vld [vmem:[%s3 + $0x1b0] sm:$0xff]
        %v6960 = vld [vmem:[%s3 + $0x1b8] sm:$0xff]
        %v6961 = vmul.f32 %v6519, %v6905
        %v6962 = vmul.f32 %v6520, %v6906
        %v6963 = vmul.f32 %v6521, %v6907
        %v6964 = vmul.f32 %v6522, %v6908
        %v6965 = vmul.f32 %v6523, %v6909
        %v6966 = vmul.f32 %v6524, %v6910
        %v6967 = vmul.f32 %v6525, %v6911
        %v6968 = vmul.f32 %v6526, %v6912
        %v6969 = vmul.f32 %v6527, %v6913
        %v6970 = vmul.f32 %v6528, %v6914
        %v6971 = vmul.f32 %v6529, %v6915
        %v6972 = vmul.f32 %v6530, %v6916
        %v6973 = vmul.f32 %v6531, %v6917
        %v6974 = vmul.f32 %v6532, %v6918
        %v6975 = vmul.f32 %v6533, %v6919
        %v6976 = vmul.f32 %v6534, %v6920
        %v6977 = vmul.f32 %v6535, %v6921
        %v6978 = vmul.f32 %v6536, %v6922
        %v6979 = vmul.f32 %v6537, %v6923
        %v6980 = vmul.f32 %v6538, %v6924
        %v6981 = vmul.f32 %v6539, %v6925
        %v6982 = vmul.f32 %v6540, %v6926
        %v6983 = vmul.f32 %v6541, %v6927
        %v6984 = vmul.f32 %v6542, %v6928
        %v6985 = vmul.f32 %v6543, %v6929
        %v6986 = vmul.f32 %v6544, %v6930
        %v6987 = vmul.f32 %v6545, %v6931
        %v6988 = vmul.f32 %v6546, %v6932
        %v6989 = vmul.f32 %v6547, %v6933
        %v6990 = vmul.f32 %v6548, %v6934
        %v6991 = vmul.f32 %v6549, %v6935
        %v6992 = vmul.f32 %v6550, %v6936
        %v6993 = vmul.f32 %v6551, %v6937
        %v6994 = vmul.f32 %v6552, %v6938
        %v6995 = vmul.f32 %v6553, %v6939
        %v6996 = vmul.f32 %v6554, %v6940
        %v6997 = vmul.f32 %v6555, %v6941
        %v6998 = vmul.f32 %v6556, %v6942
        %v6999 = vmul.f32 %v6557, %v6943
        %v7000 = vmul.f32 %v6558, %v6944
        %v7001 = vmul.f32 %v6559, %v6945
        %v7002 = vmul.f32 %v6560, %v6946
        %v7003 = vmul.f32 %v6561, %v6947
        %v7004 = vmul.f32 %v6562, %v6948
        %v7005 = vmul.f32 %v6563, %v6949
        %v7006 = vmul.f32 %v6564, %v6950
        %v7007 = vmul.f32 %v6565, %v6951
        %v7008 = vmul.f32 %v6566, %v6952
        %v7009 = vmul.f32 %v6567, %v6953
        %v7010 = vmul.f32 %v6568, %v6954
        %v7011 = vmul.f32 %v6569, %v6955
        %v7012 = vmul.f32 %v6570, %v6956
        %v7013 = vmul.f32 %v6571, %v6957
        %v7014 = vmul.f32 %v6572, %v6958
        %v7015 = vmul.f32 %v6573, %v6959
        %v7016 = vmul.f32 %v6574, %v6960
        %v7017 = vpack.c.bf16 %v6963, %v6961
        %v7018 = vpack.c.bf16 %v6964, %v6962
        %v7019 = vpack.c.bf16 %v6967, %v6965
        %v7020 = vpack.c.bf16 %v6968, %v6966
        %v7021 = vpack.c.bf16 %v6971, %v6969
        %v7022 = vpack.c.bf16 %v6972, %v6970
        %v7023 = vpack.c.bf16 %v6975, %v6973
        %v7024 = vpack.c.bf16 %v6976, %v6974
        %v7025 = vpack.c.bf16 %v6979, %v6977
        %v7026 = vpack.c.bf16 %v6980, %v6978
        %v7027 = vpack.c.bf16 %v6983, %v6981
        %v7028 = vpack.c.bf16 %v6984, %v6982
        %v7029 = vpack.c.bf16 %v6987, %v6985
        %v7030 = vpack.c.bf16 %v6988, %v6986
        %v7031 = vpack.c.bf16 %v6991, %v6989
        %v7032 = vpack.c.bf16 %v6992, %v6990
        %v7033 = vpack.c.bf16 %v6995, %v6993
        %v7034 = vpack.c.bf16 %v6996, %v6994
        %v7035 = vpack.c.bf16 %v6999, %v6997
        %v7036 = vpack.c.bf16 %v7000, %v6998
        %v7037 = vpack.c.bf16 %v7003, %v7001
        %v7038 = vpack.c.bf16 %v7004, %v7002
        %v7039 = vpack.c.bf16 %v7007, %v7005
        %v7040 = vpack.c.bf16 %v7008, %v7006
        %v7041 = vpack.c.bf16 %v7011, %v7009
        %v7042 = vpack.c.bf16 %v7012, %v7010
        %v7043 = vpack.c.bf16 %v7015, %v7013
        %v7044 = vpack.c.bf16 %v7016, %v7014
        %7045 = vst [vmem:[#allocation2 + $0x10] sm:$0xff] %v7017
        %7046 = vst [vmem:[#allocation2 + $0x18] sm:$0xff] %v7018
        %7047 = vst [vmem:[#allocation2 + $0x20] sm:$0xff] %v7019
        %7048 = vst [vmem:[#allocation2 + $0x28] sm:$0xff] %v7020
        %7049 = vst [vmem:[#allocation2 + $0x30] sm:$0xff] %v7021
        %7050 = vst [vmem:[#allocation2 + $0x38] sm:$0xff] %v7022
        %7051 = vst [vmem:[#allocation2 + $0x40] sm:$0xff] %v7023
        %7052 = vst [vmem:[#allocation2 + $0x48] sm:$0xff] %v7024
        %7053 = vst [vmem:[#allocation2 + $0x50] sm:$0xff] %v7025
        %7054 = vst [vmem:[#allocation2 + $0x58] sm:$0xff] %v7026
        %7055 = vst [vmem:[#allocation2 + $0x60] sm:$0xff] %v7027
        %7056 = vst [vmem:[#allocation2 + $0x68] sm:$0xff] %v7028
        %7057 = vst [vmem:[#allocation2 + $0x70] sm:$0xff] %v7029
        %7058 = vst [vmem:[#allocation2 + $0x78] sm:$0xff] %v7030
        %7059 = vst [vmem:[#allocation2 + $0x80] sm:$0xff] %v7031
        %7060 = vst [vmem:[#allocation2 + $0x88] sm:$0xff] %v7032
        %7061 = vst [vmem:[#allocation2 + $0x90] sm:$0xff] %v7033
        %7062 = vst [vmem:[#allocation2 + $0x98] sm:$0xff] %v7034
        %7063 = vst [vmem:[#allocation2 + $0xa0] sm:$0xff] %v7035
        %7064 = vst [vmem:[#allocation2 + $0xa8] sm:$0xff] %v7036
        %7065 = vst [vmem:[#allocation2 + $0xb0] sm:$0xff] %v7037
        %7066 = vst [vmem:[#allocation2 + $0xb8] sm:$0xff] %v7038
        %7067 = vst [vmem:[#allocation2 + $0xc0] sm:$0xff] %v7039
        %7068 = vst [vmem:[#allocation2 + $0xc8] sm:$0xff] %v7040
        %7069 = vst [vmem:[#allocation2 + $0xd0] sm:$0xff] %v7041
        %7070 = vst [vmem:[#allocation2 + $0xd8] sm:$0xff] %v7042
        %7071 = vst [vmem:[#allocation2 + $0xe0] sm:$0xff] %v7043
        %7072 = vst [vmem:[#allocation2 + $0xe8] sm:$0xff] %v7044
      $region48: #{res_block_forward.1} parent=31 // pred_fallthru
        _
      %p7073 = scmp.eq.s32.totalorder %s21, 8
      // Predicated region
      $region49: #{res_block_forward.1} parent=31 // pred_check
        %p7074 = pneg %p7073
      $region50: #{res_block_forward.1} parent=31 // pred_check_branch
        %7076 = sbr.rel (%p7074) target = $region52
      $region51: #{res_block_forward.1} parent=31 // pred_region
        %v7077 = vld [vmem:[%s1] sm:$0xff]
        %v7078 = vld [vmem:[%s1 + $0x8] sm:$0xff]
        %v7079 = vld [vmem:[%s1 + $0x10] sm:$0xff]
        %v7080 = vld [vmem:[%s1 + $0x18] sm:$0xff]
        %v7081 = vld [vmem:[%s1 + $0x20] sm:$0xff]
        %v7082 = vld [vmem:[%s1 + $0x28] sm:$0xff]
        %v7083 = vld [vmem:[%s1 + $0x30] sm:$0xff]
        %v7084 = vld [vmem:[%s1 + $0x38] sm:$0xff]
        %v7085 = vld [vmem:[%s1 + $0x40] sm:$0xff]
        %v7086 = vld [vmem:[%s1 + $0x48] sm:$0xff]
        %v7087 = vld [vmem:[%s1 + $0x50] sm:$0xff]
        %v7088 = vld [vmem:[%s1 + $0x58] sm:$0xff]
        %v7089 = vld [vmem:[%s1 + $0x60] sm:$0xff]
        %v7090 = vld [vmem:[%s1 + $0x68] sm:$0xff]
        %v7091 = vld [vmem:[%s1 + $0x70] sm:$0xff]
        %v7092 = vld [vmem:[%s1 + $0x78] sm:$0xff]
        %v7093 = vld [vmem:[%s1 + $0x80] sm:$0xff]
        %v7094 = vld [vmem:[%s1 + $0x88] sm:$0xff]
        %v7095 = vld [vmem:[%s1 + $0x90] sm:$0xff]
        %v7096 = vld [vmem:[%s1 + $0x98] sm:$0xff]
        %v7097 = vld [vmem:[%s1 + $0xa0] sm:$0xff]
        %v7098 = vld [vmem:[%s1 + $0xa8] sm:$0xff]
        %v7099 = vld [vmem:[%s1 + $0xb0] sm:$0xff]
        %v7100 = vld [vmem:[%s1 + $0xb8] sm:$0xff]
        %v7101 = vld [vmem:[%s1 + $0xc0] sm:$0xff]
        %v7102 = vld [vmem:[%s1 + $0xc8] sm:$0xff]
        %v7103 = vld [vmem:[%s1 + $0xd0] sm:$0xff]
        %v7104 = vld [vmem:[%s1 + $0xd8] sm:$0xff]
        %v7105 = vld [vmem:[%s1 + $0xe0] sm:$0xff]
        %v7106 = vld [vmem:[%s1 + $0xe8] sm:$0xff]
        %v7107 = vld [vmem:[%s1 + $0xf0] sm:$0xff]
        %v7108 = vld [vmem:[%s1 + $0xf8] sm:$0xff]
        %v7109 = vld [vmem:[%s1 + $0x100] sm:$0xff]
        %v7110 = vld [vmem:[%s1 + $0x108] sm:$0xff]
        %v7111 = vld [vmem:[%s1 + $0x110] sm:$0xff]
        %v7112 = vld [vmem:[%s1 + $0x118] sm:$0xff]
        %v7113 = vld [vmem:[%s1 + $0x120] sm:$0xff]
        %v7114 = vld [vmem:[%s1 + $0x128] sm:$0xff]
        %v7115 = vld [vmem:[%s1 + $0x130] sm:$0xff]
        %v7116 = vld [vmem:[%s1 + $0x138] sm:$0xff]
        %v7117 = vld [vmem:[%s1 + $0x140] sm:$0xff]
        %v7118 = vld [vmem:[%s1 + $0x148] sm:$0xff]
        %v7119 = vld [vmem:[%s1 + $0x150] sm:$0xff]
        %v7120 = vld [vmem:[%s1 + $0x158] sm:$0xff]
        %v7121 = vld [vmem:[%s1 + $0x160] sm:$0xff]
        %v7122 = vld [vmem:[%s1 + $0x168] sm:$0xff]
        %v7123 = vld [vmem:[%s1 + $0x170] sm:$0xff]
        %v7124 = vld [vmem:[%s1 + $0x178] sm:$0xff]
        %v7125 = vld [vmem:[%s1 + $0x180] sm:$0xff]
        %v7126 = vld [vmem:[%s1 + $0x188] sm:$0xff]
        %v7127 = vld [vmem:[%s1 + $0x190] sm:$0xff]
        %v7128 = vld [vmem:[%s1 + $0x198] sm:$0xff]
        %v7129 = vld [vmem:[%s1 + $0x1a0] sm:$0xff]
        %v7130 = vld [vmem:[%s1 + $0x1a8] sm:$0xff]
        %v7131 = vld [vmem:[%s1 + $0x1b0] sm:$0xff]
        %v7132 = vld [vmem:[%s1 + $0x1b8] sm:$0xff]
        %v7133 = vadd.f32 %v6519, %v7077
        %v7134 = vadd.f32 %v6520, %v7078
        %v7135 = vadd.f32 %v6521, %v7079
        %v7136 = vadd.f32 %v6522, %v7080
        %v7137 = vadd.f32 %v6523, %v7081
        %v7138 = vadd.f32 %v6524, %v7082
        %v7139 = vadd.f32 %v6525, %v7083
        %v7140 = vadd.f32 %v6526, %v7084
        %v7141 = vadd.f32 %v6527, %v7085
        %v7142 = vadd.f32 %v6528, %v7086
        %v7143 = vadd.f32 %v6529, %v7087
        %v7144 = vadd.f32 %v6530, %v7088
        %v7145 = vadd.f32 %v6531, %v7089
        %v7146 = vadd.f32 %v6532, %v7090
        %v7147 = vadd.f32 %v6533, %v7091
        %v7148 = vadd.f32 %v6534, %v7092
        %v7149 = vadd.f32 %v6535, %v7093
        %v7150 = vadd.f32 %v6536, %v7094
        %v7151 = vadd.f32 %v6537, %v7095
        %v7152 = vadd.f32 %v6538, %v7096
        %v7153 = vadd.f32 %v6539, %v7097
        %v7154 = vadd.f32 %v6540, %v7098
        %v7155 = vadd.f32 %v6541, %v7099
        %v7156 = vadd.f32 %v6542, %v7100
        %v7157 = vadd.f32 %v6543, %v7101
        %v7158 = vadd.f32 %v6544, %v7102
        %v7159 = vadd.f32 %v6545, %v7103
        %v7160 = vadd.f32 %v6546, %v7104
        %v7161 = vadd.f32 %v6547, %v7105
        %v7162 = vadd.f32 %v6548, %v7106
        %v7163 = vadd.f32 %v6549, %v7107
        %v7164 = vadd.f32 %v6550, %v7108
        %v7165 = vadd.f32 %v6551, %v7109
        %v7166 = vadd.f32 %v6552, %v7110
        %v7167 = vadd.f32 %v6553, %v7111
        %v7168 = vadd.f32 %v6554, %v7112
        %v7169 = vadd.f32 %v6555, %v7113
        %v7170 = vadd.f32 %v6556, %v7114
        %v7171 = vadd.f32 %v6557, %v7115
        %v7172 = vadd.f32 %v6558, %v7116
        %v7173 = vadd.f32 %v6559, %v7117
        %v7174 = vadd.f32 %v6560, %v7118
        %v7175 = vadd.f32 %v6561, %v7119
        %v7176 = vadd.f32 %v6562, %v7120
        %v7177 = vadd.f32 %v6563, %v7121
        %v7178 = vadd.f32 %v6564, %v7122
        %v7179 = vadd.f32 %v6565, %v7123
        %v7180 = vadd.f32 %v6566, %v7124
        %v7181 = vadd.f32 %v6567, %v7125
        %v7182 = vadd.f32 %v6568, %v7126
        %v7183 = vadd.f32 %v6569, %v7127
        %v7184 = vadd.f32 %v6570, %v7128
        %v7185 = vadd.f32 %v6571, %v7129
        %v7186 = vadd.f32 %v6572, %v7130
        %v7187 = vadd.f32 %v6573, %v7131
        %v7188 = vadd.f32 %v6574, %v7132
        %7189 = vst [vmem:[%s4] sm:$0xff] %v7133
        %7190 = vst [vmem:[%s4 + $0x8] sm:$0xff] %v7134
        %7191 = vst [vmem:[%s4 + $0x10] sm:$0xff] %v7135
        %7192 = vst [vmem:[%s4 + $0x18] sm:$0xff] %v7136
        %7193 = vst [vmem:[%s4 + $0x20] sm:$0xff] %v7137
        %7194 = vst [vmem:[%s4 + $0x28] sm:$0xff] %v7138
        %7195 = vst [vmem:[%s4 + $0x30] sm:$0xff] %v7139
        %7196 = vst [vmem:[%s4 + $0x38] sm:$0xff] %v7140
        %7197 = vst [vmem:[%s4 + $0x40] sm:$0xff] %v7141
        %7198 = vst [vmem:[%s4 + $0x48] sm:$0xff] %v7142
        %7199 = vst [vmem:[%s4 + $0x50] sm:$0xff] %v7143
        %7200 = vst [vmem:[%s4 + $0x58] sm:$0xff] %v7144
        %7201 = vst [vmem:[%s4 + $0x60] sm:$0xff] %v7145
        %7202 = vst [vmem:[%s4 + $0x68] sm:$0xff] %v7146
        %7203 = vst [vmem:[%s4 + $0x70] sm:$0xff] %v7147
        %7204 = vst [vmem:[%s4 + $0x78] sm:$0xff] %v7148
        %7205 = vst [vmem:[%s4 + $0x80] sm:$0xff] %v7149
        %7206 = vst [vmem:[%s4 + $0x88] sm:$0xff] %v7150
        %7207 = vst [vmem:[%s4 + $0x90] sm:$0xff] %v7151
        %7208 = vst [vmem:[%s4 + $0x98] sm:$0xff] %v7152
        %7209 = vst [vmem:[%s4 + $0xa0] sm:$0xff] %v7153
        %7210 = vst [vmem:[%s4 + $0xa8] sm:$0xff] %v7154
        %7211 = vst [vmem:[%s4 + $0xb0] sm:$0xff] %v7155
        %7212 = vst [vmem:[%s4 + $0xb8] sm:$0xff] %v7156
        %7213 = vst [vmem:[%s4 + $0xc0] sm:$0xff] %v7157
        %7214 = vst [vmem:[%s4 + $0xc8] sm:$0xff] %v7158
        %7215 = vst [vmem:[%s4 + $0xd0] sm:$0xff] %v7159
        %7216 = vst [vmem:[%s4 + $0xd8] sm:$0xff] %v7160
        %7217 = vst [vmem:[%s4 + $0xe0] sm:$0xff] %v7161
        %7218 = vst [vmem:[%s4 + $0xe8] sm:$0xff] %v7162
        %7219 = vst [vmem:[%s4 + $0xf0] sm:$0xff] %v7163
        %7220 = vst [vmem:[%s4 + $0xf8] sm:$0xff] %v7164
        %7221 = vst [vmem:[%s4 + $0x100] sm:$0xff] %v7165
        %7222 = vst [vmem:[%s4 + $0x108] sm:$0xff] %v7166
        %7223 = vst [vmem:[%s4 + $0x110] sm:$0xff] %v7167
        %7224 = vst [vmem:[%s4 + $0x118] sm:$0xff] %v7168
        %7225 = vst [vmem:[%s4 + $0x120] sm:$0xff] %v7169
        %7226 = vst [vmem:[%s4 + $0x128] sm:$0xff] %v7170
        %7227 = vst [vmem:[%s4 + $0x130] sm:$0xff] %v7171
        %7228 = vst [vmem:[%s4 + $0x138] sm:$0xff] %v7172
        %7229 = vst [vmem:[%s4 + $0x140] sm:$0xff] %v7173
        %7230 = vst [vmem:[%s4 + $0x148] sm:$0xff] %v7174
        %7231 = vst [vmem:[%s4 + $0x150] sm:$0xff] %v7175
        %7232 = vst [vmem:[%s4 + $0x158] sm:$0xff] %v7176
        %7233 = vst [vmem:[%s4 + $0x160] sm:$0xff] %v7177
        %7234 = vst [vmem:[%s4 + $0x168] sm:$0xff] %v7178
        %7235 = vst [vmem:[%s4 + $0x170] sm:$0xff] %v7179
        %7236 = vst [vmem:[%s4 + $0x178] sm:$0xff] %v7180
        %7237 = vst [vmem:[%s4 + $0x180] sm:$0xff] %v7181
        %7238 = vst [vmem:[%s4 + $0x188] sm:$0xff] %v7182
        %7239 = vst [vmem:[%s4 + $0x190] sm:$0xff] %v7183
        %7240 = vst [vmem:[%s4 + $0x198] sm:$0xff] %v7184
        %7241 = vst [vmem:[%s4 + $0x1a0] sm:$0xff] %v7185
        %7242 = vst [vmem:[%s4 + $0x1a8] sm:$0xff] %v7186
        %7243 = vst [vmem:[%s4 + $0x1b0] sm:$0xff] %v7187
        %7244 = vst [vmem:[%s4 + $0x1b8] sm:$0xff] %v7188
      $region52: #{res_block_forward.1} parent=31 // pred_fallthru
        _
      // Predicated region
      $region53: #{res_block_forward.1} parent=31 // pred_check
        %p7245 = pneg %p102
      $region54: #{res_block_forward.1} parent=31 // pred_check_branch
        %7247 = sbr.rel (%p7245) target = $region56
      $region55: #{res_block_forward.1} parent=31 // pred_region
        _
      $region56: #{res_block_forward.1} parent=31 // pred_fallthru
        _
      // Predicated region
      $region57: #{res_block_forward.1} parent=31 // pred_check
        %p7248 = pneg %p102
      $region58: #{res_block_forward.1} parent=31 // pred_check_branch
        %7250 = sbr.rel (%p7248) target = $region60
      $region59: #{res_block_forward.1} parent=31 // pred_region
        _
      $region60: #{res_block_forward.1} parent=31 // pred_fallthru
        _
    $region32: #{res_block_forward.1} parent=5 // pred_fallthru
      _
    %p7251 = scmp.le.s32.totalorder 2, %s16
    // Predicated region
    $region61: #{res_block_forward.1} parent=5 // pred_check
      %p7252 = pneg %p7251
    $region62: #{res_block_forward.1} parent=5 // pred_check_branch
      %7254 = sbr.rel (%p7252) target = $region64
    $region63: #{res_block_forward.1} parent=5 // pred_region
      %s7255 = ssub.s32 %s16, 2
    $region64: #{res_block_forward.1} parent=5 // pred_fallthru
      _
  $region6: #{res_block_forward.1} parent=0 // loop_footer
    %s20 = sadd.s32 1, %s16
  $region7: #{res_block_forward.1} parent=0 // loop_footer_branch
    %15 = sbr.rel target = $region3
  $region8: #{res_block_forward.1} parent=0 // loop_exit
    _

</llo_original>
